<compile_context>
chip_gen: v7x
topology: tpu7x:2x2x1
jax: 0.10.0
libtpu: 0.0.40
codegen_flags: <defaults>
</compile_context>

<pallas_src>
import functools

import jax
import jax.numpy as jnp
from jax.experimental import pallas as pl
from jax.experimental.pallas import tpu as pltpu

EPS = 1e-5


# --------------------------------------------------------------------------
# Kernel 1/2: (optional fused BN+ReLU of previous stage) -> Conv2d 3x3, plus
#             per-image per-channel sum / sum-of-squares for the next BN.
# --------------------------------------------------------------------------
def conv_stage_kernel(x_ref, w_ref, sc_ref, sh_ref, y_ref, st_ref, xp_ref, *,
                      apply_pre):
    """One image per grid step.

    x_ref : (1, H, W, Cin)      input tile (raw x, or previous conv output)
    w_ref : (3, 3*Cin, Cout)    weights, kh-major, (kw, ci) flattened into K
    sc_ref: (1, Cin)            folded BN scale of previous stage (gamma*inv_std)
    sh_ref: (1, Cin)            folded BN shift of previous stage
    y_ref : (1, H, W, Cout)     conv output tile
    st_ref: (1, 2, Cout)        [sum, sum_sq] over (H, W) of this image
    xp_ref: (H+2, W+2, Cin)     VMEM scratch, zero-padded halo buffer
    """
    _, H, W, Cin = x_ref.shape
    Cout = y_ref.shape[-1]

    x = x_ref[0]  # (H, W, Cin)
    if apply_pre:
        # Fused BN (previous stage) + ReLU applied on the fly.
        x = jnp.maximum(
            x * sc_ref[0][None, None, :] + sh_ref[0][None, None, :], 0.0)

    # Build zero-padded halo in VMEM (no wrapper-side jnp.pad / HBM round trip).
    xp_ref[...] = jnp.zeros(xp_ref.shape, jnp.float32)
    xp_ref[1:H + 1, 1:W + 1, :] = x

    # Conv: merge the kw taps into the contraction -> 3 MXU dots with K = 3*Cin.
    acc = jnp.zeros((H * W, Cout), jnp.float32)
    for kh in range(3):
        rows = xp_ref[kh:kh + H, :, :]  # (H, W+2, Cin)
        patch = jnp.concatenate(
            [rows[:, 0:W, :], rows[:, 1:W + 1, :], rows[:, 2:W + 2, :]],
            axis=-1)  # (H, W, 3*Cin)
        acc = acc + jnp.dot(patch.reshape(H * W, 3 * Cin), w_ref[kh],
                            preferred_element_type=jnp.float32)
    # NOTE: conv bias intentionally omitted — cancelled by training-mode BN.

    y_ref[0] = acc.reshape(H, W, Cout)

    # Single-pass BN statistics for this image (reduced across images in wrapper).
    s = jnp.sum(acc, axis=0, keepdims=True)          # (1, Cout)
    ss = jnp.sum(acc * acc, axis=0, keepdims=True)   # (1, Cout)
    st_ref[0] = jnp.concatenate([s, ss], axis=0)     # (2, Cout)


def conv_stage(x, w, scale, shift, *, apply_pre):
    """x: (N,H,W,Cin), w: (3, 3*Cin, Cout). Returns (y, per-image stats)."""
    N, H, W, Cin = x.shape
    Cout = w.shape[-1]
    kernel = functools.partial(conv_stage_kernel, apply_pre=apply_pre)
    return pl.pallas_call(
        kernel,
        out_shape=(
            jax.ShapeDtypeStruct((N, H, W, Cout), jnp.float32),
            jax.ShapeDtypeStruct((N, 2, Cout), jnp.float32),
        ),
        grid=(N,),
        in_specs=[
            pl.BlockSpec((1, H, W, Cin), lambda n: (n, 0, 0, 0)),
            pl.BlockSpec((3, 3 * Cin, Cout), lambda n: (0, 0, 0)),
            pl.BlockSpec((1, Cin), lambda n: (0, 0)),
            pl.BlockSpec((1, Cin), lambda n: (0, 0)),
        ],
        out_specs=(
            pl.BlockSpec((1, H, W, Cout), lambda n: (n, 0, 0, 0)),
            pl.BlockSpec((1, 2, Cout), lambda n: (n, 0, 0)),
        ),
        scratch_shapes=[pltpu.VMEM((H + 2, W + 2, Cin), jnp.float32)],
        compiler_params=pltpu.CompilerParams(
            dimension_semantics=("parallel",)),
    )(x, w, scale, shift)


# --------------------------------------------------------------------------
# Kernel 3: BN2 (folded affine) + identity shortcut add + ReLU.
# --------------------------------------------------------------------------
def bn_add_relu_kernel(y_ref, x_ref, sc_ref, sh_ref, o_ref):
    y = y_ref[0]
    sc = sc_ref[0][None, None, :]
    sh = sh_ref[0][None, None, :]
    o_ref[0] = jnp.maximum(y * sc + sh + x_ref[0], 0.0)


def bn_add_relu(y, x, scale, shift):
    N, H, W, C = y.shape
    return pl.pallas_call(
        bn_add_relu_kernel,
        out_shape=jax.ShapeDtypeStruct((N, H, W, C), jnp.float32),
        grid=(N,),
        in_specs=[
            pl.BlockSpec((1, H, W, C), lambda n: (n, 0, 0, 0)),
            pl.BlockSpec((1, H, W, C), lambda n: (n, 0, 0, 0)),
            pl.BlockSpec((1, C), lambda n: (0, 0)),
            pl.BlockSpec((1, C), lambda n: (0, 0)),
        ],
        out_specs=pl.BlockSpec((1, H, W, C), lambda n: (n, 0, 0, 0)),
        compiler_params=pltpu.CompilerParams(
            dimension_semantics=("parallel",)),
    )(y, x, scale, shift)


# --------------------------------------------------------------------------
# Wrapper
# --------------------------------------------------------------------------
def _bn_affine(stats, gamma, beta, count):
    """Fold training-mode BN into per-channel scale/shift from [sum, sum_sq]."""
    s = jnp.sum(stats[:, 0, :], axis=0)
    ss = jnp.sum(stats[:, 1, :], axis=0)
    mean = s / count
    var = ss / count - mean * mean
    inv_std = jax.lax.rsqrt(var + EPS)
    scale = gamma.reshape(-1) * inv_std
    shift = beta.reshape(-1) - mean * scale
    return scale.reshape(1, -1), shift.reshape(1, -1)


@jax.jit
def basic_block_forward(x_nchw, params):
    """Pallas implementation of BasicBlock.forward (stride=1, identity shortcut)."""
    x = jnp.transpose(x_nchw, (0, 2, 3, 1))  # NCHW -> NHWC
    N, H, W, C = x.shape
    count = N * H * W

    # (3, 3, Cin, Cout) -> (kh, kw*Cin, Cout): kw taps merged into matmul K.
    w1 = params["w1"].reshape(3, 3 * C, -1)
    w2 = params["w2"].reshape(3, 3 * C, -1)

    ones = jnp.ones((1, C), jnp.float32)
    zeros = jnp.zeros((1, C), jnp.float32)

    # Stage 1: conv1 + stats for bn1.
    y1, st1 = conv_stage(x, w1, ones, zeros, apply_pre=False)
    sc1, sh1 = _bn_affine(st1, params["g1"], params["be1"], count)

    # Stage 2: (bn1 + relu) fused into conv2's input path, conv2 + stats for bn2.
    y2, st2 = conv_stage(y1, w2, sc1, sh1, apply_pre=True)
    sc2, sh2 = _bn_affine(st2, params["g2"], params["be2"], count)

    # Stage 3: bn2 + identity shortcut + relu.
    out = bn_add_relu(y2, x, sc2, sh2)
    return jnp.transpose(out, (0, 3, 1, 2))  # NHWC -> NCHW


# --------------------------------------------------------------------------
# Pure-JAX reference (matches PyTorch semantics, incl. conv bias) — check only.
# --------------------------------------------------------------------------
def basic_block_reference(x_nchw, params):
    x = jnp.transpose(x_nchw, (0, 2, 3, 1))

    def conv(z, w, b):
        y = jax.lax.conv_general_dilated(
            z, w, window_strides=(1, 1), padding="SAME",
            dimension_numbers=("NHWC", "HWIO", "NHWC"))
        return y + b.reshape(1, 1, 1, -1)

    def bn(y, g, be):
        mean = jnp.mean(y, axis=(0, 1, 2), keepdims=True)
        var = jnp.mean((y - mean) ** 2, axis=(0, 1, 2), keepdims=True)
        return ((y - mean) * jax.lax.rsqrt(var + EPS) * g.reshape(1, 1, 1, -1)
                + be.reshape(1, 1, 1, -1))

    out = jnp.maximum(
        bn(conv(x, params["w1"], params["cb1"]), params["g1"], params["be1"]),
        0.0)
    out = bn(conv(out, params["w2"], params["cb2"]), params["g2"], params["be2"])
    out = jnp.maximum(out + x, 0.0)
    return jnp.transpose(out, (0, 3, 1, 2))


def init_params(key, planes):
    ks = jax.random.split(key, 10)

    def conv_w(k, cin, cout):
        bound = 1.0 / jnp.sqrt(cin * 9.0)
        return jax.random.uniform(k, (3, 3, cin, cout), jnp.float32,
                                  -bound, bound)

    p = {}
    for i in (1, 2):
        o = 5 * (i - 1)
        p[f"w{i}"] = conv_w(ks[o], planes, planes)
        p[f"cb{i}"] = jax.random.uniform(ks[o + 1], (planes,), jnp.float32,
                                         -0.1, 0.1)
        p[f"g{i}"] = 1.0 + 0.1 * jax.random.normal(ks[o + 2], (planes,),
                                                   jnp.float32)
        p[f"be{i}"] = 0.1 * jax.random.normal(ks[o + 3], (planes,), jnp.float32)
    return p


if __name__ == "__main__":
    key = jax.random.PRNGKey(0)
    k_x, k_p = jax.random.split(key)

    # BasicBlock with identity shortcut requires in_planes == planes, stride=1.
    # planes=128 keeps the channel (lane) dimension fully dense on the TPU.
    N, planes, H, W = 2, 128, 16, 16
    x = jax.random.normal(k_x, (N, planes, H, W), jnp.float32)  # NCHW
    params = init_params(k_p, planes)

    out = jax.block_until_ready(basic_block_forward(x, params))
    ref = jax.block_until_ready(basic_block_reference(x, params))

    assert out.shape == (N, planes, H, W), out.shape
    assert jnp.allclose(out, ref, rtol=1e-3, atol=1e-3), float(
        jnp.max(jnp.abs(out - ref)))

    print("KERNEL_OK")
</pallas_src>

<mosaic_0001>
module attributes {stable_mosaic.version = 11 : i64} {
  func.func @conv_stage_kernel(%arg0: i32, %arg1: memref<1x16x16x128xf32, #tpu.memory_space<vmem>>, %arg2: memref<3x384x128xf32, #tpu.memory_space<vmem>>, %arg3: memref<1x128xf32, #tpu.memory_space<vmem>>, %arg4: memref<1x128xf32, #tpu.memory_space<vmem>>, %arg5: memref<1x16x16x128xf32, #tpu.memory_space<vmem>>, %arg6: memref<1x2x128xf32, #tpu.memory_space<vmem>>, %arg7: memref<18x18x128xf32, #tpu.memory_space<vmem>>) attributes {dimension_semantics = [#tpu.dimension_semantics<parallel>], iteration_bounds = array<i64: 2>, scalar_prefetch = 0 : i64, scratch_operands = 1 : i64, tpu.core_type = #tpu.core_type<tc>, window_params = [{transform_indices = @transform_0, window_bounds = array<i64: 1, 16, 16, 128>}, {pipeline_mode = #tpu.pipeline_mode<synchronous>, transform_indices = @transform_1, window_bounds = array<i64: 3, 384, 128>}, {pipeline_mode = #tpu.pipeline_mode<synchronous>, transform_indices = @transform_2, window_bounds = array<i64: 1, 128>}, {pipeline_mode = #tpu.pipeline_mode<synchronous>, transform_indices = @transform_3, window_bounds = array<i64: 1, 128>}, {transform_indices = @transform_4, window_bounds = array<i64: 1, 16, 16, 128>}, {transform_indices = @transform_5, window_bounds = array<i64: 1, 2, 128>}]} {
    %c0 = arith.constant 0 : index
    %c0_0 = arith.constant 0 : index
    %c0_1 = arith.constant 0 : index
    %c0_2 = arith.constant 0 : index
    %0 = vector.load %arg1[%c0, %c0_0, %c0_1, %c0_2] : memref<1x16x16x128xf32, #tpu.memory_space<vmem>>, vector<1x16x16x128xf32>
    %1 = vector.shape_cast %0 : vector<1x16x16x128xf32> to vector<16x16x128xf32>
    %cst = arith.constant 0.000000e+00 : f32
    %2 = vector.broadcast %cst : f32 to vector<18x18x128xf32>
    %c0_3 = arith.constant 0 : index
    %c0_4 = arith.constant 0 : index
    %c0_5 = arith.constant 0 : index
    %3 = vector.load %arg7[%c0_3, %c0_4, %c0_5] : memref<18x18x128xf32, #tpu.memory_space<vmem>>, vector<18x18x128xf32>
    tpu.vector_store %arg7[%c0_3, %c0_4, %c0_5], %2 {strides = array<i32>} : memref<18x18x128xf32, #tpu.memory_space<vmem>>, vector<18x18x128xf32>,
    %c1 = arith.constant 1 : index
    %c1_6 = arith.constant 1 : index
    %c0_7 = arith.constant 0 : index
    %4 = vector.load %arg7[%c1, %c1_6, %c0_7] : memref<18x18x128xf32, #tpu.memory_space<vmem>>, vector<16x16x128xf32>
    tpu.vector_store %arg7[%c1, %c1_6, %c0_7], %1 {strides = array<i32>} : memref<18x18x128xf32, #tpu.memory_space<vmem>>, vector<16x16x128xf32>,
    %cst_8 = arith.constant 0.000000e+00 : f32
    %5 = vector.broadcast %cst_8 : f32 to vector<256x128xf32>
    %c0_9 = arith.constant 0 : index
    %c0_10 = arith.constant 0 : index
    %c0_11 = arith.constant 0 : index
    %6 = vector.load %arg7[%c0_9, %c0_10, %c0_11] : memref<18x18x128xf32, #tpu.memory_space<vmem>>, vector<16x18x128xf32>
    %7 = vector.extract_strided_slice %6 {offsets = [0, 0, 0], sizes = [16, 16, 128], strides = [1, 1, 1]} : vector<16x18x128xf32> to vector<16x16x128xf32>
    %8 = vector.extract_strided_slice %6 {offsets = [0, 1, 0], sizes = [16, 16, 128], strides = [1, 1, 1]} : vector<16x18x128xf32> to vector<16x16x128xf32>
    %9 = vector.extract_strided_slice %6 {offsets = [0, 2, 0], sizes = [16, 16, 128], strides = [1, 1, 1]} : vector<16x18x128xf32> to vector<16x16x128xf32>
    %10 = tpu.concatenate %7, %8, %9 in 2 : vector<16x16x128xf32>, vector<16x16x128xf32>, vector<16x16x128xf32> -> vector<16x16x384xf32>
    %11 = vector.shape_cast %10 : vector<16x16x384xf32> to vector<256x384xf32>
    %c0_12 = arith.constant 0 : index
    %c0_13 = arith.constant 0 : index
    %c0_14 = arith.constant 0 : index
    %12 = vector.load %arg2[%c0_12, %c0_13, %c0_14] : memref<3x384x128xf32, #tpu.memory_space<vmem>>, vector<1x384x128xf32>
    %13 = vector.shape_cast %12 : vector<1x384x128xf32> to vector<384x128xf32>
    %cst_15 = arith.constant dense<0.000000e+00> : vector<256x128xf32>
    %14 = tpu.matmul %11, %13, %cst_15 {dimension_numbers = #tpu.dot_dimension_numbers<[1], [0], [0], [1], [0, 0, 1, 1], [], []>} : vector<256x384xf32>, vector<384x128xf32>, vector<256x128xf32> -> vector<256x128xf32>
    %15 = arith.addf %5, %14 : vector<256x128xf32>
    %c1_16 = arith.constant 1 : index
    %c0_17 = arith.constant 0 : index
    %c0_18 = arith.constant 0 : index
    %16 = vector.load %arg7[%c1_16, %c0_17, %c0_18] : memref<18x18x128xf32, #tpu.memory_space<vmem>>, vector<16x18x128xf32>
    %17 = vector.extract_strided_slice %16 {offsets = [0, 0, 0], sizes = [16, 16, 128], strides = [1, 1, 1]} : vector<16x18x128xf32> to vector<16x16x128xf32>
    %18 = vector.extract_strided_slice %16 {offsets = [0, 1, 0], sizes = [16, 16, 128], strides = [1, 1, 1]} : vector<16x18x128xf32> to vector<16x16x128xf32>
    %19 = vector.extract_strided_slice %16 {offsets = [0, 2, 0], sizes = [16, 16, 128], strides = [1, 1, 1]} : vector<16x18x128xf32> to vector<16x16x128xf32>
    %20 = tpu.concatenate %17, %18, %19 in 2 : vector<16x16x128xf32>, vector<16x16x128xf32>, vector<16x16x128xf32> -> vector<16x16x384xf32>
    %21 = vector.shape_cast %20 : vector<16x16x384xf32> to vector<256x384xf32>
    %c1_19 = arith.constant 1 : index
    %c0_20 = arith.constant 0 : index
    %c0_21 = arith.constant 0 : index
    %22 = vector.load %arg2[%c1_19, %c0_20, %c0_21] : memref<3x384x128xf32, #tpu.memory_space<vmem>>, vector<1x384x128xf32>
    %23 = vector.shape_cast %22 : vector<1x384x128xf32> to vector<384x128xf32>
    %cst_22 = arith.constant dense<0.000000e+00> : vector<256x128xf32>
    %24 = tpu.matmul %21, %23, %cst_22 {dimension_numbers = #tpu.dot_dimension_numbers<[1], [0], [0], [1], [0, 0, 1, 1], [], []>} : vector<256x384xf32>, vector<384x128xf32>, vector<256x128xf32> -> vector<256x128xf32>
    %25 = arith.addf %15, %24 : vector<256x128xf32>
    %c2 = arith.constant 2 : index
    %c0_23 = arith.constant 0 : index
    %c0_24 = arith.constant 0 : index
    %26 = vector.load %arg7[%c2, %c0_23, %c0_24] : memref<18x18x128xf32, #tpu.memory_space<vmem>>, vector<16x18x128xf32>
    %27 = vector.extract_strided_slice %26 {offsets = [0, 0, 0], sizes = [16, 16, 128], strides = [1, 1, 1]} : vector<16x18x128xf32> to vector<16x16x128xf32>
    %28 = vector.extract_strided_slice %26 {offsets = [0, 1, 0], sizes = [16, 16, 128], strides = [1, 1, 1]} : vector<16x18x128xf32> to vector<16x16x128xf32>
    %29 = vector.extract_strided_slice %26 {offsets = [0, 2, 0], sizes = [16, 16, 128], strides = [1, 1, 1]} : vector<16x18x128xf32> to vector<16x16x128xf32>
    %30 = tpu.concatenate %27, %28, %29 in 2 : vector<16x16x128xf32>, vector<16x16x128xf32>, vector<16x16x128xf32> -> vector<16x16x384xf32>
    %31 = vector.shape_cast %30 : vector<16x16x384xf32> to vector<256x384xf32>
    %c2_25 = arith.constant 2 : index
    %c0_26 = arith.constant 0 : index
    %c0_27 = arith.constant 0 : index
    %32 = vector.load %arg2[%c2_25, %c0_26, %c0_27] : memref<3x384x128xf32, #tpu.memory_space<vmem>>, vector<1x384x128xf32>
    %33 = vector.shape_cast %32 : vector<1x384x128xf32> to vector<384x128xf32>
    %cst_28 = arith.constant dense<0.000000e+00> : vector<256x128xf32>
    %34 = tpu.matmul %31, %33, %cst_28 {dimension_numbers = #tpu.dot_dimension_numbers<[1], [0], [0], [1], [0, 0, 1, 1], [], []>} : vector<256x384xf32>, vector<384x128xf32>, vector<256x128xf32> -> vector<256x128xf32>
    %35 = arith.addf %25, %34 : vector<256x128xf32>
    %36 = vector.shape_cast %35 : vector<256x128xf32> to vector<16x16x128xf32>
    %c0_29 = arith.constant 0 : index
    %c0_30 = arith.constant 0 : index
    %c0_31 = arith.constant 0 : index
    %c0_32 = arith.constant 0 : index
    %37 = vector.load %arg5[%c0_29, %c0_30, %c0_31, %c0_32] : memref<1x16x16x128xf32, #tpu.memory_space<vmem>>, vector<1x16x16x128xf32>
    %38 = vector.shape_cast %37 : vector<1x16x16x128xf32> to vector<16x16x128xf32>
    %39 = vector.shape_cast %36 : vector<16x16x128xf32> to vector<1x16x16x128xf32>
    tpu.vector_store %arg5[%c0_29, %c0_30, %c0_31, %c0_32], %39 {strides = array<i32>} : memref<1x16x16x128xf32, #tpu.memory_space<vmem>>, vector<1x16x16x128xf32>,
    %cst_33 = arith.constant dense<0.000000e+00> : vector<128xf32>
    %40 = vector.multi_reduction <add>, %35, %cst_33 [0] : vector<256x128xf32> to vector<128xf32>
    %41 = vector.shape_cast %40 : vector<128xf32> to vector<1x128xf32>
    %42 = arith.mulf %35, %35 : vector<256x128xf32>
    %cst_34 = arith.constant dense<0.000000e+00> : vector<128xf32>
    %43 = vector.multi_reduction <add>, %42, %cst_34 [0] : vector<256x128xf32> to vector<128xf32>
    %44 = vector.shape_cast %43 : vector<128xf32> to vector<1x128xf32>
    %45 = tpu.concatenate %41, %44 in 0 : vector<1x128xf32>, vector<1x128xf32> -> vector<2x128xf32>
    %c0_35 = arith.constant 0 : index
    %c0_36 = arith.constant 0 : index
    %c0_37 = arith.constant 0 : index
    %46 = vector.load %arg6[%c0_35, %c0_36, %c0_37] : memref<1x2x128xf32, #tpu.memory_space<vmem>>, vector<1x2x128xf32>
    %47 = vector.shape_cast %46 : vector<1x2x128xf32> to vector<2x128xf32>
    %48 = vector.shape_cast %45 : vector<2x128xf32> to vector<1x2x128xf32>
    tpu.vector_store %arg6[%c0_35, %c0_36, %c0_37], %48 {strides = array<i32>} : memref<1x2x128xf32, #tpu.memory_space<vmem>>, vector<1x2x128xf32>,
    return
  }
  func.func @transform_0(%arg0: i32) -> (i32, i32, i32, i32) {
    %c0_i32 = arith.constant 0 : i32
    %c0_i32_0 = arith.constant 0 : i32
    %c0_i32_1 = arith.constant 0 : i32
    %c0_i32_2 = arith.constant 0 : i32
    return %arg0, %c0_i32, %c0_i32_0, %c0_i32_1 : i32, i32, i32, i32
  }
  func.func @transform_1(%arg0: i32) -> (i32, i32, i32) {
    %c0_i32 = arith.constant 0 : i32
    %c0_i32_0 = arith.constant 0 : i32
    %c0_i32_1 = arith.constant 0 : i32
    %c0_i32_2 = arith.constant 0 : i32
    return %c0_i32, %c0_i32_0, %c0_i32_1 : i32, i32, i32
  }
  func.func @transform_2(%arg0: i32) -> (i32, i32) {
    %c0_i32 = arith.constant 0 : i32
    %c0_i32_0 = arith.constant 0 : i32
    %c0_i32_1 = arith.constant 0 : i32
    return %c0_i32, %c0_i32_0 : i32, i32
  }
  func.func @transform_3(%arg0: i32) -> (i32, i32) {
    %c0_i32 = arith.constant 0 : i32
    %c0_i32_0 = arith.constant 0 : i32
    %c0_i32_1 = arith.constant 0 : i32
    return %c0_i32, %c0_i32_0 : i32, i32
  }
  func.func @transform_4(%arg0: i32) -> (i32, i32, i32, i32) {
    %c0_i32 = arith.constant 0 : i32
    %c0_i32_0 = arith.constant 0 : i32
    %c0_i32_1 = arith.constant 0 : i32
    %c0_i32_2 = arith.constant 0 : i32
    return %arg0, %c0_i32, %c0_i32_0, %c0_i32_1 : i32, i32, i32, i32
  }
  func.func @transform_5(%arg0: i32) -> (i32, i32, i32) {
    %c0_i32 = arith.constant 0 : i32
    %c0_i32_0 = arith.constant 0 : i32
    %c0_i32_1 = arith.constant 0 : i32
    return %arg0, %c0_i32, %c0_i32_0 : i32, i32, i32
  }
}

module attributes {stable_mosaic.version = 11 : i64} {
  func.func @bn_add_relu_kernel(%arg0: i32, %arg1: memref<1x16x16x128xf32, #tpu.memory_space<vmem>>, %arg2: memref<1x16x16x128xf32, #tpu.memory_space<vmem>>, %arg3: memref<1x128xf32, #tpu.memory_space<vmem>>, %arg4: memref<1x128xf32, #tpu.memory_space<vmem>>, %arg5: memref<1x16x16x128xf32, #tpu.memory_space<vmem>>) attributes {dimension_semantics = [#tpu.dimension_semantics<parallel>], iteration_bounds = array<i64: 2>, scalar_prefetch = 0 : i64, scratch_operands = 0 : i64, tpu.core_type = #tpu.core_type<tc>, window_params = [{transform_indices = @transform_0, window_bounds = array<i64: 1, 16, 16, 128>}, {transform_indices = @transform_1, window_bounds = array<i64: 1, 16, 16, 128>}, {pipeline_mode = #tpu.pipeline_mode<synchronous>, transform_indices = @transform_2, window_bounds = array<i64: 1, 128>}, {pipeline_mode = #tpu.pipeline_mode<synchronous>, transform_indices = @transform_3, window_bounds = array<i64: 1, 128>}, {transform_indices = @transform_4, window_bounds = array<i64: 1, 16, 16, 128>}]} {
    %c0 = arith.constant 0 : index
    %c0_0 = arith.constant 0 : index
    %c0_1 = arith.constant 0 : index
    %c0_2 = arith.constant 0 : index
    %0 = vector.load %arg1[%c0, %c0_0, %c0_1, %c0_2] : memref<1x16x16x128xf32, #tpu.memory_space<vmem>>, vector<1x16x16x128xf32>
    %1 = vector.shape_cast %0 : vector<1x16x16x128xf32> to vector<16x16x128xf32>
    %c0_3 = arith.constant 0 : index
    %c0_4 = arith.constant 0 : index
    %2 = vector.load %arg3[%c0_3, %c0_4] : memref<1x128xf32, #tpu.memory_space<vmem>>, vector<1x128xf32>
    %3 = vector.shape_cast %2 : vector<1x128xf32> to vector<128xf32>
    %4 = vector.shape_cast %3 : vector<128xf32> to vector<1x1x128xf32>
    %c0_5 = arith.constant 0 : index
    %c0_6 = arith.constant 0 : index
    %5 = vector.load %arg4[%c0_5, %c0_6] : memref<1x128xf32, #tpu.memory_space<vmem>>, vector<1x128xf32>
    %6 = vector.shape_cast %5 : vector<1x128xf32> to vector<128xf32>
    %7 = vector.shape_cast %6 : vector<128xf32> to vector<1x1x128xf32>
    %8 = vector.broadcast %4 : vector<1x1x128xf32> to vector<16x16x128xf32>
    %9 = arith.mulf %1, %8 : vector<16x16x128xf32>
    %10 = vector.broadcast %7 : vector<1x1x128xf32> to vector<16x16x128xf32>
    %11 = arith.addf %9, %10 : vector<16x16x128xf32>
    %c0_7 = arith.constant 0 : index
    %c0_8 = arith.constant 0 : index
    %c0_9 = arith.constant 0 : index
    %c0_10 = arith.constant 0 : index
    %12 = vector.load %arg2[%c0_7, %c0_8, %c0_9, %c0_10] : memref<1x16x16x128xf32, #tpu.memory_space<vmem>>, vector<1x16x16x128xf32>
    %13 = vector.shape_cast %12 : vector<1x16x16x128xf32> to vector<16x16x128xf32>
    %14 = arith.addf %11, %13 : vector<16x16x128xf32>
    %cst = arith.constant 0.000000e+00 : f32
    %15 = vector.broadcast %cst : f32 to vector<16x16x128xf32>
    %16 = arith.maximumf %14, %15 : vector<16x16x128xf32>
    %c0_11 = arith.constant 0 : index
    %c0_12 = arith.constant 0 : index
    %c0_13 = arith.constant 0 : index
    %c0_14 = arith.constant 0 : index
    %17 = vector.load %arg5[%c0_11, %c0_12, %c0_13, %c0_14] : memref<1x16x16x128xf32, #tpu.memory_space<vmem>>, vector<1x16x16x128xf32>
    %18 = vector.shape_cast %17 : vector<1x16x16x128xf32> to vector<16x16x128xf32>
    %19 = vector.shape_cast %16 : vector<16x16x128xf32> to vector<1x16x16x128xf32>
    tpu.vector_store %arg5[%c0_11, %c0_12, %c0_13, %c0_14], %19 {strides = array<i32>} : memref<1x16x16x128xf32, #tpu.memory_space<vmem>>, vector<1x16x16x128xf32>,
    return
  }
  func.func @transform_0(%arg0: i32) -> (i32, i32, i32, i32) {
    %c0_i32 = arith.constant 0 : i32
    %c0_i32_0 = arith.constant 0 : i32
    %c0_i32_1 = arith.constant 0 : i32
    %c0_i32_2 = arith.constant 0 : i32
    return %arg0, %c0_i32, %c0_i32_0, %c0_i32_1 : i32, i32, i32, i32
  }
  func.func @transform_1(%arg0: i32) -> (i32, i32, i32, i32) {
    %c0_i32 = arith.constant 0 : i32
    %c0_i32_0 = arith.constant 0 : i32
    %c0_i32_1 = arith.constant 0 : i32
    %c0_i32_2 = arith.constant 0 : i32
    return %arg0, %c0_i32, %c0_i32_0, %c0_i32_1 : i32, i32, i32, i32
  }
  func.func @transform_2(%arg0: i32) -> (i32, i32) {
    %c0_i32 = arith.constant 0 : i32
    %c0_i32_0 = arith.constant 0 : i32
    %c0_i32_1 = arith.constant 0 : i32
    return %c0_i32, %c0_i32_0 : i32, i32
  }
  func.func @transform_3(%arg0: i32) -> (i32, i32) {
    %c0_i32 = arith.constant 0 : i32
    %c0_i32_0 = arith.constant 0 : i32
    %c0_i32_1 = arith.constant 0 : i32
    return %c0_i32, %c0_i32_0 : i32, i32
  }
  func.func @transform_4(%arg0: i32) -> (i32, i32, i32, i32) {
    %c0_i32 = arith.constant 0 : i32
    %c0_i32_0 = arith.constant 0 : i32
    %c0_i32_1 = arith.constant 0 : i32
    %c0_i32_2 = arith.constant 0 : i32
    return %arg0, %c0_i32, %c0_i32_0, %c0_i32_1 : i32, i32, i32, i32
  }
}

module attributes {stable_mosaic.version = 11 : i64} {
  func.func @conv_stage_kernel(%arg0: i32, %arg1: memref<1x16x16x128xf32, #tpu.memory_space<vmem>>, %arg2: memref<3x384x128xf32, #tpu.memory_space<vmem>>, %arg3: memref<1x128xf32, #tpu.memory_space<vmem>>, %arg4: memref<1x128xf32, #tpu.memory_space<vmem>>, %arg5: memref<1x16x16x128xf32, #tpu.memory_space<vmem>>, %arg6: memref<1x2x128xf32, #tpu.memory_space<vmem>>, %arg7: memref<18x18x128xf32, #tpu.memory_space<vmem>>) attributes {dimension_semantics = [#tpu.dimension_semantics<parallel>], iteration_bounds = array<i64: 2>, scalar_prefetch = 0 : i64, scratch_operands = 1 : i64, tpu.core_type = #tpu.core_type<tc>, window_params = [{transform_indices = @transform_0, window_bounds = array<i64: 1, 16, 16, 128>}, {pipeline_mode = #tpu.pipeline_mode<synchronous>, transform_indices = @transform_1, window_bounds = array<i64: 3, 384, 128>}, {pipeline_mode = #tpu.pipeline_mode<synchronous>, transform_indices = @transform_2, window_bounds = array<i64: 1, 128>}, {pipeline_mode = #tpu.pipeline_mode<synchronous>, transform_indices = @transform_3, window_bounds = array<i64: 1, 128>}, {transform_indices = @transform_4, window_bounds = array<i64: 1, 16, 16, 128>}, {transform_indices = @transform_5, window_bounds = array<i64: 1, 2, 128>}]} {
    %c0 = arith.constant 0 : index
    %c0_0 = arith.constant 0 : index
    %c0_1 = arith.constant 0 : index
    %c0_2 = arith.constant 0 : index
    %0 = vector.load %arg1[%c0, %c0_0, %c0_1, %c0_2] : memref<1x16x16x128xf32, #tpu.memory_space<vmem>>, vector<1x16x16x128xf32>
    %1 = vector.shape_cast %0 : vector<1x16x16x128xf32> to vector<16x16x128xf32>
    %c0_3 = arith.constant 0 : index
    %c0_4 = arith.constant 0 : index
    %2 = vector.load %arg3[%c0_3, %c0_4] : memref<1x128xf32, #tpu.memory_space<vmem>>, vector<1x128xf32>
    %3 = vector.shape_cast %2 : vector<1x128xf32> to vector<128xf32>
    %4 = vector.shape_cast %3 : vector<128xf32> to vector<1x1x128xf32>
    %5 = vector.broadcast %4 : vector<1x1x128xf32> to vector<16x16x128xf32>
    %6 = arith.mulf %1, %5 : vector<16x16x128xf32>
    %c0_5 = arith.constant 0 : index
    %c0_6 = arith.constant 0 : index
    %7 = vector.load %arg4[%c0_5, %c0_6] : memref<1x128xf32, #tpu.memory_space<vmem>>, vector<1x128xf32>
    %8 = vector.shape_cast %7 : vector<1x128xf32> to vector<128xf32>
    %9 = vector.shape_cast %8 : vector<128xf32> to vector<1x1x128xf32>
    %10 = vector.broadcast %9 : vector<1x1x128xf32> to vector<16x16x128xf32>
    %11 = arith.addf %6, %10 : vector<16x16x128xf32>
    %cst = arith.constant 0.000000e+00 : f32
    %12 = vector.broadcast %cst : f32 to vector<16x16x128xf32>
    %13 = arith.maximumf %11, %12 : vector<16x16x128xf32>
    %cst_7 = arith.constant 0.000000e+00 : f32
    %14 = vector.broadcast %cst_7 : f32 to vector<18x18x128xf32>
    %c0_8 = arith.constant 0 : index
    %c0_9 = arith.constant 0 : index
    %c0_10 = arith.constant 0 : index
    %15 = vector.load %arg7[%c0_8, %c0_9, %c0_10] : memref<18x18x128xf32, #tpu.memory_space<vmem>>, vector<18x18x128xf32>
    tpu.vector_store %arg7[%c0_8, %c0_9, %c0_10], %14 {strides = array<i32>} : memref<18x18x128xf32, #tpu.memory_space<vmem>>, vector<18x18x128xf32>,
    %c1 = arith.constant 1 : index
    %c1_11 = arith.constant 1 : index
    %c0_12 = arith.constant 0 : index
    %16 = vector.load %arg7[%c1, %c1_11, %c0_12] : memref<18x18x128xf32, #tpu.memory_space<vmem>>, vector<16x16x128xf32>
    tpu.vector_store %arg7[%c1, %c1_11, %c0_12], %13 {strides = array<i32>} : memref<18x18x128xf32, #tpu.memory_space<vmem>>, vector<16x16x128xf32>,
    %cst_13 = arith.constant 0.000000e+00 : f32
    %17 = vector.broadcast %cst_13 : f32 to vector<256x128xf32>
    %c0_14 = arith.constant 0 : index
    %c0_15 = arith.constant 0 : index
    %c0_16 = arith.constant 0 : index
    %18 = vector.load %arg7[%c0_14, %c0_15, %c0_16] : memref<18x18x128xf32, #tpu.memory_space<vmem>>, vector<16x18x128xf32>
    %19 = vector.extract_strided_slice %18 {offsets = [0, 0, 0], sizes = [16, 16, 128], strides = [1, 1, 1]} : vector<16x18x128xf32> to vector<16x16x128xf32>
    %20 = vector.extract_strided_slice %18 {offsets = [0, 1, 0], sizes = [16, 16, 128], strides = [1, 1, 1]} : vector<16x18x128xf32> to vector<16x16x128xf32>
    %21 = vector.extract_strided_slice %18 {offsets = [0, 2, 0], sizes = [16, 16, 128], strides = [1, 1, 1]} : vector<16x18x128xf32> to vector<16x16x128xf32>
    %22 = tpu.concatenate %19, %20, %21 in 2 : vector<16x16x128xf32>, vector<16x16x128xf32>, vector<16x16x128xf32> -> vector<16x16x384xf32>
    %23 = vector.shape_cast %22 : vector<16x16x384xf32> to vector<256x384xf32>
    %c0_17 = arith.constant 0 : index
    %c0_18 = arith.constant 0 : index
    %c0_19 = arith.constant 0 : index
    %24 = vector.load %arg2[%c0_17, %c0_18, %c0_19] : memref<3x384x128xf32, #tpu.memory_space<vmem>>, vector<1x384x128xf32>
    %25 = vector.shape_cast %24 : vector<1x384x128xf32> to vector<384x128xf32>
    %cst_20 = arith.constant dense<0.000000e+00> : vector<256x128xf32>
    %26 = tpu.matmul %23, %25, %cst_20 {dimension_numbers = #tpu.dot_dimension_numbers<[1], [0], [0], [1], [0, 0, 1, 1], [], []>} : vector<256x384xf32>, vector<384x128xf32>, vector<256x128xf32> -> vector<256x128xf32>
    %27 = arith.addf %17, %26 : vector<256x128xf32>
    %c1_21 = arith.constant 1 : index
    %c0_22 = arith.constant 0 : index
    %c0_23 = arith.constant 0 : index
    %28 = vector.load %arg7[%c1_21, %c0_22, %c0_23] : memref<18x18x128xf32, #tpu.memory_space<vmem>>, vector<16x18x128xf32>
    %29 = vector.extract_strided_slice %28 {offsets = [0, 0, 0], sizes = [16, 16, 128], strides = [1, 1, 1]} : vector<16x18x128xf32> to vector<16x16x128xf32>
    %30 = vector.extract_strided_slice %28 {offsets = [0, 1, 0], sizes = [16, 16, 128], strides = [1, 1, 1]} : vector<16x18x128xf32> to vector<16x16x128xf32>
    %31 = vector.extract_strided_slice %28 {offsets = [0, 2, 0], sizes = [16, 16, 128], strides = [1, 1, 1]} : vector<16x18x128xf32> to vector<16x16x128xf32>
    %32 = tpu.concatenate %29, %30, %31 in 2 : vector<16x16x128xf32>, vector<16x16x128xf32>, vector<16x16x128xf32> -> vector<16x16x384xf32>
    %33 = vector.shape_cast %32 : vector<16x16x384xf32> to vector<256x384xf32>
    %c1_24 = arith.constant 1 : index
    %c0_25 = arith.constant 0 : index
    %c0_26 = arith.constant 0 : index
    %34 = vector.load %arg2[%c1_24, %c0_25, %c0_26] : memref<3x384x128xf32, #tpu.memory_space<vmem>>, vector<1x384x128xf32>
    %35 = vector.shape_cast %34 : vector<1x384x128xf32> to vector<384x128xf32>
    %cst_27 = arith.constant dense<0.000000e+00> : vector<256x128xf32>
    %36 = tpu.matmul %33, %35, %cst_27 {dimension_numbers = #tpu.dot_dimension_numbers<[1], [0], [0], [1], [0, 0, 1, 1], [], []>} : vector<256x384xf32>, vector<384x128xf32>, vector<256x128xf32> -> vector<256x128xf32>
    %37 = arith.addf %27, %36 : vector<256x128xf32>
    %c2 = arith.constant 2 : index
    %c0_28 = arith.constant 0 : index
    %c0_29 = arith.constant 0 : index
    %38 = vector.load %arg7[%c2, %c0_28, %c0_29] : memref<18x18x128xf32, #tpu.memory_space<vmem>>, vector<16x18x128xf32>
    %39 = vector.extract_strided_slice %38 {offsets = [0, 0, 0], sizes = [16, 16, 128], strides = [1, 1, 1]} : vector<16x18x128xf32> to vector<16x16x128xf32>
    %40 = vector.extract_strided_slice %38 {offsets = [0, 1, 0], sizes = [16, 16, 128], strides = [1, 1, 1]} : vector<16x18x128xf32> to vector<16x16x128xf32>
    %41 = vector.extract_strided_slice %38 {offsets = [0, 2, 0], sizes = [16, 16, 128], strides = [1, 1, 1]} : vector<16x18x128xf32> to vector<16x16x128xf32>
    %42 = tpu.concatenate %39, %40, %41 in 2 : vector<16x16x128xf32>, vector<16x16x128xf32>, vector<16x16x128xf32> -> vector<16x16x384xf32>
    %43 = vector.shape_cast %42 : vector<16x16x384xf32> to vector<256x384xf32>
    %c2_30 = arith.constant 2 : index
    %c0_31 = arith.constant 0 : index
    %c0_32 = arith.constant 0 : index
    %44 = vector.load %arg2[%c2_30, %c0_31, %c0_32] : memref<3x384x128xf32, #tpu.memory_space<vmem>>, vector<1x384x128xf32>
    %45 = vector.shape_cast %44 : vector<1x384x128xf32> to vector<384x128xf32>
    %cst_33 = arith.constant dense<0.000000e+00> : vector<256x128xf32>
    %46 = tpu.matmul %43, %45, %cst_33 {dimension_numbers = #tpu.dot_dimension_numbers<[1], [0], [0], [1], [0, 0, 1, 1], [], []>} : vector<256x384xf32>, vector<384x128xf32>, vector<256x128xf32> -> vector<256x128xf32>
    %47 = arith.addf %37, %46 : vector<256x128xf32>
    %48 = vector.shape_cast %47 : vector<256x128xf32> to vector<16x16x128xf32>
    %c0_34 = arith.constant 0 : index
    %c0_35 = arith.constant 0 : index
    %c0_36 = arith.constant 0 : index
    %c0_37 = arith.constant 0 : index
    %49 = vector.load %arg5[%c0_34, %c0_35, %c0_36, %c0_37] : memref<1x16x16x128xf32, #tpu.memory_space<vmem>>, vector<1x16x16x128xf32>
    %50 = vector.shape_cast %49 : vector<1x16x16x128xf32> to vector<16x16x128xf32>
    %51 = vector.shape_cast %48 : vector<16x16x128xf32> to vector<1x16x16x128xf32>
    tpu.vector_store %arg5[%c0_34, %c0_35, %c0_36, %c0_37], %51 {strides = array<i32>} : memref<1x16x16x128xf32, #tpu.memory_space<vmem>>, vector<1x16x16x128xf32>,
    %cst_38 = arith.constant dense<0.000000e+00> : vector<128xf32>
    %52 = vector.multi_reduction <add>, %47, %cst_38 [0] : vector<256x128xf32> to vector<128xf32>
    %53 = vector.shape_cast %52 : vector<128xf32> to vector<1x128xf32>
    %54 = arith.mulf %47, %47 : vector<256x128xf32>
    %cst_39 = arith.constant dense<0.000000e+00> : vector<128xf32>
    %55 = vector.multi_reduction <add>, %54, %cst_39 [0] : vector<256x128xf32> to vector<128xf32>
    %56 = vector.shape_cast %55 : vector<128xf32> to vector<1x128xf32>
    %57 = tpu.concatenate %53, %56 in 0 : vector<1x128xf32>, vector<1x128xf32> -> vector<2x128xf32>
    %c0_40 = arith.constant 0 : index
    %c0_41 = arith.constant 0 : index
    %c0_42 = arith.constant 0 : index
    %58 = vector.load %arg6[%c0_40, %c0_41, %c0_42] : memref<1x2x128xf32, #tpu.memory_space<vmem>>, vector<1x2x128xf32>
    %59 = vector.shape_cast %58 : vector<1x2x128xf32> to vector<2x128xf32>
    %60 = vector.shape_cast %57 : vector<2x128xf32> to vector<1x2x128xf32>
    tpu.vector_store %arg6[%c0_40, %c0_41, %c0_42], %60 {strides = array<i32>} : memref<1x2x128xf32, #tpu.memory_space<vmem>>, vector<1x2x128xf32>,
    return
  }
  func.func @transform_0(%arg0: i32) -> (i32, i32, i32, i32) {
    %c0_i32 = arith.constant 0 : i32
    %c0_i32_0 = arith.constant 0 : i32
    %c0_i32_1 = arith.constant 0 : i32
    %c0_i32_2 = arith.constant 0 : i32
    return %arg0, %c0_i32, %c0_i32_0, %c0_i32_1 : i32, i32, i32, i32
  }
  func.func @transform_1(%arg0: i32) -> (i32, i32, i32) {
    %c0_i32 = arith.constant 0 : i32
    %c0_i32_0 = arith.constant 0 : i32
    %c0_i32_1 = arith.constant 0 : i32
    %c0_i32_2 = arith.constant 0 : i32
    return %c0_i32, %c0_i32_0, %c0_i32_1 : i32, i32, i32
  }
  func.func @transform_2(%arg0: i32) -> (i32, i32) {
    %c0_i32 = arith.constant 0 : i32
    %c0_i32_0 = arith.constant 0 : i32
    %c0_i32_1 = arith.constant 0 : i32
    return %c0_i32, %c0_i32_0 : i32, i32
  }
  func.func @transform_3(%arg0: i32) -> (i32, i32) {
    %c0_i32 = arith.constant 0 : i32
    %c0_i32_0 = arith.constant 0 : i32
    %c0_i32_1 = arith.constant 0 : i32
    return %c0_i32, %c0_i32_0 : i32, i32
  }
  func.func @transform_4(%arg0: i32) -> (i32, i32, i32, i32) {
    %c0_i32 = arith.constant 0 : i32
    %c0_i32_0 = arith.constant 0 : i32
    %c0_i32_1 = arith.constant 0 : i32
    %c0_i32_2 = arith.constant 0 : i32
    return %arg0, %c0_i32, %c0_i32_0, %c0_i32_1 : i32, i32, i32, i32
  }
  func.func @transform_5(%arg0: i32) -> (i32, i32, i32) {
    %c0_i32 = arith.constant 0 : i32
    %c0_i32_0 = arith.constant 0 : i32
    %c0_i32_1 = arith.constant 0 : i32
    return %arg0, %c0_i32, %c0_i32_0 : i32, i32, i32
  }
}

</mosaic_0001>

<llo_original>
// kernel: basic_block_forward.5
$region0: #{basic_block_forward.5}
  #allocation0 [shape = 'u32[]', space=smem, size = 0x4, offset = 0x4, fixed_abs, tag = 'smem constant byte address 0x4 - core index']
  #allocation1 [shape = 'u32[144,128]{1,0:T(1,128)}', space=vmem, size = 0x12000, scoped, tag = 'internal scratch']
  %s0 = inlined_call_operand.vmem [shape: f32[2,16,16,128], index: 0, kind: input, shape index: {}]
  %s1 = inlined_call_operand.vmem [shape: f32[2,16,16,128], index: 1, kind: input, shape index: {}]
  %s2 = inlined_call_operand.vmem [shape: f32[1,128], index: 2, kind: input, shape index: {}]
  %s3 = inlined_call_operand.vmem [shape: f32[1,128], index: 3, kind: input, shape index: {}]
  %s4 = inlined_call_operand.hbm [shape: f32[2,16,16,128], index: 4, kind: output, shape index: {}]
  %s5 = sld [smem:[#allocation0]]
  $region49: #{basic_block_forward.5} parent=0
    _
  %s7 = ssub.s32 1, %s5
  %s8 = scalar_select 0, %s7, %s5
  $region1: #{basic_block_forward.5} parent=0
    #allocation2 [shape = 'u8[262144]{0}', space=vmem, size = 0x40000, scoped, tag = 'output window, operand 0']
    #allocation3 [shape = 's32[2]{0}', space=sflag, size = 0x8, scoped, tag = 'scoped memory for basic_block_forward.5']
    %9 = vsyncpa [#allocation3], 0
    %s10 = scalar_lea.sflag [#allocation3], 1
    %11 = vsyncpa %s10, 0
    loop: start=0, step=1, limit=4
    $region2: #{basic_block_forward.5} parent=1 // loop_pre_header
      _
    $region3: #{basic_block_forward.5} parent=1 // loop_header
      %s13 = sphi 0, %s17
      %p14 = scmp.ge.s32.totalorder %s13, 4
      %s23 = sphi 0, %s25
      %s26 = sphi 0, %s23
      %s27 = sphi 0, %s26
      %s43 = sphi 0, %s27
      %s49 = sphi 0, %s51
      %s52 = sphi 0, %s49
      %s53 = sphi 0, %s52
      %s69 = sphi 0, %s53
      %s73 = sphi 0, %s73
      %s75 = sphi 0, %s73
      %s76 = sphi 0, %s75
      %s90 = sphi 0, %s76
      %s94 = sphi 0, %s94
      %s96 = sphi 0, %s94
      %s97 = sphi 0, %s96
      %s111 = sphi 0, %s97
      %s117 = sphi 0, %s119
      %s120 = sphi 0, %s117
      %s121 = sphi 0, %s120
      %s137 = sphi 0, %s121
    $region4: #{basic_block_forward.5} parent=1 // loop_header_branch
      %16 = sbr.rel (%p14) target = $region8
    $region5: #{basic_block_forward.5} parent=1 // loop_body
      %s18 = ssub.s32 %s13, 1
      %s19 = ssub.s32 %s13, 2
      %s20 = sadd.s32 %s13, 1
      %s21 = ssub.s32 %s13, %s20
      %p22 = scmp.eq.s32.totalorder %s21, 0
      %s24 = sadd.s32 %s23, 1
      %s25 = scalar_select %p22, %s23, %s24
      %p28 = pneg %p22
      %p29 = scmp.eq.s32.totalorder %s13, 1
      %p30 = por %p28, %p29
      %p31 = scmp.ne.s32.totalorder %s23, %s26
      %p32 = scmp.eq.s32.totalorder %s13, 0
      %p33 = por %p31, %p32
      %p34 = scmp.ne.s32.totalorder %s23, %s26
      %p35 = scmp.eq.s32.totalorder %s18, 1
      %p36 = por %p34, %p35
      %p37 = scmp.ne.s32.totalorder %s26, %s27
      %p38 = scmp.eq.s32.totalorder %s18, 0
      %p39 = por %p37, %p38
      %p40 = scmp.ne.s32.totalorder %s26, %s27
      %p41 = scmp.eq.s32.totalorder %s19, 1
      %p42 = por %p40, %p41
      %p44 = scmp.ne.s32.totalorder %s27, %s43
      %p45 = scmp.eq.s32.totalorder %s19, 0
      %p46 = por %p44, %p45
      %s47 = ssub.s32 %s13, %s20
      %p48 = scmp.eq.s32.totalorder %s47, 0
      %s50 = sadd.s32 %s49, 1
      %s51 = scalar_select %p48, %s49, %s50
      %p54 = pneg %p48
      %p55 = scmp.eq.s32.totalorder %s13, 1
      %p56 = por %p54, %p55
      %p57 = scmp.ne.s32.totalorder %s49, %s52
      %p58 = scmp.eq.s32.totalorder %s13, 0
      %p59 = por %p57, %p58
      %p60 = scmp.ne.s32.totalorder %s49, %s52
      %p61 = scmp.eq.s32.totalorder %s18, 1
      %p62 = por %p60, %p61
      %p63 = scmp.ne.s32.totalorder %s52, %s53
      %p64 = scmp.eq.s32.totalorder %s18, 0
      %p65 = por %p63, %p64
      %p66 = scmp.ne.s32.totalorder %s52, %s53
      %p67 = scmp.eq.s32.totalorder %s19, 1
      %p68 = por %p66, %p67
      %p70 = scmp.ne.s32.totalorder %s53, %s69
      %p71 = scmp.eq.s32.totalorder %s19, 0
      %p72 = por %p70, %p71
      %s74 = sadd.s32 %s73, 1
      %p77 = scmp.eq.s32.totalorder %s13, 1
      %p78 = scmp.ne.s32.totalorder %s73, %s75
      %p79 = scmp.eq.s32.totalorder %s13, 0
      %p80 = por %p78, %p79
      %p81 = scmp.ne.s32.totalorder %s73, %s75
      %p82 = scmp.eq.s32.totalorder %s18, 1
      %p83 = por %p81, %p82
      %p84 = scmp.ne.s32.totalorder %s75, %s76
      %p85 = scmp.eq.s32.totalorder %s18, 0
      %p86 = por %p84, %p85
      %p87 = scmp.ne.s32.totalorder %s75, %s76
      %p88 = scmp.eq.s32.totalorder %s19, 1
      %p89 = por %p87, %p88
      %p91 = scmp.ne.s32.totalorder %s76, %s90
      %p92 = scmp.eq.s32.totalorder %s19, 0
      %p93 = por %p91, %p92
      %s95 = sadd.s32 %s94, 1
      %p98 = scmp.eq.s32.totalorder %s13, 1
      %p99 = scmp.ne.s32.totalorder %s94, %s96
      %p100 = scmp.eq.s32.totalorder %s13, 0
      %p101 = por %p99, %p100
      %p102 = scmp.ne.s32.totalorder %s94, %s96
      %p103 = scmp.eq.s32.totalorder %s18, 1
      %p104 = por %p102, %p103
      %p105 = scmp.ne.s32.totalorder %s96, %s97
      %p106 = scmp.eq.s32.totalorder %s18, 0
      %p107 = por %p105, %p106
      %p108 = scmp.ne.s32.totalorder %s96, %s97
      %p109 = scmp.eq.s32.totalorder %s19, 1
      %p110 = por %p108, %p109
      %p112 = scmp.ne.s32.totalorder %s97, %s111
      %p113 = scmp.eq.s32.totalorder %s19, 0
      %p114 = por %p112, %p113
      %s115 = ssub.s32 %s13, %s20
      %p116 = scmp.eq.s32.totalorder %s115, 0
      %s118 = sadd.s32 %s117, 1
      %s119 = scalar_select %p116, %s117, %s118
      %p122 = pneg %p116
      %p123 = scmp.eq.s32.totalorder %s13, 1
      %p124 = por %p122, %p123
      %p125 = scmp.ne.s32.totalorder %s117, %s120
      %p126 = scmp.eq.s32.totalorder %s13, 0
      %p127 = por %p125, %p126
      %p128 = scmp.ne.s32.totalorder %s117, %s120
      %p129 = scmp.eq.s32.totalorder %s18, 1
      %p130 = por %p128, %p129
      %p131 = scmp.ne.s32.totalorder %s120, %s121
      %p132 = scmp.eq.s32.totalorder %s18, 0
      %p133 = por %p131, %p132
      %p134 = scmp.ne.s32.totalorder %s120, %s121
      %p135 = scmp.eq.s32.totalorder %s19, 1
      %p136 = por %p134, %p135
      %p138 = scmp.ne.s32.totalorder %s121, %s137
      %p139 = scmp.eq.s32.totalorder %s19, 0
      %p140 = por %p138, %p139
      %p141 = scmp.le.s32.totalorder 1, %s13
      %p142 = scmp.lt.s32.totalorder %s13, 3
      %p143 = pnand %p141, %p142
      %p144 = pneg %p143
      // Predicated region
      $region9: #{basic_block_forward.5} parent=5 // pred_check
        _
      $region10: #{basic_block_forward.5} parent=5 // pred_check_branch
        %146 = sbr.rel (%p143) target = $region12
      $region11: #{basic_block_forward.5} parent=5 // pred_region
        %s147 = ssub.s32 %s13, 1
        // Predicated region
        $region13: #{basic_block_forward.5} parent=11 // pred_check
          %p148 = pneg %p86
        $region14: #{basic_block_forward.5} parent=11 // pred_check_branch
          %150 = sbr.rel (%p148) target = $region16
        $region15: #{basic_block_forward.5} parent=11 // pred_region
          _
        $region16: #{basic_block_forward.5} parent=11 // pred_fallthru
          _
        // Predicated region
        $region17: #{basic_block_forward.5} parent=11 // pred_check
          %p151 = pneg %p107
        $region18: #{basic_block_forward.5} parent=11 // pred_check_branch
          %153 = sbr.rel (%p151) target = $region20
        $region19: #{basic_block_forward.5} parent=11 // pred_region
          _
        $region20: #{basic_block_forward.5} parent=11 // pred_fallthru
          _
      $region12: #{basic_block_forward.5} parent=5 // pred_fallthru
        _
      %p154 = scmp.lt.s32.totalorder %s13, 2
      // Predicated region
      $region21: #{basic_block_forward.5} parent=5 // pred_check
        %p155 = pneg %p154
      $region22: #{basic_block_forward.5} parent=5 // pred_check_branch
        %157 = sbr.rel (%p155) target = $region24
      $region23: #{basic_block_forward.5} parent=5 // pred_region
        // Predicated region
        $region25: #{basic_block_forward.5} parent=23 // pred_check
          %p158 = pneg %p33
        $region26: #{basic_block_forward.5} parent=23 // pred_check_branch
          %160 = sbr.rel (%p158) target = $region28
        $region27: #{basic_block_forward.5} parent=23 // pred_region
          %p161 = scmp.lt.s32.totalorder %s13, 1
          %s162 = scalar_select %p161, %s13, 1
          %s163 = smul.addr %s162, 32
          %s164 = smul.addr %s163, 8
          %s165 = scalar_lea.vmem %s0, %s164
        $region28: #{basic_block_forward.5} parent=23 // pred_fallthru
          _
        // Predicated region
        $region29: #{basic_block_forward.5} parent=23 // pred_check
          %p166 = pneg %p59
        $region30: #{basic_block_forward.5} parent=23 // pred_check_branch
          %168 = sbr.rel (%p166) target = $region32
        $region31: #{basic_block_forward.5} parent=23 // pred_region
          %p169 = scmp.lt.s32.totalorder %s13, 1
          %s170 = scalar_select %p169, %s13, 1
          %s171 = smul.addr %s170, 32
          %s172 = smul.addr %s171, 8
          %s173 = scalar_lea.vmem %s1, %s172
        $region32: #{basic_block_forward.5} parent=23 // pred_fallthru
          _
      $region24: #{basic_block_forward.5} parent=5 // pred_fallthru
        _
      %p174 = scmp.le.s32.totalorder 1, %s13
      %p175 = scmp.lt.s32.totalorder %s13, 3
      %p176 = pnand %p174, %p175
      %p177 = pneg %p176
      // Predicated region
      $region33: #{basic_block_forward.5} parent=5 // pred_check
        _
      $region34: #{basic_block_forward.5} parent=5 // pred_check_branch
        %179 = sbr.rel (%p176) target = $region36
      $region35: #{basic_block_forward.5} parent=5 // pred_region
        %s180 = ssub.s32 %s13, 1
        %p181 = scmp.lt.s32.totalorder %s18, 1
        %s182 = scalar_select %p181, %s18, 1
        %s183 = smul.addr %s182, 32
        %s184 = smul.addr %s183, 8
        %s185 = scalar_lea.vmem %s0, %s184
        %p186 = pneg %p39
        %p187 = pneg %p36
        %p188 = scmp.lt.s32.totalorder %s18, 1
        %s189 = scalar_select %p188, %s18, 1
        %s190 = smul.addr %s189, 32
        %s191 = smul.addr %s190, 8
        %s192 = scalar_lea.vmem %s1, %s191
        %p193 = pneg %p65
        %p194 = pneg %p62
        %p195 = pneg %p86
        %p196 = pneg %p83
        %p197 = pneg %p107
        %p198 = pneg %p104
        %p199 = pneg %p133
        %p200 = pneg %p130
        %s201 = sand.u32 %s120, 1
        %s202 = scalar_lea.sflag [#allocation3], %s201
        %s203 = sand.u32 %s120, 1
        %s204 = smul.addr %s203, 256
        %s205 = scalar_lea.vmem [#allocation2], %s204
        %p206 = scmp.lt.s32.totalorder %s18, 1
        %s207 = scalar_select %p206, %s18, 1
        %s208 = smul.addr %s207, 32
        %s209 = smul.addr %s208, 8
        %s210 = scalar_lea.vmem %s0, %s209
        %p211 = scmp.lt.s32.totalorder %s18, 1
        %s212 = scalar_select %p211, %s18, 1
        %s213 = smul.addr %s212, 32
        %s214 = smul.addr %s213, 8
        %s215 = scalar_lea.vmem %s1, %s214
        %v216 = vld [vmem:[%s210] sm:$0xff]
        %v217 = vld [vmem:[%s210 + $0x8] sm:$0xff]
        %v218 = vld [vmem:[%s210 + $0x10] sm:$0xff]
        %v219 = vld [vmem:[%s210 + $0x18] sm:$0xff]
        %v220 = vld [vmem:[%s210 + $0x20] sm:$0xff]
        %v221 = vld [vmem:[%s210 + $0x28] sm:$0xff]
        %v222 = vld [vmem:[%s210 + $0x30] sm:$0xff]
        %v223 = vld [vmem:[%s210 + $0x38] sm:$0xff]
        %v224 = vld [vmem:[%s210 + $0x40] sm:$0xff]
        %v225 = vld [vmem:[%s210 + $0x48] sm:$0xff]
        %v226 = vld [vmem:[%s210 + $0x50] sm:$0xff]
        %v227 = vld [vmem:[%s210 + $0x58] sm:$0xff]
        %v228 = vld [vmem:[%s210 + $0x60] sm:$0xff]
        %v229 = vld [vmem:[%s210 + $0x68] sm:$0xff]
        %v230 = vld [vmem:[%s210 + $0x70] sm:$0xff]
        %v231 = vld [vmem:[%s210 + $0x78] sm:$0xff]
        %v232 = vld [vmem:[%s210 + $0x80] sm:$0xff]
        %v233 = vld [vmem:[%s210 + $0x88] sm:$0xff]
        %v234 = vld [vmem:[%s210 + $0x90] sm:$0xff]
        %v235 = vld [vmem:[%s210 + $0x98] sm:$0xff]
        %v236 = vld [vmem:[%s210 + $0xa0] sm:$0xff]
        %v237 = vld [vmem:[%s210 + $0xa8] sm:$0xff]
        %v238 = vld [vmem:[%s210 + $0xb0] sm:$0xff]
        %v239 = vld [vmem:[%s210 + $0xb8] sm:$0xff]
        %v240 = vld [vmem:[%s210 + $0xc0] sm:$0xff]
        %v241 = vld [vmem:[%s210 + $0xc8] sm:$0xff]
        %v242 = vld [vmem:[%s210 + $0xd0] sm:$0xff]
        %v243 = vld [vmem:[%s210 + $0xd8] sm:$0xff]
        %v244 = vld [vmem:[%s210 + $0xe0] sm:$0xff]
        %v245 = vld [vmem:[%s210 + $0xe8] sm:$0xff]
        %v246 = vld [vmem:[%s210 + $0xf0] sm:$0xff]
        %v247 = vld [vmem:[%s210 + $0xf8] sm:$0xff]
        %v248 = vld [vmem:[%s2] sm:$0x1]
        %v249 = vld [vmem:[%s3] sm:$0x1]
        %v251 = vlaneseq
        %v252 = vshrl.u32 %v251, 7
        %v253 = vsub.s32 0, %v252
        %v254 = vrot.slane %v248, %v253
        %v256 = vmul.f32 %v216, %v254
        %v257 = vmul.f32 %v217, %v254
        %v258 = vmul.f32 %v218, %v254
        %v259 = vmul.f32 %v219, %v254
        %v260 = vmul.f32 %v220, %v254
        %v261 = vmul.f32 %v221, %v254
        %v262 = vmul.f32 %v222, %v254
        %v263 = vmul.f32 %v223, %v254
        %v264 = vmul.f32 %v224, %v254
        %v265 = vmul.f32 %v225, %v254
        %v266 = vmul.f32 %v226, %v254
        %v267 = vmul.f32 %v227, %v254
        %v268 = vmul.f32 %v228, %v254
        %v269 = vmul.f32 %v229, %v254
        %v270 = vmul.f32 %v230, %v254
        %v271 = vmul.f32 %v231, %v254
        %v272 = vmul.f32 %v232, %v254
        %v273 = vmul.f32 %v233, %v254
        %v274 = vmul.f32 %v234, %v254
        %v275 = vmul.f32 %v235, %v254
        %v276 = vmul.f32 %v236, %v254
        %v277 = vmul.f32 %v237, %v254
        %v278 = vmul.f32 %v238, %v254
        %v279 = vmul.f32 %v239, %v254
        %v280 = vmul.f32 %v240, %v254
        %v281 = vmul.f32 %v241, %v254
        %v282 = vmul.f32 %v242, %v254
        %v283 = vmul.f32 %v243, %v254
        %v284 = vmul.f32 %v244, %v254
        %v285 = vmul.f32 %v245, %v254
        %v286 = vmul.f32 %v246, %v254
        %v287 = vmul.f32 %v247, %v254
        %v289 = vlaneseq
        %v290 = vshrl.u32 %v289, 7
        %v291 = vsub.s32 0, %v290
        %v292 = vrot.slane %v249, %v291
        %v294 = vadd.f32 %v256, %v292
        %v295 = vadd.f32 %v257, %v292
        %v296 = vadd.f32 %v258, %v292
        %v297 = vadd.f32 %v259, %v292
        %v298 = vadd.f32 %v260, %v292
        %v299 = vadd.f32 %v261, %v292
        %v300 = vadd.f32 %v262, %v292
        %v301 = vadd.f32 %v263, %v292
        %v302 = vadd.f32 %v264, %v292
        %v303 = vadd.f32 %v265, %v292
        %v304 = vadd.f32 %v266, %v292
        %v305 = vadd.f32 %v267, %v292
        %v306 = vadd.f32 %v268, %v292
        %v307 = vadd.f32 %v269, %v292
        %v308 = vadd.f32 %v270, %v292
        %v309 = vadd.f32 %v271, %v292
        %v310 = vadd.f32 %v272, %v292
        %v311 = vadd.f32 %v273, %v292
        %v312 = vadd.f32 %v274, %v292
        %v313 = vadd.f32 %v275, %v292
        %v314 = vadd.f32 %v276, %v292
        %v315 = vadd.f32 %v277, %v292
        %v316 = vadd.f32 %v278, %v292
        %v317 = vadd.f32 %v279, %v292
        %v318 = vadd.f32 %v280, %v292
        %v319 = vadd.f32 %v281, %v292
        %v320 = vadd.f32 %v282, %v292
        %v321 = vadd.f32 %v283, %v292
        %v322 = vadd.f32 %v284, %v292
        %v323 = vadd.f32 %v285, %v292
        %v324 = vadd.f32 %v286, %v292
        %v325 = vadd.f32 %v287, %v292
        %v326 = vld [vmem:[%s215] sm:$0xff]
        %v327 = vld [vmem:[%s215 + $0x8] sm:$0xff]
        %v328 = vld [vmem:[%s215 + $0x10] sm:$0xff]
        %v329 = vld [vmem:[%s215 + $0x18] sm:$0xff]
        %v330 = vld [vmem:[%s215 + $0x20] sm:$0xff]
        %v331 = vld [vmem:[%s215 + $0x28] sm:$0xff]
        %v332 = vld [vmem:[%s215 + $0x30] sm:$0xff]
        %v333 = vld [vmem:[%s215 + $0x38] sm:$0xff]
        %v334 = vld [vmem:[%s215 + $0x40] sm:$0xff]
        %v335 = vld [vmem:[%s215 + $0x48] sm:$0xff]
        %v336 = vld [vmem:[%s215 + $0x50] sm:$0xff]
        %v337 = vld [vmem:[%s215 + $0x58] sm:$0xff]
        %v338 = vld [vmem:[%s215 + $0x60] sm:$0xff]
        %v339 = vld [vmem:[%s215 + $0x68] sm:$0xff]
        %v340 = vld [vmem:[%s215 + $0x70] sm:$0xff]
        %v341 = vld [vmem:[%s215 + $0x78] sm:$0xff]
        %v342 = vld [vmem:[%s215 + $0x80] sm:$0xff]
        %v343 = vld [vmem:[%s215 + $0x88] sm:$0xff]
        %v344 = vld [vmem:[%s215 + $0x90] sm:$0xff]
        %v345 = vld [vmem:[%s215 + $0x98] sm:$0xff]
        %v346 = vld [vmem:[%s215 + $0xa0] sm:$0xff]
        %v347 = vld [vmem:[%s215 + $0xa8] sm:$0xff]
        %v348 = vld [vmem:[%s215 + $0xb0] sm:$0xff]
        %v349 = vld [vmem:[%s215 + $0xb8] sm:$0xff]
        %v350 = vld [vmem:[%s215 + $0xc0] sm:$0xff]
        %v351 = vld [vmem:[%s215 + $0xc8] sm:$0xff]
        %v352 = vld [vmem:[%s215 + $0xd0] sm:$0xff]
        %v353 = vld [vmem:[%s215 + $0xd8] sm:$0xff]
        %v354 = vld [vmem:[%s215 + $0xe0] sm:$0xff]
        %v355 = vld [vmem:[%s215 + $0xe8] sm:$0xff]
        %v356 = vld [vmem:[%s215 + $0xf0] sm:$0xff]
        %v357 = vld [vmem:[%s215 + $0xf8] sm:$0xff]
        %v358 = vadd.f32 %v294, %v326
        %v359 = vadd.f32 %v295, %v327
        %v360 = vadd.f32 %v296, %v328
        %v361 = vadd.f32 %v297, %v329
        %v362 = vadd.f32 %v298, %v330
        %v363 = vadd.f32 %v299, %v331
        %v364 = vadd.f32 %v300, %v332
        %v365 = vadd.f32 %v301, %v333
        %v366 = vadd.f32 %v302, %v334
        %v367 = vadd.f32 %v303, %v335
        %v368 = vadd.f32 %v304, %v336
        %v369 = vadd.f32 %v305, %v337
        %v370 = vadd.f32 %v306, %v338
        %v371 = vadd.f32 %v307, %v339
        %v372 = vadd.f32 %v308, %v340
        %v373 = vadd.f32 %v309, %v341
        %v374 = vadd.f32 %v310, %v342
        %v375 = vadd.f32 %v311, %v343
        %v376 = vadd.f32 %v312, %v344
        %v377 = vadd.f32 %v313, %v345
        %v378 = vadd.f32 %v314, %v346
        %v379 = vadd.f32 %v315, %v347
        %v380 = vadd.f32 %v316, %v348
        %v381 = vadd.f32 %v317, %v349
        %v382 = vadd.f32 %v318, %v350
        %v383 = vadd.f32 %v319, %v351
        %v384 = vadd.f32 %v320, %v352
        %v385 = vadd.f32 %v321, %v353
        %v386 = vadd.f32 %v322, %v354
        %v387 = vadd.f32 %v323, %v355
        %v388 = vadd.f32 %v324, %v356
        %v389 = vadd.f32 %v325, %v357
        %v390 = vmax.f32 %v358, 0.0
        %v391 = vmax.f32 %v359, 0.0
        %v392 = vmax.f32 %v360, 0.0
        %v393 = vmax.f32 %v361, 0.0
        %v394 = vmax.f32 %v362, 0.0
        %v395 = vmax.f32 %v363, 0.0
        %v396 = vmax.f32 %v364, 0.0
        %v397 = vmax.f32 %v365, 0.0
        %v398 = vmax.f32 %v366, 0.0
        %v399 = vmax.f32 %v367, 0.0
        %v400 = vmax.f32 %v368, 0.0
        %v401 = vmax.f32 %v369, 0.0
        %v402 = vmax.f32 %v370, 0.0
        %v403 = vmax.f32 %v371, 0.0
        %v404 = vmax.f32 %v372, 0.0
        %v405 = vmax.f32 %v373, 0.0
        %v406 = vmax.f32 %v374, 0.0
        %v407 = vmax.f32 %v375, 0.0
        %v408 = vmax.f32 %v376, 0.0
        %v409 = vmax.f32 %v377, 0.0
        %v410 = vmax.f32 %v378, 0.0
        %v411 = vmax.f32 %v379, 0.0
        %v412 = vmax.f32 %v380, 0.0
        %v413 = vmax.f32 %v381, 0.0
        %v414 = vmax.f32 %v382, 0.0
        %v415 = vmax.f32 %v383, 0.0
        %v416 = vmax.f32 %v384, 0.0
        %v417 = vmax.f32 %v385, 0.0
        %v418 = vmax.f32 %v386, 0.0
        %v419 = vmax.f32 %v387, 0.0
        %v420 = vmax.f32 %v388, 0.0
        %v421 = vmax.f32 %v389, 0.0
        %422 = vst [vmem:[%s205] sm:$0xff] %v390
        %423 = vst [vmem:[%s205 + $0x8] sm:$0xff] %v391
        %424 = vst [vmem:[%s205 + $0x10] sm:$0xff] %v392
        %425 = vst [vmem:[%s205 + $0x18] sm:$0xff] %v393
        %426 = vst [vmem:[%s205 + $0x20] sm:$0xff] %v394
        %427 = vst [vmem:[%s205 + $0x28] sm:$0xff] %v395
        %428 = vst [vmem:[%s205 + $0x30] sm:$0xff] %v396
        %429 = vst [vmem:[%s205 + $0x38] sm:$0xff] %v397
        %430 = vst [vmem:[%s205 + $0x40] sm:$0xff] %v398
        %431 = vst [vmem:[%s205 + $0x48] sm:$0xff] %v399
        %432 = vst [vmem:[%s205 + $0x50] sm:$0xff] %v400
        %433 = vst [vmem:[%s205 + $0x58] sm:$0xff] %v401
        %434 = vst [vmem:[%s205 + $0x60] sm:$0xff] %v402
        %435 = vst [vmem:[%s205 + $0x68] sm:$0xff] %v403
        %436 = vst [vmem:[%s205 + $0x70] sm:$0xff] %v404
        %437 = vst [vmem:[%s205 + $0x78] sm:$0xff] %v405
        %438 = vst [vmem:[%s205 + $0x80] sm:$0xff] %v406
        %439 = vst [vmem:[%s205 + $0x88] sm:$0xff] %v407
        %440 = vst [vmem:[%s205 + $0x90] sm:$0xff] %v408
        %441 = vst [vmem:[%s205 + $0x98] sm:$0xff] %v409
        %442 = vst [vmem:[%s205 + $0xa0] sm:$0xff] %v410
        %443 = vst [vmem:[%s205 + $0xa8] sm:$0xff] %v411
        %444 = vst [vmem:[%s205 + $0xb0] sm:$0xff] %v412
        %445 = vst [vmem:[%s205 + $0xb8] sm:$0xff] %v413
        %446 = vst [vmem:[%s205 + $0xc0] sm:$0xff] %v414
        %447 = vst [vmem:[%s205 + $0xc8] sm:$0xff] %v415
        %448 = vst [vmem:[%s205 + $0xd0] sm:$0xff] %v416
        %449 = vst [vmem:[%s205 + $0xd8] sm:$0xff] %v417
        %450 = vst [vmem:[%s205 + $0xe0] sm:$0xff] %v418
        %451 = vst [vmem:[%s205 + $0xe8] sm:$0xff] %v419
        %452 = vst [vmem:[%s205 + $0xf0] sm:$0xff] %v420
        %453 = vst [vmem:[%s205 + $0xf8] sm:$0xff] %v421
        %s454 = sand.u32 %s120, 1
        %s455 = scalar_lea.sflag [#allocation3], %s454
        %s456 = sand.u32 %s120, 1
        %s457 = smul.addr %s456, 256
        %s458 = scalar_lea.vmem [#allocation2], %s457
        // Predicated region
        $region37: #{basic_block_forward.5} parent=35 // pred_check
          %p459 = pneg %p130
        $region38: #{basic_block_forward.5} parent=35 // pred_check_branch
          %461 = sbr.rel (%p459) target = $region40
        $region39: #{basic_block_forward.5} parent=35 // pred_region
          %s463 = ssub.s32 4096, 4096
          %464 = vsyncadd %s455, %s463
          %s465 = smul.addr %s18, 32
          %s466 = smul.addr %s465, 128
          %s467 = scalar_lea.hbm %s4, %s466
          %s468 = sshll.u32 %s458, 4
          %s469 = int_to_ptr.vmem [resolvable:$true] %s468
          %474 = dma.vmem_to_hbm [thread:$0]  %s469, 4096, %s467, %s455, 128, 128, 8
        $region40: #{basic_block_forward.5} parent=35 // pred_fallthru
          _
      $region36: #{basic_block_forward.5} parent=5 // pred_fallthru
        _
      %p475 = scmp.le.s32.totalorder 2, %s13
      // Predicated region
      $region41: #{basic_block_forward.5} parent=5 // pred_check
        %p476 = pneg %p475
      $region42: #{basic_block_forward.5} parent=5 // pred_check_branch
        %478 = sbr.rel (%p476) target = $region44
      $region43: #{basic_block_forward.5} parent=5 // pred_region
        %s479 = ssub.s32 %s13, 2
        // Predicated region
        $region45: #{basic_block_forward.5} parent=43 // pred_check
          %p480 = pneg %p136
        $region46: #{basic_block_forward.5} parent=43 // pred_check_branch
          %482 = sbr.rel (%p480) target = $region48
        $region47: #{basic_block_forward.5} parent=43 // pred_region
          %s483 = sand.u32 %s121, 1
          %s484 = scalar_lea.sflag [#allocation3], %s483
          %s485 = sand.u32 %s121, 1
          %s486 = smul.addr %s485, 256
          %s487 = scalar_lea.vmem [#allocation2], %s486
          %488 = dma.done %s484, 4096
        $region48: #{basic_block_forward.5} parent=43 // pred_fallthru
          _
      $region44: #{basic_block_forward.5} parent=5 // pred_fallthru
        _
    $region6: #{basic_block_forward.5} parent=1 // loop_footer
      %s17 = sadd.s32 1, %s13
    $region7: #{basic_block_forward.5} parent=1 // loop_footer_branch
      %12 = sbr.rel target = $region3
    $region8: #{basic_block_forward.5} parent=1 // loop_exit
      _
    %489 = vsyncpa [#allocation3], 1
    %s490 = scalar_lea.sflag [#allocation3], 1
    %491 = vsyncpa %s490, 1

// kernel: basic_block_forward.3
$region0: #{basic_block_forward.3}
  #allocation0 [shape = 'u32[]', space=smem, size = 0x4, offset = 0x4, fixed_abs, tag = 'smem constant byte address 0x4 - core index']
  #allocation1 [shape = 'u32[144,128]{1,0:T(1,128)}', space=vmem, size = 0x12000, scoped, tag = 'internal scratch']
  #allocation2 [shape = 'f32[18,18,128]{2,1,0:T(8,128)}', space=vmem, size = 0x36000, scoped, tag = 'scratch operand']
  %s0 = inlined_call_operand.hbm [shape: f32[2,16,16,128], index: 0, kind: input, shape index: {}]
  %s1 = inlined_call_operand.hbm [shape: f32[3,384,128], index: 1, kind: input, shape index: {}]
  %s2 = inlined_call_operand.vmem [shape: f32[1,128], index: 2, kind: input, shape index: {}]
  %s3 = inlined_call_operand.vmem [shape: f32[1,128], index: 3, kind: input, shape index: {}]
  %s4 = inlined_call_operand.vmem [shape: f32[2,16,16,128], index: 4, kind: output, shape index: {0}]
  %s5 = inlined_call_operand.vmem [shape: f32[2,2,128], index: 5, kind: output, shape index: {1}]
  %6 = xla_tuple %s4, %s5
  %s7 = sld [smem:[#allocation0]]
  $region65: #{basic_block_forward.3} parent=0
    _
  %s9 = ssub.s32 1, %s7
  %s10 = scalar_select 0, %s9, %s7
  $region1: #{basic_block_forward.3} parent=0
    #allocation3 [shape = 'u8[262144]{0}', space=vmem, size = 0x40000, scoped, tag = 'input window, operand 0']
    #allocation4 [shape = 's32[2]{0}', space=sflag, size = 0x8, scoped, tag = 'scoped memory for basic_block_forward.3']
    #allocation5 [shape = 'u8[589824]{0}', space=vmem, size = 0x90000, scoped, tag = 'input window, operand 1, single buffered']
    #allocation6 [shape = 's32[1]{0}', space=sflag, size = 0x4, scoped, tag = 'scoped memory for basic_block_forward.3']
    %11 = vsyncpa [#allocation4], 0
    %s12 = scalar_lea.sflag [#allocation4], 1
    %13 = vsyncpa %s12, 0
    %14 = vsyncpa [#allocation6], 0
    loop: start=0, step=1, limit=4
    $region2: #{basic_block_forward.3} parent=1 // loop_pre_header
      _
    $region3: #{basic_block_forward.3} parent=1 // loop_header
      %s16 = sphi 0, %s20
      %p17 = scmp.ge.s32.totalorder %s16, 4
      %s26 = sphi 0, %s28
      %s29 = sphi 0, %s26
      %s30 = sphi 0, %s29
      %s46 = sphi 0, %s30
      %s50 = sphi 0, %s50
      %s52 = sphi 0, %s50
      %s53 = sphi 0, %s52
      %s67 = sphi 0, %s53
      %s71 = sphi 0, %s71
      %s73 = sphi 0, %s71
      %s74 = sphi 0, %s73
      %s88 = sphi 0, %s74
      %s92 = sphi 0, %s92
      %s94 = sphi 0, %s92
      %s95 = sphi 0, %s94
      %s109 = sphi 0, %s95
      %s115 = sphi 0, %s117
      %s118 = sphi 0, %s115
      %s119 = sphi 0, %s118
      %s135 = sphi 0, %s119
      %s141 = sphi 0, %s143
      %s144 = sphi 0, %s141
      %s145 = sphi 0, %s144
      %s161 = sphi 0, %s145
    $region4: #{basic_block_forward.3} parent=1 // loop_header_branch
      %19 = sbr.rel (%p17) target = $region8
    $region5: #{basic_block_forward.3} parent=1 // loop_body
      %s21 = ssub.s32 %s16, 1
      %s22 = ssub.s32 %s16, 2
      %s23 = sadd.s32 %s16, 1
      %s24 = ssub.s32 %s16, %s23
      %p25 = scmp.eq.s32.totalorder %s24, 0
      %s27 = sadd.s32 %s26, 1
      %s28 = scalar_select %p25, %s26, %s27
      %p31 = pneg %p25
      %p32 = scmp.eq.s32.totalorder %s16, 1
      %p33 = por %p31, %p32
      %p34 = scmp.ne.s32.totalorder %s26, %s29
      %p35 = scmp.eq.s32.totalorder %s16, 0
      %p36 = por %p34, %p35
      %p37 = scmp.ne.s32.totalorder %s26, %s29
      %p38 = scmp.eq.s32.totalorder %s21, 1
      %p39 = por %p37, %p38
      %p40 = scmp.ne.s32.totalorder %s29, %s30
      %p41 = scmp.eq.s32.totalorder %s21, 0
      %p42 = por %p40, %p41
      %p43 = scmp.ne.s32.totalorder %s29, %s30
      %p44 = scmp.eq.s32.totalorder %s22, 1
      %p45 = por %p43, %p44
      %p47 = scmp.ne.s32.totalorder %s30, %s46
      %p48 = scmp.eq.s32.totalorder %s22, 0
      %p49 = por %p47, %p48
      %s51 = sadd.s32 %s50, 1
      %p54 = scmp.eq.s32.totalorder %s16, 1
      %p55 = scmp.ne.s32.totalorder %s50, %s52
      %p56 = scmp.eq.s32.totalorder %s16, 0
      %p57 = por %p55, %p56
      %p58 = scmp.ne.s32.totalorder %s50, %s52
      %p59 = scmp.eq.s32.totalorder %s21, 1
      %p60 = por %p58, %p59
      %p61 = scmp.ne.s32.totalorder %s52, %s53
      %p62 = scmp.eq.s32.totalorder %s21, 0
      %p63 = por %p61, %p62
      %p64 = scmp.ne.s32.totalorder %s52, %s53
      %p65 = scmp.eq.s32.totalorder %s22, 1
      %p66 = por %p64, %p65
      %p68 = scmp.ne.s32.totalorder %s53, %s67
      %p69 = scmp.eq.s32.totalorder %s22, 0
      %p70 = por %p68, %p69
      %s72 = sadd.s32 %s71, 1
      %p75 = scmp.eq.s32.totalorder %s16, 1
      %p76 = scmp.ne.s32.totalorder %s71, %s73
      %p77 = scmp.eq.s32.totalorder %s16, 0
      %p78 = por %p76, %p77
      %p79 = scmp.ne.s32.totalorder %s71, %s73
      %p80 = scmp.eq.s32.totalorder %s21, 1
      %p81 = por %p79, %p80
      %p82 = scmp.ne.s32.totalorder %s73, %s74
      %p83 = scmp.eq.s32.totalorder %s21, 0
      %p84 = por %p82, %p83
      %p85 = scmp.ne.s32.totalorder %s73, %s74
      %p86 = scmp.eq.s32.totalorder %s22, 1
      %p87 = por %p85, %p86
      %p89 = scmp.ne.s32.totalorder %s74, %s88
      %p90 = scmp.eq.s32.totalorder %s22, 0
      %p91 = por %p89, %p90
      %s93 = sadd.s32 %s92, 1
      %p96 = scmp.eq.s32.totalorder %s16, 1
      %p97 = scmp.ne.s32.totalorder %s92, %s94
      %p98 = scmp.eq.s32.totalorder %s16, 0
      %p99 = por %p97, %p98
      %p100 = scmp.ne.s32.totalorder %s92, %s94
      %p101 = scmp.eq.s32.totalorder %s21, 1
      %p102 = por %p100, %p101
      %p103 = scmp.ne.s32.totalorder %s94, %s95
      %p104 = scmp.eq.s32.totalorder %s21, 0
      %p105 = por %p103, %p104
      %p106 = scmp.ne.s32.totalorder %s94, %s95
      %p107 = scmp.eq.s32.totalorder %s22, 1
      %p108 = por %p106, %p107
      %p110 = scmp.ne.s32.totalorder %s95, %s109
      %p111 = scmp.eq.s32.totalorder %s22, 0
      %p112 = por %p110, %p111
      %s113 = ssub.s32 %s16, %s23
      %p114 = scmp.eq.s32.totalorder %s113, 0
      %s116 = sadd.s32 %s115, 1
      %s117 = scalar_select %p114, %s115, %s116
      %p120 = pneg %p114
      %p121 = scmp.eq.s32.totalorder %s16, 1
      %p122 = por %p120, %p121
      %p123 = scmp.ne.s32.totalorder %s115, %s118
      %p124 = scmp.eq.s32.totalorder %s16, 0
      %p125 = por %p123, %p124
      %p126 = scmp.ne.s32.totalorder %s115, %s118
      %p127 = scmp.eq.s32.totalorder %s21, 1
      %p128 = por %p126, %p127
      %p129 = scmp.ne.s32.totalorder %s118, %s119
      %p130 = scmp.eq.s32.totalorder %s21, 0
      %p131 = por %p129, %p130
      %p132 = scmp.ne.s32.totalorder %s118, %s119
      %p133 = scmp.eq.s32.totalorder %s22, 1
      %p134 = por %p132, %p133
      %p136 = scmp.ne.s32.totalorder %s119, %s135
      %p137 = scmp.eq.s32.totalorder %s22, 0
      %p138 = por %p136, %p137
      %s139 = ssub.s32 %s16, %s23
      %p140 = scmp.eq.s32.totalorder %s139, 0
      %s142 = sadd.s32 %s141, 1
      %s143 = scalar_select %p140, %s141, %s142
      %p146 = pneg %p140
      %p147 = scmp.eq.s32.totalorder %s16, 1
      %p148 = por %p146, %p147
      %p149 = scmp.ne.s32.totalorder %s141, %s144
      %p150 = scmp.eq.s32.totalorder %s16, 0
      %p151 = por %p149, %p150
      %p152 = scmp.ne.s32.totalorder %s141, %s144
      %p153 = scmp.eq.s32.totalorder %s21, 1
      %p154 = por %p152, %p153
      %p155 = scmp.ne.s32.totalorder %s144, %s145
      %p156 = scmp.eq.s32.totalorder %s21, 0
      %p157 = por %p155, %p156
      %p158 = scmp.ne.s32.totalorder %s144, %s145
      %p159 = scmp.eq.s32.totalorder %s22, 1
      %p160 = por %p158, %p159
      %p162 = scmp.ne.s32.totalorder %s145, %s161
      %p163 = scmp.eq.s32.totalorder %s22, 0
      %p164 = por %p162, %p163
      %p165 = scmp.le.s32.totalorder 1, %s16
      %p166 = scmp.lt.s32.totalorder %s16, 3
      %p167 = pnand %p165, %p166
      %p168 = pneg %p167
      // Predicated region
      $region9: #{basic_block_forward.3} parent=5 // pred_check
        _
      $region10: #{basic_block_forward.3} parent=5 // pred_check_branch
        %170 = sbr.rel (%p167) target = $region12
      $region11: #{basic_block_forward.3} parent=5 // pred_region
        %s171 = ssub.s32 %s16, 1
        // Predicated region
        $region13: #{basic_block_forward.3} parent=11 // pred_check
          %p172 = pneg %p63
        $region14: #{basic_block_forward.3} parent=11 // pred_check_branch
          %174 = sbr.rel (%p172) target = $region16
        $region15: #{basic_block_forward.3} parent=11 // pred_region
          %s176 = ssub.s32 18432, 18432
          %177 = vsyncadd [#allocation6], %s176
          %s178 = sshll.u32 [#allocation5], 4
          %s179 = int_to_ptr.vmem [resolvable:$true] %s178
          %184 = dma.hbm_to_vmem [thread:$0]  %s1, 18432, %s179, [#allocation6], 128, 128, 8
        $region16: #{basic_block_forward.3} parent=11 // pred_fallthru
          _
        // Predicated region
        $region17: #{basic_block_forward.3} parent=11 // pred_check
          %p185 = pneg %p84
        $region18: #{basic_block_forward.3} parent=11 // pred_check_branch
          %187 = sbr.rel (%p185) target = $region20
        $region19: #{basic_block_forward.3} parent=11 // pred_region
          _
        $region20: #{basic_block_forward.3} parent=11 // pred_fallthru
          _
        // Predicated region
        $region21: #{basic_block_forward.3} parent=11 // pred_check
          %p188 = pneg %p105
        $region22: #{basic_block_forward.3} parent=11 // pred_check_branch
          %190 = sbr.rel (%p188) target = $region24
        $region23: #{basic_block_forward.3} parent=11 // pred_region
          _
        $region24: #{basic_block_forward.3} parent=11 // pred_fallthru
          _
      $region12: #{basic_block_forward.3} parent=5 // pred_fallthru
        _
      %p191 = scmp.lt.s32.totalorder %s16, 2
      // Predicated region
      $region25: #{basic_block_forward.3} parent=5 // pred_check
        %p192 = pneg %p191
      $region26: #{basic_block_forward.3} parent=5 // pred_check_branch
        %194 = sbr.rel (%p192) target = $region28
      $region27: #{basic_block_forward.3} parent=5 // pred_region
        // Predicated region
        $region29: #{basic_block_forward.3} parent=27 // pred_check
          %p195 = pneg %p36
        $region30: #{basic_block_forward.3} parent=27 // pred_check_branch
          %197 = sbr.rel (%p195) target = $region32
        $region31: #{basic_block_forward.3} parent=27 // pred_region
          %s198 = sand.u32 %s26, 1
          %s199 = scalar_lea.sflag [#allocation4], %s198
          %s200 = sand.u32 %s26, 1
          %s201 = smul.addr %s200, 256
          %s202 = scalar_lea.vmem [#allocation3], %s201
          %s204 = ssub.s32 4096, 4096
          %205 = vsyncadd %s199, %s204
          %s206 = smul.addr %s16, 32
          %s207 = smul.addr %s206, 128
          %s208 = scalar_lea.hbm %s0, %s207
          %s209 = sshll.u32 %s202, 4
          %s210 = int_to_ptr.vmem [resolvable:$true] %s209
          %215 = dma.hbm_to_vmem [thread:$0]  %s208, 4096, %s210, %s199, 128, 128, 8
        $region32: #{basic_block_forward.3} parent=27 // pred_fallthru
          _
      $region28: #{basic_block_forward.3} parent=5 // pred_fallthru
        _
      %p216 = scmp.le.s32.totalorder 1, %s16
      %p217 = scmp.lt.s32.totalorder %s16, 3
      %p218 = pnand %p216, %p217
      %p219 = pneg %p218
      // Predicated region
      $region33: #{basic_block_forward.3} parent=5 // pred_check
        _
      $region34: #{basic_block_forward.3} parent=5 // pred_check_branch
        %221 = sbr.rel (%p218) target = $region36
      $region35: #{basic_block_forward.3} parent=5 // pred_region
        %s222 = ssub.s32 %s16, 1
        %s223 = sand.u32 %s29, 1
        %s224 = scalar_lea.sflag [#allocation4], %s223
        %s225 = sand.u32 %s29, 1
        %s226 = smul.addr %s225, 256
        %s227 = scalar_lea.vmem [#allocation3], %s226
        // Predicated region
        $region37: #{basic_block_forward.3} parent=35 // pred_check
          %p228 = pneg %p42
        $region38: #{basic_block_forward.3} parent=35 // pred_check_branch
          %230 = sbr.rel (%p228) target = $region40
        $region39: #{basic_block_forward.3} parent=35 // pred_region
          %231 = dma.done %s224, 4096
        $region40: #{basic_block_forward.3} parent=35 // pred_fallthru
          _
        // Predicated region
        $region41: #{basic_block_forward.3} parent=35 // pred_check
          %p232 = pneg %p63
        $region42: #{basic_block_forward.3} parent=35 // pred_check_branch
          %234 = sbr.rel (%p232) target = $region44
        $region43: #{basic_block_forward.3} parent=35 // pred_region
          %235 = dma.done [#allocation6], 18432
        $region44: #{basic_block_forward.3} parent=35 // pred_fallthru
          _
        %s236 = sand.u32 %s29, 1
        %s237 = scalar_lea.sflag [#allocation4], %s236
        %s238 = sand.u32 %s29, 1
        %s239 = smul.addr %s238, 256
        %s240 = scalar_lea.vmem [#allocation3], %s239
        %p241 = pneg %p42
        %p242 = pneg %p39
        %p243 = pneg %p63
        %p244 = pneg %p60
        %p245 = pneg %p84
        %p246 = pneg %p81
        %p247 = pneg %p105
        %p248 = pneg %p102
        %p249 = pneg %p131
        %p250 = pneg %p128
        %p251 = scmp.lt.s32.totalorder %s21, 1
        %s252 = scalar_select %p251, %s21, 1
        %s253 = smul.addr %s252, 32
        %s254 = smul.addr %s253, 8
        %s255 = scalar_lea.vmem %s4, %s254
        %p256 = pneg %p157
        %p257 = pneg %p154
        %p258 = scmp.lt.s32.totalorder %s21, 1
        %s259 = scalar_select %p258, %s21, 1
        %s260 = smul.addr %s259, 2
        %s261 = scalar_lea.vmem %s5, %s260
        %p262 = scmp.lt.s32.totalorder %s21, 1
        %s263 = scalar_select %p262, %s21, 1
        %s264 = smul.addr %s263, 32
        %s265 = smul.addr %s264, 8
        %s266 = scalar_lea.vmem %s4, %s265
        %p267 = scmp.lt.s32.totalorder %s21, 1
        %s268 = scalar_select %p267, %s21, 1
        %s269 = smul.addr %s268, 2
        %s270 = scalar_lea.vmem %s5, %s269
        %v271 = vld [vmem:[%s227] sm:$0xff]
        %v272 = vld [vmem:[%s227 + $0x8] sm:$0xff]
        %v273 = vld [vmem:[%s227 + $0x10] sm:$0xff]
        %v274 = vld [vmem:[%s227 + $0x18] sm:$0xff]
        %v275 = vld [vmem:[%s227 + $0x20] sm:$0xff]
        %v276 = vld [vmem:[%s227 + $0x28] sm:$0xff]
        %v277 = vld [vmem:[%s227 + $0x30] sm:$0xff]
        %v278 = vld [vmem:[%s227 + $0x38] sm:$0xff]
        %v279 = vld [vmem:[%s227 + $0x40] sm:$0xff]
        %v280 = vld [vmem:[%s227 + $0x48] sm:$0xff]
        %v281 = vld [vmem:[%s227 + $0x50] sm:$0xff]
        %v282 = vld [vmem:[%s227 + $0x58] sm:$0xff]
        %v283 = vld [vmem:[%s227 + $0x60] sm:$0xff]
        %v284 = vld [vmem:[%s227 + $0x68] sm:$0xff]
        %v285 = vld [vmem:[%s227 + $0x70] sm:$0xff]
        %v286 = vld [vmem:[%s227 + $0x78] sm:$0xff]
        %v287 = vld [vmem:[%s227 + $0x80] sm:$0xff]
        %v288 = vld [vmem:[%s227 + $0x88] sm:$0xff]
        %v289 = vld [vmem:[%s227 + $0x90] sm:$0xff]
        %v290 = vld [vmem:[%s227 + $0x98] sm:$0xff]
        %v291 = vld [vmem:[%s227 + $0xa0] sm:$0xff]
        %v292 = vld [vmem:[%s227 + $0xa8] sm:$0xff]
        %v293 = vld [vmem:[%s227 + $0xb0] sm:$0xff]
        %v294 = vld [vmem:[%s227 + $0xb8] sm:$0xff]
        %v295 = vld [vmem:[%s227 + $0xc0] sm:$0xff]
        %v296 = vld [vmem:[%s227 + $0xc8] sm:$0xff]
        %v297 = vld [vmem:[%s227 + $0xd0] sm:$0xff]
        %v298 = vld [vmem:[%s227 + $0xd8] sm:$0xff]
        %v299 = vld [vmem:[%s227 + $0xe0] sm:$0xff]
        %v300 = vld [vmem:[%s227 + $0xe8] sm:$0xff]
        %v301 = vld [vmem:[%s227 + $0xf0] sm:$0xff]
        %v302 = vld [vmem:[%s227 + $0xf8] sm:$0xff]
        %303 = vst [vmem:[#allocation2] sm:$0xff] 0.0
        %304 = vst [vmem:[#allocation2 + $0x8] sm:$0xff] 0.0
        %305 = vst [vmem:[#allocation2 + $0x10] sm:$0x3] 0.0
        %306 = vst [vmem:[#allocation2 + $0x18] sm:$0xff] 0.0
        %307 = vst [vmem:[#allocation2 + $0x20] sm:$0xff] 0.0
        %308 = vst [vmem:[#allocation2 + $0x28] sm:$0x3] 0.0
        %309 = vst [vmem:[#allocation2 + $0x30] sm:$0xff] 0.0
        %310 = vst [vmem:[#allocation2 + $0x38] sm:$0xff] 0.0
        %311 = vst [vmem:[#allocation2 + $0x40] sm:$0x3] 0.0
        %312 = vst [vmem:[#allocation2 + $0x48] sm:$0xff] 0.0
        %313 = vst [vmem:[#allocation2 + $0x50] sm:$0xff] 0.0
        %314 = vst [vmem:[#allocation2 + $0x58] sm:$0x3] 0.0
        %315 = vst [vmem:[#allocation2 + $0x60] sm:$0xff] 0.0
        %316 = vst [vmem:[#allocation2 + $0x68] sm:$0xff] 0.0
        %317 = vst [vmem:[#allocation2 + $0x70] sm:$0x3] 0.0
        %318 = vst [vmem:[#allocation2 + $0x78] sm:$0xff] 0.0
        %319 = vst [vmem:[#allocation2 + $0x80] sm:$0xff] 0.0
        %320 = vst [vmem:[#allocation2 + $0x88] sm:$0x3] 0.0
        %321 = vst [vmem:[#allocation2 + $0x90] sm:$0xff] 0.0
        %322 = vst [vmem:[#allocation2 + $0x98] sm:$0xff] 0.0
        %323 = vst [vmem:[#allocation2 + $0xa0] sm:$0x3] 0.0
        %324 = vst [vmem:[#allocation2 + $0xa8] sm:$0xff] 0.0
        %325 = vst [vmem:[#allocation2 + $0xb0] sm:$0xff] 0.0
        %326 = vst [vmem:[#allocation2 + $0xb8] sm:$0x3] 0.0
        %327 = vst [vmem:[#allocation2 + $0xc0] sm:$0xff] 0.0
        %328 = vst [vmem:[#allocation2 + $0xc8] sm:$0xff] 0.0
        %329 = vst [vmem:[#allocation2 + $0xd0] sm:$0x3] 0.0
        %330 = vst [vmem:[#allocation2 + $0xd8] sm:$0xff] 0.0
        %331 = vst [vmem:[#allocation2 + $0xe0] sm:$0xff] 0.0
        %332 = vst [vmem:[#allocation2 + $0xe8] sm:$0x3] 0.0
        %333 = vst [vmem:[#allocation2 + $0xf0] sm:$0xff] 0.0
        %334 = vst [vmem:[#allocation2 + $0xf8] sm:$0xff] 0.0
        %335 = vst [vmem:[#allocation2 + $0x100] sm:$0x3] 0.0
        %336 = vst [vmem:[#allocation2 + $0x108] sm:$0xff] 0.0
        %337 = vst [vmem:[#allocation2 + $0x110] sm:$0xff] 0.0
        %338 = vst [vmem:[#allocation2 + $0x118] sm:$0x3] 0.0
        %339 = vst [vmem:[#allocation2 + $0x120] sm:$0xff] 0.0
        %340 = vst [vmem:[#allocation2 + $0x128] sm:$0xff] 0.0
        %341 = vst [vmem:[#allocation2 + $0x130] sm:$0x3] 0.0
        %342 = vst [vmem:[#allocation2 + $0x138] sm:$0xff] 0.0
        %343 = vst [vmem:[#allocation2 + $0x140] sm:$0xff] 0.0
        %344 = vst [vmem:[#allocation2 + $0x148] sm:$0x3] 0.0
        %345 = vst [vmem:[#allocation2 + $0x150] sm:$0xff] 0.0
        %346 = vst [vmem:[#allocation2 + $0x158] sm:$0xff] 0.0
        %347 = vst [vmem:[#allocation2 + $0x160] sm:$0x3] 0.0
        %348 = vst [vmem:[#allocation2 + $0x168] sm:$0xff] 0.0
        %349 = vst [vmem:[#allocation2 + $0x170] sm:$0xff] 0.0
        %350 = vst [vmem:[#allocation2 + $0x178] sm:$0x3] 0.0
        %351 = vst [vmem:[#allocation2 + $0x180] sm:$0xff] 0.0
        %352 = vst [vmem:[#allocation2 + $0x188] sm:$0xff] 0.0
        %353 = vst [vmem:[#allocation2 + $0x190] sm:$0x3] 0.0
        %354 = vst [vmem:[#allocation2 + $0x198] sm:$0xff] 0.0
        %355 = vst [vmem:[#allocation2 + $0x1a0] sm:$0xff] 0.0
        %356 = vst [vmem:[#allocation2 + $0x1a8] sm:$0x3] 0.0
        %s357 = scalar_lea.vmem [#allocation2], 24
        %358 = vst [vmem:[%s357 + $0x1] sm:$0xff] %v271
        %359 = vst [vmem:[%s357 + $0x9] sm:$0xff] %v272
        %360 = vst [vmem:[%s357 + $0x19] sm:$0xff] %v273
        %361 = vst [vmem:[%s357 + $0x21] sm:$0xff] %v274
        %362 = vst [vmem:[%s357 + $0x31] sm:$0xff] %v275
        %363 = vst [vmem:[%s357 + $0x39] sm:$0xff] %v276
        %364 = vst [vmem:[%s357 + $0x49] sm:$0xff] %v277
        %365 = vst [vmem:[%s357 + $0x51] sm:$0xff] %v278
        %366 = vst [vmem:[%s357 + $0x61] sm:$0xff] %v279
        %367 = vst [vmem:[%s357 + $0x69] sm:$0xff] %v280
        %368 = vst [vmem:[%s357 + $0x79] sm:$0xff] %v281
        %369 = vst [vmem:[%s357 + $0x81] sm:$0xff] %v282
        %370 = vst [vmem:[%s357 + $0x91] sm:$0xff] %v283
        %371 = vst [vmem:[%s357 + $0x99] sm:$0xff] %v284
        %372 = vst [vmem:[%s357 + $0xa9] sm:$0xff] %v285
        %373 = vst [vmem:[%s357 + $0xb1] sm:$0xff] %v286
        %374 = vst [vmem:[%s357 + $0xc1] sm:$0xff] %v287
        %375 = vst [vmem:[%s357 + $0xc9] sm:$0xff] %v288
        %376 = vst [vmem:[%s357 + $0xd9] sm:$0xff] %v289
        %377 = vst [vmem:[%s357 + $0xe1] sm:$0xff] %v290
        %378 = vst [vmem:[%s357 + $0xf1] sm:$0xff] %v291
        %379 = vst [vmem:[%s357 + $0xf9] sm:$0xff] %v292
        %380 = vst [vmem:[%s357 + $0x109] sm:$0xff] %v293
        %381 = vst [vmem:[%s357 + $0x111] sm:$0xff] %v294
        %382 = vst [vmem:[%s357 + $0x121] sm:$0xff] %v295
        %383 = vst [vmem:[%s357 + $0x129] sm:$0xff] %v296
        %384 = vst [vmem:[%s357 + $0x139] sm:$0xff] %v297
        %385 = vst [vmem:[%s357 + $0x141] sm:$0xff] %v298
        %386 = vst [vmem:[%s357 + $0x151] sm:$0xff] %v299
        %387 = vst [vmem:[%s357 + $0x159] sm:$0xff] %v300
        %388 = vst [vmem:[%s357 + $0x169] sm:$0xff] %v301
        %389 = vst [vmem:[%s357 + $0x171] sm:$0xff] %v302
        %v390 = vld [vmem:[#allocation2] sm:$0xff]
        %v391 = vld [vmem:[#allocation2 + $0x8] sm:$0xff]
        %v392 = vld [vmem:[#allocation2 + $0x10] sm:$0x3]
        %v393 = vld [vmem:[#allocation2 + $0x18] sm:$0xff]
        %v394 = vld [vmem:[#allocation2 + $0x20] sm:$0xff]
        %v395 = vld [vmem:[#allocation2 + $0x28] sm:$0x3]
        %v396 = vld [vmem:[#allocation2 + $0x30] sm:$0xff]
        %v397 = vld [vmem:[#allocation2 + $0x38] sm:$0xff]
        %v398 = vld [vmem:[#allocation2 + $0x40] sm:$0x3]
        %v399 = vld [vmem:[#allocation2 + $0x48] sm:$0xff]
        %v400 = vld [vmem:[#allocation2 + $0x50] sm:$0xff]
        %v401 = vld [vmem:[#allocation2 + $0x58] sm:$0x3]
        %v402 = vld [vmem:[#allocation2 + $0x60] sm:$0xff]
        %v403 = vld [vmem:[#allocation2 + $0x68] sm:$0xff]
        %v404 = vld [vmem:[#allocation2 + $0x70] sm:$0x3]
        %v405 = vld [vmem:[#allocation2 + $0x78] sm:$0xff]
        %v406 = vld [vmem:[#allocation2 + $0x80] sm:$0xff]
        %v407 = vld [vmem:[#allocation2 + $0x88] sm:$0x3]
        %v408 = vld [vmem:[#allocation2 + $0x90] sm:$0xff]
        %v409 = vld [vmem:[#allocation2 + $0x98] sm:$0xff]
        %v410 = vld [vmem:[#allocation2 + $0xa0] sm:$0x3]
        %v411 = vld [vmem:[#allocation2 + $0xa8] sm:$0xff]
        %v412 = vld [vmem:[#allocation2 + $0xb0] sm:$0xff]
        %v413 = vld [vmem:[#allocation2 + $0xb8] sm:$0x3]
        %v414 = vld [vmem:[#allocation2 + $0xc0] sm:$0xff]
        %v415 = vld [vmem:[#allocation2 + $0xc8] sm:$0xff]
        %v416 = vld [vmem:[#allocation2 + $0xd0] sm:$0x3]
        %v417 = vld [vmem:[#allocation2 + $0xd8] sm:$0xff]
        %v418 = vld [vmem:[#allocation2 + $0xe0] sm:$0xff]
        %v419 = vld [vmem:[#allocation2 + $0xe8] sm:$0x3]
        %v420 = vld [vmem:[#allocation2 + $0xf0] sm:$0xff]
        %v421 = vld [vmem:[#allocation2 + $0xf8] sm:$0xff]
        %v422 = vld [vmem:[#allocation2 + $0x100] sm:$0x3]
        %v423 = vld [vmem:[#allocation2 + $0x108] sm:$0xff]
        %v424 = vld [vmem:[#allocation2 + $0x110] sm:$0xff]
        %v425 = vld [vmem:[#allocation2 + $0x118] sm:$0x3]
        %v426 = vld [vmem:[#allocation2 + $0x120] sm:$0xff]
        %v427 = vld [vmem:[#allocation2 + $0x128] sm:$0xff]
        %v428 = vld [vmem:[#allocation2 + $0x130] sm:$0x3]
        %v429 = vld [vmem:[#allocation2 + $0x138] sm:$0xff]
        %v430 = vld [vmem:[#allocation2 + $0x140] sm:$0xff]
        %v431 = vld [vmem:[#allocation2 + $0x148] sm:$0x3]
        %v432 = vld [vmem:[#allocation2 + $0x150] sm:$0xff]
        %v433 = vld [vmem:[#allocation2 + $0x158] sm:$0xff]
        %v434 = vld [vmem:[#allocation2 + $0x160] sm:$0x3]
        %v435 = vld [vmem:[#allocation2 + $0x168] sm:$0xff]
        %v436 = vld [vmem:[#allocation2 + $0x170] sm:$0xff]
        %v437 = vld [vmem:[#allocation2 + $0x178] sm:$0x3]
        %vm486 = vcmask 1046528
        %v487 = vrot.slane %v390, 1
        %v488 = vrot.slane %v391, 1
        %v489 = vsel %vm486, %v487, %v488
        %v490 = vrot.slane %v392, 1
        %v491 = vsel %vm486, %v488, %v490
        %v492 = vrot.slane %v393, 1
        %v493 = vrot.slane %v394, 1
        %v494 = vsel %vm486, %v492, %v493
        %v495 = vrot.slane %v395, 1
        %v496 = vsel %vm486, %v493, %v495
        %v497 = vrot.slane %v396, 1
        %v498 = vrot.slane %v397, 1
        %v499 = vsel %vm486, %v497, %v498
        %v500 = vrot.slane %v398, 1
        %v501 = vsel %vm486, %v498, %v500
        %v502 = vrot.slane %v399, 1
        %v503 = vrot.slane %v400, 1
        %v504 = vsel %vm486, %v502, %v503
        %v505 = vrot.slane %v401, 1
        %v506 = vsel %vm486, %v503, %v505
        %v507 = vrot.slane %v402, 1
        %v508 = vrot.slane %v403, 1
        %v509 = vsel %vm486, %v507, %v508
        %v510 = vrot.slane %v404, 1
        %v511 = vsel %vm486, %v508, %v510
        %v512 = vrot.slane %v405, 1
        %v513 = vrot.slane %v406, 1
        %v514 = vsel %vm486, %v512, %v513
        %v515 = vrot.slane %v407, 1
        %v516 = vsel %vm486, %v513, %v515
        %v517 = vrot.slane %v408, 1
        %v518 = vrot.slane %v409, 1
        %v519 = vsel %vm486, %v517, %v518
        %v520 = vrot.slane %v410, 1
        %v521 = vsel %vm486, %v518, %v520
        %v522 = vrot.slane %v411, 1
        %v523 = vrot.slane %v412, 1
        %v524 = vsel %vm486, %v522, %v523
        %v525 = vrot.slane %v413, 1
        %v526 = vsel %vm486, %v523, %v525
        %v527 = vrot.slane %v414, 1
        %v528 = vrot.slane %v415, 1
        %v529 = vsel %vm486, %v527, %v528
        %v530 = vrot.slane %v416, 1
        %v531 = vsel %vm486, %v528, %v530
        %v532 = vrot.slane %v417, 1
        %v533 = vrot.slane %v418, 1
        %v534 = vsel %vm486, %v532, %v533
        %v535 = vrot.slane %v419, 1
        %v536 = vsel %vm486, %v533, %v535
        %v537 = vrot.slane %v420, 1
        %v538 = vrot.slane %v421, 1
        %v539 = vsel %vm486, %v537, %v538
        %v540 = vrot.slane %v422, 1
        %v541 = vsel %vm486, %v538, %v540
        %v542 = vrot.slane %v423, 1
        %v543 = vrot.slane %v424, 1
        %v544 = vsel %vm486, %v542, %v543
        %v545 = vrot.slane %v425, 1
        %v546 = vsel %vm486, %v543, %v545
        %v547 = vrot.slane %v426, 1
        %v548 = vrot.slane %v427, 1
        %v549 = vsel %vm486, %v547, %v548
        %v550 = vrot.slane %v428, 1
        %v551 = vsel %vm486, %v548, %v550
        %v552 = vrot.slane %v429, 1
        %v553 = vrot.slane %v430, 1
        %v554 = vsel %vm486, %v552, %v553
        %v555 = vrot.slane %v431, 1
        %v556 = vsel %vm486, %v553, %v555
        %v557 = vrot.slane %v432, 1
        %v558 = vrot.slane %v433, 1
        %v559 = vsel %vm486, %v557, %v558
        %v560 = vrot.slane %v434, 1
        %v561 = vsel %vm486, %v558, %v560
        %v562 = vrot.slane %v435, 1
        %v563 = vrot.slane %v436, 1
        %v564 = vsel %vm486, %v562, %v563
        %v565 = vrot.slane %v437, 1
        %v566 = vsel %vm486, %v563, %v565
        %vm599 = vcmask 1045504
        %v600 = vrot.slane %v390, 2
        %v601 = vrot.slane %v391, 2
        %v602 = vsel %vm599, %v600, %v601
        %v603 = vrot.slane %v392, 2
        %v604 = vsel %vm599, %v601, %v603
        %v605 = vrot.slane %v393, 2
        %v606 = vrot.slane %v394, 2
        %v607 = vsel %vm599, %v605, %v606
        %v608 = vrot.slane %v395, 2
        %v609 = vsel %vm599, %v606, %v608
        %v610 = vrot.slane %v396, 2
        %v611 = vrot.slane %v397, 2
        %v612 = vsel %vm599, %v610, %v611
        %v613 = vrot.slane %v398, 2
        %v614 = vsel %vm599, %v611, %v613
        %v615 = vrot.slane %v399, 2
        %v616 = vrot.slane %v400, 2
        %v617 = vsel %vm599, %v615, %v616
        %v618 = vrot.slane %v401, 2
        %v619 = vsel %vm599, %v616, %v618
        %v620 = vrot.slane %v402, 2
        %v621 = vrot.slane %v403, 2
        %v622 = vsel %vm599, %v620, %v621
        %v623 = vrot.slane %v404, 2
        %v624 = vsel %vm599, %v621, %v623
        %v625 = vrot.slane %v405, 2
        %v626 = vrot.slane %v406, 2
        %v627 = vsel %vm599, %v625, %v626
        %v628 = vrot.slane %v407, 2
        %v629 = vsel %vm599, %v626, %v628
        %v630 = vrot.slane %v408, 2
        %v631 = vrot.slane %v409, 2
        %v632 = vsel %vm599, %v630, %v631
        %v633 = vrot.slane %v410, 2
        %v634 = vsel %vm599, %v631, %v633
        %v635 = vrot.slane %v411, 2
        %v636 = vrot.slane %v412, 2
        %v637 = vsel %vm599, %v635, %v636
        %v638 = vrot.slane %v413, 2
        %v639 = vsel %vm599, %v636, %v638
        %v640 = vrot.slane %v414, 2
        %v641 = vrot.slane %v415, 2
        %v642 = vsel %vm599, %v640, %v641
        %v643 = vrot.slane %v416, 2
        %v644 = vsel %vm599, %v641, %v643
        %v645 = vrot.slane %v417, 2
        %v646 = vrot.slane %v418, 2
        %v647 = vsel %vm599, %v645, %v646
        %v648 = vrot.slane %v419, 2
        %v649 = vsel %vm599, %v646, %v648
        %v650 = vrot.slane %v420, 2
        %v651 = vrot.slane %v421, 2
        %v652 = vsel %vm599, %v650, %v651
        %v653 = vrot.slane %v422, 2
        %v654 = vsel %vm599, %v651, %v653
        %v655 = vrot.slane %v423, 2
        %v656 = vrot.slane %v424, 2
        %v657 = vsel %vm599, %v655, %v656
        %v658 = vrot.slane %v425, 2
        %v659 = vsel %vm599, %v656, %v658
        %v660 = vrot.slane %v426, 2
        %v661 = vrot.slane %v427, 2
        %v662 = vsel %vm599, %v660, %v661
        %v663 = vrot.slane %v428, 2
        %v664 = vsel %vm599, %v661, %v663
        %v665 = vrot.slane %v429, 2
        %v666 = vrot.slane %v430, 2
        %v667 = vsel %vm599, %v665, %v666
        %v668 = vrot.slane %v431, 2
        %v669 = vsel %vm599, %v666, %v668
        %v670 = vrot.slane %v432, 2
        %v671 = vrot.slane %v433, 2
        %v672 = vsel %vm599, %v670, %v671
        %v673 = vrot.slane %v434, 2
        %v674 = vsel %vm599, %v671, %v673
        %v675 = vrot.slane %v435, 2
        %v676 = vrot.slane %v436, 2
        %v677 = vsel %vm599, %v675, %v676
        %v678 = vrot.slane %v437, 2
        %v679 = vsel %vm599, %v676, %v678
        %v712 = vld [vmem:[#allocation5] sm:$0xff]
        %v713 = vld [vmem:[#allocation5 + $0x8] sm:$0xff]
        %v714 = vld [vmem:[#allocation5 + $0x10] sm:$0xff]
        %v715 = vld [vmem:[#allocation5 + $0x18] sm:$0xff]
        %v716 = vld [vmem:[#allocation5 + $0x20] sm:$0xff]
        %v717 = vld [vmem:[#allocation5 + $0x28] sm:$0xff]
        %v718 = vld [vmem:[#allocation5 + $0x30] sm:$0xff]
        %v719 = vld [vmem:[#allocation5 + $0x38] sm:$0xff]
        %v720 = vld [vmem:[#allocation5 + $0x40] sm:$0xff]
        %v721 = vld [vmem:[#allocation5 + $0x48] sm:$0xff]
        %v722 = vld [vmem:[#allocation5 + $0x50] sm:$0xff]
        %v723 = vld [vmem:[#allocation5 + $0x58] sm:$0xff]
        %v724 = vld [vmem:[#allocation5 + $0x60] sm:$0xff]
        %v725 = vld [vmem:[#allocation5 + $0x68] sm:$0xff]
        %v726 = vld [vmem:[#allocation5 + $0x70] sm:$0xff]
        %v727 = vld [vmem:[#allocation5 + $0x78] sm:$0xff]
        %v728 = vld [vmem:[#allocation5 + $0x80] sm:$0xff]
        %v729 = vld [vmem:[#allocation5 + $0x88] sm:$0xff]
        %v730 = vld [vmem:[#allocation5 + $0x90] sm:$0xff]
        %v731 = vld [vmem:[#allocation5 + $0x98] sm:$0xff]
        %v732 = vld [vmem:[#allocation5 + $0xa0] sm:$0xff]
        %v733 = vld [vmem:[#allocation5 + $0xa8] sm:$0xff]
        %v734 = vld [vmem:[#allocation5 + $0xb0] sm:$0xff]
        %v735 = vld [vmem:[#allocation5 + $0xb8] sm:$0xff]
        %v736 = vld [vmem:[#allocation5 + $0xc0] sm:$0xff]
        %v737 = vld [vmem:[#allocation5 + $0xc8] sm:$0xff]
        %v738 = vld [vmem:[#allocation5 + $0xd0] sm:$0xff]
        %v739 = vld [vmem:[#allocation5 + $0xd8] sm:$0xff]
        %v740 = vld [vmem:[#allocation5 + $0xe0] sm:$0xff]
        %v741 = vld [vmem:[#allocation5 + $0xe8] sm:$0xff]
        %v742 = vld [vmem:[#allocation5 + $0xf0] sm:$0xff]
        %v743 = vld [vmem:[#allocation5 + $0xf8] sm:$0xff]
        %v744 = vld [vmem:[#allocation5 + $0x100] sm:$0xff]
        %v745 = vld [vmem:[#allocation5 + $0x108] sm:$0xff]
        %v746 = vld [vmem:[#allocation5 + $0x110] sm:$0xff]
        %v747 = vld [vmem:[#allocation5 + $0x118] sm:$0xff]
        %v748 = vld [vmem:[#allocation5 + $0x120] sm:$0xff]
        %v749 = vld [vmem:[#allocation5 + $0x128] sm:$0xff]
        %v750 = vld [vmem:[#allocation5 + $0x130] sm:$0xff]
        %v751 = vld [vmem:[#allocation5 + $0x138] sm:$0xff]
        %v752 = vld [vmem:[#allocation5 + $0x140] sm:$0xff]
        %v753 = vld [vmem:[#allocation5 + $0x148] sm:$0xff]
        %v754 = vld [vmem:[#allocation5 + $0x150] sm:$0xff]
        %v755 = vld [vmem:[#allocation5 + $0x158] sm:$0xff]
        %v756 = vld [vmem:[#allocation5 + $0x160] sm:$0xff]
        %v757 = vld [vmem:[#allocation5 + $0x168] sm:$0xff]
        %v758 = vld [vmem:[#allocation5 + $0x170] sm:$0xff]
        %v759 = vld [vmem:[#allocation5 + $0x178] sm:$0xff]
        %v760 = vld [vmem:[%s357] sm:$0xff]
        %v761 = vld [vmem:[%s357 + $0x8] sm:$0xff]
        %v762 = vld [vmem:[%s357 + $0x10] sm:$0x3]
        %v763 = vld [vmem:[%s357 + $0x18] sm:$0xff]
        %v764 = vld [vmem:[%s357 + $0x20] sm:$0xff]
        %v765 = vld [vmem:[%s357 + $0x28] sm:$0x3]
        %v766 = vld [vmem:[%s357 + $0x30] sm:$0xff]
        %v767 = vld [vmem:[%s357 + $0x38] sm:$0xff]
        %v768 = vld [vmem:[%s357 + $0x40] sm:$0x3]
        %v769 = vld [vmem:[%s357 + $0x48] sm:$0xff]
        %v770 = vld [vmem:[%s357 + $0x50] sm:$0xff]
        %v771 = vld [vmem:[%s357 + $0x58] sm:$0x3]
        %v772 = vld [vmem:[%s357 + $0x60] sm:$0xff]
        %v773 = vld [vmem:[%s357 + $0x68] sm:$0xff]
        %v774 = vld [vmem:[%s357 + $0x70] sm:$0x3]
        %v775 = vld [vmem:[%s357 + $0x78] sm:$0xff]
        %v776 = vld [vmem:[%s357 + $0x80] sm:$0xff]
        %v777 = vld [vmem:[%s357 + $0x88] sm:$0x3]
        %v778 = vld [vmem:[%s357 + $0x90] sm:$0xff]
        %v779 = vld [vmem:[%s357 + $0x98] sm:$0xff]
        %v780 = vld [vmem:[%s357 + $0xa0] sm:$0x3]
        %v781 = vld [vmem:[%s357 + $0xa8] sm:$0xff]
        %v782 = vld [vmem:[%s357 + $0xb0] sm:$0xff]
        %v783 = vld [vmem:[%s357 + $0xb8] sm:$0x3]
        %v784 = vld [vmem:[%s357 + $0xc0] sm:$0xff]
        %v785 = vld [vmem:[%s357 + $0xc8] sm:$0xff]
        %v786 = vld [vmem:[%s357 + $0xd0] sm:$0x3]
        %v787 = vld [vmem:[%s357 + $0xd8] sm:$0xff]
        %v788 = vld [vmem:[%s357 + $0xe0] sm:$0xff]
        %v789 = vld [vmem:[%s357 + $0xe8] sm:$0x3]
        %v790 = vld [vmem:[%s357 + $0xf0] sm:$0xff]
        %v791 = vld [vmem:[%s357 + $0xf8] sm:$0xff]
        %v792 = vld [vmem:[%s357 + $0x100] sm:$0x3]
        %v793 = vld [vmem:[%s357 + $0x108] sm:$0xff]
        %v794 = vld [vmem:[%s357 + $0x110] sm:$0xff]
        %v795 = vld [vmem:[%s357 + $0x118] sm:$0x3]
        %v796 = vld [vmem:[%s357 + $0x120] sm:$0xff]
        %v797 = vld [vmem:[%s357 + $0x128] sm:$0xff]
        %v798 = vld [vmem:[%s357 + $0x130] sm:$0x3]
        %v799 = vld [vmem:[%s357 + $0x138] sm:$0xff]
        %v800 = vld [vmem:[%s357 + $0x140] sm:$0xff]
        %v801 = vld [vmem:[%s357 + $0x148] sm:$0x3]
        %v802 = vld [vmem:[%s357 + $0x150] sm:$0xff]
        %v803 = vld [vmem:[%s357 + $0x158] sm:$0xff]
        %v804 = vld [vmem:[%s357 + $0x160] sm:$0x3]
        %v805 = vld [vmem:[%s357 + $0x168] sm:$0xff]
        %v806 = vld [vmem:[%s357 + $0x170] sm:$0xff]
        %v807 = vld [vmem:[%s357 + $0x178] sm:$0x3]
        %v856 = vrot.slane %v760, 1
        %v857 = vrot.slane %v761, 1
        %v858 = vsel %vm486, %v856, %v857
        %v859 = vrot.slane %v762, 1
        %v860 = vsel %vm486, %v857, %v859
        %v861 = vrot.slane %v763, 1
        %v862 = vrot.slane %v764, 1
        %v863 = vsel %vm486, %v861, %v862
        %v864 = vrot.slane %v765, 1
        %v865 = vsel %vm486, %v862, %v864
        %v866 = vrot.slane %v766, 1
        %v867 = vrot.slane %v767, 1
        %v868 = vsel %vm486, %v866, %v867
        %v869 = vrot.slane %v768, 1
        %v870 = vsel %vm486, %v867, %v869
        %v871 = vrot.slane %v769, 1
        %v872 = vrot.slane %v770, 1
        %v873 = vsel %vm486, %v871, %v872
        %v874 = vrot.slane %v771, 1
        %v875 = vsel %vm486, %v872, %v874
        %v876 = vrot.slane %v772, 1
        %v877 = vrot.slane %v773, 1
        %v878 = vsel %vm486, %v876, %v877
        %v879 = vrot.slane %v774, 1
        %v880 = vsel %vm486, %v877, %v879
        %v881 = vrot.slane %v775, 1
        %v882 = vrot.slane %v776, 1
        %v883 = vsel %vm486, %v881, %v882
        %v884 = vrot.slane %v777, 1
        %v885 = vsel %vm486, %v882, %v884
        %v886 = vrot.slane %v778, 1
        %v887 = vrot.slane %v779, 1
        %v888 = vsel %vm486, %v886, %v887
        %v889 = vrot.slane %v780, 1
        %v890 = vsel %vm486, %v887, %v889
        %v891 = vrot.slane %v781, 1
        %v892 = vrot.slane %v782, 1
        %v893 = vsel %vm486, %v891, %v892
        %v894 = vrot.slane %v783, 1
        %v895 = vsel %vm486, %v892, %v894
        %v896 = vrot.slane %v784, 1
        %v897 = vrot.slane %v785, 1
        %v898 = vsel %vm486, %v896, %v897
        %v899 = vrot.slane %v786, 1
        %v900 = vsel %vm486, %v897, %v899
        %v901 = vrot.slane %v787, 1
        %v902 = vrot.slane %v788, 1
        %v903 = vsel %vm486, %v901, %v902
        %v904 = vrot.slane %v789, 1
        %v905 = vsel %vm486, %v902, %v904
        %v906 = vrot.slane %v790, 1
        %v907 = vrot.slane %v791, 1
        %v908 = vsel %vm486, %v906, %v907
        %v909 = vrot.slane %v792, 1
        %v910 = vsel %vm486, %v907, %v909
        %v911 = vrot.slane %v793, 1
        %v912 = vrot.slane %v794, 1
        %v913 = vsel %vm486, %v911, %v912
        %v914 = vrot.slane %v795, 1
        %v915 = vsel %vm486, %v912, %v914
        %v916 = vrot.slane %v796, 1
        %v917 = vrot.slane %v797, 1
        %v918 = vsel %vm486, %v916, %v917
        %v919 = vrot.slane %v798, 1
        %v920 = vsel %vm486, %v917, %v919
        %v921 = vrot.slane %v799, 1
        %v922 = vrot.slane %v800, 1
        %v923 = vsel %vm486, %v921, %v922
        %v924 = vrot.slane %v801, 1
        %v925 = vsel %vm486, %v922, %v924
        %v926 = vrot.slane %v802, 1
        %v927 = vrot.slane %v803, 1
        %v928 = vsel %vm486, %v926, %v927
        %v929 = vrot.slane %v804, 1
        %v930 = vsel %vm486, %v927, %v929
        %v931 = vrot.slane %v805, 1
        %v932 = vrot.slane %v806, 1
        %v933 = vsel %vm486, %v931, %v932
        %v934 = vrot.slane %v807, 1
        %v935 = vsel %vm486, %v932, %v934
        %v968 = vrot.slane %v760, 2
        %v969 = vrot.slane %v761, 2
        %v970 = vsel %vm599, %v968, %v969
        %v971 = vrot.slane %v762, 2
        %v972 = vsel %vm599, %v969, %v971
        %v973 = vrot.slane %v763, 2
        %v974 = vrot.slane %v764, 2
        %v975 = vsel %vm599, %v973, %v974
        %v976 = vrot.slane %v765, 2
        %v977 = vsel %vm599, %v974, %v976
        %v978 = vrot.slane %v766, 2
        %v979 = vrot.slane %v767, 2
        %v980 = vsel %vm599, %v978, %v979
        %v981 = vrot.slane %v768, 2
        %v982 = vsel %vm599, %v979, %v981
        %v983 = vrot.slane %v769, 2
        %v984 = vrot.slane %v770, 2
        %v985 = vsel %vm599, %v983, %v984
        %v986 = vrot.slane %v771, 2
        %v987 = vsel %vm599, %v984, %v986
        %v988 = vrot.slane %v772, 2
        %v989 = vrot.slane %v773, 2
        %v990 = vsel %vm599, %v988, %v989
        %v991 = vrot.slane %v774, 2
        %v992 = vsel %vm599, %v989, %v991
        %v993 = vrot.slane %v775, 2
        %v994 = vrot.slane %v776, 2
        %v995 = vsel %vm599, %v993, %v994
        %v996 = vrot.slane %v777, 2
        %v997 = vsel %vm599, %v994, %v996
        %v998 = vrot.slane %v778, 2
        %v999 = vrot.slane %v779, 2
        %v1000 = vsel %vm599, %v998, %v999
        %v1001 = vrot.slane %v780, 2
        %v1002 = vsel %vm599, %v999, %v1001
        %v1003 = vrot.slane %v781, 2
        %v1004 = vrot.slane %v782, 2
        %v1005 = vsel %vm599, %v1003, %v1004
        %v1006 = vrot.slane %v783, 2
        %v1007 = vsel %vm599, %v1004, %v1006
        %v1008 = vrot.slane %v784, 2
        %v1009 = vrot.slane %v785, 2
        %v1010 = vsel %vm599, %v1008, %v1009
        %v1011 = vrot.slane %v786, 2
        %v1012 = vsel %vm599, %v1009, %v1011
        %v1013 = vrot.slane %v787, 2
        %v1014 = vrot.slane %v788, 2
        %v1015 = vsel %vm599, %v1013, %v1014
        %v1016 = vrot.slane %v789, 2
        %v1017 = vsel %vm599, %v1014, %v1016
        %v1018 = vrot.slane %v790, 2
        %v1019 = vrot.slane %v791, 2
        %v1020 = vsel %vm599, %v1018, %v1019
        %v1021 = vrot.slane %v792, 2
        %v1022 = vsel %vm599, %v1019, %v1021
        %v1023 = vrot.slane %v793, 2
        %v1024 = vrot.slane %v794, 2
        %v1025 = vsel %vm599, %v1023, %v1024
        %v1026 = vrot.slane %v795, 2
        %v1027 = vsel %vm599, %v1024, %v1026
        %v1028 = vrot.slane %v796, 2
        %v1029 = vrot.slane %v797, 2
        %v1030 = vsel %vm599, %v1028, %v1029
        %v1031 = vrot.slane %v798, 2
        %v1032 = vsel %vm599, %v1029, %v1031
        %v1033 = vrot.slane %v799, 2
        %v1034 = vrot.slane %v800, 2
        %v1035 = vsel %vm599, %v1033, %v1034
        %v1036 = vrot.slane %v801, 2
        %v1037 = vsel %vm599, %v1034, %v1036
        %v1038 = vrot.slane %v802, 2
        %v1039 = vrot.slane %v803, 2
        %v1040 = vsel %vm599, %v1038, %v1039
        %v1041 = vrot.slane %v804, 2
        %v1042 = vsel %vm599, %v1039, %v1041
        %v1043 = vrot.slane %v805, 2
        %v1044 = vrot.slane %v806, 2
        %v1045 = vsel %vm599, %v1043, %v1044
        %v1046 = vrot.slane %v807, 2
        %v1047 = vsel %vm599, %v1044, %v1046
        %s1080 = scalar_lea.vmem [#allocation5], 384
        %v1081 = vld [vmem:[%s1080] sm:$0xff]
        %v1082 = vld [vmem:[%s1080 + $0x8] sm:$0xff]
        %v1083 = vld [vmem:[%s1080 + $0x10] sm:$0xff]
        %v1084 = vld [vmem:[%s1080 + $0x18] sm:$0xff]
        %v1085 = vld [vmem:[%s1080 + $0x20] sm:$0xff]
        %v1086 = vld [vmem:[%s1080 + $0x28] sm:$0xff]
        %v1087 = vld [vmem:[%s1080 + $0x30] sm:$0xff]
        %v1088 = vld [vmem:[%s1080 + $0x38] sm:$0xff]
        %v1089 = vld [vmem:[%s1080 + $0x40] sm:$0xff]
        %v1090 = vld [vmem:[%s1080 + $0x48] sm:$0xff]
        %v1091 = vld [vmem:[%s1080 + $0x50] sm:$0xff]
        %v1092 = vld [vmem:[%s1080 + $0x58] sm:$0xff]
        %v1093 = vld [vmem:[%s1080 + $0x60] sm:$0xff]
        %v1094 = vld [vmem:[%s1080 + $0x68] sm:$0xff]
        %v1095 = vld [vmem:[%s1080 + $0x70] sm:$0xff]
        %v1096 = vld [vmem:[%s1080 + $0x78] sm:$0xff]
        %v1097 = vld [vmem:[%s1080 + $0x80] sm:$0xff]
        %v1098 = vld [vmem:[%s1080 + $0x88] sm:$0xff]
        %v1099 = vld [vmem:[%s1080 + $0x90] sm:$0xff]
        %v1100 = vld [vmem:[%s1080 + $0x98] sm:$0xff]
        %v1101 = vld [vmem:[%s1080 + $0xa0] sm:$0xff]
        %v1102 = vld [vmem:[%s1080 + $0xa8] sm:$0xff]
        %v1103 = vld [vmem:[%s1080 + $0xb0] sm:$0xff]
        %v1104 = vld [vmem:[%s1080 + $0xb8] sm:$0xff]
        %v1105 = vld [vmem:[%s1080 + $0xc0] sm:$0xff]
        %v1106 = vld [vmem:[%s1080 + $0xc8] sm:$0xff]
        %v1107 = vld [vmem:[%s1080 + $0xd0] sm:$0xff]
        %v1108 = vld [vmem:[%s1080 + $0xd8] sm:$0xff]
        %v1109 = vld [vmem:[%s1080 + $0xe0] sm:$0xff]
        %v1110 = vld [vmem:[%s1080 + $0xe8] sm:$0xff]
        %v1111 = vld [vmem:[%s1080 + $0xf0] sm:$0xff]
        %v1112 = vld [vmem:[%s1080 + $0xf8] sm:$0xff]
        %v1113 = vld [vmem:[%s1080 + $0x100] sm:$0xff]
        %v1114 = vld [vmem:[%s1080 + $0x108] sm:$0xff]
        %v1115 = vld [vmem:[%s1080 + $0x110] sm:$0xff]
        %v1116 = vld [vmem:[%s1080 + $0x118] sm:$0xff]
        %v1117 = vld [vmem:[%s1080 + $0x120] sm:$0xff]
        %v1118 = vld [vmem:[%s1080 + $0x128] sm:$0xff]
        %v1119 = vld [vmem:[%s1080 + $0x130] sm:$0xff]
        %v1120 = vld [vmem:[%s1080 + $0x138] sm:$0xff]
        %v1121 = vld [vmem:[%s1080 + $0x140] sm:$0xff]
        %v1122 = vld [vmem:[%s1080 + $0x148] sm:$0xff]
        %v1123 = vld [vmem:[%s1080 + $0x150] sm:$0xff]
        %v1124 = vld [vmem:[%s1080 + $0x158] sm:$0xff]
        %v1125 = vld [vmem:[%s1080 + $0x160] sm:$0xff]
        %v1126 = vld [vmem:[%s1080 + $0x168] sm:$0xff]
        %v1127 = vld [vmem:[%s1080 + $0x170] sm:$0xff]
        %v1128 = vld [vmem:[%s1080 + $0x178] sm:$0xff]
        %1129 = vmatprep.subr.mxu0 0.0
        %1130 = vmatpush1.msra.mxu0 %v1081
        %1131 = vmatprep.subr.mxu0 0.0
        %1132 = vmatpush1.msra.mxu0 %v1082
        %1133 = vmatprep.subr.mxu0 0.0
        %1134 = vmatpush1.msra.mxu0 %v1083
        %1135 = vmatprep.subr.mxu0 0.0
        %1136 = vmatpush1.msra.mxu0 %v1084
        %1137 = vmatprep.subr.mxu0 0.0
        %1138 = vmatpush1.msra.mxu0 %v1085
        %1139 = vmatprep.subr.mxu0 0.0
        %1140 = vmatpush1.msra.mxu0 %v1086
        %1141 = vmatprep.subr.mxu0 0.0
        %1142 = vmatpush1.msra.mxu0 %v1087
        %1143 = vmatprep.subr.mxu0 0.0
        %1144 = vmatpush1.msra.mxu0 %v1088
        %1145 = vmatprep.subr.mxu0 0.0
        %1146 = vmatpush1.msra.mxu0 %v1089
        %1147 = vmatprep.subr.mxu0 0.0
        %1148 = vmatpush1.msra.mxu0 %v1090
        %1149 = vmatprep.subr.mxu0 0.0
        %1150 = vmatpush1.msra.mxu0 %v1091
        %1151 = vmatprep.subr.mxu0 0.0
        %1152 = vmatpush1.msra.mxu0 %v1092
        %1153 = vmatprep.subr.mxu0 0.0
        %1154 = vmatpush1.msra.mxu0 %v1093
        %1155 = vmatprep.subr.mxu0 0.0
        %1156 = vmatpush1.msra.mxu0 %v1094
        %1157 = vmatprep.subr.mxu0 0.0
        %1158 = vmatpush1.msra.mxu0 %v1095
        %1159 = vmatprep.subr.mxu0 0.0
        %1160 = vmatpush1.msra.mxu0 %v1096
        %1161 = vmatprep.subr.mxu0 0.0
        %1162 = vmatpush1.msra.mxu0 %v1097
        %1163 = vmatprep.subr.mxu0 0.0
        %1164 = vmatpush1.msra.mxu0 %v1098
        %1165 = vmatprep.subr.mxu0 0.0
        %1166 = vmatpush1.msra.mxu0 %v1099
        %1167 = vmatprep.subr.mxu0 0.0
        %1168 = vmatpush1.msra.mxu0 %v1100
        %1169 = vmatprep.subr.mxu0 0.0
        %1170 = vmatpush1.msra.mxu0 %v1101
        %1171 = vmatprep.subr.mxu0 0.0
        %1172 = vmatpush1.msra.mxu0 %v1102
        %1173 = vmatprep.subr.mxu0 0.0
        %1174 = vmatpush1.msra.mxu0 %v1103
        %1175 = vmatprep.subr.mxu0 0.0
        %1176 = vmatpush1.msra.mxu0 %v1104
        %1177 = vmatprep.subr.mxu0 0.0
        %1178 = vmatpush1.msra.mxu0 %v1105
        %1179 = vmatprep.subr.mxu0 0.0
        %1180 = vmatpush1.msra.mxu0 %v1106
        %1181 = vmatprep.subr.mxu0 0.0
        %1182 = vmatpush1.msra.mxu0 %v1107
        %1183 = vmatprep.subr.mxu0 0.0
        %1184 = vmatpush1.msra.mxu0 %v1108
        %1185 = vmatprep.subr.mxu0 0.0
        %1186 = vmatpush1.msra.mxu0 %v1109
        %1187 = vmatprep.subr.mxu0 0.0
        %1188 = vmatpush1.msra.mxu0 %v1110
        %1189 = vmatprep.subr.mxu0 0.0
        %1190 = vmatpush1.msra.mxu0 %v1111
        %1191 = vmatprep.subr.mxu0 0.0
        %1192 = vmatpush1.msra.mxu0 %v1112
        %1193 = vmatprep.mubr.f32.mxu0 %v858
        %1194 = vmatmul.mubr.f32.gmra.mrb[0].mxu0 %v760
        %v1195 = vpop.f32.mrb[0].mxu0
        %v1196 = vadd.f32 0.0, %v1195
        %v1197 = vpop.f32.mrb[0].mxu0
        %1198 = vmatprep.mubr.f32.mxu0 %v860
        %1199 = vmatmul.mubr.f32.gmra.mrb[0].mxu0 %v761
        %v1200 = vpop.f32.mrb[0].mxu0
        %v1201 = vadd.f32 0.0, %v1200
        %v1202 = vpop.f32.mrb[0].mxu0
        %1203 = vmatprep.mubr.f32.mxu0 %v863
        %1204 = vmatmul.mubr.f32.gmra.mrb[0].mxu0 %v763
        %v1205 = vpop.f32.mrb[0].mxu0
        %v1206 = vadd.f32 0.0, %v1205
        %v1207 = vpop.f32.mrb[0].mxu0
        %1208 = vmatprep.mubr.f32.mxu0 %v865
        %1209 = vmatmul.mubr.f32.gmra.mrb[0].mxu0 %v764
        %v1210 = vpop.f32.mrb[0].mxu0
        %v1211 = vadd.f32 0.0, %v1210
        %v1212 = vpop.f32.mrb[0].mxu0
        %1213 = vmatprep.mubr.f32.mxu0 %v868
        %1214 = vmatmul.mubr.f32.gmra.mrb[0].mxu0 %v766
        %v1215 = vpop.f32.mrb[0].mxu0
        %v1216 = vadd.f32 0.0, %v1215
        %v1217 = vpop.f32.mrb[0].mxu0
        %1218 = vmatprep.mubr.f32.mxu0 %v870
        %1219 = vmatmul.mubr.f32.gmra.mrb[0].mxu0 %v767
        %v1220 = vpop.f32.mrb[0].mxu0
        %v1221 = vadd.f32 0.0, %v1220
        %v1222 = vpop.f32.mrb[0].mxu0
        %1223 = vmatprep.mubr.f32.mxu0 %v873
        %1224 = vmatmul.mubr.f32.gmra.mrb[0].mxu0 %v769
        %v1225 = vpop.f32.mrb[0].mxu0
        %v1226 = vadd.f32 0.0, %v1225
        %v1227 = vpop.f32.mrb[0].mxu0
        %1228 = vmatprep.mubr.f32.mxu0 %v875
        %1229 = vmatmul.mubr.f32.gmra.mrb[0].mxu0 %v770
        %v1230 = vpop.f32.mrb[0].mxu0
        %v1231 = vadd.f32 0.0, %v1230
        %v1232 = vpop.f32.mrb[0].mxu0
        %1233 = vmatprep.mubr.f32.mxu0 %v878
        %1234 = vmatmul.mubr.f32.gmra.mrb[0].mxu0 %v772
        %v1235 = vpop.f32.mrb[0].mxu0
        %v1236 = vadd.f32 0.0, %v1235
        %v1237 = vpop.f32.mrb[0].mxu0
        %1238 = vmatprep.mubr.f32.mxu0 %v880
        %1239 = vmatmul.mubr.f32.gmra.mrb[0].mxu0 %v773
        %v1240 = vpop.f32.mrb[0].mxu0
        %v1241 = vadd.f32 0.0, %v1240
        %v1242 = vpop.f32.mrb[0].mxu0
        %1243 = vmatprep.mubr.f32.mxu0 %v883
        %1244 = vmatmul.mubr.f32.gmra.mrb[0].mxu0 %v775
        %v1245 = vpop.f32.mrb[0].mxu0
        %v1246 = vadd.f32 0.0, %v1245
        %v1247 = vpop.f32.mrb[0].mxu0
        %1248 = vmatprep.mubr.f32.mxu0 %v885
        %1249 = vmatmul.mubr.f32.gmra.mrb[0].mxu0 %v776
        %v1250 = vpop.f32.mrb[0].mxu0
        %v1251 = vadd.f32 0.0, %v1250
        %v1252 = vpop.f32.mrb[0].mxu0
        %1253 = vmatprep.mubr.f32.mxu0 %v888
        %1254 = vmatmul.mubr.f32.gmra.mrb[0].mxu0 %v778
        %v1255 = vpop.f32.mrb[0].mxu0
        %v1256 = vadd.f32 0.0, %v1255
        %v1257 = vpop.f32.mrb[0].mxu0
        %1258 = vmatprep.mubr.f32.mxu0 %v890
        %1259 = vmatmul.mubr.f32.gmra.mrb[0].mxu0 %v779
        %v1260 = vpop.f32.mrb[0].mxu0
        %v1261 = vadd.f32 0.0, %v1260
        %v1262 = vpop.f32.mrb[0].mxu0
        %1263 = vmatprep.mubr.f32.mxu0 %v893
        %1264 = vmatmul.mubr.f32.gmra.mrb[0].mxu0 %v781
        %v1265 = vpop.f32.mrb[0].mxu0
        %v1266 = vadd.f32 0.0, %v1265
        %v1267 = vpop.f32.mrb[0].mxu0
        %1268 = vmatprep.mubr.f32.mxu0 %v895
        %1269 = vmatmul.mubr.f32.gmra.mrb[0].mxu0 %v782
        %v1270 = vpop.f32.mrb[0].mxu0
        %v1271 = vadd.f32 0.0, %v1270
        %v1272 = vpop.f32.mrb[0].mxu0
        %1273 = vmatprep.mubr.f32.mxu0 %v898
        %1274 = vmatmul.mubr.f32.gmra.mrb[0].mxu0 %v784
        %v1275 = vpop.f32.mrb[0].mxu0
        %v1276 = vadd.f32 0.0, %v1275
        %v1277 = vpop.f32.mrb[0].mxu0
        %1278 = vmatprep.mubr.f32.mxu0 %v900
        %1279 = vmatmul.mubr.f32.gmra.mrb[0].mxu0 %v785
        %v1280 = vpop.f32.mrb[0].mxu0
        %v1281 = vadd.f32 0.0, %v1280
        %v1282 = vpop.f32.mrb[0].mxu0
        %1283 = vmatprep.mubr.f32.mxu0 %v903
        %1284 = vmatmul.mubr.f32.gmra.mrb[0].mxu0 %v787
        %v1285 = vpop.f32.mrb[0].mxu0
        %v1286 = vadd.f32 0.0, %v1285
        %v1287 = vpop.f32.mrb[0].mxu0
        %1288 = vmatprep.mubr.f32.mxu0 %v905
        %1289 = vmatmul.mubr.f32.gmra.mrb[0].mxu0 %v788
        %v1290 = vpop.f32.mrb[0].mxu0
        %v1291 = vadd.f32 0.0, %v1290
        %v1292 = vpop.f32.mrb[0].mxu0
        %1293 = vmatprep.mubr.f32.mxu0 %v908
        %1294 = vmatmul.mubr.f32.gmra.mrb[0].mxu0 %v790
        %v1295 = vpop.f32.mrb[0].mxu0
        %v1296 = vadd.f32 0.0, %v1295
        %v1297 = vpop.f32.mrb[0].mxu0
        %1298 = vmatprep.mubr.f32.mxu0 %v910
        %1299 = vmatmul.mubr.f32.gmra.mrb[0].mxu0 %v791
        %v1300 = vpop.f32.mrb[0].mxu0
        %v1301 = vadd.f32 0.0, %v1300
        %v1302 = vpop.f32.mrb[0].mxu0
        %1303 = vmatprep.mubr.f32.mxu0 %v913
        %1304 = vmatmul.mubr.f32.gmra.mrb[0].mxu0 %v793
        %v1305 = vpop.f32.mrb[0].mxu0
        %v1306 = vadd.f32 0.0, %v1305
        %v1307 = vpop.f32.mrb[0].mxu0
        %1308 = vmatprep.mubr.f32.mxu0 %v915
        %1309 = vmatmul.mubr.f32.gmra.mrb[0].mxu0 %v794
        %v1310 = vpop.f32.mrb[0].mxu0
        %v1311 = vadd.f32 0.0, %v1310
        %v1312 = vpop.f32.mrb[0].mxu0
        %1313 = vmatprep.mubr.f32.mxu0 %v918
        %1314 = vmatmul.mubr.f32.gmra.mrb[0].mxu0 %v796
        %v1315 = vpop.f32.mrb[0].mxu0
        %v1316 = vadd.f32 0.0, %v1315
        %v1317 = vpop.f32.mrb[0].mxu0
        %1318 = vmatprep.mubr.f32.mxu0 %v920
        %1319 = vmatmul.mubr.f32.gmra.mrb[0].mxu0 %v797
        %v1320 = vpop.f32.mrb[0].mxu0
        %v1321 = vadd.f32 0.0, %v1320
        %v1322 = vpop.f32.mrb[0].mxu0
        %1323 = vmatprep.mubr.f32.mxu0 %v923
        %1324 = vmatmul.mubr.f32.gmra.mrb[0].mxu0 %v799
        %v1325 = vpop.f32.mrb[0].mxu0
        %v1326 = vadd.f32 0.0, %v1325
        %v1327 = vpop.f32.mrb[0].mxu0
        %1328 = vmatprep.mubr.f32.mxu0 %v925
        %1329 = vmatmul.mubr.f32.gmra.mrb[0].mxu0 %v800
        %v1330 = vpop.f32.mrb[0].mxu0
        %v1331 = vadd.f32 0.0, %v1330
        %v1332 = vpop.f32.mrb[0].mxu0
        %1333 = vmatprep.mubr.f32.mxu0 %v928
        %1334 = vmatmul.mubr.f32.gmra.mrb[0].mxu0 %v802
        %v1335 = vpop.f32.mrb[0].mxu0
        %v1336 = vadd.f32 0.0, %v1335
        %v1337 = vpop.f32.mrb[0].mxu0
        %1338 = vmatprep.mubr.f32.mxu0 %v930
        %1339 = vmatmul.mubr.f32.gmra.mrb[0].mxu0 %v803
        %v1340 = vpop.f32.mrb[0].mxu0
        %v1341 = vadd.f32 0.0, %v1340
        %v1342 = vpop.f32.mrb[0].mxu0
        %1343 = vmatprep.mubr.f32.mxu0 %v933
        %1344 = vmatmul.mubr.f32.gmra.mrb[0].mxu0 %v805
        %v1345 = vpop.f32.mrb[0].mxu0
        %v1346 = vadd.f32 0.0, %v1345
        %v1347 = vpop.f32.mrb[0].mxu0
        %1348 = vmatprep.mubr.f32.mxu0 %v935
        %1349 = vmatmul.mubr.f32.gmra.mrb[0].mxu0 %v806
        %v1350 = vpop.f32.mrb[0].mxu0
        %v1351 = vadd.f32 0.0, %v1350
        %v1352 = vpop.f32.mrb[0].mxu0
        %1353 = vdwg.mxu0
        %1354 = vmatprep.subr.mxu0 0.0
        %1355 = vmatpush1.msra.mxu0 %v1113
        %1356 = vmatprep.subr.mxu0 0.0
        %1357 = vmatpush1.msra.mxu0 %v1114
        %1358 = vmatprep.subr.mxu0 0.0
        %1359 = vmatpush1.msra.mxu0 %v1115
        %1360 = vmatprep.subr.mxu0 0.0
        %1361 = vmatpush1.msra.mxu0 %v1116
        %1362 = vmatprep.subr.mxu0 0.0
        %1363 = vmatpush1.msra.mxu0 %v1117
        %1364 = vmatprep.subr.mxu0 0.0
        %1365 = vmatpush1.msra.mxu0 %v1118
        %1366 = vmatprep.subr.mxu0 0.0
        %1367 = vmatpush1.msra.mxu0 %v1119
        %1368 = vmatprep.subr.mxu0 0.0
        %1369 = vmatpush1.msra.mxu0 %v1120
        %1370 = vmatprep.subr.mxu0 0.0
        %1371 = vmatpush1.msra.mxu0 %v1121
        %1372 = vmatprep.subr.mxu0 0.0
        %1373 = vmatpush1.msra.mxu0 %v1122
        %1374 = vmatprep.subr.mxu0 0.0
        %1375 = vmatpush1.msra.mxu0 %v1123
        %1376 = vmatprep.subr.mxu0 0.0
        %1377 = vmatpush1.msra.mxu0 %v1124
        %1378 = vmatprep.subr.mxu0 0.0
        %1379 = vmatpush1.msra.mxu0 %v1125
        %1380 = vmatprep.subr.mxu0 0.0
        %1381 = vmatpush1.msra.mxu0 %v1126
        %1382 = vmatprep.subr.mxu0 0.0
        %1383 = vmatpush1.msra.mxu0 %v1127
        %1384 = vmatprep.subr.mxu0 0.0
        %1385 = vmatpush1.msra.mxu0 %v1128
        %1386 = vmatprep.subr.mxu0 0.0
        %1387 = vmatpush1.msra.mxu0 0.0
        %1388 = vmatprep.subr.mxu0 0.0
        %1389 = vmatpush1.msra.mxu0 0.0
        %1390 = vmatprep.subr.mxu0 0.0
        %1391 = vmatpush1.msra.mxu0 0.0
        %1392 = vmatprep.subr.mxu0 0.0
        %1393 = vmatpush1.msra.mxu0 0.0
        %1394 = vmatprep.subr.mxu0 0.0
        %1395 = vmatpush1.msra.mxu0 0.0
        %1396 = vmatprep.subr.mxu0 0.0
        %1397 = vmatpush1.msra.mxu0 0.0
        %1398 = vmatprep.subr.mxu0 0.0
        %1399 = vmatpush1.msra.mxu0 0.0
        %1400 = vmatprep.subr.mxu0 0.0
        %1401 = vmatpush1.msra.mxu0 0.0
        %1402 = vmatprep.subr.mxu0 0.0
        %1403 = vmatpush1.msra.mxu0 0.0
        %1404 = vmatprep.subr.mxu0 0.0
        %1405 = vmatpush1.msra.mxu0 0.0
        %1406 = vmatprep.subr.mxu0 0.0
        %1407 = vmatpush1.msra.mxu0 0.0
        %1408 = vmatprep.subr.mxu0 0.0
        %1409 = vmatpush1.msra.mxu0 0.0
        %1410 = vmatprep.subr.mxu0 0.0
        %1411 = vmatpush1.msra.mxu0 0.0
        %1412 = vmatprep.subr.mxu0 0.0
        %1413 = vmatpush1.msra.mxu0 0.0
        %1414 = vmatprep.subr.mxu0 0.0
        %1415 = vmatpush1.msra.mxu0 0.0
        %1416 = vmatprep.subr.mxu0 0.0
        %1417 = vmatpush1.msra.mxu0 0.0
        %1418 = vmatprep.mubr.f32.mxu0 0.0
        %1419 = vmatmul.mubr.f32.gmra.mrb[0].mxu0 %v970
        %v1420 = vpop.f32.mrb[0].mxu0
        %v1421 = vadd.f32 %v1196, %v1420
        %v1422 = vpop.f32.mrb[0].mxu0
        %1423 = vmatprep.mubr.f32.mxu0 0.0
        %1424 = vmatmul.mubr.f32.gmra.mrb[0].mxu0 %v972
        %v1425 = vpop.f32.mrb[0].mxu0
        %v1426 = vadd.f32 %v1201, %v1425
        %v1427 = vpop.f32.mrb[0].mxu0
        %1428 = vmatprep.mubr.f32.mxu0 0.0
        %1429 = vmatmul.mubr.f32.gmra.mrb[0].mxu0 %v975
        %v1430 = vpop.f32.mrb[0].mxu0
        %v1431 = vadd.f32 %v1206, %v1430
        %v1432 = vpop.f32.mrb[0].mxu0
        %1433 = vmatprep.mubr.f32.mxu0 0.0
        %1434 = vmatmul.mubr.f32.gmra.mrb[0].mxu0 %v977
        %v1435 = vpop.f32.mrb[0].mxu0
        %v1436 = vadd.f32 %v1211, %v1435
        %v1437 = vpop.f32.mrb[0].mxu0
        %1438 = vmatprep.mubr.f32.mxu0 0.0
        %1439 = vmatmul.mubr.f32.gmra.mrb[0].mxu0 %v980
        %v1440 = vpop.f32.mrb[0].mxu0
        %v1441 = vadd.f32 %v1216, %v1440
        %v1442 = vpop.f32.mrb[0].mxu0
        %1443 = vmatprep.mubr.f32.mxu0 0.0
        %1444 = vmatmul.mubr.f32.gmra.mrb[0].mxu0 %v982
        %v1445 = vpop.f32.mrb[0].mxu0
        %v1446 = vadd.f32 %v1221, %v1445
        %v1447 = vpop.f32.mrb[0].mxu0
        %1448 = vmatprep.mubr.f32.mxu0 0.0
        %1449 = vmatmul.mubr.f32.gmra.mrb[0].mxu0 %v985
        %v1450 = vpop.f32.mrb[0].mxu0
        %v1451 = vadd.f32 %v1226, %v1450
        %v1452 = vpop.f32.mrb[0].mxu0
        %1453 = vmatprep.mubr.f32.mxu0 0.0
        %1454 = vmatmul.mubr.f32.gmra.mrb[0].mxu0 %v987
        %v1455 = vpop.f32.mrb[0].mxu0
        %v1456 = vadd.f32 %v1231, %v1455
        %v1457 = vpop.f32.mrb[0].mxu0
        %1458 = vmatprep.mubr.f32.mxu0 0.0
        %1459 = vmatmul.mubr.f32.gmra.mrb[0].mxu0 %v990
        %v1460 = vpop.f32.mrb[0].mxu0
        %v1461 = vadd.f32 %v1236, %v1460
        %v1462 = vpop.f32.mrb[0].mxu0
        %1463 = vmatprep.mubr.f32.mxu0 0.0
        %1464 = vmatmul.mubr.f32.gmra.mrb[0].mxu0 %v992
        %v1465 = vpop.f32.mrb[0].mxu0
        %v1466 = vadd.f32 %v1241, %v1465
        %v1467 = vpop.f32.mrb[0].mxu0
        %1468 = vmatprep.mubr.f32.mxu0 0.0
        %1469 = vmatmul.mubr.f32.gmra.mrb[0].mxu0 %v995
        %v1470 = vpop.f32.mrb[0].mxu0
        %v1471 = vadd.f32 %v1246, %v1470
        %v1472 = vpop.f32.mrb[0].mxu0
        %1473 = vmatprep.mubr.f32.mxu0 0.0
        %1474 = vmatmul.mubr.f32.gmra.mrb[0].mxu0 %v997
        %v1475 = vpop.f32.mrb[0].mxu0
        %v1476 = vadd.f32 %v1251, %v1475
        %v1477 = vpop.f32.mrb[0].mxu0
        %1478 = vmatprep.mubr.f32.mxu0 0.0
        %1479 = vmatmul.mubr.f32.gmra.mrb[0].mxu0 %v1000
        %v1480 = vpop.f32.mrb[0].mxu0
        %v1481 = vadd.f32 %v1256, %v1480
        %v1482 = vpop.f32.mrb[0].mxu0
        %1483 = vmatprep.mubr.f32.mxu0 0.0
        %1484 = vmatmul.mubr.f32.gmra.mrb[0].mxu0 %v1002
        %v1485 = vpop.f32.mrb[0].mxu0
        %v1486 = vadd.f32 %v1261, %v1485
        %v1487 = vpop.f32.mrb[0].mxu0
        %1488 = vmatprep.mubr.f32.mxu0 0.0
        %1489 = vmatmul.mubr.f32.gmra.mrb[0].mxu0 %v1005
        %v1490 = vpop.f32.mrb[0].mxu0
        %v1491 = vadd.f32 %v1266, %v1490
        %v1492 = vpop.f32.mrb[0].mxu0
        %1493 = vmatprep.mubr.f32.mxu0 0.0
        %1494 = vmatmul.mubr.f32.gmra.mrb[0].mxu0 %v1007
        %v1495 = vpop.f32.mrb[0].mxu0
        %v1496 = vadd.f32 %v1271, %v1495
        %v1497 = vpop.f32.mrb[0].mxu0
        %1498 = vmatprep.mubr.f32.mxu0 0.0
        %1499 = vmatmul.mubr.f32.gmra.mrb[0].mxu0 %v1010
        %v1500 = vpop.f32.mrb[0].mxu0
        %v1501 = vadd.f32 %v1276, %v1500
        %v1502 = vpop.f32.mrb[0].mxu0
        %1503 = vmatprep.mubr.f32.mxu0 0.0
        %1504 = vmatmul.mubr.f32.gmra.mrb[0].mxu0 %v1012
        %v1505 = vpop.f32.mrb[0].mxu0
        %v1506 = vadd.f32 %v1281, %v1505
        %v1507 = vpop.f32.mrb[0].mxu0
        %1508 = vmatprep.mubr.f32.mxu0 0.0
        %1509 = vmatmul.mubr.f32.gmra.mrb[0].mxu0 %v1015
        %v1510 = vpop.f32.mrb[0].mxu0
        %v1511 = vadd.f32 %v1286, %v1510
        %v1512 = vpop.f32.mrb[0].mxu0
        %1513 = vmatprep.mubr.f32.mxu0 0.0
        %1514 = vmatmul.mubr.f32.gmra.mrb[0].mxu0 %v1017
        %v1515 = vpop.f32.mrb[0].mxu0
        %v1516 = vadd.f32 %v1291, %v1515
        %v1517 = vpop.f32.mrb[0].mxu0
        %1518 = vmatprep.mubr.f32.mxu0 0.0
        %1519 = vmatmul.mubr.f32.gmra.mrb[0].mxu0 %v1020
        %v1520 = vpop.f32.mrb[0].mxu0
        %v1521 = vadd.f32 %v1296, %v1520
        %v1522 = vpop.f32.mrb[0].mxu0
        %1523 = vmatprep.mubr.f32.mxu0 0.0
        %1524 = vmatmul.mubr.f32.gmra.mrb[0].mxu0 %v1022
        %v1525 = vpop.f32.mrb[0].mxu0
        %v1526 = vadd.f32 %v1301, %v1525
        %v1527 = vpop.f32.mrb[0].mxu0
        %1528 = vmatprep.mubr.f32.mxu0 0.0
        %1529 = vmatmul.mubr.f32.gmra.mrb[0].mxu0 %v1025
        %v1530 = vpop.f32.mrb[0].mxu0
        %v1531 = vadd.f32 %v1306, %v1530
        %v1532 = vpop.f32.mrb[0].mxu0
        %1533 = vmatprep.mubr.f32.mxu0 0.0
        %1534 = vmatmul.mubr.f32.gmra.mrb[0].mxu0 %v1027
        %v1535 = vpop.f32.mrb[0].mxu0
        %v1536 = vadd.f32 %v1311, %v1535
        %v1537 = vpop.f32.mrb[0].mxu0
        %1538 = vmatprep.mubr.f32.mxu0 0.0
        %1539 = vmatmul.mubr.f32.gmra.mrb[0].mxu0 %v1030
        %v1540 = vpop.f32.mrb[0].mxu0
        %v1541 = vadd.f32 %v1316, %v1540
        %v1542 = vpop.f32.mrb[0].mxu0
        %1543 = vmatprep.mubr.f32.mxu0 0.0
        %1544 = vmatmul.mubr.f32.gmra.mrb[0].mxu0 %v1032
        %v1545 = vpop.f32.mrb[0].mxu0
        %v1546 = vadd.f32 %v1321, %v1545
        %v1547 = vpop.f32.mrb[0].mxu0
        %1548 = vmatprep.mubr.f32.mxu0 0.0
        %1549 = vmatmul.mubr.f32.gmra.mrb[0].mxu0 %v1035
        %v1550 = vpop.f32.mrb[0].mxu0
        %v1551 = vadd.f32 %v1326, %v1550
        %v1552 = vpop.f32.mrb[0].mxu0
        %1553 = vmatprep.mubr.f32.mxu0 0.0
        %1554 = vmatmul.mubr.f32.gmra.mrb[0].mxu0 %v1037
        %v1555 = vpop.f32.mrb[0].mxu0
        %v1556 = vadd.f32 %v1331, %v1555
        %v1557 = vpop.f32.mrb[0].mxu0
        %1558 = vmatprep.mubr.f32.mxu0 0.0
        %1559 = vmatmul.mubr.f32.gmra.mrb[0].mxu0 %v1040
        %v1560 = vpop.f32.mrb[0].mxu0
        %v1561 = vadd.f32 %v1336, %v1560
        %v1562 = vpop.f32.mrb[0].mxu0
        %1563 = vmatprep.mubr.f32.mxu0 0.0
        %1564 = vmatmul.mubr.f32.gmra.mrb[0].mxu0 %v1042
        %v1565 = vpop.f32.mrb[0].mxu0
        %v1566 = vadd.f32 %v1341, %v1565
        %v1567 = vpop.f32.mrb[0].mxu0
        %1568 = vmatprep.mubr.f32.mxu0 0.0
        %1569 = vmatmul.mubr.f32.gmra.mrb[0].mxu0 %v1045
        %v1570 = vpop.f32.mrb[0].mxu0
        %v1571 = vadd.f32 %v1346, %v1570
        %v1572 = vpop.f32.mrb[0].mxu0
        %1573 = vmatprep.mubr.f32.mxu0 0.0
        %1574 = vmatmul.mubr.f32.gmra.mrb[0].mxu0 %v1047
        %v1575 = vpop.f32.mrb[0].mxu0
        %v1576 = vadd.f32 %v1351, %v1575
        %v1577 = vpop.f32.mrb[0].mxu0
        %1578 = vdwg.mxu0
        %1579 = vmatprep.subr.mxu0 0.0
        %1580 = vmatpush1.msra.mxu0 %v712
        %1581 = vmatprep.subr.mxu0 0.0
        %1582 = vmatpush1.msra.mxu0 %v713
        %1583 = vmatprep.subr.mxu0 0.0
        %1584 = vmatpush1.msra.mxu0 %v714
        %1585 = vmatprep.subr.mxu0 0.0
        %1586 = vmatpush1.msra.mxu0 %v715
        %1587 = vmatprep.subr.mxu0 0.0
        %1588 = vmatpush1.msra.mxu0 %v716
        %1589 = vmatprep.subr.mxu0 0.0
        %1590 = vmatpush1.msra.mxu0 %v717
        %1591 = vmatprep.subr.mxu0 0.0
        %1592 = vmatpush1.msra.mxu0 %v718
        %1593 = vmatprep.subr.mxu0 0.0
        %1594 = vmatpush1.msra.mxu0 %v719
        %1595 = vmatprep.subr.mxu0 0.0
        %1596 = vmatpush1.msra.mxu0 %v720
        %1597 = vmatprep.subr.mxu0 0.0
        %1598 = vmatpush1.msra.mxu0 %v721
        %1599 = vmatprep.subr.mxu0 0.0
        %1600 = vmatpush1.msra.mxu0 %v722
        %1601 = vmatprep.subr.mxu0 0.0
        %1602 = vmatpush1.msra.mxu0 %v723
        %1603 = vmatprep.subr.mxu0 0.0
        %1604 = vmatpush1.msra.mxu0 %v724
        %1605 = vmatprep.subr.mxu0 0.0
        %1606 = vmatpush1.msra.mxu0 %v725
        %1607 = vmatprep.subr.mxu0 0.0
        %1608 = vmatpush1.msra.mxu0 %v726
        %1609 = vmatprep.subr.mxu0 0.0
        %1610 = vmatpush1.msra.mxu0 %v727
        %1611 = vmatprep.subr.mxu0 0.0
        %1612 = vmatpush1.msra.mxu0 %v728
        %1613 = vmatprep.subr.mxu0 0.0
        %1614 = vmatpush1.msra.mxu0 %v729
        %1615 = vmatprep.subr.mxu0 0.0
        %1616 = vmatpush1.msra.mxu0 %v730
        %1617 = vmatprep.subr.mxu0 0.0
        %1618 = vmatpush1.msra.mxu0 %v731
        %1619 = vmatprep.subr.mxu0 0.0
        %1620 = vmatpush1.msra.mxu0 %v732
        %1621 = vmatprep.subr.mxu0 0.0
        %1622 = vmatpush1.msra.mxu0 %v733
        %1623 = vmatprep.subr.mxu0 0.0
        %1624 = vmatpush1.msra.mxu0 %v734
        %1625 = vmatprep.subr.mxu0 0.0
        %1626 = vmatpush1.msra.mxu0 %v735
        %1627 = vmatprep.subr.mxu0 0.0
        %1628 = vmatpush1.msra.mxu0 %v736
        %1629 = vmatprep.subr.mxu0 0.0
        %1630 = vmatpush1.msra.mxu0 %v737
        %1631 = vmatprep.subr.mxu0 0.0
        %1632 = vmatpush1.msra.mxu0 %v738
        %1633 = vmatprep.subr.mxu0 0.0
        %1634 = vmatpush1.msra.mxu0 %v739
        %1635 = vmatprep.subr.mxu0 0.0
        %1636 = vmatpush1.msra.mxu0 %v740
        %1637 = vmatprep.subr.mxu0 0.0
        %1638 = vmatpush1.msra.mxu0 %v741
        %1639 = vmatprep.subr.mxu0 0.0
        %1640 = vmatpush1.msra.mxu0 %v742
        %1641 = vmatprep.subr.mxu0 0.0
        %1642 = vmatpush1.msra.mxu0 %v743
        %1643 = vmatprep.mubr.f32.mxu0 %v489
        %1644 = vmatmul.mubr.f32.gmra.mrb[0].mxu0 %v390
        %v1645 = vpop.f32.mrb[0].mxu0
        %v1646 = vadd.f32 %v1421, %v1645
        %v1647 = vpop.f32.mrb[0].mxu0
        %1648 = vmatprep.mubr.f32.mxu0 %v491
        %1649 = vmatmul.mubr.f32.gmra.mrb[0].mxu0 %v391
        %v1650 = vpop.f32.mrb[0].mxu0
        %v1651 = vadd.f32 %v1426, %v1650
        %v1652 = vpop.f32.mrb[0].mxu0
        %1653 = vmatprep.mubr.f32.mxu0 %v494
        %1654 = vmatmul.mubr.f32.gmra.mrb[0].mxu0 %v393
        %v1655 = vpop.f32.mrb[0].mxu0
        %v1656 = vadd.f32 %v1431, %v1655
        %v1657 = vpop.f32.mrb[0].mxu0
        %1658 = vmatprep.mubr.f32.mxu0 %v496
        %1659 = vmatmul.mubr.f32.gmra.mrb[0].mxu0 %v394
        %v1660 = vpop.f32.mrb[0].mxu0
        %v1661 = vadd.f32 %v1436, %v1660
        %v1662 = vpop.f32.mrb[0].mxu0
        %1663 = vmatprep.mubr.f32.mxu0 %v499
        %1664 = vmatmul.mubr.f32.gmra.mrb[0].mxu0 %v396
        %v1665 = vpop.f32.mrb[0].mxu0
        %v1666 = vadd.f32 %v1441, %v1665
        %v1667 = vpop.f32.mrb[0].mxu0
        %1668 = vmatprep.mubr.f32.mxu0 %v501
        %1669 = vmatmul.mubr.f32.gmra.mrb[0].mxu0 %v397
        %v1670 = vpop.f32.mrb[0].mxu0
        %v1671 = vadd.f32 %v1446, %v1670
        %v1672 = vpop.f32.mrb[0].mxu0
        %1673 = vmatprep.mubr.f32.mxu0 %v504
        %1674 = vmatmul.mubr.f32.gmra.mrb[0].mxu0 %v399
        %v1675 = vpop.f32.mrb[0].mxu0
        %v1676 = vadd.f32 %v1451, %v1675
        %v1677 = vpop.f32.mrb[0].mxu0
        %1678 = vmatprep.mubr.f32.mxu0 %v506
        %1679 = vmatmul.mubr.f32.gmra.mrb[0].mxu0 %v400
        %v1680 = vpop.f32.mrb[0].mxu0
        %v1681 = vadd.f32 %v1456, %v1680
        %v1682 = vpop.f32.mrb[0].mxu0
        %1683 = vmatprep.mubr.f32.mxu0 %v509
        %1684 = vmatmul.mubr.f32.gmra.mrb[0].mxu0 %v402
        %v1685 = vpop.f32.mrb[0].mxu0
        %v1686 = vadd.f32 %v1461, %v1685
        %v1687 = vpop.f32.mrb[0].mxu0
        %1688 = vmatprep.mubr.f32.mxu0 %v511
        %1689 = vmatmul.mubr.f32.gmra.mrb[0].mxu0 %v403
        %v1690 = vpop.f32.mrb[0].mxu0
        %v1691 = vadd.f32 %v1466, %v1690
        %v1692 = vpop.f32.mrb[0].mxu0
        %1693 = vmatprep.mubr.f32.mxu0 %v514
        %1694 = vmatmul.mubr.f32.gmra.mrb[0].mxu0 %v405
        %v1695 = vpop.f32.mrb[0].mxu0
        %v1696 = vadd.f32 %v1471, %v1695
        %v1697 = vpop.f32.mrb[0].mxu0
        %1698 = vmatprep.mubr.f32.mxu0 %v516
        %1699 = vmatmul.mubr.f32.gmra.mrb[0].mxu0 %v406
        %v1700 = vpop.f32.mrb[0].mxu0
        %v1701 = vadd.f32 %v1476, %v1700
        %v1702 = vpop.f32.mrb[0].mxu0
        %1703 = vmatprep.mubr.f32.mxu0 %v519
        %1704 = vmatmul.mubr.f32.gmra.mrb[0].mxu0 %v408
        %v1705 = vpop.f32.mrb[0].mxu0
        %v1706 = vadd.f32 %v1481, %v1705
        %v1707 = vpop.f32.mrb[0].mxu0
        %1708 = vmatprep.mubr.f32.mxu0 %v521
        %1709 = vmatmul.mubr.f32.gmra.mrb[0].mxu0 %v409
        %v1710 = vpop.f32.mrb[0].mxu0
        %v1711 = vadd.f32 %v1486, %v1710
        %v1712 = vpop.f32.mrb[0].mxu0
        %1713 = vmatprep.mubr.f32.mxu0 %v524
        %1714 = vmatmul.mubr.f32.gmra.mrb[0].mxu0 %v411
        %v1715 = vpop.f32.mrb[0].mxu0
        %v1716 = vadd.f32 %v1491, %v1715
        %v1717 = vpop.f32.mrb[0].mxu0
        %1718 = vmatprep.mubr.f32.mxu0 %v526
        %1719 = vmatmul.mubr.f32.gmra.mrb[0].mxu0 %v412
        %v1720 = vpop.f32.mrb[0].mxu0
        %v1721 = vadd.f32 %v1496, %v1720
        %v1722 = vpop.f32.mrb[0].mxu0
        %1723 = vmatprep.mubr.f32.mxu0 %v529
        %1724 = vmatmul.mubr.f32.gmra.mrb[0].mxu0 %v414
        %v1725 = vpop.f32.mrb[0].mxu0
        %v1726 = vadd.f32 %v1501, %v1725
        %v1727 = vpop.f32.mrb[0].mxu0
        %1728 = vmatprep.mubr.f32.mxu0 %v531
        %1729 = vmatmul.mubr.f32.gmra.mrb[0].mxu0 %v415
        %v1730 = vpop.f32.mrb[0].mxu0
        %v1731 = vadd.f32 %v1506, %v1730
        %v1732 = vpop.f32.mrb[0].mxu0
        %1733 = vmatprep.mubr.f32.mxu0 %v534
        %1734 = vmatmul.mubr.f32.gmra.mrb[0].mxu0 %v417
        %v1735 = vpop.f32.mrb[0].mxu0
        %v1736 = vadd.f32 %v1511, %v1735
        %v1737 = vpop.f32.mrb[0].mxu0
        %1738 = vmatprep.mubr.f32.mxu0 %v536
        %1739 = vmatmul.mubr.f32.gmra.mrb[0].mxu0 %v418
        %v1740 = vpop.f32.mrb[0].mxu0
        %v1741 = vadd.f32 %v1516, %v1740
        %v1742 = vpop.f32.mrb[0].mxu0
        %1743 = vmatprep.mubr.f32.mxu0 %v539
        %1744 = vmatmul.mubr.f32.gmra.mrb[0].mxu0 %v420
        %v1745 = vpop.f32.mrb[0].mxu0
        %v1746 = vadd.f32 %v1521, %v1745
        %v1747 = vpop.f32.mrb[0].mxu0
        %1748 = vmatprep.mubr.f32.mxu0 %v541
        %1749 = vmatmul.mubr.f32.gmra.mrb[0].mxu0 %v421
        %v1750 = vpop.f32.mrb[0].mxu0
        %v1751 = vadd.f32 %v1526, %v1750
        %v1752 = vpop.f32.mrb[0].mxu0
        %1753 = vmatprep.mubr.f32.mxu0 %v544
        %1754 = vmatmul.mubr.f32.gmra.mrb[0].mxu0 %v423
        %v1755 = vpop.f32.mrb[0].mxu0
        %v1756 = vadd.f32 %v1531, %v1755
        %v1757 = vpop.f32.mrb[0].mxu0
        %1758 = vmatprep.mubr.f32.mxu0 %v546
        %1759 = vmatmul.mubr.f32.gmra.mrb[0].mxu0 %v424
        %v1760 = vpop.f32.mrb[0].mxu0
        %v1761 = vadd.f32 %v1536, %v1760
        %v1762 = vpop.f32.mrb[0].mxu0
        %1763 = vmatprep.mubr.f32.mxu0 %v549
        %1764 = vmatmul.mubr.f32.gmra.mrb[0].mxu0 %v426
        %v1765 = vpop.f32.mrb[0].mxu0
        %v1766 = vadd.f32 %v1541, %v1765
        %v1767 = vpop.f32.mrb[0].mxu0
        %1768 = vmatprep.mubr.f32.mxu0 %v551
        %1769 = vmatmul.mubr.f32.gmra.mrb[0].mxu0 %v427
        %v1770 = vpop.f32.mrb[0].mxu0
        %v1771 = vadd.f32 %v1546, %v1770
        %v1772 = vpop.f32.mrb[0].mxu0
        %1773 = vmatprep.mubr.f32.mxu0 %v554
        %1774 = vmatmul.mubr.f32.gmra.mrb[0].mxu0 %v429
        %v1775 = vpop.f32.mrb[0].mxu0
        %v1776 = vadd.f32 %v1551, %v1775
        %v1777 = vpop.f32.mrb[0].mxu0
        %1778 = vmatprep.mubr.f32.mxu0 %v556
        %1779 = vmatmul.mubr.f32.gmra.mrb[0].mxu0 %v430
        %v1780 = vpop.f32.mrb[0].mxu0
        %v1781 = vadd.f32 %v1556, %v1780
        %v1782 = vpop.f32.mrb[0].mxu0
        %1783 = vmatprep.mubr.f32.mxu0 %v559
        %1784 = vmatmul.mubr.f32.gmra.mrb[0].mxu0 %v432
        %v1785 = vpop.f32.mrb[0].mxu0
        %v1786 = vadd.f32 %v1561, %v1785
        %v1787 = vpop.f32.mrb[0].mxu0
        %1788 = vmatprep.mubr.f32.mxu0 %v561
        %1789 = vmatmul.mubr.f32.gmra.mrb[0].mxu0 %v433
        %v1790 = vpop.f32.mrb[0].mxu0
        %v1791 = vadd.f32 %v1566, %v1790
        %v1792 = vpop.f32.mrb[0].mxu0
        %1793 = vmatprep.mubr.f32.mxu0 %v564
        %1794 = vmatmul.mubr.f32.gmra.mrb[0].mxu0 %v435
        %v1795 = vpop.f32.mrb[0].mxu0
        %v1796 = vadd.f32 %v1571, %v1795
        %v1797 = vpop.f32.mrb[0].mxu0
        %1798 = vmatprep.mubr.f32.mxu0 %v566
        %1799 = vmatmul.mubr.f32.gmra.mrb[0].mxu0 %v436
        %v1800 = vpop.f32.mrb[0].mxu0
        %v1801 = vadd.f32 %v1576, %v1800
        %v1802 = vpop.f32.mrb[0].mxu0
        %1803 = vdwg.mxu0
        %1804 = vmatprep.subr.mxu0 0.0
        %1805 = vmatpush1.msra.mxu0 %v744
        %1806 = vmatprep.subr.mxu0 0.0
        %1807 = vmatpush1.msra.mxu0 %v745
        %1808 = vmatprep.subr.mxu0 0.0
        %1809 = vmatpush1.msra.mxu0 %v746
        %1810 = vmatprep.subr.mxu0 0.0
        %1811 = vmatpush1.msra.mxu0 %v747
        %1812 = vmatprep.subr.mxu0 0.0
        %1813 = vmatpush1.msra.mxu0 %v748
        %1814 = vmatprep.subr.mxu0 0.0
        %1815 = vmatpush1.msra.mxu0 %v749
        %1816 = vmatprep.subr.mxu0 0.0
        %1817 = vmatpush1.msra.mxu0 %v750
        %1818 = vmatprep.subr.mxu0 0.0
        %1819 = vmatpush1.msra.mxu0 %v751
        %1820 = vmatprep.subr.mxu0 0.0
        %1821 = vmatpush1.msra.mxu0 %v752
        %1822 = vmatprep.subr.mxu0 0.0
        %1823 = vmatpush1.msra.mxu0 %v753
        %1824 = vmatprep.subr.mxu0 0.0
        %1825 = vmatpush1.msra.mxu0 %v754
        %1826 = vmatprep.subr.mxu0 0.0
        %1827 = vmatpush1.msra.mxu0 %v755
        %1828 = vmatprep.subr.mxu0 0.0
        %1829 = vmatpush1.msra.mxu0 %v756
        %1830 = vmatprep.subr.mxu0 0.0
        %1831 = vmatpush1.msra.mxu0 %v757
        %1832 = vmatprep.subr.mxu0 0.0
        %1833 = vmatpush1.msra.mxu0 %v758
        %1834 = vmatprep.subr.mxu0 0.0
        %1835 = vmatpush1.msra.mxu0 %v759
        %1836 = vmatprep.subr.mxu0 0.0
        %1837 = vmatpush1.msra.mxu0 0.0
        %1838 = vmatprep.subr.mxu0 0.0
        %1839 = vmatpush1.msra.mxu0 0.0
        %1840 = vmatprep.subr.mxu0 0.0
        %1841 = vmatpush1.msra.mxu0 0.0
        %1842 = vmatprep.subr.mxu0 0.0
        %1843 = vmatpush1.msra.mxu0 0.0
        %1844 = vmatprep.subr.mxu0 0.0
        %1845 = vmatpush1.msra.mxu0 0.0
        %1846 = vmatprep.subr.mxu0 0.0
        %1847 = vmatpush1.msra.mxu0 0.0
        %1848 = vmatprep.subr.mxu0 0.0
        %1849 = vmatpush1.msra.mxu0 0.0
        %1850 = vmatprep.subr.mxu0 0.0
        %1851 = vmatpush1.msra.mxu0 0.0
        %1852 = vmatprep.subr.mxu0 0.0
        %1853 = vmatpush1.msra.mxu0 0.0
        %1854 = vmatprep.subr.mxu0 0.0
        %1855 = vmatpush1.msra.mxu0 0.0
        %1856 = vmatprep.subr.mxu0 0.0
        %1857 = vmatpush1.msra.mxu0 0.0
        %1858 = vmatprep.subr.mxu0 0.0
        %1859 = vmatpush1.msra.mxu0 0.0
        %1860 = vmatprep.subr.mxu0 0.0
        %1861 = vmatpush1.msra.mxu0 0.0
        %1862 = vmatprep.subr.mxu0 0.0
        %1863 = vmatpush1.msra.mxu0 0.0
        %1864 = vmatprep.subr.mxu0 0.0
        %1865 = vmatpush1.msra.mxu0 0.0
        %1866 = vmatprep.subr.mxu0 0.0
        %1867 = vmatpush1.msra.mxu0 0.0
        %1868 = vmatprep.mubr.f32.mxu0 0.0
        %1869 = vmatmul.mubr.f32.gmra.mrb[0].mxu0 %v602
        %v1870 = vpop.f32.mrb[0].mxu0
        %v1871 = vadd.f32 %v1646, %v1870
        %v1872 = vpop.f32.mrb[0].mxu0
        %1873 = vmatprep.mubr.f32.mxu0 0.0
        %1874 = vmatmul.mubr.f32.gmra.mrb[0].mxu0 %v604
        %v1875 = vpop.f32.mrb[0].mxu0
        %v1876 = vadd.f32 %v1651, %v1875
        %v1877 = vpop.f32.mrb[0].mxu0
        %1878 = vmatprep.mubr.f32.mxu0 0.0
        %1879 = vmatmul.mubr.f32.gmra.mrb[0].mxu0 %v607
        %v1880 = vpop.f32.mrb[0].mxu0
        %v1881 = vadd.f32 %v1656, %v1880
        %v1882 = vpop.f32.mrb[0].mxu0
        %1883 = vmatprep.mubr.f32.mxu0 0.0
        %1884 = vmatmul.mubr.f32.gmra.mrb[0].mxu0 %v609
        %v1885 = vpop.f32.mrb[0].mxu0
        %v1886 = vadd.f32 %v1661, %v1885
        %v1887 = vpop.f32.mrb[0].mxu0
        %1888 = vmatprep.mubr.f32.mxu0 0.0
        %1889 = vmatmul.mubr.f32.gmra.mrb[0].mxu0 %v612
        %v1890 = vpop.f32.mrb[0].mxu0
        %v1891 = vadd.f32 %v1666, %v1890
        %v1892 = vpop.f32.mrb[0].mxu0
        %1893 = vmatprep.mubr.f32.mxu0 0.0
        %1894 = vmatmul.mubr.f32.gmra.mrb[0].mxu0 %v614
        %v1895 = vpop.f32.mrb[0].mxu0
        %v1896 = vadd.f32 %v1671, %v1895
        %v1897 = vpop.f32.mrb[0].mxu0
        %1898 = vmatprep.mubr.f32.mxu0 0.0
        %1899 = vmatmul.mubr.f32.gmra.mrb[0].mxu0 %v617
        %v1900 = vpop.f32.mrb[0].mxu0
        %v1901 = vadd.f32 %v1676, %v1900
        %v1902 = vpop.f32.mrb[0].mxu0
        %1903 = vmatprep.mubr.f32.mxu0 0.0
        %1904 = vmatmul.mubr.f32.gmra.mrb[0].mxu0 %v619
        %v1905 = vpop.f32.mrb[0].mxu0
        %v1906 = vadd.f32 %v1681, %v1905
        %v1907 = vpop.f32.mrb[0].mxu0
        %1908 = vmatprep.mubr.f32.mxu0 0.0
        %1909 = vmatmul.mubr.f32.gmra.mrb[0].mxu0 %v622
        %v1910 = vpop.f32.mrb[0].mxu0
        %v1911 = vadd.f32 %v1686, %v1910
        %v1912 = vpop.f32.mrb[0].mxu0
        %1913 = vmatprep.mubr.f32.mxu0 0.0
        %1914 = vmatmul.mubr.f32.gmra.mrb[0].mxu0 %v624
        %v1915 = vpop.f32.mrb[0].mxu0
        %v1916 = vadd.f32 %v1691, %v1915
        %v1917 = vpop.f32.mrb[0].mxu0
        %1918 = vmatprep.mubr.f32.mxu0 0.0
        %1919 = vmatmul.mubr.f32.gmra.mrb[0].mxu0 %v627
        %v1920 = vpop.f32.mrb[0].mxu0
        %v1921 = vadd.f32 %v1696, %v1920
        %v1922 = vpop.f32.mrb[0].mxu0
        %1923 = vmatprep.mubr.f32.mxu0 0.0
        %1924 = vmatmul.mubr.f32.gmra.mrb[0].mxu0 %v629
        %v1925 = vpop.f32.mrb[0].mxu0
        %v1926 = vadd.f32 %v1701, %v1925
        %v1927 = vpop.f32.mrb[0].mxu0
        %1928 = vmatprep.mubr.f32.mxu0 0.0
        %1929 = vmatmul.mubr.f32.gmra.mrb[0].mxu0 %v632
        %v1930 = vpop.f32.mrb[0].mxu0
        %v1931 = vadd.f32 %v1706, %v1930
        %v1932 = vpop.f32.mrb[0].mxu0
        %1933 = vmatprep.mubr.f32.mxu0 0.0
        %1934 = vmatmul.mubr.f32.gmra.mrb[0].mxu0 %v634
        %v1935 = vpop.f32.mrb[0].mxu0
        %v1936 = vadd.f32 %v1711, %v1935
        %v1937 = vpop.f32.mrb[0].mxu0
        %1938 = vmatprep.mubr.f32.mxu0 0.0
        %1939 = vmatmul.mubr.f32.gmra.mrb[0].mxu0 %v637
        %v1940 = vpop.f32.mrb[0].mxu0
        %v1941 = vadd.f32 %v1716, %v1940
        %v1942 = vpop.f32.mrb[0].mxu0
        %1943 = vmatprep.mubr.f32.mxu0 0.0
        %1944 = vmatmul.mubr.f32.gmra.mrb[0].mxu0 %v639
        %v1945 = vpop.f32.mrb[0].mxu0
        %v1946 = vadd.f32 %v1721, %v1945
        %v1947 = vpop.f32.mrb[0].mxu0
        %1948 = vmatprep.mubr.f32.mxu0 0.0
        %1949 = vmatmul.mubr.f32.gmra.mrb[0].mxu0 %v642
        %v1950 = vpop.f32.mrb[0].mxu0
        %v1951 = vadd.f32 %v1726, %v1950
        %v1952 = vpop.f32.mrb[0].mxu0
        %1953 = vmatprep.mubr.f32.mxu0 0.0
        %1954 = vmatmul.mubr.f32.gmra.mrb[0].mxu0 %v644
        %v1955 = vpop.f32.mrb[0].mxu0
        %v1956 = vadd.f32 %v1731, %v1955
        %v1957 = vpop.f32.mrb[0].mxu0
        %1958 = vmatprep.mubr.f32.mxu0 0.0
        %1959 = vmatmul.mubr.f32.gmra.mrb[0].mxu0 %v647
        %v1960 = vpop.f32.mrb[0].mxu0
        %v1961 = vadd.f32 %v1736, %v1960
        %v1962 = vpop.f32.mrb[0].mxu0
        %1963 = vmatprep.mubr.f32.mxu0 0.0
        %1964 = vmatmul.mubr.f32.gmra.mrb[0].mxu0 %v649
        %v1965 = vpop.f32.mrb[0].mxu0
        %v1966 = vadd.f32 %v1741, %v1965
        %v1967 = vpop.f32.mrb[0].mxu0
        %1968 = vmatprep.mubr.f32.mxu0 0.0
        %1969 = vmatmul.mubr.f32.gmra.mrb[0].mxu0 %v652
        %v1970 = vpop.f32.mrb[0].mxu0
        %v1971 = vadd.f32 %v1746, %v1970
        %v1972 = vpop.f32.mrb[0].mxu0
        %1973 = vmatprep.mubr.f32.mxu0 0.0
        %1974 = vmatmul.mubr.f32.gmra.mrb[0].mxu0 %v654
        %v1975 = vpop.f32.mrb[0].mxu0
        %v1976 = vadd.f32 %v1751, %v1975
        %v1977 = vpop.f32.mrb[0].mxu0
        %1978 = vmatprep.mubr.f32.mxu0 0.0
        %1979 = vmatmul.mubr.f32.gmra.mrb[0].mxu0 %v657
        %v1980 = vpop.f32.mrb[0].mxu0
        %v1981 = vadd.f32 %v1756, %v1980
        %v1982 = vpop.f32.mrb[0].mxu0
        %1983 = vmatprep.mubr.f32.mxu0 0.0
        %1984 = vmatmul.mubr.f32.gmra.mrb[0].mxu0 %v659
        %v1985 = vpop.f32.mrb[0].mxu0
        %v1986 = vadd.f32 %v1761, %v1985
        %v1987 = vpop.f32.mrb[0].mxu0
        %1988 = vmatprep.mubr.f32.mxu0 0.0
        %1989 = vmatmul.mubr.f32.gmra.mrb[0].mxu0 %v662
        %v1990 = vpop.f32.mrb[0].mxu0
        %v1991 = vadd.f32 %v1766, %v1990
        %v1992 = vpop.f32.mrb[0].mxu0
        %1993 = vmatprep.mubr.f32.mxu0 0.0
        %1994 = vmatmul.mubr.f32.gmra.mrb[0].mxu0 %v664
        %v1995 = vpop.f32.mrb[0].mxu0
        %v1996 = vadd.f32 %v1771, %v1995
        %v1997 = vpop.f32.mrb[0].mxu0
        %1998 = vmatprep.mubr.f32.mxu0 0.0
        %1999 = vmatmul.mubr.f32.gmra.mrb[0].mxu0 %v667
        %v2000 = vpop.f32.mrb[0].mxu0
        %v2001 = vadd.f32 %v1776, %v2000
        %v2002 = vpop.f32.mrb[0].mxu0
        %2003 = vmatprep.mubr.f32.mxu0 0.0
        %2004 = vmatmul.mubr.f32.gmra.mrb[0].mxu0 %v669
        %v2005 = vpop.f32.mrb[0].mxu0
        %v2006 = vadd.f32 %v1781, %v2005
        %v2007 = vpop.f32.mrb[0].mxu0
        %2008 = vmatprep.mubr.f32.mxu0 0.0
        %2009 = vmatmul.mubr.f32.gmra.mrb[0].mxu0 %v672
        %v2010 = vpop.f32.mrb[0].mxu0
        %v2011 = vadd.f32 %v1786, %v2010
        %v2012 = vpop.f32.mrb[0].mxu0
        %2013 = vmatprep.mubr.f32.mxu0 0.0
        %2014 = vmatmul.mubr.f32.gmra.mrb[0].mxu0 %v674
        %v2015 = vpop.f32.mrb[0].mxu0
        %v2016 = vadd.f32 %v1791, %v2015
        %v2017 = vpop.f32.mrb[0].mxu0
        %2018 = vmatprep.mubr.f32.mxu0 0.0
        %2019 = vmatmul.mubr.f32.gmra.mrb[0].mxu0 %v677
        %v2020 = vpop.f32.mrb[0].mxu0
        %v2021 = vadd.f32 %v1796, %v2020
        %v2022 = vpop.f32.mrb[0].mxu0
        %2023 = vmatprep.mubr.f32.mxu0 0.0
        %2024 = vmatmul.mubr.f32.gmra.mrb[0].mxu0 %v679
        %v2025 = vpop.f32.mrb[0].mxu0
        %v2026 = vadd.f32 %v1801, %v2025
        %v2027 = vpop.f32.mrb[0].mxu0
        %2028 = vdwg.mxu0
        %s2029 = scalar_lea.vmem [#allocation2], 48
        %v2030 = vld [vmem:[%s2029] sm:$0xff]
        %v2031 = vld [vmem:[%s2029 + $0x8] sm:$0xff]
        %v2032 = vld [vmem:[%s2029 + $0x10] sm:$0x3]
        %v2033 = vld [vmem:[%s2029 + $0x18] sm:$0xff]
        %v2034 = vld [vmem:[%s2029 + $0x20] sm:$0xff]
        %v2035 = vld [vmem:[%s2029 + $0x28] sm:$0x3]
        %v2036 = vld [vmem:[%s2029 + $0x30] sm:$0xff]
        %v2037 = vld [vmem:[%s2029 + $0x38] sm:$0xff]
        %v2038 = vld [vmem:[%s2029 + $0x40] sm:$0x3]
        %v2039 = vld [vmem:[%s2029 + $0x48] sm:$0xff]
        %v2040 = vld [vmem:[%s2029 + $0x50] sm:$0xff]
        %v2041 = vld [vmem:[%s2029 + $0x58] sm:$0x3]
        %v2042 = vld [vmem:[%s2029 + $0x60] sm:$0xff]
        %v2043 = vld [vmem:[%s2029 + $0x68] sm:$0xff]
        %v2044 = vld [vmem:[%s2029 + $0x70] sm:$0x3]
        %v2045 = vld [vmem:[%s2029 + $0x78] sm:$0xff]
        %v2046 = vld [vmem:[%s2029 + $0x80] sm:$0xff]
        %v2047 = vld [vmem:[%s2029 + $0x88] sm:$0x3]
        %v2048 = vld [vmem:[%s2029 + $0x90] sm:$0xff]
        %v2049 = vld [vmem:[%s2029 + $0x98] sm:$0xff]
        %v2050 = vld [vmem:[%s2029 + $0xa0] sm:$0x3]
        %v2051 = vld [vmem:[%s2029 + $0xa8] sm:$0xff]
        %v2052 = vld [vmem:[%s2029 + $0xb0] sm:$0xff]
        %v2053 = vld [vmem:[%s2029 + $0xb8] sm:$0x3]
        %v2054 = vld [vmem:[%s2029 + $0xc0] sm:$0xff]
        %v2055 = vld [vmem:[%s2029 + $0xc8] sm:$0xff]
        %v2056 = vld [vmem:[%s2029 + $0xd0] sm:$0x3]
        %v2057 = vld [vmem:[%s2029 + $0xd8] sm:$0xff]
        %v2058 = vld [vmem:[%s2029 + $0xe0] sm:$0xff]
        %v2059 = vld [vmem:[%s2029 + $0xe8] sm:$0x3]
        %v2060 = vld [vmem:[%s2029 + $0xf0] sm:$0xff]
        %v2061 = vld [vmem:[%s2029 + $0xf8] sm:$0xff]
        %v2062 = vld [vmem:[%s2029 + $0x100] sm:$0x3]
        %v2063 = vld [vmem:[%s2029 + $0x108] sm:$0xff]
        %v2064 = vld [vmem:[%s2029 + $0x110] sm:$0xff]
        %v2065 = vld [vmem:[%s2029 + $0x118] sm:$0x3]
        %v2066 = vld [vmem:[%s2029 + $0x120] sm:$0xff]
        %v2067 = vld [vmem:[%s2029 + $0x128] sm:$0xff]
        %v2068 = vld [vmem:[%s2029 + $0x130] sm:$0x3]
        %v2069 = vld [vmem:[%s2029 + $0x138] sm:$0xff]
        %v2070 = vld [vmem:[%s2029 + $0x140] sm:$0xff]
        %v2071 = vld [vmem:[%s2029 + $0x148] sm:$0x3]
        %v2072 = vld [vmem:[%s2029 + $0x150] sm:$0xff]
        %v2073 = vld [vmem:[%s2029 + $0x158] sm:$0xff]
        %v2074 = vld [vmem:[%s2029 + $0x160] sm:$0x3]
        %v2075 = vld [vmem:[%s2029 + $0x168] sm:$0xff]
        %v2076 = vld [vmem:[%s2029 + $0x170] sm:$0xff]
        %v2077 = vld [vmem:[%s2029 + $0x178] sm:$0x3]
        %v2126 = vrot.slane %v2030, 1
        %v2127 = vrot.slane %v2031, 1
        %v2128 = vsel %vm486, %v2126, %v2127
        %v2129 = vrot.slane %v2032, 1
        %v2130 = vsel %vm486, %v2127, %v2129
        %v2131 = vrot.slane %v2033, 1
        %v2132 = vrot.slane %v2034, 1
        %v2133 = vsel %vm486, %v2131, %v2132
        %v2134 = vrot.slane %v2035, 1
        %v2135 = vsel %vm486, %v2132, %v2134
        %v2136 = vrot.slane %v2036, 1
        %v2137 = vrot.slane %v2037, 1
        %v2138 = vsel %vm486, %v2136, %v2137
        %v2139 = vrot.slane %v2038, 1
        %v2140 = vsel %vm486, %v2137, %v2139
        %v2141 = vrot.slane %v2039, 1
        %v2142 = vrot.slane %v2040, 1
        %v2143 = vsel %vm486, %v2141, %v2142
        %v2144 = vrot.slane %v2041, 1
        %v2145 = vsel %vm486, %v2142, %v2144
        %v2146 = vrot.slane %v2042, 1
        %v2147 = vrot.slane %v2043, 1
        %v2148 = vsel %vm486, %v2146, %v2147
        %v2149 = vrot.slane %v2044, 1
        %v2150 = vsel %vm486, %v2147, %v2149
        %v2151 = vrot.slane %v2045, 1
        %v2152 = vrot.slane %v2046, 1
        %v2153 = vsel %vm486, %v2151, %v2152
        %v2154 = vrot.slane %v2047, 1
        %v2155 = vsel %vm486, %v2152, %v2154
        %v2156 = vrot.slane %v2048, 1
        %v2157 = vrot.slane %v2049, 1
        %v2158 = vsel %vm486, %v2156, %v2157
        %v2159 = vrot.slane %v2050, 1
        %v2160 = vsel %vm486, %v2157, %v2159
        %v2161 = vrot.slane %v2051, 1
        %v2162 = vrot.slane %v2052, 1
        %v2163 = vsel %vm486, %v2161, %v2162
        %v2164 = vrot.slane %v2053, 1
        %v2165 = vsel %vm486, %v2162, %v2164
        %v2166 = vrot.slane %v2054, 1
        %v2167 = vrot.slane %v2055, 1
        %v2168 = vsel %vm486, %v2166, %v2167
        %v2169 = vrot.slane %v2056, 1
        %v2170 = vsel %vm486, %v2167, %v2169
        %v2171 = vrot.slane %v2057, 1
        %v2172 = vrot.slane %v2058, 1
        %v2173 = vsel %vm486, %v2171, %v2172
        %v2174 = vrot.slane %v2059, 1
        %v2175 = vsel %vm486, %v2172, %v2174
        %v2176 = vrot.slane %v2060, 1
        %v2177 = vrot.slane %v2061, 1
        %v2178 = vsel %vm486, %v2176, %v2177
        %v2179 = vrot.slane %v2062, 1
        %v2180 = vsel %vm486, %v2177, %v2179
        %v2181 = vrot.slane %v2063, 1
        %v2182 = vrot.slane %v2064, 1
        %v2183 = vsel %vm486, %v2181, %v2182
        %v2184 = vrot.slane %v2065, 1
        %v2185 = vsel %vm486, %v2182, %v2184
        %v2186 = vrot.slane %v2066, 1
        %v2187 = vrot.slane %v2067, 1
        %v2188 = vsel %vm486, %v2186, %v2187
        %v2189 = vrot.slane %v2068, 1
        %v2190 = vsel %vm486, %v2187, %v2189
        %v2191 = vrot.slane %v2069, 1
        %v2192 = vrot.slane %v2070, 1
        %v2193 = vsel %vm486, %v2191, %v2192
        %v2194 = vrot.slane %v2071, 1
        %v2195 = vsel %vm486, %v2192, %v2194
        %v2196 = vrot.slane %v2072, 1
        %v2197 = vrot.slane %v2073, 1
        %v2198 = vsel %vm486, %v2196, %v2197
        %v2199 = vrot.slane %v2074, 1
        %v2200 = vsel %vm486, %v2197, %v2199
        %v2201 = vrot.slane %v2075, 1
        %v2202 = vrot.slane %v2076, 1
        %v2203 = vsel %vm486, %v2201, %v2202
        %v2204 = vrot.slane %v2077, 1
        %v2205 = vsel %vm486, %v2202, %v2204
        %v2238 = vrot.slane %v2030, 2
        %v2239 = vrot.slane %v2031, 2
        %v2240 = vsel %vm599, %v2238, %v2239
        %v2241 = vrot.slane %v2032, 2
        %v2242 = vsel %vm599, %v2239, %v2241
        %v2243 = vrot.slane %v2033, 2
        %v2244 = vrot.slane %v2034, 2
        %v2245 = vsel %vm599, %v2243, %v2244
        %v2246 = vrot.slane %v2035, 2
        %v2247 = vsel %vm599, %v2244, %v2246
        %v2248 = vrot.slane %v2036, 2
        %v2249 = vrot.slane %v2037, 2
        %v2250 = vsel %vm599, %v2248, %v2249
        %v2251 = vrot.slane %v2038, 2
        %v2252 = vsel %vm599, %v2249, %v2251
        %v2253 = vrot.slane %v2039, 2
        %v2254 = vrot.slane %v2040, 2
        %v2255 = vsel %vm599, %v2253, %v2254
        %v2256 = vrot.slane %v2041, 2
        %v2257 = vsel %vm599, %v2254, %v2256
        %v2258 = vrot.slane %v2042, 2
        %v2259 = vrot.slane %v2043, 2
        %v2260 = vsel %vm599, %v2258, %v2259
        %v2261 = vrot.slane %v2044, 2
        %v2262 = vsel %vm599, %v2259, %v2261
        %v2263 = vrot.slane %v2045, 2
        %v2264 = vrot.slane %v2046, 2
        %v2265 = vsel %vm599, %v2263, %v2264
        %v2266 = vrot.slane %v2047, 2
        %v2267 = vsel %vm599, %v2264, %v2266
        %v2268 = vrot.slane %v2048, 2
        %v2269 = vrot.slane %v2049, 2
        %v2270 = vsel %vm599, %v2268, %v2269
        %v2271 = vrot.slane %v2050, 2
        %v2272 = vsel %vm599, %v2269, %v2271
        %v2273 = vrot.slane %v2051, 2
        %v2274 = vrot.slane %v2052, 2
        %v2275 = vsel %vm599, %v2273, %v2274
        %v2276 = vrot.slane %v2053, 2
        %v2277 = vsel %vm599, %v2274, %v2276
        %v2278 = vrot.slane %v2054, 2
        %v2279 = vrot.slane %v2055, 2
        %v2280 = vsel %vm599, %v2278, %v2279
        %v2281 = vrot.slane %v2056, 2
        %v2282 = vsel %vm599, %v2279, %v2281
        %v2283 = vrot.slane %v2057, 2
        %v2284 = vrot.slane %v2058, 2
        %v2285 = vsel %vm599, %v2283, %v2284
        %v2286 = vrot.slane %v2059, 2
        %v2287 = vsel %vm599, %v2284, %v2286
        %v2288 = vrot.slane %v2060, 2
        %v2289 = vrot.slane %v2061, 2
        %v2290 = vsel %vm599, %v2288, %v2289
        %v2291 = vrot.slane %v2062, 2
        %v2292 = vsel %vm599, %v2289, %v2291
        %v2293 = vrot.slane %v2063, 2
        %v2294 = vrot.slane %v2064, 2
        %v2295 = vsel %vm599, %v2293, %v2294
        %v2296 = vrot.slane %v2065, 2
        %v2297 = vsel %vm599, %v2294, %v2296
        %v2298 = vrot.slane %v2066, 2
        %v2299 = vrot.slane %v2067, 2
        %v2300 = vsel %vm599, %v2298, %v2299
        %v2301 = vrot.slane %v2068, 2
        %v2302 = vsel %vm599, %v2299, %v2301
        %v2303 = vrot.slane %v2069, 2
        %v2304 = vrot.slane %v2070, 2
        %v2305 = vsel %vm599, %v2303, %v2304
        %v2306 = vrot.slane %v2071, 2
        %v2307 = vsel %vm599, %v2304, %v2306
        %v2308 = vrot.slane %v2072, 2
        %v2309 = vrot.slane %v2073, 2
        %v2310 = vsel %vm599, %v2308, %v2309
        %v2311 = vrot.slane %v2074, 2
        %v2312 = vsel %vm599, %v2309, %v2311
        %v2313 = vrot.slane %v2075, 2
        %v2314 = vrot.slane %v2076, 2
        %v2315 = vsel %vm599, %v2313, %v2314
        %v2316 = vrot.slane %v2077, 2
        %v2317 = vsel %vm599, %v2314, %v2316
        %s2350 = scalar_lea.vmem [#allocation5], 768
        %v2351 = vld [vmem:[%s2350] sm:$0xff]
        %v2352 = vld [vmem:[%s2350 + $0x8] sm:$0xff]
        %v2353 = vld [vmem:[%s2350 + $0x10] sm:$0xff]
        %v2354 = vld [vmem:[%s2350 + $0x18] sm:$0xff]
        %v2355 = vld [vmem:[%s2350 + $0x20] sm:$0xff]
        %v2356 = vld [vmem:[%s2350 + $0x28] sm:$0xff]
        %v2357 = vld [vmem:[%s2350 + $0x30] sm:$0xff]
        %v2358 = vld [vmem:[%s2350 + $0x38] sm:$0xff]
        %v2359 = vld [vmem:[%s2350 + $0x40] sm:$0xff]
        %v2360 = vld [vmem:[%s2350 + $0x48] sm:$0xff]
        %v2361 = vld [vmem:[%s2350 + $0x50] sm:$0xff]
        %v2362 = vld [vmem:[%s2350 + $0x58] sm:$0xff]
        %v2363 = vld [vmem:[%s2350 + $0x60] sm:$0xff]
        %v2364 = vld [vmem:[%s2350 + $0x68] sm:$0xff]
        %v2365 = vld [vmem:[%s2350 + $0x70] sm:$0xff]
        %v2366 = vld [vmem:[%s2350 + $0x78] sm:$0xff]
        %v2367 = vld [vmem:[%s2350 + $0x80] sm:$0xff]
        %v2368 = vld [vmem:[%s2350 + $0x88] sm:$0xff]
        %v2369 = vld [vmem:[%s2350 + $0x90] sm:$0xff]
        %v2370 = vld [vmem:[%s2350 + $0x98] sm:$0xff]
        %v2371 = vld [vmem:[%s2350 + $0xa0] sm:$0xff]
        %v2372 = vld [vmem:[%s2350 + $0xa8] sm:$0xff]
        %v2373 = vld [vmem:[%s2350 + $0xb0] sm:$0xff]
        %v2374 = vld [vmem:[%s2350 + $0xb8] sm:$0xff]
        %v2375 = vld [vmem:[%s2350 + $0xc0] sm:$0xff]
        %v2376 = vld [vmem:[%s2350 + $0xc8] sm:$0xff]
        %v2377 = vld [vmem:[%s2350 + $0xd0] sm:$0xff]
        %v2378 = vld [vmem:[%s2350 + $0xd8] sm:$0xff]
        %v2379 = vld [vmem:[%s2350 + $0xe0] sm:$0xff]
        %v2380 = vld [vmem:[%s2350 + $0xe8] sm:$0xff]
        %v2381 = vld [vmem:[%s2350 + $0xf0] sm:$0xff]
        %v2382 = vld [vmem:[%s2350 + $0xf8] sm:$0xff]
        %v2383 = vld [vmem:[%s2350 + $0x100] sm:$0xff]
        %v2384 = vld [vmem:[%s2350 + $0x108] sm:$0xff]
        %v2385 = vld [vmem:[%s2350 + $0x110] sm:$0xff]
        %v2386 = vld [vmem:[%s2350 + $0x118] sm:$0xff]
        %v2387 = vld [vmem:[%s2350 + $0x120] sm:$0xff]
        %v2388 = vld [vmem:[%s2350 + $0x128] sm:$0xff]
        %v2389 = vld [vmem:[%s2350 + $0x130] sm:$0xff]
        %v2390 = vld [vmem:[%s2350 + $0x138] sm:$0xff]
        %v2391 = vld [vmem:[%s2350 + $0x140] sm:$0xff]
        %v2392 = vld [vmem:[%s2350 + $0x148] sm:$0xff]
        %v2393 = vld [vmem:[%s2350 + $0x150] sm:$0xff]
        %v2394 = vld [vmem:[%s2350 + $0x158] sm:$0xff]
        %v2395 = vld [vmem:[%s2350 + $0x160] sm:$0xff]
        %v2396 = vld [vmem:[%s2350 + $0x168] sm:$0xff]
        %v2397 = vld [vmem:[%s2350 + $0x170] sm:$0xff]
        %v2398 = vld [vmem:[%s2350 + $0x178] sm:$0xff]
        %2399 = vmatprep.subr.mxu0 0.0
        %2400 = vmatpush1.msra.mxu0 %v2351
        %2401 = vmatprep.subr.mxu0 0.0
        %2402 = vmatpush1.msra.mxu0 %v2352
        %2403 = vmatprep.subr.mxu0 0.0
        %2404 = vmatpush1.msra.mxu0 %v2353
        %2405 = vmatprep.subr.mxu0 0.0
        %2406 = vmatpush1.msra.mxu0 %v2354
        %2407 = vmatprep.subr.mxu0 0.0
        %2408 = vmatpush1.msra.mxu0 %v2355
        %2409 = vmatprep.subr.mxu0 0.0
        %2410 = vmatpush1.msra.mxu0 %v2356
        %2411 = vmatprep.subr.mxu0 0.0
        %2412 = vmatpush1.msra.mxu0 %v2357
        %2413 = vmatprep.subr.mxu0 0.0
        %2414 = vmatpush1.msra.mxu0 %v2358
        %2415 = vmatprep.subr.mxu0 0.0
        %2416 = vmatpush1.msra.mxu0 %v2359
        %2417 = vmatprep.subr.mxu0 0.0
        %2418 = vmatpush1.msra.mxu0 %v2360
        %2419 = vmatprep.subr.mxu0 0.0
        %2420 = vmatpush1.msra.mxu0 %v2361
        %2421 = vmatprep.subr.mxu0 0.0
        %2422 = vmatpush1.msra.mxu0 %v2362
        %2423 = vmatprep.subr.mxu0 0.0
        %2424 = vmatpush1.msra.mxu0 %v2363
        %2425 = vmatprep.subr.mxu0 0.0
        %2426 = vmatpush1.msra.mxu0 %v2364
        %2427 = vmatprep.subr.mxu0 0.0
        %2428 = vmatpush1.msra.mxu0 %v2365
        %2429 = vmatprep.subr.mxu0 0.0
        %2430 = vmatpush1.msra.mxu0 %v2366
        %2431 = vmatprep.subr.mxu0 0.0
        %2432 = vmatpush1.msra.mxu0 %v2367
        %2433 = vmatprep.subr.mxu0 0.0
        %2434 = vmatpush1.msra.mxu0 %v2368
        %2435 = vmatprep.subr.mxu0 0.0
        %2436 = vmatpush1.msra.mxu0 %v2369
        %2437 = vmatprep.subr.mxu0 0.0
        %2438 = vmatpush1.msra.mxu0 %v2370
        %2439 = vmatprep.subr.mxu0 0.0
        %2440 = vmatpush1.msra.mxu0 %v2371
        %2441 = vmatprep.subr.mxu0 0.0
        %2442 = vmatpush1.msra.mxu0 %v2372
        %2443 = vmatprep.subr.mxu0 0.0
        %2444 = vmatpush1.msra.mxu0 %v2373
        %2445 = vmatprep.subr.mxu0 0.0
        %2446 = vmatpush1.msra.mxu0 %v2374
        %2447 = vmatprep.subr.mxu0 0.0
        %2448 = vmatpush1.msra.mxu0 %v2375
        %2449 = vmatprep.subr.mxu0 0.0
        %2450 = vmatpush1.msra.mxu0 %v2376
        %2451 = vmatprep.subr.mxu0 0.0
        %2452 = vmatpush1.msra.mxu0 %v2377
        %2453 = vmatprep.subr.mxu0 0.0
        %2454 = vmatpush1.msra.mxu0 %v2378
        %2455 = vmatprep.subr.mxu0 0.0
        %2456 = vmatpush1.msra.mxu0 %v2379
        %2457 = vmatprep.subr.mxu0 0.0
        %2458 = vmatpush1.msra.mxu0 %v2380
        %2459 = vmatprep.subr.mxu0 0.0
        %2460 = vmatpush1.msra.mxu0 %v2381
        %2461 = vmatprep.subr.mxu0 0.0
        %2462 = vmatpush1.msra.mxu0 %v2382
        %2463 = vmatprep.mubr.f32.mxu0 %v2128
        %2464 = vmatmul.mubr.f32.gmra.mrb[0].mxu0 %v2030
        %v2465 = vpop.f32.mrb[0].mxu0
        %v2466 = vadd.f32 0.0, %v2465
        %v2467 = vpop.f32.mrb[0].mxu0
        %2468 = vmatprep.mubr.f32.mxu0 %v2130
        %2469 = vmatmul.mubr.f32.gmra.mrb[0].mxu0 %v2031
        %v2470 = vpop.f32.mrb[0].mxu0
        %v2471 = vadd.f32 0.0, %v2470
        %v2472 = vpop.f32.mrb[0].mxu0
        %2473 = vmatprep.mubr.f32.mxu0 %v2133
        %2474 = vmatmul.mubr.f32.gmra.mrb[0].mxu0 %v2033
        %v2475 = vpop.f32.mrb[0].mxu0
        %v2476 = vadd.f32 0.0, %v2475
        %v2477 = vpop.f32.mrb[0].mxu0
        %2478 = vmatprep.mubr.f32.mxu0 %v2135
        %2479 = vmatmul.mubr.f32.gmra.mrb[0].mxu0 %v2034
        %v2480 = vpop.f32.mrb[0].mxu0
        %v2481 = vadd.f32 0.0, %v2480
        %v2482 = vpop.f32.mrb[0].mxu0
        %2483 = vmatprep.mubr.f32.mxu0 %v2138
        %2484 = vmatmul.mubr.f32.gmra.mrb[0].mxu0 %v2036
        %v2485 = vpop.f32.mrb[0].mxu0
        %v2486 = vadd.f32 0.0, %v2485
        %v2487 = vpop.f32.mrb[0].mxu0
        %2488 = vmatprep.mubr.f32.mxu0 %v2140
        %2489 = vmatmul.mubr.f32.gmra.mrb[0].mxu0 %v2037
        %v2490 = vpop.f32.mrb[0].mxu0
        %v2491 = vadd.f32 0.0, %v2490
        %v2492 = vpop.f32.mrb[0].mxu0
        %2493 = vmatprep.mubr.f32.mxu0 %v2143
        %2494 = vmatmul.mubr.f32.gmra.mrb[0].mxu0 %v2039
        %v2495 = vpop.f32.mrb[0].mxu0
        %v2496 = vadd.f32 0.0, %v2495
        %v2497 = vpop.f32.mrb[0].mxu0
        %2498 = vmatprep.mubr.f32.mxu0 %v2145
        %2499 = vmatmul.mubr.f32.gmra.mrb[0].mxu0 %v2040
        %v2500 = vpop.f32.mrb[0].mxu0
        %v2501 = vadd.f32 0.0, %v2500
        %v2502 = vpop.f32.mrb[0].mxu0
        %2503 = vmatprep.mubr.f32.mxu0 %v2148
        %2504 = vmatmul.mubr.f32.gmra.mrb[0].mxu0 %v2042
        %v2505 = vpop.f32.mrb[0].mxu0
        %v2506 = vadd.f32 0.0, %v2505
        %v2507 = vpop.f32.mrb[0].mxu0
        %2508 = vmatprep.mubr.f32.mxu0 %v2150
        %2509 = vmatmul.mubr.f32.gmra.mrb[0].mxu0 %v2043
        %v2510 = vpop.f32.mrb[0].mxu0
        %v2511 = vadd.f32 0.0, %v2510
        %v2512 = vpop.f32.mrb[0].mxu0
        %2513 = vmatprep.mubr.f32.mxu0 %v2153
        %2514 = vmatmul.mubr.f32.gmra.mrb[0].mxu0 %v2045
        %v2515 = vpop.f32.mrb[0].mxu0
        %v2516 = vadd.f32 0.0, %v2515
        %v2517 = vpop.f32.mrb[0].mxu0
        %2518 = vmatprep.mubr.f32.mxu0 %v2155
        %2519 = vmatmul.mubr.f32.gmra.mrb[0].mxu0 %v2046
        %v2520 = vpop.f32.mrb[0].mxu0
        %v2521 = vadd.f32 0.0, %v2520
        %v2522 = vpop.f32.mrb[0].mxu0
        %2523 = vmatprep.mubr.f32.mxu0 %v2158
        %2524 = vmatmul.mubr.f32.gmra.mrb[0].mxu0 %v2048
        %v2525 = vpop.f32.mrb[0].mxu0
        %v2526 = vadd.f32 0.0, %v2525
        %v2527 = vpop.f32.mrb[0].mxu0
        %2528 = vmatprep.mubr.f32.mxu0 %v2160
        %2529 = vmatmul.mubr.f32.gmra.mrb[0].mxu0 %v2049
        %v2530 = vpop.f32.mrb[0].mxu0
        %v2531 = vadd.f32 0.0, %v2530
        %v2532 = vpop.f32.mrb[0].mxu0
        %2533 = vmatprep.mubr.f32.mxu0 %v2163
        %2534 = vmatmul.mubr.f32.gmra.mrb[0].mxu0 %v2051
        %v2535 = vpop.f32.mrb[0].mxu0
        %v2536 = vadd.f32 0.0, %v2535
        %v2537 = vpop.f32.mrb[0].mxu0
        %2538 = vmatprep.mubr.f32.mxu0 %v2165
        %2539 = vmatmul.mubr.f32.gmra.mrb[0].mxu0 %v2052
        %v2540 = vpop.f32.mrb[0].mxu0
        %v2541 = vadd.f32 0.0, %v2540
        %v2542 = vpop.f32.mrb[0].mxu0
        %2543 = vmatprep.mubr.f32.mxu0 %v2168
        %2544 = vmatmul.mubr.f32.gmra.mrb[0].mxu0 %v2054
        %v2545 = vpop.f32.mrb[0].mxu0
        %v2546 = vadd.f32 0.0, %v2545
        %v2547 = vpop.f32.mrb[0].mxu0
        %2548 = vmatprep.mubr.f32.mxu0 %v2170
        %2549 = vmatmul.mubr.f32.gmra.mrb[0].mxu0 %v2055
        %v2550 = vpop.f32.mrb[0].mxu0
        %v2551 = vadd.f32 0.0, %v2550
        %v2552 = vpop.f32.mrb[0].mxu0
        %2553 = vmatprep.mubr.f32.mxu0 %v2173
        %2554 = vmatmul.mubr.f32.gmra.mrb[0].mxu0 %v2057
        %v2555 = vpop.f32.mrb[0].mxu0
        %v2556 = vadd.f32 0.0, %v2555
        %v2557 = vpop.f32.mrb[0].mxu0
        %2558 = vmatprep.mubr.f32.mxu0 %v2175
        %2559 = vmatmul.mubr.f32.gmra.mrb[0].mxu0 %v2058
        %v2560 = vpop.f32.mrb[0].mxu0
        %v2561 = vadd.f32 0.0, %v2560
        %v2562 = vpop.f32.mrb[0].mxu0
        %2563 = vmatprep.mubr.f32.mxu0 %v2178
        %2564 = vmatmul.mubr.f32.gmra.mrb[0].mxu0 %v2060
        %v2565 = vpop.f32.mrb[0].mxu0
        %v2566 = vadd.f32 0.0, %v2565
        %v2567 = vpop.f32.mrb[0].mxu0
        %2568 = vmatprep.mubr.f32.mxu0 %v2180
        %2569 = vmatmul.mubr.f32.gmra.mrb[0].mxu0 %v2061
        %v2570 = vpop.f32.mrb[0].mxu0
        %v2571 = vadd.f32 0.0, %v2570
        %v2572 = vpop.f32.mrb[0].mxu0
        %2573 = vmatprep.mubr.f32.mxu0 %v2183
        %2574 = vmatmul.mubr.f32.gmra.mrb[0].mxu0 %v2063
        %v2575 = vpop.f32.mrb[0].mxu0
        %v2576 = vadd.f32 0.0, %v2575
        %v2577 = vpop.f32.mrb[0].mxu0
        %2578 = vmatprep.mubr.f32.mxu0 %v2185
        %2579 = vmatmul.mubr.f32.gmra.mrb[0].mxu0 %v2064
        %v2580 = vpop.f32.mrb[0].mxu0
        %v2581 = vadd.f32 0.0, %v2580
        %v2582 = vpop.f32.mrb[0].mxu0
        %2583 = vmatprep.mubr.f32.mxu0 %v2188
        %2584 = vmatmul.mubr.f32.gmra.mrb[0].mxu0 %v2066
        %v2585 = vpop.f32.mrb[0].mxu0
        %v2586 = vadd.f32 0.0, %v2585
        %v2587 = vpop.f32.mrb[0].mxu0
        %2588 = vmatprep.mubr.f32.mxu0 %v2190
        %2589 = vmatmul.mubr.f32.gmra.mrb[0].mxu0 %v2067
        %v2590 = vpop.f32.mrb[0].mxu0
        %v2591 = vadd.f32 0.0, %v2590
        %v2592 = vpop.f32.mrb[0].mxu0
        %2593 = vmatprep.mubr.f32.mxu0 %v2193
        %2594 = vmatmul.mubr.f32.gmra.mrb[0].mxu0 %v2069
        %v2595 = vpop.f32.mrb[0].mxu0
        %v2596 = vadd.f32 0.0, %v2595
        %v2597 = vpop.f32.mrb[0].mxu0
        %2598 = vmatprep.mubr.f32.mxu0 %v2195
        %2599 = vmatmul.mubr.f32.gmra.mrb[0].mxu0 %v2070
        %v2600 = vpop.f32.mrb[0].mxu0
        %v2601 = vadd.f32 0.0, %v2600
        %v2602 = vpop.f32.mrb[0].mxu0
        %2603 = vmatprep.mubr.f32.mxu0 %v2198
        %2604 = vmatmul.mubr.f32.gmra.mrb[0].mxu0 %v2072
        %v2605 = vpop.f32.mrb[0].mxu0
        %v2606 = vadd.f32 0.0, %v2605
        %v2607 = vpop.f32.mrb[0].mxu0
        %2608 = vmatprep.mubr.f32.mxu0 %v2200
        %2609 = vmatmul.mubr.f32.gmra.mrb[0].mxu0 %v2073
        %v2610 = vpop.f32.mrb[0].mxu0
        %v2611 = vadd.f32 0.0, %v2610
        %v2612 = vpop.f32.mrb[0].mxu0
        %2613 = vmatprep.mubr.f32.mxu0 %v2203
        %2614 = vmatmul.mubr.f32.gmra.mrb[0].mxu0 %v2075
        %v2615 = vpop.f32.mrb[0].mxu0
        %v2616 = vadd.f32 0.0, %v2615
        %v2617 = vpop.f32.mrb[0].mxu0
        %2618 = vmatprep.mubr.f32.mxu0 %v2205
        %2619 = vmatmul.mubr.f32.gmra.mrb[0].mxu0 %v2076
        %v2620 = vpop.f32.mrb[0].mxu0
        %v2621 = vadd.f32 0.0, %v2620
        %v2622 = vpop.f32.mrb[0].mxu0
        %2623 = vdwg.mxu0
        %2624 = vmatprep.subr.mxu0 0.0
        %2625 = vmatpush1.msra.mxu0 %v2383
        %2626 = vmatprep.subr.mxu0 0.0
        %2627 = vmatpush1.msra.mxu0 %v2384
        %2628 = vmatprep.subr.mxu0 0.0
        %2629 = vmatpush1.msra.mxu0 %v2385
        %2630 = vmatprep.subr.mxu0 0.0
        %2631 = vmatpush1.msra.mxu0 %v2386
        %2632 = vmatprep.subr.mxu0 0.0
        %2633 = vmatpush1.msra.mxu0 %v2387
        %2634 = vmatprep.subr.mxu0 0.0
        %2635 = vmatpush1.msra.mxu0 %v2388
        %2636 = vmatprep.subr.mxu0 0.0
        %2637 = vmatpush1.msra.mxu0 %v2389
        %2638 = vmatprep.subr.mxu0 0.0
        %2639 = vmatpush1.msra.mxu0 %v2390
        %2640 = vmatprep.subr.mxu0 0.0
        %2641 = vmatpush1.msra.mxu0 %v2391
        %2642 = vmatprep.subr.mxu0 0.0
        %2643 = vmatpush1.msra.mxu0 %v2392
        %2644 = vmatprep.subr.mxu0 0.0
        %2645 = vmatpush1.msra.mxu0 %v2393
        %2646 = vmatprep.subr.mxu0 0.0
        %2647 = vmatpush1.msra.mxu0 %v2394
        %2648 = vmatprep.subr.mxu0 0.0
        %2649 = vmatpush1.msra.mxu0 %v2395
        %2650 = vmatprep.subr.mxu0 0.0
        %2651 = vmatpush1.msra.mxu0 %v2396
        %2652 = vmatprep.subr.mxu0 0.0
        %2653 = vmatpush1.msra.mxu0 %v2397
        %2654 = vmatprep.subr.mxu0 0.0
        %2655 = vmatpush1.msra.mxu0 %v2398
        %2656 = vmatprep.subr.mxu0 0.0
        %2657 = vmatpush1.msra.mxu0 0.0
        %2658 = vmatprep.subr.mxu0 0.0
        %2659 = vmatpush1.msra.mxu0 0.0
        %2660 = vmatprep.subr.mxu0 0.0
        %2661 = vmatpush1.msra.mxu0 0.0
        %2662 = vmatprep.subr.mxu0 0.0
        %2663 = vmatpush1.msra.mxu0 0.0
        %2664 = vmatprep.subr.mxu0 0.0
        %2665 = vmatpush1.msra.mxu0 0.0
        %2666 = vmatprep.subr.mxu0 0.0
        %2667 = vmatpush1.msra.mxu0 0.0
        %2668 = vmatprep.subr.mxu0 0.0
        %2669 = vmatpush1.msra.mxu0 0.0
        %2670 = vmatprep.subr.mxu0 0.0
        %2671 = vmatpush1.msra.mxu0 0.0
        %2672 = vmatprep.subr.mxu0 0.0
        %2673 = vmatpush1.msra.mxu0 0.0
        %2674 = vmatprep.subr.mxu0 0.0
        %2675 = vmatpush1.msra.mxu0 0.0
        %2676 = vmatprep.subr.mxu0 0.0
        %2677 = vmatpush1.msra.mxu0 0.0
        %2678 = vmatprep.subr.mxu0 0.0
        %2679 = vmatpush1.msra.mxu0 0.0
        %2680 = vmatprep.subr.mxu0 0.0
        %2681 = vmatpush1.msra.mxu0 0.0
        %2682 = vmatprep.subr.mxu0 0.0
        %2683 = vmatpush1.msra.mxu0 0.0
        %2684 = vmatprep.subr.mxu0 0.0
        %2685 = vmatpush1.msra.mxu0 0.0
        %2686 = vmatprep.subr.mxu0 0.0
        %2687 = vmatpush1.msra.mxu0 0.0
        %2688 = vmatprep.mubr.f32.mxu0 0.0
        %2689 = vmatmul.mubr.f32.gmra.mrb[0].mxu0 %v2240
        %v2690 = vpop.f32.mrb[0].mxu0
        %v2691 = vadd.f32 %v2466, %v2690
        %v2692 = vpop.f32.mrb[0].mxu0
        %2693 = vmatprep.mubr.f32.mxu0 0.0
        %2694 = vmatmul.mubr.f32.gmra.mrb[0].mxu0 %v2242
        %v2695 = vpop.f32.mrb[0].mxu0
        %v2696 = vadd.f32 %v2471, %v2695
        %v2697 = vpop.f32.mrb[0].mxu0
        %2698 = vmatprep.mubr.f32.mxu0 0.0
        %2699 = vmatmul.mubr.f32.gmra.mrb[0].mxu0 %v2245
        %v2700 = vpop.f32.mrb[0].mxu0
        %v2701 = vadd.f32 %v2476, %v2700
        %v2702 = vpop.f32.mrb[0].mxu0
        %2703 = vmatprep.mubr.f32.mxu0 0.0
        %2704 = vmatmul.mubr.f32.gmra.mrb[0].mxu0 %v2247
        %v2705 = vpop.f32.mrb[0].mxu0
        %v2706 = vadd.f32 %v2481, %v2705
        %v2707 = vpop.f32.mrb[0].mxu0
        %2708 = vmatprep.mubr.f32.mxu0 0.0
        %2709 = vmatmul.mubr.f32.gmra.mrb[0].mxu0 %v2250
        %v2710 = vpop.f32.mrb[0].mxu0
        %v2711 = vadd.f32 %v2486, %v2710
        %v2712 = vpop.f32.mrb[0].mxu0
        %2713 = vmatprep.mubr.f32.mxu0 0.0
        %2714 = vmatmul.mubr.f32.gmra.mrb[0].mxu0 %v2252
        %v2715 = vpop.f32.mrb[0].mxu0
        %v2716 = vadd.f32 %v2491, %v2715
        %v2717 = vpop.f32.mrb[0].mxu0
        %2718 = vmatprep.mubr.f32.mxu0 0.0
        %2719 = vmatmul.mubr.f32.gmra.mrb[0].mxu0 %v2255
        %v2720 = vpop.f32.mrb[0].mxu0
        %v2721 = vadd.f32 %v2496, %v2720
        %v2722 = vpop.f32.mrb[0].mxu0
        %2723 = vmatprep.mubr.f32.mxu0 0.0
        %2724 = vmatmul.mubr.f32.gmra.mrb[0].mxu0 %v2257
        %v2725 = vpop.f32.mrb[0].mxu0
        %v2726 = vadd.f32 %v2501, %v2725
        %v2727 = vpop.f32.mrb[0].mxu0
        %2728 = vmatprep.mubr.f32.mxu0 0.0
        %2729 = vmatmul.mubr.f32.gmra.mrb[0].mxu0 %v2260
        %v2730 = vpop.f32.mrb[0].mxu0
        %v2731 = vadd.f32 %v2506, %v2730
        %v2732 = vpop.f32.mrb[0].mxu0
        %2733 = vmatprep.mubr.f32.mxu0 0.0
        %2734 = vmatmul.mubr.f32.gmra.mrb[0].mxu0 %v2262
        %v2735 = vpop.f32.mrb[0].mxu0
        %v2736 = vadd.f32 %v2511, %v2735
        %v2737 = vpop.f32.mrb[0].mxu0
        %2738 = vmatprep.mubr.f32.mxu0 0.0
        %2739 = vmatmul.mubr.f32.gmra.mrb[0].mxu0 %v2265
        %v2740 = vpop.f32.mrb[0].mxu0
        %v2741 = vadd.f32 %v2516, %v2740
        %v2742 = vpop.f32.mrb[0].mxu0
        %2743 = vmatprep.mubr.f32.mxu0 0.0
        %2744 = vmatmul.mubr.f32.gmra.mrb[0].mxu0 %v2267
        %v2745 = vpop.f32.mrb[0].mxu0
        %v2746 = vadd.f32 %v2521, %v2745
        %v2747 = vpop.f32.mrb[0].mxu0
        %2748 = vmatprep.mubr.f32.mxu0 0.0
        %2749 = vmatmul.mubr.f32.gmra.mrb[0].mxu0 %v2270
        %v2750 = vpop.f32.mrb[0].mxu0
        %v2751 = vadd.f32 %v2526, %v2750
        %v2752 = vpop.f32.mrb[0].mxu0
        %2753 = vmatprep.mubr.f32.mxu0 0.0
        %2754 = vmatmul.mubr.f32.gmra.mrb[0].mxu0 %v2272
        %v2755 = vpop.f32.mrb[0].mxu0
        %v2756 = vadd.f32 %v2531, %v2755
        %v2757 = vpop.f32.mrb[0].mxu0
        %2758 = vmatprep.mubr.f32.mxu0 0.0
        %2759 = vmatmul.mubr.f32.gmra.mrb[0].mxu0 %v2275
        %v2760 = vpop.f32.mrb[0].mxu0
        %v2761 = vadd.f32 %v2536, %v2760
        %v2762 = vpop.f32.mrb[0].mxu0
        %2763 = vmatprep.mubr.f32.mxu0 0.0
        %2764 = vmatmul.mubr.f32.gmra.mrb[0].mxu0 %v2277
        %v2765 = vpop.f32.mrb[0].mxu0
        %v2766 = vadd.f32 %v2541, %v2765
        %v2767 = vpop.f32.mrb[0].mxu0
        %2768 = vmatprep.mubr.f32.mxu0 0.0
        %2769 = vmatmul.mubr.f32.gmra.mrb[0].mxu0 %v2280
        %v2770 = vpop.f32.mrb[0].mxu0
        %v2771 = vadd.f32 %v2546, %v2770
        %v2772 = vpop.f32.mrb[0].mxu0
        %2773 = vmatprep.mubr.f32.mxu0 0.0
        %2774 = vmatmul.mubr.f32.gmra.mrb[0].mxu0 %v2282
        %v2775 = vpop.f32.mrb[0].mxu0
        %v2776 = vadd.f32 %v2551, %v2775
        %v2777 = vpop.f32.mrb[0].mxu0
        %2778 = vmatprep.mubr.f32.mxu0 0.0
        %2779 = vmatmul.mubr.f32.gmra.mrb[0].mxu0 %v2285
        %v2780 = vpop.f32.mrb[0].mxu0
        %v2781 = vadd.f32 %v2556, %v2780
        %v2782 = vpop.f32.mrb[0].mxu0
        %2783 = vmatprep.mubr.f32.mxu0 0.0
        %2784 = vmatmul.mubr.f32.gmra.mrb[0].mxu0 %v2287
        %v2785 = vpop.f32.mrb[0].mxu0
        %v2786 = vadd.f32 %v2561, %v2785
        %v2787 = vpop.f32.mrb[0].mxu0
        %2788 = vmatprep.mubr.f32.mxu0 0.0
        %2789 = vmatmul.mubr.f32.gmra.mrb[0].mxu0 %v2290
        %v2790 = vpop.f32.mrb[0].mxu0
        %v2791 = vadd.f32 %v2566, %v2790
        %v2792 = vpop.f32.mrb[0].mxu0
        %2793 = vmatprep.mubr.f32.mxu0 0.0
        %2794 = vmatmul.mubr.f32.gmra.mrb[0].mxu0 %v2292
        %v2795 = vpop.f32.mrb[0].mxu0
        %v2796 = vadd.f32 %v2571, %v2795
        %v2797 = vpop.f32.mrb[0].mxu0
        %2798 = vmatprep.mubr.f32.mxu0 0.0
        %2799 = vmatmul.mubr.f32.gmra.mrb[0].mxu0 %v2295
        %v2800 = vpop.f32.mrb[0].mxu0
        %v2801 = vadd.f32 %v2576, %v2800
        %v2802 = vpop.f32.mrb[0].mxu0
        %2803 = vmatprep.mubr.f32.mxu0 0.0
        %2804 = vmatmul.mubr.f32.gmra.mrb[0].mxu0 %v2297
        %v2805 = vpop.f32.mrb[0].mxu0
        %v2806 = vadd.f32 %v2581, %v2805
        %v2807 = vpop.f32.mrb[0].mxu0
        %2808 = vmatprep.mubr.f32.mxu0 0.0
        %2809 = vmatmul.mubr.f32.gmra.mrb[0].mxu0 %v2300
        %v2810 = vpop.f32.mrb[0].mxu0
        %v2811 = vadd.f32 %v2586, %v2810
        %v2812 = vpop.f32.mrb[0].mxu0
        %2813 = vmatprep.mubr.f32.mxu0 0.0
        %2814 = vmatmul.mubr.f32.gmra.mrb[0].mxu0 %v2302
        %v2815 = vpop.f32.mrb[0].mxu0
        %v2816 = vadd.f32 %v2591, %v2815
        %v2817 = vpop.f32.mrb[0].mxu0
        %2818 = vmatprep.mubr.f32.mxu0 0.0
        %2819 = vmatmul.mubr.f32.gmra.mrb[0].mxu0 %v2305
        %v2820 = vpop.f32.mrb[0].mxu0
        %v2821 = vadd.f32 %v2596, %v2820
        %v2822 = vpop.f32.mrb[0].mxu0
        %2823 = vmatprep.mubr.f32.mxu0 0.0
        %2824 = vmatmul.mubr.f32.gmra.mrb[0].mxu0 %v2307
        %v2825 = vpop.f32.mrb[0].mxu0
        %v2826 = vadd.f32 %v2601, %v2825
        %v2827 = vpop.f32.mrb[0].mxu0
        %2828 = vmatprep.mubr.f32.mxu0 0.0
        %2829 = vmatmul.mubr.f32.gmra.mrb[0].mxu0 %v2310
        %v2830 = vpop.f32.mrb[0].mxu0
        %v2831 = vadd.f32 %v2606, %v2830
        %v2832 = vpop.f32.mrb[0].mxu0
        %2833 = vmatprep.mubr.f32.mxu0 0.0
        %2834 = vmatmul.mubr.f32.gmra.mrb[0].mxu0 %v2312
        %v2835 = vpop.f32.mrb[0].mxu0
        %v2836 = vadd.f32 %v2611, %v2835
        %v2837 = vpop.f32.mrb[0].mxu0
        %2838 = vmatprep.mubr.f32.mxu0 0.0
        %2839 = vmatmul.mubr.f32.gmra.mrb[0].mxu0 %v2315
        %v2840 = vpop.f32.mrb[0].mxu0
        %v2841 = vadd.f32 %v2616, %v2840
        %v2842 = vpop.f32.mrb[0].mxu0
        %2843 = vmatprep.mubr.f32.mxu0 0.0
        %2844 = vmatmul.mubr.f32.gmra.mrb[0].mxu0 %v2317
        %v2845 = vpop.f32.mrb[0].mxu0
        %v2846 = vadd.f32 %v2621, %v2845
        %v2847 = vpop.f32.mrb[0].mxu0
        %2848 = vdwg.mxu0
        %v2849 = vadd.f32 %v1871, %v2691
        %v2850 = vadd.f32 %v1876, %v2696
        %v2851 = vadd.f32 %v1881, %v2701
        %v2852 = vadd.f32 %v1886, %v2706
        %v2853 = vadd.f32 %v1891, %v2711
        %v2854 = vadd.f32 %v1896, %v2716
        %v2855 = vadd.f32 %v1901, %v2721
        %v2856 = vadd.f32 %v1906, %v2726
        %v2857 = vadd.f32 %v1911, %v2731
        %v2858 = vadd.f32 %v1916, %v2736
        %v2859 = vadd.f32 %v1921, %v2741
        %v2860 = vadd.f32 %v1926, %v2746
        %v2861 = vadd.f32 %v1931, %v2751
        %v2862 = vadd.f32 %v1936, %v2756
        %v2863 = vadd.f32 %v1941, %v2761
        %v2864 = vadd.f32 %v1946, %v2766
        %v2865 = vadd.f32 %v1951, %v2771
        %v2866 = vadd.f32 %v1956, %v2776
        %v2867 = vadd.f32 %v1961, %v2781
        %v2868 = vadd.f32 %v1966, %v2786
        %v2869 = vadd.f32 %v1971, %v2791
        %v2870 = vadd.f32 %v1976, %v2796
        %v2871 = vadd.f32 %v1981, %v2801
        %v2872 = vadd.f32 %v1986, %v2806
        %v2873 = vadd.f32 %v1991, %v2811
        %v2874 = vadd.f32 %v1996, %v2816
        %v2875 = vadd.f32 %v2001, %v2821
        %v2876 = vadd.f32 %v2006, %v2826
        %v2877 = vadd.f32 %v2011, %v2831
        %v2878 = vadd.f32 %v2016, %v2836
        %v2879 = vadd.f32 %v2021, %v2841
        %v2880 = vadd.f32 %v2026, %v2846
        %2881 = vst [vmem:[%s266] sm:$0xff] %v2849
        %2882 = vst [vmem:[%s266 + $0x8] sm:$0xff] %v2850
        %2883 = vst [vmem:[%s266 + $0x10] sm:$0xff] %v2851
        %2884 = vst [vmem:[%s266 + $0x18] sm:$0xff] %v2852
        %2885 = vst [vmem:[%s266 + $0x20] sm:$0xff] %v2853
        %2886 = vst [vmem:[%s266 + $0x28] sm:$0xff] %v2854
        %2887 = vst [vmem:[%s266 + $0x30] sm:$0xff] %v2855
        %2888 = vst [vmem:[%s266 + $0x38] sm:$0xff] %v2856
        %2889 = vst [vmem:[%s266 + $0x40] sm:$0xff] %v2857
        %2890 = vst [vmem:[%s266 + $0x48] sm:$0xff] %v2858
        %2891 = vst [vmem:[%s266 + $0x50] sm:$0xff] %v2859
        %2892 = vst [vmem:[%s266 + $0x58] sm:$0xff] %v2860
        %2893 = vst [vmem:[%s266 + $0x60] sm:$0xff] %v2861
        %2894 = vst [vmem:[%s266 + $0x68] sm:$0xff] %v2862
        %2895 = vst [vmem:[%s266 + $0x70] sm:$0xff] %v2863
        %2896 = vst [vmem:[%s266 + $0x78] sm:$0xff] %v2864
        %2897 = vst [vmem:[%s266 + $0x80] sm:$0xff] %v2865
        %2898 = vst [vmem:[%s266 + $0x88] sm:$0xff] %v2866
        %2899 = vst [vmem:[%s266 + $0x90] sm:$0xff] %v2867
        %2900 = vst [vmem:[%s266 + $0x98] sm:$0xff] %v2868
        %2901 = vst [vmem:[%s266 + $0xa0] sm:$0xff] %v2869
        %2902 = vst [vmem:[%s266 + $0xa8] sm:$0xff] %v2870
        %2903 = vst [vmem:[%s266 + $0xb0] sm:$0xff] %v2871
        %2904 = vst [vmem:[%s266 + $0xb8] sm:$0xff] %v2872
        %2905 = vst [vmem:[%s266 + $0xc0] sm:$0xff] %v2873
        %2906 = vst [vmem:[%s266 + $0xc8] sm:$0xff] %v2874
        %2907 = vst [vmem:[%s266 + $0xd0] sm:$0xff] %v2875
        %2908 = vst [vmem:[%s266 + $0xd8] sm:$0xff] %v2876
        %2909 = vst [vmem:[%s266 + $0xe0] sm:$0xff] %v2877
        %2910 = vst [vmem:[%s266 + $0xe8] sm:$0xff] %v2878
        %2911 = vst [vmem:[%s266 + $0xf0] sm:$0xff] %v2879
        %2912 = vst [vmem:[%s266 + $0xf8] sm:$0xff] %v2880
        %v2913 = vadd.f32 %v2849, %v2850
        %v2914 = vadd.f32 %v2913, %v2851
        %v2915 = vadd.f32 %v2914, %v2852
        %v2916 = vadd.f32 %v2915, %v2853
        %v2917 = vadd.f32 %v2916, %v2854
        %v2918 = vadd.f32 %v2917, %v2855
        %v2919 = vadd.f32 %v2918, %v2856
        %v2920 = vadd.f32 %v2919, %v2857
        %v2921 = vadd.f32 %v2920, %v2858
        %v2922 = vadd.f32 %v2921, %v2859
        %v2923 = vadd.f32 %v2922, %v2860
        %v2924 = vadd.f32 %v2923, %v2861
        %v2925 = vadd.f32 %v2924, %v2862
        %v2926 = vadd.f32 %v2925, %v2863
        %v2927 = vadd.f32 %v2926, %v2864
        %v2928 = vadd.f32 %v2927, %v2865
        %v2929 = vadd.f32 %v2928, %v2866
        %v2930 = vadd.f32 %v2929, %v2867
        %v2931 = vadd.f32 %v2930, %v2868
        %v2932 = vadd.f32 %v2931, %v2869
        %v2933 = vadd.f32 %v2932, %v2870
        %v2934 = vadd.f32 %v2933, %v2871
        %v2935 = vadd.f32 %v2934, %v2872
        %v2936 = vadd.f32 %v2935, %v2873
        %v2937 = vadd.f32 %v2936, %v2874
        %v2938 = vadd.f32 %v2937, %v2875
        %v2939 = vadd.f32 %v2938, %v2876
        %v2940 = vadd.f32 %v2939, %v2877
        %v2941 = vadd.f32 %v2940, %v2878
        %v2942 = vadd.f32 %v2941, %v2879
        %v2943 = vadd.f32 %v2942, %v2880
        %v2944 = vrot.slane %v2943, 4
        %v2945 = vadd.f32 %v2943, %v2944
        %v2946 = vrot.slane %v2945, 2
        %v2947 = vadd.f32 %v2945, %v2946
        %v2948 = vrot.slane %v2947, 1
        %v2949 = vadd.f32 %v2947, %v2948
        %v2950 = vmul.f32 %v2849, %v2849
        %v2951 = vmul.f32 %v2850, %v2850
        %v2952 = vmul.f32 %v2851, %v2851
        %v2953 = vmul.f32 %v2852, %v2852
        %v2954 = vmul.f32 %v2853, %v2853
        %v2955 = vmul.f32 %v2854, %v2854
        %v2956 = vmul.f32 %v2855, %v2855
        %v2957 = vmul.f32 %v2856, %v2856
        %v2958 = vmul.f32 %v2857, %v2857
        %v2959 = vmul.f32 %v2858, %v2858
        %v2960 = vmul.f32 %v2859, %v2859
        %v2961 = vmul.f32 %v2860, %v2860
        %v2962 = vmul.f32 %v2861, %v2861
        %v2963 = vmul.f32 %v2862, %v2862
        %v2964 = vmul.f32 %v2863, %v2863
        %v2965 = vmul.f32 %v2864, %v2864
        %v2966 = vmul.f32 %v2865, %v2865
        %v2967 = vmul.f32 %v2866, %v2866
        %v2968 = vmul.f32 %v2867, %v2867
        %v2969 = vmul.f32 %v2868, %v2868
        %v2970 = vmul.f32 %v2869, %v2869
        %v2971 = vmul.f32 %v2870, %v2870
        %v2972 = vmul.f32 %v2871, %v2871
        %v2973 = vmul.f32 %v2872, %v2872
        %v2974 = vmul.f32 %v2873, %v2873
        %v2975 = vmul.f32 %v2874, %v2874
        %v2976 = vmul.f32 %v2875, %v2875
        %v2977 = vmul.f32 %v2876, %v2876
        %v2978 = vmul.f32 %v2877, %v2877
        %v2979 = vmul.f32 %v2878, %v2878
        %v2980 = vmul.f32 %v2879, %v2879
        %v2981 = vmul.f32 %v2880, %v2880
        %v2982 = vadd.f32 %v2950, %v2951
        %v2983 = vadd.f32 %v2982, %v2952
        %v2984 = vadd.f32 %v2983, %v2953
        %v2985 = vadd.f32 %v2984, %v2954
        %v2986 = vadd.f32 %v2985, %v2955
        %v2987 = vadd.f32 %v2986, %v2956
        %v2988 = vadd.f32 %v2987, %v2957
        %v2989 = vadd.f32 %v2988, %v2958
        %v2990 = vadd.f32 %v2989, %v2959
        %v2991 = vadd.f32 %v2990, %v2960
        %v2992 = vadd.f32 %v2991, %v2961
        %v2993 = vadd.f32 %v2992, %v2962
        %v2994 = vadd.f32 %v2993, %v2963
        %v2995 = vadd.f32 %v2994, %v2964
        %v2996 = vadd.f32 %v2995, %v2965
        %v2997 = vadd.f32 %v2996, %v2966
        %v2998 = vadd.f32 %v2997, %v2967
        %v2999 = vadd.f32 %v2998, %v2968
        %v3000 = vadd.f32 %v2999, %v2969
        %v3001 = vadd.f32 %v3000, %v2970
        %v3002 = vadd.f32 %v3001, %v2971
        %v3003 = vadd.f32 %v3002, %v2972
        %v3004 = vadd.f32 %v3003, %v2973
        %v3005 = vadd.f32 %v3004, %v2974
        %v3006 = vadd.f32 %v3005, %v2975
        %v3007 = vadd.f32 %v3006, %v2976
        %v3008 = vadd.f32 %v3007, %v2977
        %v3009 = vadd.f32 %v3008, %v2978
        %v3010 = vadd.f32 %v3009, %v2979
        %v3011 = vadd.f32 %v3010, %v2980
        %v3012 = vadd.f32 %v3011, %v2981
        %v3013 = vrot.slane %v3012, 4
        %v3014 = vadd.f32 %v3012, %v3013
        %v3015 = vrot.slane %v3014, 2
        %v3016 = vadd.f32 %v3014, %v3015
        %v3017 = vrot.slane %v3016, 1
        %v3018 = vadd.f32 %v3016, %v3017
        %vm3019 = vcmask 1040384
        %v3020 = vsel %vm3019, %v2949, %v3018
        %3021 = vst [vmem:[%s270] sm:$0x3] %v3020
        %p3022 = scmp.lt.s32.totalorder %s21, 1
        %s3023 = scalar_select %p3022, %s21, 1
        %s3024 = smul.addr %s3023, 32
        %s3025 = smul.addr %s3024, 8
        %s3026 = scalar_lea.vmem %s4, %s3025
        %p3027 = scmp.lt.s32.totalorder %s21, 1
        %s3028 = scalar_select %p3027, %s21, 1
        %s3029 = smul.addr %s3028, 2
        %s3030 = scalar_lea.vmem %s5, %s3029
        // Predicated region
        $region45: #{basic_block_forward.3} parent=35 // pred_check
          %p3031 = pneg %p128
        $region46: #{basic_block_forward.3} parent=35 // pred_check_branch
          %3033 = sbr.rel (%p3031) target = $region48
        $region47: #{basic_block_forward.3} parent=35 // pred_region
          _
        $region48: #{basic_block_forward.3} parent=35 // pred_fallthru
          _
        // Predicated region
        $region49: #{basic_block_forward.3} parent=35 // pred_check
          %p3034 = pneg %p154
        $region50: #{basic_block_forward.3} parent=35 // pred_check_branch
          %3036 = sbr.rel (%p3034) target = $region52
        $region51: #{basic_block_forward.3} parent=35 // pred_region
          _
        $region52: #{basic_block_forward.3} parent=35 // pred_fallthru
          _
      $region36: #{basic_block_forward.3} parent=5 // pred_fallthru
        _
      %p3037 = scmp.le.s32.totalorder 2, %s16
      // Predicated region
      $region53: #{basic_block_forward.3} parent=5 // pred_check
        %p3038 = pneg %p3037
      $region54: #{basic_block_forward.3} parent=5 // pred_check_branch
        %3040 = sbr.rel (%p3038) target = $region56
      $region55: #{basic_block_forward.3} parent=5 // pred_region
        %s3041 = ssub.s32 %s16, 2
        // Predicated region
        $region57: #{basic_block_forward.3} parent=55 // pred_check
          %p3042 = pneg %p134
        $region58: #{basic_block_forward.3} parent=55 // pred_check_branch
          %3044 = sbr.rel (%p3042) target = $region60
        $region59: #{basic_block_forward.3} parent=55 // pred_region
          %p3045 = scmp.lt.s32.totalorder %s22, 1
          %s3046 = scalar_select %p3045, %s22, 1
          %s3047 = smul.addr %s3046, 32
          %s3048 = smul.addr %s3047, 8
          %s3049 = scalar_lea.vmem %s4, %s3048
        $region60: #{basic_block_forward.3} parent=55 // pred_fallthru
          _
        // Predicated region
        $region61: #{basic_block_forward.3} parent=55 // pred_check
          %p3050 = pneg %p160
        $region62: #{basic_block_forward.3} parent=55 // pred_check_branch
          %3052 = sbr.rel (%p3050) target = $region64
        $region63: #{basic_block_forward.3} parent=55 // pred_region
          %p3053 = scmp.lt.s32.totalorder %s22, 1
          %s3054 = scalar_select %p3053, %s22, 1
          %s3055 = smul.addr %s3054, 2
          %s3056 = scalar_lea.vmem %s5, %s3055
        $region64: #{basic_block_forward.3} parent=55 // pred_fallthru
          _
      $region56: #{basic_block_forward.3} parent=5 // pred_fallthru
        _
    $region6: #{basic_block_forward.3} parent=1 // loop_footer
      %s20 = sadd.s32 1, %s16
    $region7: #{basic_block_forward.3} parent=1 // loop_footer_branch
      %15 = sbr.rel target = $region3
    $region8: #{basic_block_forward.3} parent=1 // loop_exit
      _
    %3057 = vsyncpa [#allocation4], 1
    %s3058 = scalar_lea.sflag [#allocation4], 1
    %3059 = vsyncpa %s3058, 1
    %3060 = vsyncpa [#allocation6], 1

// kernel: basic_block_forward.4
$region0: #{basic_block_forward.4}
  #allocation0 [shape = 'u32[]', space=smem, size = 0x4, offset = 0x4, fixed_abs, tag = 'smem constant byte address 0x4 - core index']
  #allocation1 [shape = 'u32[144,128]{1,0:T(1,128)}', space=vmem, size = 0x12000, scoped, tag = 'internal scratch']
  #allocation2 [shape = 'f32[18,18,128]{2,1,0:T(8,128)}', space=vmem, size = 0x36000, scoped, tag = 'scratch operand']
  %s0 = inlined_call_operand.vmem [shape: f32[2,16,16,128], index: 0, kind: input, shape index: {}]
  %s1 = inlined_call_operand.vmem [shape: f32[3,384,128], index: 1, kind: input, shape index: {}]
  %s2 = inlined_call_operand.vmem [shape: f32[1,128], index: 2, kind: input, shape index: {}]
  %s3 = inlined_call_operand.vmem [shape: f32[1,128], index: 3, kind: input, shape index: {}]
  %s4 = inlined_call_operand.vmem [shape: f32[2,16,16,128], index: 4, kind: output, shape index: {0}]
  %s5 = inlined_call_operand.vmem [shape: f32[2,2,128], index: 5, kind: output, shape index: {1}]
  %6 = xla_tuple %s4, %s5
  %s7 = sld [smem:[#allocation0]]
  $region57: #{basic_block_forward.4} parent=0
    _
  %s9 = ssub.s32 1, %s7
  %s10 = scalar_select 0, %s9, %s7
  loop: start=0, step=1, limit=4
  $region2: #{basic_block_forward.4} parent=0 // loop_pre_header
    _
  $region3: #{basic_block_forward.4} parent=0 // loop_header
    %s12 = sphi 0, %s16
    %p13 = scmp.ge.s32.totalorder %s12, 4
    %s22 = sphi 0, %s24
    %s25 = sphi 0, %s22
    %s26 = sphi 0, %s25
    %s42 = sphi 0, %s26
    %s46 = sphi 0, %s46
    %s48 = sphi 0, %s46
    %s49 = sphi 0, %s48
    %s63 = sphi 0, %s49
    %s67 = sphi 0, %s67
    %s69 = sphi 0, %s67
    %s70 = sphi 0, %s69
    %s84 = sphi 0, %s70
    %s88 = sphi 0, %s88
    %s90 = sphi 0, %s88
    %s91 = sphi 0, %s90
    %s105 = sphi 0, %s91
    %s111 = sphi 0, %s113
    %s114 = sphi 0, %s111
    %s115 = sphi 0, %s114
    %s131 = sphi 0, %s115
    %s137 = sphi 0, %s139
    %s140 = sphi 0, %s137
    %s141 = sphi 0, %s140
    %s157 = sphi 0, %s141
  $region4: #{basic_block_forward.4} parent=0 // loop_header_branch
    %15 = sbr.rel (%p13) target = $region8
  $region5: #{basic_block_forward.4} parent=0 // loop_body
    %s17 = ssub.s32 %s12, 1
    %s18 = ssub.s32 %s12, 2
    %s19 = sadd.s32 %s12, 1
    %s20 = ssub.s32 %s12, %s19
    %p21 = scmp.eq.s32.totalorder %s20, 0
    %s23 = sadd.s32 %s22, 1
    %s24 = scalar_select %p21, %s22, %s23
    %p27 = pneg %p21
    %p28 = scmp.eq.s32.totalorder %s12, 1
    %p29 = por %p27, %p28
    %p30 = scmp.ne.s32.totalorder %s22, %s25
    %p31 = scmp.eq.s32.totalorder %s12, 0
    %p32 = por %p30, %p31
    %p33 = scmp.ne.s32.totalorder %s22, %s25
    %p34 = scmp.eq.s32.totalorder %s17, 1
    %p35 = por %p33, %p34
    %p36 = scmp.ne.s32.totalorder %s25, %s26
    %p37 = scmp.eq.s32.totalorder %s17, 0
    %p38 = por %p36, %p37
    %p39 = scmp.ne.s32.totalorder %s25, %s26
    %p40 = scmp.eq.s32.totalorder %s18, 1
    %p41 = por %p39, %p40
    %p43 = scmp.ne.s32.totalorder %s26, %s42
    %p44 = scmp.eq.s32.totalorder %s18, 0
    %p45 = por %p43, %p44
    %s47 = sadd.s32 %s46, 1
    %p50 = scmp.eq.s32.totalorder %s12, 1
    %p51 = scmp.ne.s32.totalorder %s46, %s48
    %p52 = scmp.eq.s32.totalorder %s12, 0
    %p53 = por %p51, %p52
    %p54 = scmp.ne.s32.totalorder %s46, %s48
    %p55 = scmp.eq.s32.totalorder %s17, 1
    %p56 = por %p54, %p55
    %p57 = scmp.ne.s32.totalorder %s48, %s49
    %p58 = scmp.eq.s32.totalorder %s17, 0
    %p59 = por %p57, %p58
    %p60 = scmp.ne.s32.totalorder %s48, %s49
    %p61 = scmp.eq.s32.totalorder %s18, 1
    %p62 = por %p60, %p61
    %p64 = scmp.ne.s32.totalorder %s49, %s63
    %p65 = scmp.eq.s32.totalorder %s18, 0
    %p66 = por %p64, %p65
    %s68 = sadd.s32 %s67, 1
    %p71 = scmp.eq.s32.totalorder %s12, 1
    %p72 = scmp.ne.s32.totalorder %s67, %s69
    %p73 = scmp.eq.s32.totalorder %s12, 0
    %p74 = por %p72, %p73
    %p75 = scmp.ne.s32.totalorder %s67, %s69
    %p76 = scmp.eq.s32.totalorder %s17, 1
    %p77 = por %p75, %p76
    %p78 = scmp.ne.s32.totalorder %s69, %s70
    %p79 = scmp.eq.s32.totalorder %s17, 0
    %p80 = por %p78, %p79
    %p81 = scmp.ne.s32.totalorder %s69, %s70
    %p82 = scmp.eq.s32.totalorder %s18, 1
    %p83 = por %p81, %p82
    %p85 = scmp.ne.s32.totalorder %s70, %s84
    %p86 = scmp.eq.s32.totalorder %s18, 0
    %p87 = por %p85, %p86
    %s89 = sadd.s32 %s88, 1
    %p92 = scmp.eq.s32.totalorder %s12, 1
    %p93 = scmp.ne.s32.totalorder %s88, %s90
    %p94 = scmp.eq.s32.totalorder %s12, 0
    %p95 = por %p93, %p94
    %p96 = scmp.ne.s32.totalorder %s88, %s90
    %p97 = scmp.eq.s32.totalorder %s17, 1
    %p98 = por %p96, %p97
    %p99 = scmp.ne.s32.totalorder %s90, %s91
    %p100 = scmp.eq.s32.totalorder %s17, 0
    %p101 = por %p99, %p100
    %p102 = scmp.ne.s32.totalorder %s90, %s91
    %p103 = scmp.eq.s32.totalorder %s18, 1
    %p104 = por %p102, %p103
    %p106 = scmp.ne.s32.totalorder %s91, %s105
    %p107 = scmp.eq.s32.totalorder %s18, 0
    %p108 = por %p106, %p107
    %s109 = ssub.s32 %s12, %s19
    %p110 = scmp.eq.s32.totalorder %s109, 0
    %s112 = sadd.s32 %s111, 1
    %s113 = scalar_select %p110, %s111, %s112
    %p116 = pneg %p110
    %p117 = scmp.eq.s32.totalorder %s12, 1
    %p118 = por %p116, %p117
    %p119 = scmp.ne.s32.totalorder %s111, %s114
    %p120 = scmp.eq.s32.totalorder %s12, 0
    %p121 = por %p119, %p120
    %p122 = scmp.ne.s32.totalorder %s111, %s114
    %p123 = scmp.eq.s32.totalorder %s17, 1
    %p124 = por %p122, %p123
    %p125 = scmp.ne.s32.totalorder %s114, %s115
    %p126 = scmp.eq.s32.totalorder %s17, 0
    %p127 = por %p125, %p126
    %p128 = scmp.ne.s32.totalorder %s114, %s115
    %p129 = scmp.eq.s32.totalorder %s18, 1
    %p130 = por %p128, %p129
    %p132 = scmp.ne.s32.totalorder %s115, %s131
    %p133 = scmp.eq.s32.totalorder %s18, 0
    %p134 = por %p132, %p133
    %s135 = ssub.s32 %s12, %s19
    %p136 = scmp.eq.s32.totalorder %s135, 0
    %s138 = sadd.s32 %s137, 1
    %s139 = scalar_select %p136, %s137, %s138
    %p142 = pneg %p136
    %p143 = scmp.eq.s32.totalorder %s12, 1
    %p144 = por %p142, %p143
    %p145 = scmp.ne.s32.totalorder %s137, %s140
    %p146 = scmp.eq.s32.totalorder %s12, 0
    %p147 = por %p145, %p146
    %p148 = scmp.ne.s32.totalorder %s137, %s140
    %p149 = scmp.eq.s32.totalorder %s17, 1
    %p150 = por %p148, %p149
    %p151 = scmp.ne.s32.totalorder %s140, %s141
    %p152 = scmp.eq.s32.totalorder %s17, 0
    %p153 = por %p151, %p152
    %p154 = scmp.ne.s32.totalorder %s140, %s141
    %p155 = scmp.eq.s32.totalorder %s18, 1
    %p156 = por %p154, %p155
    %p158 = scmp.ne.s32.totalorder %s141, %s157
    %p159 = scmp.eq.s32.totalorder %s18, 0
    %p160 = por %p158, %p159
    %p161 = scmp.le.s32.totalorder 1, %s12
    %p162 = scmp.lt.s32.totalorder %s12, 3
    %p163 = pnand %p161, %p162
    %p164 = pneg %p163
    // Predicated region
    $region9: #{basic_block_forward.4} parent=5 // pred_check
      _
    $region10: #{basic_block_forward.4} parent=5 // pred_check_branch
      %166 = sbr.rel (%p163) target = $region12
    $region11: #{basic_block_forward.4} parent=5 // pred_region
      %s167 = ssub.s32 %s12, 1
      // Predicated region
      $region13: #{basic_block_forward.4} parent=11 // pred_check
        %p168 = pneg %p59
      $region14: #{basic_block_forward.4} parent=11 // pred_check_branch
        %170 = sbr.rel (%p168) target = $region16
      $region15: #{basic_block_forward.4} parent=11 // pred_region
        _
      $region16: #{basic_block_forward.4} parent=11 // pred_fallthru
        _
      // Predicated region
      $region17: #{basic_block_forward.4} parent=11 // pred_check
        %p171 = pneg %p80
      $region18: #{basic_block_forward.4} parent=11 // pred_check_branch
        %173 = sbr.rel (%p171) target = $region20
      $region19: #{basic_block_forward.4} parent=11 // pred_region
        _
      $region20: #{basic_block_forward.4} parent=11 // pred_fallthru
        _
      // Predicated region
      $region21: #{basic_block_forward.4} parent=11 // pred_check
        %p174 = pneg %p101
      $region22: #{basic_block_forward.4} parent=11 // pred_check_branch
        %176 = sbr.rel (%p174) target = $region24
      $region23: #{basic_block_forward.4} parent=11 // pred_region
        _
      $region24: #{basic_block_forward.4} parent=11 // pred_fallthru
        _
    $region12: #{basic_block_forward.4} parent=5 // pred_fallthru
      _
    %p177 = scmp.lt.s32.totalorder %s12, 2
    // Predicated region
    $region25: #{basic_block_forward.4} parent=5 // pred_check
      %p178 = pneg %p177
    $region26: #{basic_block_forward.4} parent=5 // pred_check_branch
      %180 = sbr.rel (%p178) target = $region28
    $region27: #{basic_block_forward.4} parent=5 // pred_region
      // Predicated region
      $region29: #{basic_block_forward.4} parent=27 // pred_check
        %p181 = pneg %p32
      $region30: #{basic_block_forward.4} parent=27 // pred_check_branch
        %183 = sbr.rel (%p181) target = $region32
      $region31: #{basic_block_forward.4} parent=27 // pred_region
        %p184 = scmp.lt.s32.totalorder %s12, 1
        %s185 = scalar_select %p184, %s12, 1
        %s186 = smul.addr %s185, 32
        %s187 = smul.addr %s186, 8
        %s188 = scalar_lea.vmem %s0, %s187
      $region32: #{basic_block_forward.4} parent=27 // pred_fallthru
        _
    $region28: #{basic_block_forward.4} parent=5 // pred_fallthru
      _
    %p189 = scmp.le.s32.totalorder 1, %s12
    %p190 = scmp.lt.s32.totalorder %s12, 3
    %p191 = pnand %p189, %p190
    %p192 = pneg %p191
    // Predicated region
    $region33: #{basic_block_forward.4} parent=5 // pred_check
      _
    $region34: #{basic_block_forward.4} parent=5 // pred_check_branch
      %194 = sbr.rel (%p191) target = $region36
    $region35: #{basic_block_forward.4} parent=5 // pred_region
      %s195 = ssub.s32 %s12, 1
      %p196 = scmp.lt.s32.totalorder %s17, 1
      %s197 = scalar_select %p196, %s17, 1
      %s198 = smul.addr %s197, 32
      %s199 = smul.addr %s198, 8
      %s200 = scalar_lea.vmem %s0, %s199
      %p201 = pneg %p38
      %p202 = pneg %p35
      %p203 = pneg %p59
      %p204 = pneg %p56
      %p205 = pneg %p80
      %p206 = pneg %p77
      %p207 = pneg %p101
      %p208 = pneg %p98
      %p209 = pneg %p127
      %p210 = pneg %p124
      %p211 = scmp.lt.s32.totalorder %s17, 1
      %s212 = scalar_select %p211, %s17, 1
      %s213 = smul.addr %s212, 32
      %s214 = smul.addr %s213, 8
      %s215 = scalar_lea.vmem %s4, %s214
      %p216 = pneg %p153
      %p217 = pneg %p150
      %p218 = scmp.lt.s32.totalorder %s17, 1
      %s219 = scalar_select %p218, %s17, 1
      %s220 = smul.addr %s219, 2
      %s221 = scalar_lea.vmem %s5, %s220
      %p222 = scmp.lt.s32.totalorder %s17, 1
      %s223 = scalar_select %p222, %s17, 1
      %s224 = smul.addr %s223, 32
      %s225 = smul.addr %s224, 8
      %s226 = scalar_lea.vmem %s0, %s225
      %p227 = scmp.lt.s32.totalorder %s17, 1
      %s228 = scalar_select %p227, %s17, 1
      %s229 = smul.addr %s228, 32
      %s230 = smul.addr %s229, 8
      %s231 = scalar_lea.vmem %s4, %s230
      %p232 = scmp.lt.s32.totalorder %s17, 1
      %s233 = scalar_select %p232, %s17, 1
      %s234 = smul.addr %s233, 2
      %s235 = scalar_lea.vmem %s5, %s234
      %v236 = vld [vmem:[%s226] sm:$0xff]
      %v237 = vld [vmem:[%s226 + $0x8] sm:$0xff]
      %v238 = vld [vmem:[%s226 + $0x10] sm:$0xff]
      %v239 = vld [vmem:[%s226 + $0x18] sm:$0xff]
      %v240 = vld [vmem:[%s226 + $0x20] sm:$0xff]
      %v241 = vld [vmem:[%s226 + $0x28] sm:$0xff]
      %v242 = vld [vmem:[%s226 + $0x30] sm:$0xff]
      %v243 = vld [vmem:[%s226 + $0x38] sm:$0xff]
      %v244 = vld [vmem:[%s226 + $0x40] sm:$0xff]
      %v245 = vld [vmem:[%s226 + $0x48] sm:$0xff]
      %v246 = vld [vmem:[%s226 + $0x50] sm:$0xff]
      %v247 = vld [vmem:[%s226 + $0x58] sm:$0xff]
      %v248 = vld [vmem:[%s226 + $0x60] sm:$0xff]
      %v249 = vld [vmem:[%s226 + $0x68] sm:$0xff]
      %v250 = vld [vmem:[%s226 + $0x70] sm:$0xff]
      %v251 = vld [vmem:[%s226 + $0x78] sm:$0xff]
      %v252 = vld [vmem:[%s226 + $0x80] sm:$0xff]
      %v253 = vld [vmem:[%s226 + $0x88] sm:$0xff]
      %v254 = vld [vmem:[%s226 + $0x90] sm:$0xff]
      %v255 = vld [vmem:[%s226 + $0x98] sm:$0xff]
      %v256 = vld [vmem:[%s226 + $0xa0] sm:$0xff]
      %v257 = vld [vmem:[%s226 + $0xa8] sm:$0xff]
      %v258 = vld [vmem:[%s226 + $0xb0] sm:$0xff]
      %v259 = vld [vmem:[%s226 + $0xb8] sm:$0xff]
      %v260 = vld [vmem:[%s226 + $0xc0] sm:$0xff]
      %v261 = vld [vmem:[%s226 + $0xc8] sm:$0xff]
      %v262 = vld [vmem:[%s226 + $0xd0] sm:$0xff]
      %v263 = vld [vmem:[%s226 + $0xd8] sm:$0xff]
      %v264 = vld [vmem:[%s226 + $0xe0] sm:$0xff]
      %v265 = vld [vmem:[%s226 + $0xe8] sm:$0xff]
      %v266 = vld [vmem:[%s226 + $0xf0] sm:$0xff]
      %v267 = vld [vmem:[%s226 + $0xf8] sm:$0xff]
      %v268 = vld [vmem:[%s2] sm:$0x1]
      %v270 = vlaneseq
      %v271 = vshrl.u32 %v270, 7
      %v272 = vsub.s32 0, %v271
      %v273 = vrot.slane %v268, %v272
      %v275 = vmul.f32 %v236, %v273
      %v276 = vmul.f32 %v237, %v273
      %v277 = vmul.f32 %v238, %v273
      %v278 = vmul.f32 %v239, %v273
      %v279 = vmul.f32 %v240, %v273
      %v280 = vmul.f32 %v241, %v273
      %v281 = vmul.f32 %v242, %v273
      %v282 = vmul.f32 %v243, %v273
      %v283 = vmul.f32 %v244, %v273
      %v284 = vmul.f32 %v245, %v273
      %v285 = vmul.f32 %v246, %v273
      %v286 = vmul.f32 %v247, %v273
      %v287 = vmul.f32 %v248, %v273
      %v288 = vmul.f32 %v249, %v273
      %v289 = vmul.f32 %v250, %v273
      %v290 = vmul.f32 %v251, %v273
      %v291 = vmul.f32 %v252, %v273
      %v292 = vmul.f32 %v253, %v273
      %v293 = vmul.f32 %v254, %v273
      %v294 = vmul.f32 %v255, %v273
      %v295 = vmul.f32 %v256, %v273
      %v296 = vmul.f32 %v257, %v273
      %v297 = vmul.f32 %v258, %v273
      %v298 = vmul.f32 %v259, %v273
      %v299 = vmul.f32 %v260, %v273
      %v300 = vmul.f32 %v261, %v273
      %v301 = vmul.f32 %v262, %v273
      %v302 = vmul.f32 %v263, %v273
      %v303 = vmul.f32 %v264, %v273
      %v304 = vmul.f32 %v265, %v273
      %v305 = vmul.f32 %v266, %v273
      %v306 = vmul.f32 %v267, %v273
      %v307 = vld [vmem:[%s3] sm:$0x1]
      %v309 = vlaneseq
      %v310 = vshrl.u32 %v309, 7
      %v311 = vsub.s32 0, %v310
      %v312 = vrot.slane %v307, %v311
      %v314 = vadd.f32 %v275, %v312
      %v315 = vadd.f32 %v276, %v312
      %v316 = vadd.f32 %v277, %v312
      %v317 = vadd.f32 %v278, %v312
      %v318 = vadd.f32 %v279, %v312
      %v319 = vadd.f32 %v280, %v312
      %v320 = vadd.f32 %v281, %v312
      %v321 = vadd.f32 %v282, %v312
      %v322 = vadd.f32 %v283, %v312
      %v323 = vadd.f32 %v284, %v312
      %v324 = vadd.f32 %v285, %v312
      %v325 = vadd.f32 %v286, %v312
      %v326 = vadd.f32 %v287, %v312
      %v327 = vadd.f32 %v288, %v312
      %v328 = vadd.f32 %v289, %v312
      %v329 = vadd.f32 %v290, %v312
      %v330 = vadd.f32 %v291, %v312
      %v331 = vadd.f32 %v292, %v312
      %v332 = vadd.f32 %v293, %v312
      %v333 = vadd.f32 %v294, %v312
      %v334 = vadd.f32 %v295, %v312
      %v335 = vadd.f32 %v296, %v312
      %v336 = vadd.f32 %v297, %v312
      %v337 = vadd.f32 %v298, %v312
      %v338 = vadd.f32 %v299, %v312
      %v339 = vadd.f32 %v300, %v312
      %v340 = vadd.f32 %v301, %v312
      %v341 = vadd.f32 %v302, %v312
      %v342 = vadd.f32 %v303, %v312
      %v343 = vadd.f32 %v304, %v312
      %v344 = vadd.f32 %v305, %v312
      %v345 = vadd.f32 %v306, %v312
      %v346 = vmax.f32 %v314, 0.0
      %v347 = vmax.f32 %v315, 0.0
      %v348 = vmax.f32 %v316, 0.0
      %v349 = vmax.f32 %v317, 0.0
      %v350 = vmax.f32 %v318, 0.0
      %v351 = vmax.f32 %v319, 0.0
      %v352 = vmax.f32 %v320, 0.0
      %v353 = vmax.f32 %v321, 0.0
      %v354 = vmax.f32 %v322, 0.0
      %v355 = vmax.f32 %v323, 0.0
      %v356 = vmax.f32 %v324, 0.0
      %v357 = vmax.f32 %v325, 0.0
      %v358 = vmax.f32 %v326, 0.0
      %v359 = vmax.f32 %v327, 0.0
      %v360 = vmax.f32 %v328, 0.0
      %v361 = vmax.f32 %v329, 0.0
      %v362 = vmax.f32 %v330, 0.0
      %v363 = vmax.f32 %v331, 0.0
      %v364 = vmax.f32 %v332, 0.0
      %v365 = vmax.f32 %v333, 0.0
      %v366 = vmax.f32 %v334, 0.0
      %v367 = vmax.f32 %v335, 0.0
      %v368 = vmax.f32 %v336, 0.0
      %v369 = vmax.f32 %v337, 0.0
      %v370 = vmax.f32 %v338, 0.0
      %v371 = vmax.f32 %v339, 0.0
      %v372 = vmax.f32 %v340, 0.0
      %v373 = vmax.f32 %v341, 0.0
      %v374 = vmax.f32 %v342, 0.0
      %v375 = vmax.f32 %v343, 0.0
      %v376 = vmax.f32 %v344, 0.0
      %v377 = vmax.f32 %v345, 0.0
      %378 = vst [vmem:[#allocation2] sm:$0xff] 0.0
      %379 = vst [vmem:[#allocation2 + $0x8] sm:$0xff] 0.0
      %380 = vst [vmem:[#allocation2 + $0x10] sm:$0x3] 0.0
      %381 = vst [vmem:[#allocation2 + $0x18] sm:$0xff] 0.0
      %382 = vst [vmem:[#allocation2 + $0x20] sm:$0xff] 0.0
      %383 = vst [vmem:[#allocation2 + $0x28] sm:$0x3] 0.0
      %384 = vst [vmem:[#allocation2 + $0x30] sm:$0xff] 0.0
      %385 = vst [vmem:[#allocation2 + $0x38] sm:$0xff] 0.0
      %386 = vst [vmem:[#allocation2 + $0x40] sm:$0x3] 0.0
      %387 = vst [vmem:[#allocation2 + $0x48] sm:$0xff] 0.0
      %388 = vst [vmem:[#allocation2 + $0x50] sm:$0xff] 0.0
      %389 = vst [vmem:[#allocation2 + $0x58] sm:$0x3] 0.0
      %390 = vst [vmem:[#allocation2 + $0x60] sm:$0xff] 0.0
      %391 = vst [vmem:[#allocation2 + $0x68] sm:$0xff] 0.0
      %392 = vst [vmem:[#allocation2 + $0x70] sm:$0x3] 0.0
      %393 = vst [vmem:[#allocation2 + $0x78] sm:$0xff] 0.0
      %394 = vst [vmem:[#allocation2 + $0x80] sm:$0xff] 0.0
      %395 = vst [vmem:[#allocation2 + $0x88] sm:$0x3] 0.0
      %396 = vst [vmem:[#allocation2 + $0x90] sm:$0xff] 0.0
      %397 = vst [vmem:[#allocation2 + $0x98] sm:$0xff] 0.0
      %398 = vst [vmem:[#allocation2 + $0xa0] sm:$0x3] 0.0
      %399 = vst [vmem:[#allocation2 + $0xa8] sm:$0xff] 0.0
      %400 = vst [vmem:[#allocation2 + $0xb0] sm:$0xff] 0.0
      %401 = vst [vmem:[#allocation2 + $0xb8] sm:$0x3] 0.0
      %402 = vst [vmem:[#allocation2 + $0xc0] sm:$0xff] 0.0
      %403 = vst [vmem:[#allocation2 + $0xc8] sm:$0xff] 0.0
      %404 = vst [vmem:[#allocation2 + $0xd0] sm:$0x3] 0.0
      %405 = vst [vmem:[#allocation2 + $0xd8] sm:$0xff] 0.0
      %406 = vst [vmem:[#allocation2 + $0xe0] sm:$0xff] 0.0
      %407 = vst [vmem:[#allocation2 + $0xe8] sm:$0x3] 0.0
      %408 = vst [vmem:[#allocation2 + $0xf0] sm:$0xff] 0.0
      %409 = vst [vmem:[#allocation2 + $0xf8] sm:$0xff] 0.0
      %410 = vst [vmem:[#allocation2 + $0x100] sm:$0x3] 0.0
      %411 = vst [vmem:[#allocation2 + $0x108] sm:$0xff] 0.0
      %412 = vst [vmem:[#allocation2 + $0x110] sm:$0xff] 0.0
      %413 = vst [vmem:[#allocation2 + $0x118] sm:$0x3] 0.0
      %414 = vst [vmem:[#allocation2 + $0x120] sm:$0xff] 0.0
      %415 = vst [vmem:[#allocation2 + $0x128] sm:$0xff] 0.0
      %416 = vst [vmem:[#allocation2 + $0x130] sm:$0x3] 0.0
      %417 = vst [vmem:[#allocation2 + $0x138] sm:$0xff] 0.0
      %418 = vst [vmem:[#allocation2 + $0x140] sm:$0xff] 0.0
      %419 = vst [vmem:[#allocation2 + $0x148] sm:$0x3] 0.0
      %420 = vst [vmem:[#allocation2 + $0x150] sm:$0xff] 0.0
      %421 = vst [vmem:[#allocation2 + $0x158] sm:$0xff] 0.0
      %422 = vst [vmem:[#allocation2 + $0x160] sm:$0x3] 0.0
      %423 = vst [vmem:[#allocation2 + $0x168] sm:$0xff] 0.0
      %424 = vst [vmem:[#allocation2 + $0x170] sm:$0xff] 0.0
      %425 = vst [vmem:[#allocation2 + $0x178] sm:$0x3] 0.0
      %426 = vst [vmem:[#allocation2 + $0x180] sm:$0xff] 0.0
      %427 = vst [vmem:[#allocation2 + $0x188] sm:$0xff] 0.0
      %428 = vst [vmem:[#allocation2 + $0x190] sm:$0x3] 0.0
      %429 = vst [vmem:[#allocation2 + $0x198] sm:$0xff] 0.0
      %430 = vst [vmem:[#allocation2 + $0x1a0] sm:$0xff] 0.0
      %431 = vst [vmem:[#allocation2 + $0x1a8] sm:$0x3] 0.0
      %s432 = scalar_lea.vmem [#allocation2], 24
      %433 = vst [vmem:[%s432 + $0x1] sm:$0xff] %v346
      %434 = vst [vmem:[%s432 + $0x9] sm:$0xff] %v347
      %435 = vst [vmem:[%s432 + $0x19] sm:$0xff] %v348
      %436 = vst [vmem:[%s432 + $0x21] sm:$0xff] %v349
      %437 = vst [vmem:[%s432 + $0x31] sm:$0xff] %v350
      %438 = vst [vmem:[%s432 + $0x39] sm:$0xff] %v351
      %439 = vst [vmem:[%s432 + $0x49] sm:$0xff] %v352
      %440 = vst [vmem:[%s432 + $0x51] sm:$0xff] %v353
      %441 = vst [vmem:[%s432 + $0x61] sm:$0xff] %v354
      %442 = vst [vmem:[%s432 + $0x69] sm:$0xff] %v355
      %443 = vst [vmem:[%s432 + $0x79] sm:$0xff] %v356
      %444 = vst [vmem:[%s432 + $0x81] sm:$0xff] %v357
      %445 = vst [vmem:[%s432 + $0x91] sm:$0xff] %v358
      %446 = vst [vmem:[%s432 + $0x99] sm:$0xff] %v359
      %447 = vst [vmem:[%s432 + $0xa9] sm:$0xff] %v360
      %448 = vst [vmem:[%s432 + $0xb1] sm:$0xff] %v361
      %449 = vst [vmem:[%s432 + $0xc1] sm:$0xff] %v362
      %450 = vst [vmem:[%s432 + $0xc9] sm:$0xff] %v363
      %451 = vst [vmem:[%s432 + $0xd9] sm:$0xff] %v364
      %452 = vst [vmem:[%s432 + $0xe1] sm:$0xff] %v365
      %453 = vst [vmem:[%s432 + $0xf1] sm:$0xff] %v366
      %454 = vst [vmem:[%s432 + $0xf9] sm:$0xff] %v367
      %455 = vst [vmem:[%s432 + $0x109] sm:$0xff] %v368
      %456 = vst [vmem:[%s432 + $0x111] sm:$0xff] %v369
      %457 = vst [vmem:[%s432 + $0x121] sm:$0xff] %v370
      %458 = vst [vmem:[%s432 + $0x129] sm:$0xff] %v371
      %459 = vst [vmem:[%s432 + $0x139] sm:$0xff] %v372
      %460 = vst [vmem:[%s432 + $0x141] sm:$0xff] %v373
      %461 = vst [vmem:[%s432 + $0x151] sm:$0xff] %v374
      %462 = vst [vmem:[%s432 + $0x159] sm:$0xff] %v375
      %463 = vst [vmem:[%s432 + $0x169] sm:$0xff] %v376
      %464 = vst [vmem:[%s432 + $0x171] sm:$0xff] %v377
      %v465 = vld [vmem:[#allocation2] sm:$0xff]
      %v466 = vld [vmem:[#allocation2 + $0x8] sm:$0xff]
      %v467 = vld [vmem:[#allocation2 + $0x10] sm:$0x3]
      %v468 = vld [vmem:[#allocation2 + $0x18] sm:$0xff]
      %v469 = vld [vmem:[#allocation2 + $0x20] sm:$0xff]
      %v470 = vld [vmem:[#allocation2 + $0x28] sm:$0x3]
      %v471 = vld [vmem:[#allocation2 + $0x30] sm:$0xff]
      %v472 = vld [vmem:[#allocation2 + $0x38] sm:$0xff]
      %v473 = vld [vmem:[#allocation2 + $0x40] sm:$0x3]
      %v474 = vld [vmem:[#allocation2 + $0x48] sm:$0xff]
      %v475 = vld [vmem:[#allocation2 + $0x50] sm:$0xff]
      %v476 = vld [vmem:[#allocation2 + $0x58] sm:$0x3]
      %v477 = vld [vmem:[#allocation2 + $0x60] sm:$0xff]
      %v478 = vld [vmem:[#allocation2 + $0x68] sm:$0xff]
      %v479 = vld [vmem:[#allocation2 + $0x70] sm:$0x3]
      %v480 = vld [vmem:[#allocation2 + $0x78] sm:$0xff]
      %v481 = vld [vmem:[#allocation2 + $0x80] sm:$0xff]
      %v482 = vld [vmem:[#allocation2 + $0x88] sm:$0x3]
      %v483 = vld [vmem:[#allocation2 + $0x90] sm:$0xff]
      %v484 = vld [vmem:[#allocation2 + $0x98] sm:$0xff]
      %v485 = vld [vmem:[#allocation2 + $0xa0] sm:$0x3]
      %v486 = vld [vmem:[#allocation2 + $0xa8] sm:$0xff]
      %v487 = vld [vmem:[#allocation2 + $0xb0] sm:$0xff]
      %v488 = vld [vmem:[#allocation2 + $0xb8] sm:$0x3]
      %v489 = vld [vmem:[#allocation2 + $0xc0] sm:$0xff]
      %v490 = vld [vmem:[#allocation2 + $0xc8] sm:$0xff]
      %v491 = vld [vmem:[#allocation2 + $0xd0] sm:$0x3]
      %v492 = vld [vmem:[#allocation2 + $0xd8] sm:$0xff]
      %v493 = vld [vmem:[#allocation2 + $0xe0] sm:$0xff]
      %v494 = vld [vmem:[#allocation2 + $0xe8] sm:$0x3]
      %v495 = vld [vmem:[#allocation2 + $0xf0] sm:$0xff]
      %v496 = vld [vmem:[#allocation2 + $0xf8] sm:$0xff]
      %v497 = vld [vmem:[#allocation2 + $0x100] sm:$0x3]
      %v498 = vld [vmem:[#allocation2 + $0x108] sm:$0xff]
      %v499 = vld [vmem:[#allocation2 + $0x110] sm:$0xff]
      %v500 = vld [vmem:[#allocation2 + $0x118] sm:$0x3]
      %v501 = vld [vmem:[#allocation2 + $0x120] sm:$0xff]
      %v502 = vld [vmem:[#allocation2 + $0x128] sm:$0xff]
      %v503 = vld [vmem:[#allocation2 + $0x130] sm:$0x3]
      %v504 = vld [vmem:[#allocation2 + $0x138] sm:$0xff]
      %v505 = vld [vmem:[#allocation2 + $0x140] sm:$0xff]
      %v506 = vld [vmem:[#allocation2 + $0x148] sm:$0x3]
      %v507 = vld [vmem:[#allocation2 + $0x150] sm:$0xff]
      %v508 = vld [vmem:[#allocation2 + $0x158] sm:$0xff]
      %v509 = vld [vmem:[#allocation2 + $0x160] sm:$0x3]
      %v510 = vld [vmem:[#allocation2 + $0x168] sm:$0xff]
      %v511 = vld [vmem:[#allocation2 + $0x170] sm:$0xff]
      %v512 = vld [vmem:[#allocation2 + $0x178] sm:$0x3]
      %vm561 = vcmask 1046528
      %v562 = vrot.slane %v465, 1
      %v563 = vrot.slane %v466, 1
      %v564 = vsel %vm561, %v562, %v563
      %v565 = vrot.slane %v467, 1
      %v566 = vsel %vm561, %v563, %v565
      %v567 = vrot.slane %v468, 1
      %v568 = vrot.slane %v469, 1
      %v569 = vsel %vm561, %v567, %v568
      %v570 = vrot.slane %v470, 1
      %v571 = vsel %vm561, %v568, %v570
      %v572 = vrot.slane %v471, 1
      %v573 = vrot.slane %v472, 1
      %v574 = vsel %vm561, %v572, %v573
      %v575 = vrot.slane %v473, 1
      %v576 = vsel %vm561, %v573, %v575
      %v577 = vrot.slane %v474, 1
      %v578 = vrot.slane %v475, 1
      %v579 = vsel %vm561, %v577, %v578
      %v580 = vrot.slane %v476, 1
      %v581 = vsel %vm561, %v578, %v580
      %v582 = vrot.slane %v477, 1
      %v583 = vrot.slane %v478, 1
      %v584 = vsel %vm561, %v582, %v583
      %v585 = vrot.slane %v479, 1
      %v586 = vsel %vm561, %v583, %v585
      %v587 = vrot.slane %v480, 1
      %v588 = vrot.slane %v481, 1
      %v589 = vsel %vm561, %v587, %v588
      %v590 = vrot.slane %v482, 1
      %v591 = vsel %vm561, %v588, %v590
      %v592 = vrot.slane %v483, 1
      %v593 = vrot.slane %v484, 1
      %v594 = vsel %vm561, %v592, %v593
      %v595 = vrot.slane %v485, 1
      %v596 = vsel %vm561, %v593, %v595
      %v597 = vrot.slane %v486, 1
      %v598 = vrot.slane %v487, 1
      %v599 = vsel %vm561, %v597, %v598
      %v600 = vrot.slane %v488, 1
      %v601 = vsel %vm561, %v598, %v600
      %v602 = vrot.slane %v489, 1
      %v603 = vrot.slane %v490, 1
      %v604 = vsel %vm561, %v602, %v603
      %v605 = vrot.slane %v491, 1
      %v606 = vsel %vm561, %v603, %v605
      %v607 = vrot.slane %v492, 1
      %v608 = vrot.slane %v493, 1
      %v609 = vsel %vm561, %v607, %v608
      %v610 = vrot.slane %v494, 1
      %v611 = vsel %vm561, %v608, %v610
      %v612 = vrot.slane %v495, 1
      %v613 = vrot.slane %v496, 1
      %v614 = vsel %vm561, %v612, %v613
      %v615 = vrot.slane %v497, 1
      %v616 = vsel %vm561, %v613, %v615
      %v617 = vrot.slane %v498, 1
      %v618 = vrot.slane %v499, 1
      %v619 = vsel %vm561, %v617, %v618
      %v620 = vrot.slane %v500, 1
      %v621 = vsel %vm561, %v618, %v620
      %v622 = vrot.slane %v501, 1
      %v623 = vrot.slane %v502, 1
      %v624 = vsel %vm561, %v622, %v623
      %v625 = vrot.slane %v503, 1
      %v626 = vsel %vm561, %v623, %v625
      %v627 = vrot.slane %v504, 1
      %v628 = vrot.slane %v505, 1
      %v629 = vsel %vm561, %v627, %v628
      %v630 = vrot.slane %v506, 1
      %v631 = vsel %vm561, %v628, %v630
      %v632 = vrot.slane %v507, 1
      %v633 = vrot.slane %v508, 1
      %v634 = vsel %vm561, %v632, %v633
      %v635 = vrot.slane %v509, 1
      %v636 = vsel %vm561, %v633, %v635
      %v637 = vrot.slane %v510, 1
      %v638 = vrot.slane %v511, 1
      %v639 = vsel %vm561, %v637, %v638
      %v640 = vrot.slane %v512, 1
      %v641 = vsel %vm561, %v638, %v640
      %vm674 = vcmask 1045504
      %v675 = vrot.slane %v465, 2
      %v676 = vrot.slane %v466, 2
      %v677 = vsel %vm674, %v675, %v676
      %v678 = vrot.slane %v467, 2
      %v679 = vsel %vm674, %v676, %v678
      %v680 = vrot.slane %v468, 2
      %v681 = vrot.slane %v469, 2
      %v682 = vsel %vm674, %v680, %v681
      %v683 = vrot.slane %v470, 2
      %v684 = vsel %vm674, %v681, %v683
      %v685 = vrot.slane %v471, 2
      %v686 = vrot.slane %v472, 2
      %v687 = vsel %vm674, %v685, %v686
      %v688 = vrot.slane %v473, 2
      %v689 = vsel %vm674, %v686, %v688
      %v690 = vrot.slane %v474, 2
      %v691 = vrot.slane %v475, 2
      %v692 = vsel %vm674, %v690, %v691
      %v693 = vrot.slane %v476, 2
      %v694 = vsel %vm674, %v691, %v693
      %v695 = vrot.slane %v477, 2
      %v696 = vrot.slane %v478, 2
      %v697 = vsel %vm674, %v695, %v696
      %v698 = vrot.slane %v479, 2
      %v699 = vsel %vm674, %v696, %v698
      %v700 = vrot.slane %v480, 2
      %v701 = vrot.slane %v481, 2
      %v702 = vsel %vm674, %v700, %v701
      %v703 = vrot.slane %v482, 2
      %v704 = vsel %vm674, %v701, %v703
      %v705 = vrot.slane %v483, 2
      %v706 = vrot.slane %v484, 2
      %v707 = vsel %vm674, %v705, %v706
      %v708 = vrot.slane %v485, 2
      %v709 = vsel %vm674, %v706, %v708
      %v710 = vrot.slane %v486, 2
      %v711 = vrot.slane %v487, 2
      %v712 = vsel %vm674, %v710, %v711
      %v713 = vrot.slane %v488, 2
      %v714 = vsel %vm674, %v711, %v713
      %v715 = vrot.slane %v489, 2
      %v716 = vrot.slane %v490, 2
      %v717 = vsel %vm674, %v715, %v716
      %v718 = vrot.slane %v491, 2
      %v719 = vsel %vm674, %v716, %v718
      %v720 = vrot.slane %v492, 2
      %v721 = vrot.slane %v493, 2
      %v722 = vsel %vm674, %v720, %v721
      %v723 = vrot.slane %v494, 2
      %v724 = vsel %vm674, %v721, %v723
      %v725 = vrot.slane %v495, 2
      %v726 = vrot.slane %v496, 2
      %v727 = vsel %vm674, %v725, %v726
      %v728 = vrot.slane %v497, 2
      %v729 = vsel %vm674, %v726, %v728
      %v730 = vrot.slane %v498, 2
      %v731 = vrot.slane %v499, 2
      %v732 = vsel %vm674, %v730, %v731
      %v733 = vrot.slane %v500, 2
      %v734 = vsel %vm674, %v731, %v733
      %v735 = vrot.slane %v501, 2
      %v736 = vrot.slane %v502, 2
      %v737 = vsel %vm674, %v735, %v736
      %v738 = vrot.slane %v503, 2
      %v739 = vsel %vm674, %v736, %v738
      %v740 = vrot.slane %v504, 2
      %v741 = vrot.slane %v505, 2
      %v742 = vsel %vm674, %v740, %v741
      %v743 = vrot.slane %v506, 2
      %v744 = vsel %vm674, %v741, %v743
      %v745 = vrot.slane %v507, 2
      %v746 = vrot.slane %v508, 2
      %v747 = vsel %vm674, %v745, %v746
      %v748 = vrot.slane %v509, 2
      %v749 = vsel %vm674, %v746, %v748
      %v750 = vrot.slane %v510, 2
      %v751 = vrot.slane %v511, 2
      %v752 = vsel %vm674, %v750, %v751
      %v753 = vrot.slane %v512, 2
      %v754 = vsel %vm674, %v751, %v753
      %v787 = vld [vmem:[%s1] sm:$0xff]
      %v788 = vld [vmem:[%s1 + $0x8] sm:$0xff]
      %v789 = vld [vmem:[%s1 + $0x10] sm:$0xff]
      %v790 = vld [vmem:[%s1 + $0x18] sm:$0xff]
      %v791 = vld [vmem:[%s1 + $0x20] sm:$0xff]
      %v792 = vld [vmem:[%s1 + $0x28] sm:$0xff]
      %v793 = vld [vmem:[%s1 + $0x30] sm:$0xff]
      %v794 = vld [vmem:[%s1 + $0x38] sm:$0xff]
      %v795 = vld [vmem:[%s1 + $0x40] sm:$0xff]
      %v796 = vld [vmem:[%s1 + $0x48] sm:$0xff]
      %v797 = vld [vmem:[%s1 + $0x50] sm:$0xff]
      %v798 = vld [vmem:[%s1 + $0x58] sm:$0xff]
      %v799 = vld [vmem:[%s1 + $0x60] sm:$0xff]
      %v800 = vld [vmem:[%s1 + $0x68] sm:$0xff]
      %v801 = vld [vmem:[%s1 + $0x70] sm:$0xff]
      %v802 = vld [vmem:[%s1 + $0x78] sm:$0xff]
      %v803 = vld [vmem:[%s1 + $0x80] sm:$0xff]
      %v804 = vld [vmem:[%s1 + $0x88] sm:$0xff]
      %v805 = vld [vmem:[%s1 + $0x90] sm:$0xff]
      %v806 = vld [vmem:[%s1 + $0x98] sm:$0xff]
      %v807 = vld [vmem:[%s1 + $0xa0] sm:$0xff]
      %v808 = vld [vmem:[%s1 + $0xa8] sm:$0xff]
      %v809 = vld [vmem:[%s1 + $0xb0] sm:$0xff]
      %v810 = vld [vmem:[%s1 + $0xb8] sm:$0xff]
      %v811 = vld [vmem:[%s1 + $0xc0] sm:$0xff]
      %v812 = vld [vmem:[%s1 + $0xc8] sm:$0xff]
      %v813 = vld [vmem:[%s1 + $0xd0] sm:$0xff]
      %v814 = vld [vmem:[%s1 + $0xd8] sm:$0xff]
      %v815 = vld [vmem:[%s1 + $0xe0] sm:$0xff]
      %v816 = vld [vmem:[%s1 + $0xe8] sm:$0xff]
      %v817 = vld [vmem:[%s1 + $0xf0] sm:$0xff]
      %v818 = vld [vmem:[%s1 + $0xf8] sm:$0xff]
      %v819 = vld [vmem:[%s1 + $0x100] sm:$0xff]
      %v820 = vld [vmem:[%s1 + $0x108] sm:$0xff]
      %v821 = vld [vmem:[%s1 + $0x110] sm:$0xff]
      %v822 = vld [vmem:[%s1 + $0x118] sm:$0xff]
      %v823 = vld [vmem:[%s1 + $0x120] sm:$0xff]
      %v824 = vld [vmem:[%s1 + $0x128] sm:$0xff]
      %v825 = vld [vmem:[%s1 + $0x130] sm:$0xff]
      %v826 = vld [vmem:[%s1 + $0x138] sm:$0xff]
      %v827 = vld [vmem:[%s1 + $0x140] sm:$0xff]
      %v828 = vld [vmem:[%s1 + $0x148] sm:$0xff]
      %v829 = vld [vmem:[%s1 + $0x150] sm:$0xff]
      %v830 = vld [vmem:[%s1 + $0x158] sm:$0xff]
      %v831 = vld [vmem:[%s1 + $0x160] sm:$0xff]
      %v832 = vld [vmem:[%s1 + $0x168] sm:$0xff]
      %v833 = vld [vmem:[%s1 + $0x170] sm:$0xff]
      %v834 = vld [vmem:[%s1 + $0x178] sm:$0xff]
      %v835 = vld [vmem:[%s432] sm:$0xff]
      %v836 = vld [vmem:[%s432 + $0x8] sm:$0xff]
      %v837 = vld [vmem:[%s432 + $0x10] sm:$0x3]
      %v838 = vld [vmem:[%s432 + $0x18] sm:$0xff]
      %v839 = vld [vmem:[%s432 + $0x20] sm:$0xff]
      %v840 = vld [vmem:[%s432 + $0x28] sm:$0x3]
      %v841 = vld [vmem:[%s432 + $0x30] sm:$0xff]
      %v842 = vld [vmem:[%s432 + $0x38] sm:$0xff]
      %v843 = vld [vmem:[%s432 + $0x40] sm:$0x3]
      %v844 = vld [vmem:[%s432 + $0x48] sm:$0xff]
      %v845 = vld [vmem:[%s432 + $0x50] sm:$0xff]
      %v846 = vld [vmem:[%s432 + $0x58] sm:$0x3]
      %v847 = vld [vmem:[%s432 + $0x60] sm:$0xff]
      %v848 = vld [vmem:[%s432 + $0x68] sm:$0xff]
      %v849 = vld [vmem:[%s432 + $0x70] sm:$0x3]
      %v850 = vld [vmem:[%s432 + $0x78] sm:$0xff]
      %v851 = vld [vmem:[%s432 + $0x80] sm:$0xff]
      %v852 = vld [vmem:[%s432 + $0x88] sm:$0x3]
      %v853 = vld [vmem:[%s432 + $0x90] sm:$0xff]
      %v854 = vld [vmem:[%s432 + $0x98] sm:$0xff]
      %v855 = vld [vmem:[%s432 + $0xa0] sm:$0x3]
      %v856 = vld [vmem:[%s432 + $0xa8] sm:$0xff]
      %v857 = vld [vmem:[%s432 + $0xb0] sm:$0xff]
      %v858 = vld [vmem:[%s432 + $0xb8] sm:$0x3]
      %v859 = vld [vmem:[%s432 + $0xc0] sm:$0xff]
      %v860 = vld [vmem:[%s432 + $0xc8] sm:$0xff]
      %v861 = vld [vmem:[%s432 + $0xd0] sm:$0x3]
      %v862 = vld [vmem:[%s432 + $0xd8] sm:$0xff]
      %v863 = vld [vmem:[%s432 + $0xe0] sm:$0xff]
      %v864 = vld [vmem:[%s432 + $0xe8] sm:$0x3]
      %v865 = vld [vmem:[%s432 + $0xf0] sm:$0xff]
      %v866 = vld [vmem:[%s432 + $0xf8] sm:$0xff]
      %v867 = vld [vmem:[%s432 + $0x100] sm:$0x3]
      %v868 = vld [vmem:[%s432 + $0x108] sm:$0xff]
      %v869 = vld [vmem:[%s432 + $0x110] sm:$0xff]
      %v870 = vld [vmem:[%s432 + $0x118] sm:$0x3]
      %v871 = vld [vmem:[%s432 + $0x120] sm:$0xff]
      %v872 = vld [vmem:[%s432 + $0x128] sm:$0xff]
      %v873 = vld [vmem:[%s432 + $0x130] sm:$0x3]
      %v874 = vld [vmem:[%s432 + $0x138] sm:$0xff]
      %v875 = vld [vmem:[%s432 + $0x140] sm:$0xff]
      %v876 = vld [vmem:[%s432 + $0x148] sm:$0x3]
      %v877 = vld [vmem:[%s432 + $0x150] sm:$0xff]
      %v878 = vld [vmem:[%s432 + $0x158] sm:$0xff]
      %v879 = vld [vmem:[%s432 + $0x160] sm:$0x3]
      %v880 = vld [vmem:[%s432 + $0x168] sm:$0xff]
      %v881 = vld [vmem:[%s432 + $0x170] sm:$0xff]
      %v882 = vld [vmem:[%s432 + $0x178] sm:$0x3]
      %v931 = vrot.slane %v835, 1
      %v932 = vrot.slane %v836, 1
      %v933 = vsel %vm561, %v931, %v932
      %v934 = vrot.slane %v837, 1
      %v935 = vsel %vm561, %v932, %v934
      %v936 = vrot.slane %v838, 1
      %v937 = vrot.slane %v839, 1
      %v938 = vsel %vm561, %v936, %v937
      %v939 = vrot.slane %v840, 1
      %v940 = vsel %vm561, %v937, %v939
      %v941 = vrot.slane %v841, 1
      %v942 = vrot.slane %v842, 1
      %v943 = vsel %vm561, %v941, %v942
      %v944 = vrot.slane %v843, 1
      %v945 = vsel %vm561, %v942, %v944
      %v946 = vrot.slane %v844, 1
      %v947 = vrot.slane %v845, 1
      %v948 = vsel %vm561, %v946, %v947
      %v949 = vrot.slane %v846, 1
      %v950 = vsel %vm561, %v947, %v949
      %v951 = vrot.slane %v847, 1
      %v952 = vrot.slane %v848, 1
      %v953 = vsel %vm561, %v951, %v952
      %v954 = vrot.slane %v849, 1
      %v955 = vsel %vm561, %v952, %v954
      %v956 = vrot.slane %v850, 1
      %v957 = vrot.slane %v851, 1
      %v958 = vsel %vm561, %v956, %v957
      %v959 = vrot.slane %v852, 1
      %v960 = vsel %vm561, %v957, %v959
      %v961 = vrot.slane %v853, 1
      %v962 = vrot.slane %v854, 1
      %v963 = vsel %vm561, %v961, %v962
      %v964 = vrot.slane %v855, 1
      %v965 = vsel %vm561, %v962, %v964
      %v966 = vrot.slane %v856, 1
      %v967 = vrot.slane %v857, 1
      %v968 = vsel %vm561, %v966, %v967
      %v969 = vrot.slane %v858, 1
      %v970 = vsel %vm561, %v967, %v969
      %v971 = vrot.slane %v859, 1
      %v972 = vrot.slane %v860, 1
      %v973 = vsel %vm561, %v971, %v972
      %v974 = vrot.slane %v861, 1
      %v975 = vsel %vm561, %v972, %v974
      %v976 = vrot.slane %v862, 1
      %v977 = vrot.slane %v863, 1
      %v978 = vsel %vm561, %v976, %v977
      %v979 = vrot.slane %v864, 1
      %v980 = vsel %vm561, %v977, %v979
      %v981 = vrot.slane %v865, 1
      %v982 = vrot.slane %v866, 1
      %v983 = vsel %vm561, %v981, %v982
      %v984 = vrot.slane %v867, 1
      %v985 = vsel %vm561, %v982, %v984
      %v986 = vrot.slane %v868, 1
      %v987 = vrot.slane %v869, 1
      %v988 = vsel %vm561, %v986, %v987
      %v989 = vrot.slane %v870, 1
      %v990 = vsel %vm561, %v987, %v989
      %v991 = vrot.slane %v871, 1
      %v992 = vrot.slane %v872, 1
      %v993 = vsel %vm561, %v991, %v992
      %v994 = vrot.slane %v873, 1
      %v995 = vsel %vm561, %v992, %v994
      %v996 = vrot.slane %v874, 1
      %v997 = vrot.slane %v875, 1
      %v998 = vsel %vm561, %v996, %v997
      %v999 = vrot.slane %v876, 1
      %v1000 = vsel %vm561, %v997, %v999
      %v1001 = vrot.slane %v877, 1
      %v1002 = vrot.slane %v878, 1
      %v1003 = vsel %vm561, %v1001, %v1002
      %v1004 = vrot.slane %v879, 1
      %v1005 = vsel %vm561, %v1002, %v1004
      %v1006 = vrot.slane %v880, 1
      %v1007 = vrot.slane %v881, 1
      %v1008 = vsel %vm561, %v1006, %v1007
      %v1009 = vrot.slane %v882, 1
      %v1010 = vsel %vm561, %v1007, %v1009
      %v1043 = vrot.slane %v835, 2
      %v1044 = vrot.slane %v836, 2
      %v1045 = vsel %vm674, %v1043, %v1044
      %v1046 = vrot.slane %v837, 2
      %v1047 = vsel %vm674, %v1044, %v1046
      %v1048 = vrot.slane %v838, 2
      %v1049 = vrot.slane %v839, 2
      %v1050 = vsel %vm674, %v1048, %v1049
      %v1051 = vrot.slane %v840, 2
      %v1052 = vsel %vm674, %v1049, %v1051
      %v1053 = vrot.slane %v841, 2
      %v1054 = vrot.slane %v842, 2
      %v1055 = vsel %vm674, %v1053, %v1054
      %v1056 = vrot.slane %v843, 2
      %v1057 = vsel %vm674, %v1054, %v1056
      %v1058 = vrot.slane %v844, 2
      %v1059 = vrot.slane %v845, 2
      %v1060 = vsel %vm674, %v1058, %v1059
      %v1061 = vrot.slane %v846, 2
      %v1062 = vsel %vm674, %v1059, %v1061
      %v1063 = vrot.slane %v847, 2
      %v1064 = vrot.slane %v848, 2
      %v1065 = vsel %vm674, %v1063, %v1064
      %v1066 = vrot.slane %v849, 2
      %v1067 = vsel %vm674, %v1064, %v1066
      %v1068 = vrot.slane %v850, 2
      %v1069 = vrot.slane %v851, 2
      %v1070 = vsel %vm674, %v1068, %v1069
      %v1071 = vrot.slane %v852, 2
      %v1072 = vsel %vm674, %v1069, %v1071
      %v1073 = vrot.slane %v853, 2
      %v1074 = vrot.slane %v854, 2
      %v1075 = vsel %vm674, %v1073, %v1074
      %v1076 = vrot.slane %v855, 2
      %v1077 = vsel %vm674, %v1074, %v1076
      %v1078 = vrot.slane %v856, 2
      %v1079 = vrot.slane %v857, 2
      %v1080 = vsel %vm674, %v1078, %v1079
      %v1081 = vrot.slane %v858, 2
      %v1082 = vsel %vm674, %v1079, %v1081
      %v1083 = vrot.slane %v859, 2
      %v1084 = vrot.slane %v860, 2
      %v1085 = vsel %vm674, %v1083, %v1084
      %v1086 = vrot.slane %v861, 2
      %v1087 = vsel %vm674, %v1084, %v1086
      %v1088 = vrot.slane %v862, 2
      %v1089 = vrot.slane %v863, 2
      %v1090 = vsel %vm674, %v1088, %v1089
      %v1091 = vrot.slane %v864, 2
      %v1092 = vsel %vm674, %v1089, %v1091
      %v1093 = vrot.slane %v865, 2
      %v1094 = vrot.slane %v866, 2
      %v1095 = vsel %vm674, %v1093, %v1094
      %v1096 = vrot.slane %v867, 2
      %v1097 = vsel %vm674, %v1094, %v1096
      %v1098 = vrot.slane %v868, 2
      %v1099 = vrot.slane %v869, 2
      %v1100 = vsel %vm674, %v1098, %v1099
      %v1101 = vrot.slane %v870, 2
      %v1102 = vsel %vm674, %v1099, %v1101
      %v1103 = vrot.slane %v871, 2
      %v1104 = vrot.slane %v872, 2
      %v1105 = vsel %vm674, %v1103, %v1104
      %v1106 = vrot.slane %v873, 2
      %v1107 = vsel %vm674, %v1104, %v1106
      %v1108 = vrot.slane %v874, 2
      %v1109 = vrot.slane %v875, 2
      %v1110 = vsel %vm674, %v1108, %v1109
      %v1111 = vrot.slane %v876, 2
      %v1112 = vsel %vm674, %v1109, %v1111
      %v1113 = vrot.slane %v877, 2
      %v1114 = vrot.slane %v878, 2
      %v1115 = vsel %vm674, %v1113, %v1114
      %v1116 = vrot.slane %v879, 2
      %v1117 = vsel %vm674, %v1114, %v1116
      %v1118 = vrot.slane %v880, 2
      %v1119 = vrot.slane %v881, 2
      %v1120 = vsel %vm674, %v1118, %v1119
      %v1121 = vrot.slane %v882, 2
      %v1122 = vsel %vm674, %v1119, %v1121
      %s1155 = scalar_lea.vmem %s1, 384
      %v1156 = vld [vmem:[%s1155] sm:$0xff]
      %v1157 = vld [vmem:[%s1155 + $0x8] sm:$0xff]
      %v1158 = vld [vmem:[%s1155 + $0x10] sm:$0xff]
      %v1159 = vld [vmem:[%s1155 + $0x18] sm:$0xff]
      %v1160 = vld [vmem:[%s1155 + $0x20] sm:$0xff]
      %v1161 = vld [vmem:[%s1155 + $0x28] sm:$0xff]
      %v1162 = vld [vmem:[%s1155 + $0x30] sm:$0xff]
      %v1163 = vld [vmem:[%s1155 + $0x38] sm:$0xff]
      %v1164 = vld [vmem:[%s1155 + $0x40] sm:$0xff]
      %v1165 = vld [vmem:[%s1155 + $0x48] sm:$0xff]
      %v1166 = vld [vmem:[%s1155 + $0x50] sm:$0xff]
      %v1167 = vld [vmem:[%s1155 + $0x58] sm:$0xff]
      %v1168 = vld [vmem:[%s1155 + $0x60] sm:$0xff]
      %v1169 = vld [vmem:[%s1155 + $0x68] sm:$0xff]
      %v1170 = vld [vmem:[%s1155 + $0x70] sm:$0xff]
      %v1171 = vld [vmem:[%s1155 + $0x78] sm:$0xff]
      %v1172 = vld [vmem:[%s1155 + $0x80] sm:$0xff]
      %v1173 = vld [vmem:[%s1155 + $0x88] sm:$0xff]
      %v1174 = vld [vmem:[%s1155 + $0x90] sm:$0xff]
      %v1175 = vld [vmem:[%s1155 + $0x98] sm:$0xff]
      %v1176 = vld [vmem:[%s1155 + $0xa0] sm:$0xff]
      %v1177 = vld [vmem:[%s1155 + $0xa8] sm:$0xff]
      %v1178 = vld [vmem:[%s1155 + $0xb0] sm:$0xff]
      %v1179 = vld [vmem:[%s1155 + $0xb8] sm:$0xff]
      %v1180 = vld [vmem:[%s1155 + $0xc0] sm:$0xff]
      %v1181 = vld [vmem:[%s1155 + $0xc8] sm:$0xff]
      %v1182 = vld [vmem:[%s1155 + $0xd0] sm:$0xff]
      %v1183 = vld [vmem:[%s1155 + $0xd8] sm:$0xff]
      %v1184 = vld [vmem:[%s1155 + $0xe0] sm:$0xff]
      %v1185 = vld [vmem:[%s1155 + $0xe8] sm:$0xff]
      %v1186 = vld [vmem:[%s1155 + $0xf0] sm:$0xff]
      %v1187 = vld [vmem:[%s1155 + $0xf8] sm:$0xff]
      %v1188 = vld [vmem:[%s1155 + $0x100] sm:$0xff]
      %v1189 = vld [vmem:[%s1155 + $0x108] sm:$0xff]
      %v1190 = vld [vmem:[%s1155 + $0x110] sm:$0xff]
      %v1191 = vld [vmem:[%s1155 + $0x118] sm:$0xff]
      %v1192 = vld [vmem:[%s1155 + $0x120] sm:$0xff]
      %v1193 = vld [vmem:[%s1155 + $0x128] sm:$0xff]
      %v1194 = vld [vmem:[%s1155 + $0x130] sm:$0xff]
      %v1195 = vld [vmem:[%s1155 + $0x138] sm:$0xff]
      %v1196 = vld [vmem:[%s1155 + $0x140] sm:$0xff]
      %v1197 = vld [vmem:[%s1155 + $0x148] sm:$0xff]
      %v1198 = vld [vmem:[%s1155 + $0x150] sm:$0xff]
      %v1199 = vld [vmem:[%s1155 + $0x158] sm:$0xff]
      %v1200 = vld [vmem:[%s1155 + $0x160] sm:$0xff]
      %v1201 = vld [vmem:[%s1155 + $0x168] sm:$0xff]
      %v1202 = vld [vmem:[%s1155 + $0x170] sm:$0xff]
      %v1203 = vld [vmem:[%s1155 + $0x178] sm:$0xff]
      %1204 = vmatprep.subr.mxu0 0.0
      %1205 = vmatpush1.msra.mxu0 %v1156
      %1206 = vmatprep.subr.mxu0 0.0
      %1207 = vmatpush1.msra.mxu0 %v1157
      %1208 = vmatprep.subr.mxu0 0.0
      %1209 = vmatpush1.msra.mxu0 %v1158
      %1210 = vmatprep.subr.mxu0 0.0
      %1211 = vmatpush1.msra.mxu0 %v1159
      %1212 = vmatprep.subr.mxu0 0.0
      %1213 = vmatpush1.msra.mxu0 %v1160
      %1214 = vmatprep.subr.mxu0 0.0
      %1215 = vmatpush1.msra.mxu0 %v1161
      %1216 = vmatprep.subr.mxu0 0.0
      %1217 = vmatpush1.msra.mxu0 %v1162
      %1218 = vmatprep.subr.mxu0 0.0
      %1219 = vmatpush1.msra.mxu0 %v1163
      %1220 = vmatprep.subr.mxu0 0.0
      %1221 = vmatpush1.msra.mxu0 %v1164
      %1222 = vmatprep.subr.mxu0 0.0
      %1223 = vmatpush1.msra.mxu0 %v1165
      %1224 = vmatprep.subr.mxu0 0.0
      %1225 = vmatpush1.msra.mxu0 %v1166
      %1226 = vmatprep.subr.mxu0 0.0
      %1227 = vmatpush1.msra.mxu0 %v1167
      %1228 = vmatprep.subr.mxu0 0.0
      %1229 = vmatpush1.msra.mxu0 %v1168
      %1230 = vmatprep.subr.mxu0 0.0
      %1231 = vmatpush1.msra.mxu0 %v1169
      %1232 = vmatprep.subr.mxu0 0.0
      %1233 = vmatpush1.msra.mxu0 %v1170
      %1234 = vmatprep.subr.mxu0 0.0
      %1235 = vmatpush1.msra.mxu0 %v1171
      %1236 = vmatprep.subr.mxu0 0.0
      %1237 = vmatpush1.msra.mxu0 %v1172
      %1238 = vmatprep.subr.mxu0 0.0
      %1239 = vmatpush1.msra.mxu0 %v1173
      %1240 = vmatprep.subr.mxu0 0.0
      %1241 = vmatpush1.msra.mxu0 %v1174
      %1242 = vmatprep.subr.mxu0 0.0
      %1243 = vmatpush1.msra.mxu0 %v1175
      %1244 = vmatprep.subr.mxu0 0.0
      %1245 = vmatpush1.msra.mxu0 %v1176
      %1246 = vmatprep.subr.mxu0 0.0
      %1247 = vmatpush1.msra.mxu0 %v1177
      %1248 = vmatprep.subr.mxu0 0.0
      %1249 = vmatpush1.msra.mxu0 %v1178
      %1250 = vmatprep.subr.mxu0 0.0
      %1251 = vmatpush1.msra.mxu0 %v1179
      %1252 = vmatprep.subr.mxu0 0.0
      %1253 = vmatpush1.msra.mxu0 %v1180
      %1254 = vmatprep.subr.mxu0 0.0
      %1255 = vmatpush1.msra.mxu0 %v1181
      %1256 = vmatprep.subr.mxu0 0.0
      %1257 = vmatpush1.msra.mxu0 %v1182
      %1258 = vmatprep.subr.mxu0 0.0
      %1259 = vmatpush1.msra.mxu0 %v1183
      %1260 = vmatprep.subr.mxu0 0.0
      %1261 = vmatpush1.msra.mxu0 %v1184
      %1262 = vmatprep.subr.mxu0 0.0
      %1263 = vmatpush1.msra.mxu0 %v1185
      %1264 = vmatprep.subr.mxu0 0.0
      %1265 = vmatpush1.msra.mxu0 %v1186
      %1266 = vmatprep.subr.mxu0 0.0
      %1267 = vmatpush1.msra.mxu0 %v1187
      %1268 = vmatprep.mubr.f32.mxu0 %v933
      %1269 = vmatmul.mubr.f32.gmra.mrb[0].mxu0 %v835
      %v1270 = vpop.f32.mrb[0].mxu0
      %v1271 = vadd.f32 0.0, %v1270
      %v1272 = vpop.f32.mrb[0].mxu0
      %1273 = vmatprep.mubr.f32.mxu0 %v935
      %1274 = vmatmul.mubr.f32.gmra.mrb[0].mxu0 %v836
      %v1275 = vpop.f32.mrb[0].mxu0
      %v1276 = vadd.f32 0.0, %v1275
      %v1277 = vpop.f32.mrb[0].mxu0
      %1278 = vmatprep.mubr.f32.mxu0 %v938
      %1279 = vmatmul.mubr.f32.gmra.mrb[0].mxu0 %v838
      %v1280 = vpop.f32.mrb[0].mxu0
      %v1281 = vadd.f32 0.0, %v1280
      %v1282 = vpop.f32.mrb[0].mxu0
      %1283 = vmatprep.mubr.f32.mxu0 %v940
      %1284 = vmatmul.mubr.f32.gmra.mrb[0].mxu0 %v839
      %v1285 = vpop.f32.mrb[0].mxu0
      %v1286 = vadd.f32 0.0, %v1285
      %v1287 = vpop.f32.mrb[0].mxu0
      %1288 = vmatprep.mubr.f32.mxu0 %v943
      %1289 = vmatmul.mubr.f32.gmra.mrb[0].mxu0 %v841
      %v1290 = vpop.f32.mrb[0].mxu0
      %v1291 = vadd.f32 0.0, %v1290
      %v1292 = vpop.f32.mrb[0].mxu0
      %1293 = vmatprep.mubr.f32.mxu0 %v945
      %1294 = vmatmul.mubr.f32.gmra.mrb[0].mxu0 %v842
      %v1295 = vpop.f32.mrb[0].mxu0
      %v1296 = vadd.f32 0.0, %v1295
      %v1297 = vpop.f32.mrb[0].mxu0
      %1298 = vmatprep.mubr.f32.mxu0 %v948
      %1299 = vmatmul.mubr.f32.gmra.mrb[0].mxu0 %v844
      %v1300 = vpop.f32.mrb[0].mxu0
      %v1301 = vadd.f32 0.0, %v1300
      %v1302 = vpop.f32.mrb[0].mxu0
      %1303 = vmatprep.mubr.f32.mxu0 %v950
      %1304 = vmatmul.mubr.f32.gmra.mrb[0].mxu0 %v845
      %v1305 = vpop.f32.mrb[0].mxu0
      %v1306 = vadd.f32 0.0, %v1305
      %v1307 = vpop.f32.mrb[0].mxu0
      %1308 = vmatprep.mubr.f32.mxu0 %v953
      %1309 = vmatmul.mubr.f32.gmra.mrb[0].mxu0 %v847
      %v1310 = vpop.f32.mrb[0].mxu0
      %v1311 = vadd.f32 0.0, %v1310
      %v1312 = vpop.f32.mrb[0].mxu0
      %1313 = vmatprep.mubr.f32.mxu0 %v955
      %1314 = vmatmul.mubr.f32.gmra.mrb[0].mxu0 %v848
      %v1315 = vpop.f32.mrb[0].mxu0
      %v1316 = vadd.f32 0.0, %v1315
      %v1317 = vpop.f32.mrb[0].mxu0
      %1318 = vmatprep.mubr.f32.mxu0 %v958
      %1319 = vmatmul.mubr.f32.gmra.mrb[0].mxu0 %v850
      %v1320 = vpop.f32.mrb[0].mxu0
      %v1321 = vadd.f32 0.0, %v1320
      %v1322 = vpop.f32.mrb[0].mxu0
      %1323 = vmatprep.mubr.f32.mxu0 %v960
      %1324 = vmatmul.mubr.f32.gmra.mrb[0].mxu0 %v851
      %v1325 = vpop.f32.mrb[0].mxu0
      %v1326 = vadd.f32 0.0, %v1325
      %v1327 = vpop.f32.mrb[0].mxu0
      %1328 = vmatprep.mubr.f32.mxu0 %v963
      %1329 = vmatmul.mubr.f32.gmra.mrb[0].mxu0 %v853
      %v1330 = vpop.f32.mrb[0].mxu0
      %v1331 = vadd.f32 0.0, %v1330
      %v1332 = vpop.f32.mrb[0].mxu0
      %1333 = vmatprep.mubr.f32.mxu0 %v965
      %1334 = vmatmul.mubr.f32.gmra.mrb[0].mxu0 %v854
      %v1335 = vpop.f32.mrb[0].mxu0
      %v1336 = vadd.f32 0.0, %v1335
      %v1337 = vpop.f32.mrb[0].mxu0
      %1338 = vmatprep.mubr.f32.mxu0 %v968
      %1339 = vmatmul.mubr.f32.gmra.mrb[0].mxu0 %v856
      %v1340 = vpop.f32.mrb[0].mxu0
      %v1341 = vadd.f32 0.0, %v1340
      %v1342 = vpop.f32.mrb[0].mxu0
      %1343 = vmatprep.mubr.f32.mxu0 %v970
      %1344 = vmatmul.mubr.f32.gmra.mrb[0].mxu0 %v857
      %v1345 = vpop.f32.mrb[0].mxu0
      %v1346 = vadd.f32 0.0, %v1345
      %v1347 = vpop.f32.mrb[0].mxu0
      %1348 = vmatprep.mubr.f32.mxu0 %v973
      %1349 = vmatmul.mubr.f32.gmra.mrb[0].mxu0 %v859
      %v1350 = vpop.f32.mrb[0].mxu0
      %v1351 = vadd.f32 0.0, %v1350
      %v1352 = vpop.f32.mrb[0].mxu0
      %1353 = vmatprep.mubr.f32.mxu0 %v975
      %1354 = vmatmul.mubr.f32.gmra.mrb[0].mxu0 %v860
      %v1355 = vpop.f32.mrb[0].mxu0
      %v1356 = vadd.f32 0.0, %v1355
      %v1357 = vpop.f32.mrb[0].mxu0
      %1358 = vmatprep.mubr.f32.mxu0 %v978
      %1359 = vmatmul.mubr.f32.gmra.mrb[0].mxu0 %v862
      %v1360 = vpop.f32.mrb[0].mxu0
      %v1361 = vadd.f32 0.0, %v1360
      %v1362 = vpop.f32.mrb[0].mxu0
      %1363 = vmatprep.mubr.f32.mxu0 %v980
      %1364 = vmatmul.mubr.f32.gmra.mrb[0].mxu0 %v863
      %v1365 = vpop.f32.mrb[0].mxu0
      %v1366 = vadd.f32 0.0, %v1365
      %v1367 = vpop.f32.mrb[0].mxu0
      %1368 = vmatprep.mubr.f32.mxu0 %v983
      %1369 = vmatmul.mubr.f32.gmra.mrb[0].mxu0 %v865
      %v1370 = vpop.f32.mrb[0].mxu0
      %v1371 = vadd.f32 0.0, %v1370
      %v1372 = vpop.f32.mrb[0].mxu0
      %1373 = vmatprep.mubr.f32.mxu0 %v985
      %1374 = vmatmul.mubr.f32.gmra.mrb[0].mxu0 %v866
      %v1375 = vpop.f32.mrb[0].mxu0
      %v1376 = vadd.f32 0.0, %v1375
      %v1377 = vpop.f32.mrb[0].mxu0
      %1378 = vmatprep.mubr.f32.mxu0 %v988
      %1379 = vmatmul.mubr.f32.gmra.mrb[0].mxu0 %v868
      %v1380 = vpop.f32.mrb[0].mxu0
      %v1381 = vadd.f32 0.0, %v1380
      %v1382 = vpop.f32.mrb[0].mxu0
      %1383 = vmatprep.mubr.f32.mxu0 %v990
      %1384 = vmatmul.mubr.f32.gmra.mrb[0].mxu0 %v869
      %v1385 = vpop.f32.mrb[0].mxu0
      %v1386 = vadd.f32 0.0, %v1385
      %v1387 = vpop.f32.mrb[0].mxu0
      %1388 = vmatprep.mubr.f32.mxu0 %v993
      %1389 = vmatmul.mubr.f32.gmra.mrb[0].mxu0 %v871
      %v1390 = vpop.f32.mrb[0].mxu0
      %v1391 = vadd.f32 0.0, %v1390
      %v1392 = vpop.f32.mrb[0].mxu0
      %1393 = vmatprep.mubr.f32.mxu0 %v995
      %1394 = vmatmul.mubr.f32.gmra.mrb[0].mxu0 %v872
      %v1395 = vpop.f32.mrb[0].mxu0
      %v1396 = vadd.f32 0.0, %v1395
      %v1397 = vpop.f32.mrb[0].mxu0
      %1398 = vmatprep.mubr.f32.mxu0 %v998
      %1399 = vmatmul.mubr.f32.gmra.mrb[0].mxu0 %v874
      %v1400 = vpop.f32.mrb[0].mxu0
      %v1401 = vadd.f32 0.0, %v1400
      %v1402 = vpop.f32.mrb[0].mxu0
      %1403 = vmatprep.mubr.f32.mxu0 %v1000
      %1404 = vmatmul.mubr.f32.gmra.mrb[0].mxu0 %v875
      %v1405 = vpop.f32.mrb[0].mxu0
      %v1406 = vadd.f32 0.0, %v1405
      %v1407 = vpop.f32.mrb[0].mxu0
      %1408 = vmatprep.mubr.f32.mxu0 %v1003
      %1409 = vmatmul.mubr.f32.gmra.mrb[0].mxu0 %v877
      %v1410 = vpop.f32.mrb[0].mxu0
      %v1411 = vadd.f32 0.0, %v1410
      %v1412 = vpop.f32.mrb[0].mxu0
      %1413 = vmatprep.mubr.f32.mxu0 %v1005
      %1414 = vmatmul.mubr.f32.gmra.mrb[0].mxu0 %v878
      %v1415 = vpop.f32.mrb[0].mxu0
      %v1416 = vadd.f32 0.0, %v1415
      %v1417 = vpop.f32.mrb[0].mxu0
      %1418 = vmatprep.mubr.f32.mxu0 %v1008
      %1419 = vmatmul.mubr.f32.gmra.mrb[0].mxu0 %v880
      %v1420 = vpop.f32.mrb[0].mxu0
      %v1421 = vadd.f32 0.0, %v1420
      %v1422 = vpop.f32.mrb[0].mxu0
      %1423 = vmatprep.mubr.f32.mxu0 %v1010
      %1424 = vmatmul.mubr.f32.gmra.mrb[0].mxu0 %v881
      %v1425 = vpop.f32.mrb[0].mxu0
      %v1426 = vadd.f32 0.0, %v1425
      %v1427 = vpop.f32.mrb[0].mxu0
      %1428 = vdwg.mxu0
      %1429 = vmatprep.subr.mxu0 0.0
      %1430 = vmatpush1.msra.mxu0 %v1188
      %1431 = vmatprep.subr.mxu0 0.0
      %1432 = vmatpush1.msra.mxu0 %v1189
      %1433 = vmatprep.subr.mxu0 0.0
      %1434 = vmatpush1.msra.mxu0 %v1190
      %1435 = vmatprep.subr.mxu0 0.0
      %1436 = vmatpush1.msra.mxu0 %v1191
      %1437 = vmatprep.subr.mxu0 0.0
      %1438 = vmatpush1.msra.mxu0 %v1192
      %1439 = vmatprep.subr.mxu0 0.0
      %1440 = vmatpush1.msra.mxu0 %v1193
      %1441 = vmatprep.subr.mxu0 0.0
      %1442 = vmatpush1.msra.mxu0 %v1194
      %1443 = vmatprep.subr.mxu0 0.0
      %1444 = vmatpush1.msra.mxu0 %v1195
      %1445 = vmatprep.subr.mxu0 0.0
      %1446 = vmatpush1.msra.mxu0 %v1196
      %1447 = vmatprep.subr.mxu0 0.0
      %1448 = vmatpush1.msra.mxu0 %v1197
      %1449 = vmatprep.subr.mxu0 0.0
      %1450 = vmatpush1.msra.mxu0 %v1198
      %1451 = vmatprep.subr.mxu0 0.0
      %1452 = vmatpush1.msra.mxu0 %v1199
      %1453 = vmatprep.subr.mxu0 0.0
      %1454 = vmatpush1.msra.mxu0 %v1200
      %1455 = vmatprep.subr.mxu0 0.0
      %1456 = vmatpush1.msra.mxu0 %v1201
      %1457 = vmatprep.subr.mxu0 0.0
      %1458 = vmatpush1.msra.mxu0 %v1202
      %1459 = vmatprep.subr.mxu0 0.0
      %1460 = vmatpush1.msra.mxu0 %v1203
      %1461 = vmatprep.subr.mxu0 0.0
      %1462 = vmatpush1.msra.mxu0 0.0
      %1463 = vmatprep.subr.mxu0 0.0
      %1464 = vmatpush1.msra.mxu0 0.0
      %1465 = vmatprep.subr.mxu0 0.0
      %1466 = vmatpush1.msra.mxu0 0.0
      %1467 = vmatprep.subr.mxu0 0.0
      %1468 = vmatpush1.msra.mxu0 0.0
      %1469 = vmatprep.subr.mxu0 0.0
      %1470 = vmatpush1.msra.mxu0 0.0
      %1471 = vmatprep.subr.mxu0 0.0
      %1472 = vmatpush1.msra.mxu0 0.0
      %1473 = vmatprep.subr.mxu0 0.0
      %1474 = vmatpush1.msra.mxu0 0.0
      %1475 = vmatprep.subr.mxu0 0.0
      %1476 = vmatpush1.msra.mxu0 0.0
      %1477 = vmatprep.subr.mxu0 0.0
      %1478 = vmatpush1.msra.mxu0 0.0
      %1479 = vmatprep.subr.mxu0 0.0
      %1480 = vmatpush1.msra.mxu0 0.0
      %1481 = vmatprep.subr.mxu0 0.0
      %1482 = vmatpush1.msra.mxu0 0.0
      %1483 = vmatprep.subr.mxu0 0.0
      %1484 = vmatpush1.msra.mxu0 0.0
      %1485 = vmatprep.subr.mxu0 0.0
      %1486 = vmatpush1.msra.mxu0 0.0
      %1487 = vmatprep.subr.mxu0 0.0
      %1488 = vmatpush1.msra.mxu0 0.0
      %1489 = vmatprep.subr.mxu0 0.0
      %1490 = vmatpush1.msra.mxu0 0.0
      %1491 = vmatprep.subr.mxu0 0.0
      %1492 = vmatpush1.msra.mxu0 0.0
      %1493 = vmatprep.mubr.f32.mxu0 0.0
      %1494 = vmatmul.mubr.f32.gmra.mrb[0].mxu0 %v1045
      %v1495 = vpop.f32.mrb[0].mxu0
      %v1496 = vadd.f32 %v1271, %v1495
      %v1497 = vpop.f32.mrb[0].mxu0
      %1498 = vmatprep.mubr.f32.mxu0 0.0
      %1499 = vmatmul.mubr.f32.gmra.mrb[0].mxu0 %v1047
      %v1500 = vpop.f32.mrb[0].mxu0
      %v1501 = vadd.f32 %v1276, %v1500
      %v1502 = vpop.f32.mrb[0].mxu0
      %1503 = vmatprep.mubr.f32.mxu0 0.0
      %1504 = vmatmul.mubr.f32.gmra.mrb[0].mxu0 %v1050
      %v1505 = vpop.f32.mrb[0].mxu0
      %v1506 = vadd.f32 %v1281, %v1505
      %v1507 = vpop.f32.mrb[0].mxu0
      %1508 = vmatprep.mubr.f32.mxu0 0.0
      %1509 = vmatmul.mubr.f32.gmra.mrb[0].mxu0 %v1052
      %v1510 = vpop.f32.mrb[0].mxu0
      %v1511 = vadd.f32 %v1286, %v1510
      %v1512 = vpop.f32.mrb[0].mxu0
      %1513 = vmatprep.mubr.f32.mxu0 0.0
      %1514 = vmatmul.mubr.f32.gmra.mrb[0].mxu0 %v1055
      %v1515 = vpop.f32.mrb[0].mxu0
      %v1516 = vadd.f32 %v1291, %v1515
      %v1517 = vpop.f32.mrb[0].mxu0
      %1518 = vmatprep.mubr.f32.mxu0 0.0
      %1519 = vmatmul.mubr.f32.gmra.mrb[0].mxu0 %v1057
      %v1520 = vpop.f32.mrb[0].mxu0
      %v1521 = vadd.f32 %v1296, %v1520
      %v1522 = vpop.f32.mrb[0].mxu0
      %1523 = vmatprep.mubr.f32.mxu0 0.0
      %1524 = vmatmul.mubr.f32.gmra.mrb[0].mxu0 %v1060
      %v1525 = vpop.f32.mrb[0].mxu0
      %v1526 = vadd.f32 %v1301, %v1525
      %v1527 = vpop.f32.mrb[0].mxu0
      %1528 = vmatprep.mubr.f32.mxu0 0.0
      %1529 = vmatmul.mubr.f32.gmra.mrb[0].mxu0 %v1062
      %v1530 = vpop.f32.mrb[0].mxu0
      %v1531 = vadd.f32 %v1306, %v1530
      %v1532 = vpop.f32.mrb[0].mxu0
      %1533 = vmatprep.mubr.f32.mxu0 0.0
      %1534 = vmatmul.mubr.f32.gmra.mrb[0].mxu0 %v1065
      %v1535 = vpop.f32.mrb[0].mxu0
      %v1536 = vadd.f32 %v1311, %v1535
      %v1537 = vpop.f32.mrb[0].mxu0
      %1538 = vmatprep.mubr.f32.mxu0 0.0
      %1539 = vmatmul.mubr.f32.gmra.mrb[0].mxu0 %v1067
      %v1540 = vpop.f32.mrb[0].mxu0
      %v1541 = vadd.f32 %v1316, %v1540
      %v1542 = vpop.f32.mrb[0].mxu0
      %1543 = vmatprep.mubr.f32.mxu0 0.0
      %1544 = vmatmul.mubr.f32.gmra.mrb[0].mxu0 %v1070
      %v1545 = vpop.f32.mrb[0].mxu0
      %v1546 = vadd.f32 %v1321, %v1545
      %v1547 = vpop.f32.mrb[0].mxu0
      %1548 = vmatprep.mubr.f32.mxu0 0.0
      %1549 = vmatmul.mubr.f32.gmra.mrb[0].mxu0 %v1072
      %v1550 = vpop.f32.mrb[0].mxu0
      %v1551 = vadd.f32 %v1326, %v1550
      %v1552 = vpop.f32.mrb[0].mxu0
      %1553 = vmatprep.mubr.f32.mxu0 0.0
      %1554 = vmatmul.mubr.f32.gmra.mrb[0].mxu0 %v1075
      %v1555 = vpop.f32.mrb[0].mxu0
      %v1556 = vadd.f32 %v1331, %v1555
      %v1557 = vpop.f32.mrb[0].mxu0
      %1558 = vmatprep.mubr.f32.mxu0 0.0
      %1559 = vmatmul.mubr.f32.gmra.mrb[0].mxu0 %v1077
      %v1560 = vpop.f32.mrb[0].mxu0
      %v1561 = vadd.f32 %v1336, %v1560
      %v1562 = vpop.f32.mrb[0].mxu0
      %1563 = vmatprep.mubr.f32.mxu0 0.0
      %1564 = vmatmul.mubr.f32.gmra.mrb[0].mxu0 %v1080
      %v1565 = vpop.f32.mrb[0].mxu0
      %v1566 = vadd.f32 %v1341, %v1565
      %v1567 = vpop.f32.mrb[0].mxu0
      %1568 = vmatprep.mubr.f32.mxu0 0.0
      %1569 = vmatmul.mubr.f32.gmra.mrb[0].mxu0 %v1082
      %v1570 = vpop.f32.mrb[0].mxu0
      %v1571 = vadd.f32 %v1346, %v1570
      %v1572 = vpop.f32.mrb[0].mxu0
      %1573 = vmatprep.mubr.f32.mxu0 0.0
      %1574 = vmatmul.mubr.f32.gmra.mrb[0].mxu0 %v1085
      %v1575 = vpop.f32.mrb[0].mxu0
      %v1576 = vadd.f32 %v1351, %v1575
      %v1577 = vpop.f32.mrb[0].mxu0
      %1578 = vmatprep.mubr.f32.mxu0 0.0
      %1579 = vmatmul.mubr.f32.gmra.mrb[0].mxu0 %v1087
      %v1580 = vpop.f32.mrb[0].mxu0
      %v1581 = vadd.f32 %v1356, %v1580
      %v1582 = vpop.f32.mrb[0].mxu0
      %1583 = vmatprep.mubr.f32.mxu0 0.0
      %1584 = vmatmul.mubr.f32.gmra.mrb[0].mxu0 %v1090
      %v1585 = vpop.f32.mrb[0].mxu0
      %v1586 = vadd.f32 %v1361, %v1585
      %v1587 = vpop.f32.mrb[0].mxu0
      %1588 = vmatprep.mubr.f32.mxu0 0.0
      %1589 = vmatmul.mubr.f32.gmra.mrb[0].mxu0 %v1092
      %v1590 = vpop.f32.mrb[0].mxu0
      %v1591 = vadd.f32 %v1366, %v1590
      %v1592 = vpop.f32.mrb[0].mxu0
      %1593 = vmatprep.mubr.f32.mxu0 0.0
      %1594 = vmatmul.mubr.f32.gmra.mrb[0].mxu0 %v1095
      %v1595 = vpop.f32.mrb[0].mxu0
      %v1596 = vadd.f32 %v1371, %v1595
      %v1597 = vpop.f32.mrb[0].mxu0
      %1598 = vmatprep.mubr.f32.mxu0 0.0
      %1599 = vmatmul.mubr.f32.gmra.mrb[0].mxu0 %v1097
      %v1600 = vpop.f32.mrb[0].mxu0
      %v1601 = vadd.f32 %v1376, %v1600
      %v1602 = vpop.f32.mrb[0].mxu0
      %1603 = vmatprep.mubr.f32.mxu0 0.0
      %1604 = vmatmul.mubr.f32.gmra.mrb[0].mxu0 %v1100
      %v1605 = vpop.f32.mrb[0].mxu0
      %v1606 = vadd.f32 %v1381, %v1605
      %v1607 = vpop.f32.mrb[0].mxu0
      %1608 = vmatprep.mubr.f32.mxu0 0.0
      %1609 = vmatmul.mubr.f32.gmra.mrb[0].mxu0 %v1102
      %v1610 = vpop.f32.mrb[0].mxu0
      %v1611 = vadd.f32 %v1386, %v1610
      %v1612 = vpop.f32.mrb[0].mxu0
      %1613 = vmatprep.mubr.f32.mxu0 0.0
      %1614 = vmatmul.mubr.f32.gmra.mrb[0].mxu0 %v1105
      %v1615 = vpop.f32.mrb[0].mxu0
      %v1616 = vadd.f32 %v1391, %v1615
      %v1617 = vpop.f32.mrb[0].mxu0
      %1618 = vmatprep.mubr.f32.mxu0 0.0
      %1619 = vmatmul.mubr.f32.gmra.mrb[0].mxu0 %v1107
      %v1620 = vpop.f32.mrb[0].mxu0
      %v1621 = vadd.f32 %v1396, %v1620
      %v1622 = vpop.f32.mrb[0].mxu0
      %1623 = vmatprep.mubr.f32.mxu0 0.0
      %1624 = vmatmul.mubr.f32.gmra.mrb[0].mxu0 %v1110
      %v1625 = vpop.f32.mrb[0].mxu0
      %v1626 = vadd.f32 %v1401, %v1625
      %v1627 = vpop.f32.mrb[0].mxu0
      %1628 = vmatprep.mubr.f32.mxu0 0.0
      %1629 = vmatmul.mubr.f32.gmra.mrb[0].mxu0 %v1112
      %v1630 = vpop.f32.mrb[0].mxu0
      %v1631 = vadd.f32 %v1406, %v1630
      %v1632 = vpop.f32.mrb[0].mxu0
      %1633 = vmatprep.mubr.f32.mxu0 0.0
      %1634 = vmatmul.mubr.f32.gmra.mrb[0].mxu0 %v1115
      %v1635 = vpop.f32.mrb[0].mxu0
      %v1636 = vadd.f32 %v1411, %v1635
      %v1637 = vpop.f32.mrb[0].mxu0
      %1638 = vmatprep.mubr.f32.mxu0 0.0
      %1639 = vmatmul.mubr.f32.gmra.mrb[0].mxu0 %v1117
      %v1640 = vpop.f32.mrb[0].mxu0
      %v1641 = vadd.f32 %v1416, %v1640
      %v1642 = vpop.f32.mrb[0].mxu0
      %1643 = vmatprep.mubr.f32.mxu0 0.0
      %1644 = vmatmul.mubr.f32.gmra.mrb[0].mxu0 %v1120
      %v1645 = vpop.f32.mrb[0].mxu0
      %v1646 = vadd.f32 %v1421, %v1645
      %v1647 = vpop.f32.mrb[0].mxu0
      %1648 = vmatprep.mubr.f32.mxu0 0.0
      %1649 = vmatmul.mubr.f32.gmra.mrb[0].mxu0 %v1122
      %v1650 = vpop.f32.mrb[0].mxu0
      %v1651 = vadd.f32 %v1426, %v1650
      %v1652 = vpop.f32.mrb[0].mxu0
      %1653 = vdwg.mxu0
      %1654 = vmatprep.subr.mxu0 0.0
      %1655 = vmatpush1.msra.mxu0 %v787
      %1656 = vmatprep.subr.mxu0 0.0
      %1657 = vmatpush1.msra.mxu0 %v788
      %1658 = vmatprep.subr.mxu0 0.0
      %1659 = vmatpush1.msra.mxu0 %v789
      %1660 = vmatprep.subr.mxu0 0.0
      %1661 = vmatpush1.msra.mxu0 %v790
      %1662 = vmatprep.subr.mxu0 0.0
      %1663 = vmatpush1.msra.mxu0 %v791
      %1664 = vmatprep.subr.mxu0 0.0
      %1665 = vmatpush1.msra.mxu0 %v792
      %1666 = vmatprep.subr.mxu0 0.0
      %1667 = vmatpush1.msra.mxu0 %v793
      %1668 = vmatprep.subr.mxu0 0.0
      %1669 = vmatpush1.msra.mxu0 %v794
      %1670 = vmatprep.subr.mxu0 0.0
      %1671 = vmatpush1.msra.mxu0 %v795
      %1672 = vmatprep.subr.mxu0 0.0
      %1673 = vmatpush1.msra.mxu0 %v796
      %1674 = vmatprep.subr.mxu0 0.0
      %1675 = vmatpush1.msra.mxu0 %v797
      %1676 = vmatprep.subr.mxu0 0.0
      %1677 = vmatpush1.msra.mxu0 %v798
      %1678 = vmatprep.subr.mxu0 0.0
      %1679 = vmatpush1.msra.mxu0 %v799
      %1680 = vmatprep.subr.mxu0 0.0
      %1681 = vmatpush1.msra.mxu0 %v800
      %1682 = vmatprep.subr.mxu0 0.0
      %1683 = vmatpush1.msra.mxu0 %v801
      %1684 = vmatprep.subr.mxu0 0.0
      %1685 = vmatpush1.msra.mxu0 %v802
      %1686 = vmatprep.subr.mxu0 0.0
      %1687 = vmatpush1.msra.mxu0 %v803
      %1688 = vmatprep.subr.mxu0 0.0
      %1689 = vmatpush1.msra.mxu0 %v804
      %1690 = vmatprep.subr.mxu0 0.0
      %1691 = vmatpush1.msra.mxu0 %v805
      %1692 = vmatprep.subr.mxu0 0.0
      %1693 = vmatpush1.msra.mxu0 %v806
      %1694 = vmatprep.subr.mxu0 0.0
      %1695 = vmatpush1.msra.mxu0 %v807
      %1696 = vmatprep.subr.mxu0 0.0
      %1697 = vmatpush1.msra.mxu0 %v808
      %1698 = vmatprep.subr.mxu0 0.0
      %1699 = vmatpush1.msra.mxu0 %v809
      %1700 = vmatprep.subr.mxu0 0.0
      %1701 = vmatpush1.msra.mxu0 %v810
      %1702 = vmatprep.subr.mxu0 0.0
      %1703 = vmatpush1.msra.mxu0 %v811
      %1704 = vmatprep.subr.mxu0 0.0
      %1705 = vmatpush1.msra.mxu0 %v812
      %1706 = vmatprep.subr.mxu0 0.0
      %1707 = vmatpush1.msra.mxu0 %v813
      %1708 = vmatprep.subr.mxu0 0.0
      %1709 = vmatpush1.msra.mxu0 %v814
      %1710 = vmatprep.subr.mxu0 0.0
      %1711 = vmatpush1.msra.mxu0 %v815
      %1712 = vmatprep.subr.mxu0 0.0
      %1713 = vmatpush1.msra.mxu0 %v816
      %1714 = vmatprep.subr.mxu0 0.0
      %1715 = vmatpush1.msra.mxu0 %v817
      %1716 = vmatprep.subr.mxu0 0.0
      %1717 = vmatpush1.msra.mxu0 %v818
      %1718 = vmatprep.mubr.f32.mxu0 %v564
      %1719 = vmatmul.mubr.f32.gmra.mrb[0].mxu0 %v465
      %v1720 = vpop.f32.mrb[0].mxu0
      %v1721 = vadd.f32 %v1496, %v1720
      %v1722 = vpop.f32.mrb[0].mxu0
      %1723 = vmatprep.mubr.f32.mxu0 %v566
      %1724 = vmatmul.mubr.f32.gmra.mrb[0].mxu0 %v466
      %v1725 = vpop.f32.mrb[0].mxu0
      %v1726 = vadd.f32 %v1501, %v1725
      %v1727 = vpop.f32.mrb[0].mxu0
      %1728 = vmatprep.mubr.f32.mxu0 %v569
      %1729 = vmatmul.mubr.f32.gmra.mrb[0].mxu0 %v468
      %v1730 = vpop.f32.mrb[0].mxu0
      %v1731 = vadd.f32 %v1506, %v1730
      %v1732 = vpop.f32.mrb[0].mxu0
      %1733 = vmatprep.mubr.f32.mxu0 %v571
      %1734 = vmatmul.mubr.f32.gmra.mrb[0].mxu0 %v469
      %v1735 = vpop.f32.mrb[0].mxu0
      %v1736 = vadd.f32 %v1511, %v1735
      %v1737 = vpop.f32.mrb[0].mxu0
      %1738 = vmatprep.mubr.f32.mxu0 %v574
      %1739 = vmatmul.mubr.f32.gmra.mrb[0].mxu0 %v471
      %v1740 = vpop.f32.mrb[0].mxu0
      %v1741 = vadd.f32 %v1516, %v1740
      %v1742 = vpop.f32.mrb[0].mxu0
      %1743 = vmatprep.mubr.f32.mxu0 %v576
      %1744 = vmatmul.mubr.f32.gmra.mrb[0].mxu0 %v472
      %v1745 = vpop.f32.mrb[0].mxu0
      %v1746 = vadd.f32 %v1521, %v1745
      %v1747 = vpop.f32.mrb[0].mxu0
      %1748 = vmatprep.mubr.f32.mxu0 %v579
      %1749 = vmatmul.mubr.f32.gmra.mrb[0].mxu0 %v474
      %v1750 = vpop.f32.mrb[0].mxu0
      %v1751 = vadd.f32 %v1526, %v1750
      %v1752 = vpop.f32.mrb[0].mxu0
      %1753 = vmatprep.mubr.f32.mxu0 %v581
      %1754 = vmatmul.mubr.f32.gmra.mrb[0].mxu0 %v475
      %v1755 = vpop.f32.mrb[0].mxu0
      %v1756 = vadd.f32 %v1531, %v1755
      %v1757 = vpop.f32.mrb[0].mxu0
      %1758 = vmatprep.mubr.f32.mxu0 %v584
      %1759 = vmatmul.mubr.f32.gmra.mrb[0].mxu0 %v477
      %v1760 = vpop.f32.mrb[0].mxu0
      %v1761 = vadd.f32 %v1536, %v1760
      %v1762 = vpop.f32.mrb[0].mxu0
      %1763 = vmatprep.mubr.f32.mxu0 %v586
      %1764 = vmatmul.mubr.f32.gmra.mrb[0].mxu0 %v478
      %v1765 = vpop.f32.mrb[0].mxu0
      %v1766 = vadd.f32 %v1541, %v1765
      %v1767 = vpop.f32.mrb[0].mxu0
      %1768 = vmatprep.mubr.f32.mxu0 %v589
      %1769 = vmatmul.mubr.f32.gmra.mrb[0].mxu0 %v480
      %v1770 = vpop.f32.mrb[0].mxu0
      %v1771 = vadd.f32 %v1546, %v1770
      %v1772 = vpop.f32.mrb[0].mxu0
      %1773 = vmatprep.mubr.f32.mxu0 %v591
      %1774 = vmatmul.mubr.f32.gmra.mrb[0].mxu0 %v481
      %v1775 = vpop.f32.mrb[0].mxu0
      %v1776 = vadd.f32 %v1551, %v1775
      %v1777 = vpop.f32.mrb[0].mxu0
      %1778 = vmatprep.mubr.f32.mxu0 %v594
      %1779 = vmatmul.mubr.f32.gmra.mrb[0].mxu0 %v483
      %v1780 = vpop.f32.mrb[0].mxu0
      %v1781 = vadd.f32 %v1556, %v1780
      %v1782 = vpop.f32.mrb[0].mxu0
      %1783 = vmatprep.mubr.f32.mxu0 %v596
      %1784 = vmatmul.mubr.f32.gmra.mrb[0].mxu0 %v484
      %v1785 = vpop.f32.mrb[0].mxu0
      %v1786 = vadd.f32 %v1561, %v1785
      %v1787 = vpop.f32.mrb[0].mxu0
      %1788 = vmatprep.mubr.f32.mxu0 %v599
      %1789 = vmatmul.mubr.f32.gmra.mrb[0].mxu0 %v486
      %v1790 = vpop.f32.mrb[0].mxu0
      %v1791 = vadd.f32 %v1566, %v1790
      %v1792 = vpop.f32.mrb[0].mxu0
      %1793 = vmatprep.mubr.f32.mxu0 %v601
      %1794 = vmatmul.mubr.f32.gmra.mrb[0].mxu0 %v487
      %v1795 = vpop.f32.mrb[0].mxu0
      %v1796 = vadd.f32 %v1571, %v1795
      %v1797 = vpop.f32.mrb[0].mxu0
      %1798 = vmatprep.mubr.f32.mxu0 %v604
      %1799 = vmatmul.mubr.f32.gmra.mrb[0].mxu0 %v489
      %v1800 = vpop.f32.mrb[0].mxu0
      %v1801 = vadd.f32 %v1576, %v1800
      %v1802 = vpop.f32.mrb[0].mxu0
      %1803 = vmatprep.mubr.f32.mxu0 %v606
      %1804 = vmatmul.mubr.f32.gmra.mrb[0].mxu0 %v490
      %v1805 = vpop.f32.mrb[0].mxu0
      %v1806 = vadd.f32 %v1581, %v1805
      %v1807 = vpop.f32.mrb[0].mxu0
      %1808 = vmatprep.mubr.f32.mxu0 %v609
      %1809 = vmatmul.mubr.f32.gmra.mrb[0].mxu0 %v492
      %v1810 = vpop.f32.mrb[0].mxu0
      %v1811 = vadd.f32 %v1586, %v1810
      %v1812 = vpop.f32.mrb[0].mxu0
      %1813 = vmatprep.mubr.f32.mxu0 %v611
      %1814 = vmatmul.mubr.f32.gmra.mrb[0].mxu0 %v493
      %v1815 = vpop.f32.mrb[0].mxu0
      %v1816 = vadd.f32 %v1591, %v1815
      %v1817 = vpop.f32.mrb[0].mxu0
      %1818 = vmatprep.mubr.f32.mxu0 %v614
      %1819 = vmatmul.mubr.f32.gmra.mrb[0].mxu0 %v495
      %v1820 = vpop.f32.mrb[0].mxu0
      %v1821 = vadd.f32 %v1596, %v1820
      %v1822 = vpop.f32.mrb[0].mxu0
      %1823 = vmatprep.mubr.f32.mxu0 %v616
      %1824 = vmatmul.mubr.f32.gmra.mrb[0].mxu0 %v496
      %v1825 = vpop.f32.mrb[0].mxu0
      %v1826 = vadd.f32 %v1601, %v1825
      %v1827 = vpop.f32.mrb[0].mxu0
      %1828 = vmatprep.mubr.f32.mxu0 %v619
      %1829 = vmatmul.mubr.f32.gmra.mrb[0].mxu0 %v498
      %v1830 = vpop.f32.mrb[0].mxu0
      %v1831 = vadd.f32 %v1606, %v1830
      %v1832 = vpop.f32.mrb[0].mxu0
      %1833 = vmatprep.mubr.f32.mxu0 %v621
      %1834 = vmatmul.mubr.f32.gmra.mrb[0].mxu0 %v499
      %v1835 = vpop.f32.mrb[0].mxu0
      %v1836 = vadd.f32 %v1611, %v1835
      %v1837 = vpop.f32.mrb[0].mxu0
      %1838 = vmatprep.mubr.f32.mxu0 %v624
      %1839 = vmatmul.mubr.f32.gmra.mrb[0].mxu0 %v501
      %v1840 = vpop.f32.mrb[0].mxu0
      %v1841 = vadd.f32 %v1616, %v1840
      %v1842 = vpop.f32.mrb[0].mxu0
      %1843 = vmatprep.mubr.f32.mxu0 %v626
      %1844 = vmatmul.mubr.f32.gmra.mrb[0].mxu0 %v502
      %v1845 = vpop.f32.mrb[0].mxu0
      %v1846 = vadd.f32 %v1621, %v1845
      %v1847 = vpop.f32.mrb[0].mxu0
      %1848 = vmatprep.mubr.f32.mxu0 %v629
      %1849 = vmatmul.mubr.f32.gmra.mrb[0].mxu0 %v504
      %v1850 = vpop.f32.mrb[0].mxu0
      %v1851 = vadd.f32 %v1626, %v1850
      %v1852 = vpop.f32.mrb[0].mxu0
      %1853 = vmatprep.mubr.f32.mxu0 %v631
      %1854 = vmatmul.mubr.f32.gmra.mrb[0].mxu0 %v505
      %v1855 = vpop.f32.mrb[0].mxu0
      %v1856 = vadd.f32 %v1631, %v1855
      %v1857 = vpop.f32.mrb[0].mxu0
      %1858 = vmatprep.mubr.f32.mxu0 %v634
      %1859 = vmatmul.mubr.f32.gmra.mrb[0].mxu0 %v507
      %v1860 = vpop.f32.mrb[0].mxu0
      %v1861 = vadd.f32 %v1636, %v1860
      %v1862 = vpop.f32.mrb[0].mxu0
      %1863 = vmatprep.mubr.f32.mxu0 %v636
      %1864 = vmatmul.mubr.f32.gmra.mrb[0].mxu0 %v508
      %v1865 = vpop.f32.mrb[0].mxu0
      %v1866 = vadd.f32 %v1641, %v1865
      %v1867 = vpop.f32.mrb[0].mxu0
      %1868 = vmatprep.mubr.f32.mxu0 %v639
      %1869 = vmatmul.mubr.f32.gmra.mrb[0].mxu0 %v510
      %v1870 = vpop.f32.mrb[0].mxu0
      %v1871 = vadd.f32 %v1646, %v1870
      %v1872 = vpop.f32.mrb[0].mxu0
      %1873 = vmatprep.mubr.f32.mxu0 %v641
      %1874 = vmatmul.mubr.f32.gmra.mrb[0].mxu0 %v511
      %v1875 = vpop.f32.mrb[0].mxu0
      %v1876 = vadd.f32 %v1651, %v1875
      %v1877 = vpop.f32.mrb[0].mxu0
      %1878 = vdwg.mxu0
      %1879 = vmatprep.subr.mxu0 0.0
      %1880 = vmatpush1.msra.mxu0 %v819
      %1881 = vmatprep.subr.mxu0 0.0
      %1882 = vmatpush1.msra.mxu0 %v820
      %1883 = vmatprep.subr.mxu0 0.0
      %1884 = vmatpush1.msra.mxu0 %v821
      %1885 = vmatprep.subr.mxu0 0.0
      %1886 = vmatpush1.msra.mxu0 %v822
      %1887 = vmatprep.subr.mxu0 0.0
      %1888 = vmatpush1.msra.mxu0 %v823
      %1889 = vmatprep.subr.mxu0 0.0
      %1890 = vmatpush1.msra.mxu0 %v824
      %1891 = vmatprep.subr.mxu0 0.0
      %1892 = vmatpush1.msra.mxu0 %v825
      %1893 = vmatprep.subr.mxu0 0.0
      %1894 = vmatpush1.msra.mxu0 %v826
      %1895 = vmatprep.subr.mxu0 0.0
      %1896 = vmatpush1.msra.mxu0 %v827
      %1897 = vmatprep.subr.mxu0 0.0
      %1898 = vmatpush1.msra.mxu0 %v828
      %1899 = vmatprep.subr.mxu0 0.0
      %1900 = vmatpush1.msra.mxu0 %v829
      %1901 = vmatprep.subr.mxu0 0.0
      %1902 = vmatpush1.msra.mxu0 %v830
      %1903 = vmatprep.subr.mxu0 0.0
      %1904 = vmatpush1.msra.mxu0 %v831
      %1905 = vmatprep.subr.mxu0 0.0
      %1906 = vmatpush1.msra.mxu0 %v832
      %1907 = vmatprep.subr.mxu0 0.0
      %1908 = vmatpush1.msra.mxu0 %v833
      %1909 = vmatprep.subr.mxu0 0.0
      %1910 = vmatpush1.msra.mxu0 %v834
      %1911 = vmatprep.subr.mxu0 0.0
      %1912 = vmatpush1.msra.mxu0 0.0
      %1913 = vmatprep.subr.mxu0 0.0
      %1914 = vmatpush1.msra.mxu0 0.0
      %1915 = vmatprep.subr.mxu0 0.0
      %1916 = vmatpush1.msra.mxu0 0.0
      %1917 = vmatprep.subr.mxu0 0.0
      %1918 = vmatpush1.msra.mxu0 0.0
      %1919 = vmatprep.subr.mxu0 0.0
      %1920 = vmatpush1.msra.mxu0 0.0
      %1921 = vmatprep.subr.mxu0 0.0
      %1922 = vmatpush1.msra.mxu0 0.0
      %1923 = vmatprep.subr.mxu0 0.0
      %1924 = vmatpush1.msra.mxu0 0.0
      %1925 = vmatprep.subr.mxu0 0.0
      %1926 = vmatpush1.msra.mxu0 0.0
      %1927 = vmatprep.subr.mxu0 0.0
      %1928 = vmatpush1.msra.mxu0 0.0
      %1929 = vmatprep.subr.mxu0 0.0
      %1930 = vmatpush1.msra.mxu0 0.0
      %1931 = vmatprep.subr.mxu0 0.0
      %1932 = vmatpush1.msra.mxu0 0.0
      %1933 = vmatprep.subr.mxu0 0.0
      %1934 = vmatpush1.msra.mxu0 0.0
      %1935 = vmatprep.subr.mxu0 0.0
      %1936 = vmatpush1.msra.mxu0 0.0
      %1937 = vmatprep.subr.mxu0 0.0
      %1938 = vmatpush1.msra.mxu0 0.0
      %1939 = vmatprep.subr.mxu0 0.0
      %1940 = vmatpush1.msra.mxu0 0.0
      %1941 = vmatprep.subr.mxu0 0.0
      %1942 = vmatpush1.msra.mxu0 0.0
      %1943 = vmatprep.mubr.f32.mxu0 0.0
      %1944 = vmatmul.mubr.f32.gmra.mrb[0].mxu0 %v677
      %v1945 = vpop.f32.mrb[0].mxu0
      %v1946 = vadd.f32 %v1721, %v1945
      %v1947 = vpop.f32.mrb[0].mxu0
      %1948 = vmatprep.mubr.f32.mxu0 0.0
      %1949 = vmatmul.mubr.f32.gmra.mrb[0].mxu0 %v679
      %v1950 = vpop.f32.mrb[0].mxu0
      %v1951 = vadd.f32 %v1726, %v1950
      %v1952 = vpop.f32.mrb[0].mxu0
      %1953 = vmatprep.mubr.f32.mxu0 0.0
      %1954 = vmatmul.mubr.f32.gmra.mrb[0].mxu0 %v682
      %v1955 = vpop.f32.mrb[0].mxu0
      %v1956 = vadd.f32 %v1731, %v1955
      %v1957 = vpop.f32.mrb[0].mxu0
      %1958 = vmatprep.mubr.f32.mxu0 0.0
      %1959 = vmatmul.mubr.f32.gmra.mrb[0].mxu0 %v684
      %v1960 = vpop.f32.mrb[0].mxu0
      %v1961 = vadd.f32 %v1736, %v1960
      %v1962 = vpop.f32.mrb[0].mxu0
      %1963 = vmatprep.mubr.f32.mxu0 0.0
      %1964 = vmatmul.mubr.f32.gmra.mrb[0].mxu0 %v687
      %v1965 = vpop.f32.mrb[0].mxu0
      %v1966 = vadd.f32 %v1741, %v1965
      %v1967 = vpop.f32.mrb[0].mxu0
      %1968 = vmatprep.mubr.f32.mxu0 0.0
      %1969 = vmatmul.mubr.f32.gmra.mrb[0].mxu0 %v689
      %v1970 = vpop.f32.mrb[0].mxu0
      %v1971 = vadd.f32 %v1746, %v1970
      %v1972 = vpop.f32.mrb[0].mxu0
      %1973 = vmatprep.mubr.f32.mxu0 0.0
      %1974 = vmatmul.mubr.f32.gmra.mrb[0].mxu0 %v692
      %v1975 = vpop.f32.mrb[0].mxu0
      %v1976 = vadd.f32 %v1751, %v1975
      %v1977 = vpop.f32.mrb[0].mxu0
      %1978 = vmatprep.mubr.f32.mxu0 0.0
      %1979 = vmatmul.mubr.f32.gmra.mrb[0].mxu0 %v694
      %v1980 = vpop.f32.mrb[0].mxu0
      %v1981 = vadd.f32 %v1756, %v1980
      %v1982 = vpop.f32.mrb[0].mxu0
      %1983 = vmatprep.mubr.f32.mxu0 0.0
      %1984 = vmatmul.mubr.f32.gmra.mrb[0].mxu0 %v697
      %v1985 = vpop.f32.mrb[0].mxu0
      %v1986 = vadd.f32 %v1761, %v1985
      %v1987 = vpop.f32.mrb[0].mxu0
      %1988 = vmatprep.mubr.f32.mxu0 0.0
      %1989 = vmatmul.mubr.f32.gmra.mrb[0].mxu0 %v699
      %v1990 = vpop.f32.mrb[0].mxu0
      %v1991 = vadd.f32 %v1766, %v1990
      %v1992 = vpop.f32.mrb[0].mxu0
      %1993 = vmatprep.mubr.f32.mxu0 0.0
      %1994 = vmatmul.mubr.f32.gmra.mrb[0].mxu0 %v702
      %v1995 = vpop.f32.mrb[0].mxu0
      %v1996 = vadd.f32 %v1771, %v1995
      %v1997 = vpop.f32.mrb[0].mxu0
      %1998 = vmatprep.mubr.f32.mxu0 0.0
      %1999 = vmatmul.mubr.f32.gmra.mrb[0].mxu0 %v704
      %v2000 = vpop.f32.mrb[0].mxu0
      %v2001 = vadd.f32 %v1776, %v2000
      %v2002 = vpop.f32.mrb[0].mxu0
      %2003 = vmatprep.mubr.f32.mxu0 0.0
      %2004 = vmatmul.mubr.f32.gmra.mrb[0].mxu0 %v707
      %v2005 = vpop.f32.mrb[0].mxu0
      %v2006 = vadd.f32 %v1781, %v2005
      %v2007 = vpop.f32.mrb[0].mxu0
      %2008 = vmatprep.mubr.f32.mxu0 0.0
      %2009 = vmatmul.mubr.f32.gmra.mrb[0].mxu0 %v709
      %v2010 = vpop.f32.mrb[0].mxu0
      %v2011 = vadd.f32 %v1786, %v2010
      %v2012 = vpop.f32.mrb[0].mxu0
      %2013 = vmatprep.mubr.f32.mxu0 0.0
      %2014 = vmatmul.mubr.f32.gmra.mrb[0].mxu0 %v712
      %v2015 = vpop.f32.mrb[0].mxu0
      %v2016 = vadd.f32 %v1791, %v2015
      %v2017 = vpop.f32.mrb[0].mxu0
      %2018 = vmatprep.mubr.f32.mxu0 0.0
      %2019 = vmatmul.mubr.f32.gmra.mrb[0].mxu0 %v714
      %v2020 = vpop.f32.mrb[0].mxu0
      %v2021 = vadd.f32 %v1796, %v2020
      %v2022 = vpop.f32.mrb[0].mxu0
      %2023 = vmatprep.mubr.f32.mxu0 0.0
      %2024 = vmatmul.mubr.f32.gmra.mrb[0].mxu0 %v717
      %v2025 = vpop.f32.mrb[0].mxu0
      %v2026 = vadd.f32 %v1801, %v2025
      %v2027 = vpop.f32.mrb[0].mxu0
      %2028 = vmatprep.mubr.f32.mxu0 0.0
      %2029 = vmatmul.mubr.f32.gmra.mrb[0].mxu0 %v719
      %v2030 = vpop.f32.mrb[0].mxu0
      %v2031 = vadd.f32 %v1806, %v2030
      %v2032 = vpop.f32.mrb[0].mxu0
      %2033 = vmatprep.mubr.f32.mxu0 0.0
      %2034 = vmatmul.mubr.f32.gmra.mrb[0].mxu0 %v722
      %v2035 = vpop.f32.mrb[0].mxu0
      %v2036 = vadd.f32 %v1811, %v2035
      %v2037 = vpop.f32.mrb[0].mxu0
      %2038 = vmatprep.mubr.f32.mxu0 0.0
      %2039 = vmatmul.mubr.f32.gmra.mrb[0].mxu0 %v724
      %v2040 = vpop.f32.mrb[0].mxu0
      %v2041 = vadd.f32 %v1816, %v2040
      %v2042 = vpop.f32.mrb[0].mxu0
      %2043 = vmatprep.mubr.f32.mxu0 0.0
      %2044 = vmatmul.mubr.f32.gmra.mrb[0].mxu0 %v727
      %v2045 = vpop.f32.mrb[0].mxu0
      %v2046 = vadd.f32 %v1821, %v2045
      %v2047 = vpop.f32.mrb[0].mxu0
      %2048 = vmatprep.mubr.f32.mxu0 0.0
      %2049 = vmatmul.mubr.f32.gmra.mrb[0].mxu0 %v729
      %v2050 = vpop.f32.mrb[0].mxu0
      %v2051 = vadd.f32 %v1826, %v2050
      %v2052 = vpop.f32.mrb[0].mxu0
      %2053 = vmatprep.mubr.f32.mxu0 0.0
      %2054 = vmatmul.mubr.f32.gmra.mrb[0].mxu0 %v732
      %v2055 = vpop.f32.mrb[0].mxu0
      %v2056 = vadd.f32 %v1831, %v2055
      %v2057 = vpop.f32.mrb[0].mxu0
      %2058 = vmatprep.mubr.f32.mxu0 0.0
      %2059 = vmatmul.mubr.f32.gmra.mrb[0].mxu0 %v734
      %v2060 = vpop.f32.mrb[0].mxu0
      %v2061 = vadd.f32 %v1836, %v2060
      %v2062 = vpop.f32.mrb[0].mxu0
      %2063 = vmatprep.mubr.f32.mxu0 0.0
      %2064 = vmatmul.mubr.f32.gmra.mrb[0].mxu0 %v737
      %v2065 = vpop.f32.mrb[0].mxu0
      %v2066 = vadd.f32 %v1841, %v2065
      %v2067 = vpop.f32.mrb[0].mxu0
      %2068 = vmatprep.mubr.f32.mxu0 0.0
      %2069 = vmatmul.mubr.f32.gmra.mrb[0].mxu0 %v739
      %v2070 = vpop.f32.mrb[0].mxu0
      %v2071 = vadd.f32 %v1846, %v2070
      %v2072 = vpop.f32.mrb[0].mxu0
      %2073 = vmatprep.mubr.f32.mxu0 0.0
      %2074 = vmatmul.mubr.f32.gmra.mrb[0].mxu0 %v742
      %v2075 = vpop.f32.mrb[0].mxu0
      %v2076 = vadd.f32 %v1851, %v2075
      %v2077 = vpop.f32.mrb[0].mxu0
      %2078 = vmatprep.mubr.f32.mxu0 0.0
      %2079 = vmatmul.mubr.f32.gmra.mrb[0].mxu0 %v744
      %v2080 = vpop.f32.mrb[0].mxu0
      %v2081 = vadd.f32 %v1856, %v2080
      %v2082 = vpop.f32.mrb[0].mxu0
      %2083 = vmatprep.mubr.f32.mxu0 0.0
      %2084 = vmatmul.mubr.f32.gmra.mrb[0].mxu0 %v747
      %v2085 = vpop.f32.mrb[0].mxu0
      %v2086 = vadd.f32 %v1861, %v2085
      %v2087 = vpop.f32.mrb[0].mxu0
      %2088 = vmatprep.mubr.f32.mxu0 0.0
      %2089 = vmatmul.mubr.f32.gmra.mrb[0].mxu0 %v749
      %v2090 = vpop.f32.mrb[0].mxu0
      %v2091 = vadd.f32 %v1866, %v2090
      %v2092 = vpop.f32.mrb[0].mxu0
      %2093 = vmatprep.mubr.f32.mxu0 0.0
      %2094 = vmatmul.mubr.f32.gmra.mrb[0].mxu0 %v752
      %v2095 = vpop.f32.mrb[0].mxu0
      %v2096 = vadd.f32 %v1871, %v2095
      %v2097 = vpop.f32.mrb[0].mxu0
      %2098 = vmatprep.mubr.f32.mxu0 0.0
      %2099 = vmatmul.mubr.f32.gmra.mrb[0].mxu0 %v754
      %v2100 = vpop.f32.mrb[0].mxu0
      %v2101 = vadd.f32 %v1876, %v2100
      %v2102 = vpop.f32.mrb[0].mxu0
      %2103 = vdwg.mxu0
      %s2104 = scalar_lea.vmem [#allocation2], 48
      %v2105 = vld [vmem:[%s2104] sm:$0xff]
      %v2106 = vld [vmem:[%s2104 + $0x8] sm:$0xff]
      %v2107 = vld [vmem:[%s2104 + $0x10] sm:$0x3]
      %v2108 = vld [vmem:[%s2104 + $0x18] sm:$0xff]
      %v2109 = vld [vmem:[%s2104 + $0x20] sm:$0xff]
      %v2110 = vld [vmem:[%s2104 + $0x28] sm:$0x3]
      %v2111 = vld [vmem:[%s2104 + $0x30] sm:$0xff]
      %v2112 = vld [vmem:[%s2104 + $0x38] sm:$0xff]
      %v2113 = vld [vmem:[%s2104 + $0x40] sm:$0x3]
      %v2114 = vld [vmem:[%s2104 + $0x48] sm:$0xff]
      %v2115 = vld [vmem:[%s2104 + $0x50] sm:$0xff]
      %v2116 = vld [vmem:[%s2104 + $0x58] sm:$0x3]
      %v2117 = vld [vmem:[%s2104 + $0x60] sm:$0xff]
      %v2118 = vld [vmem:[%s2104 + $0x68] sm:$0xff]
      %v2119 = vld [vmem:[%s2104 + $0x70] sm:$0x3]
      %v2120 = vld [vmem:[%s2104 + $0x78] sm:$0xff]
      %v2121 = vld [vmem:[%s2104 + $0x80] sm:$0xff]
      %v2122 = vld [vmem:[%s2104 + $0x88] sm:$0x3]
      %v2123 = vld [vmem:[%s2104 + $0x90] sm:$0xff]
      %v2124 = vld [vmem:[%s2104 + $0x98] sm:$0xff]
      %v2125 = vld [vmem:[%s2104 + $0xa0] sm:$0x3]
      %v2126 = vld [vmem:[%s2104 + $0xa8] sm:$0xff]
      %v2127 = vld [vmem:[%s2104 + $0xb0] sm:$0xff]
      %v2128 = vld [vmem:[%s2104 + $0xb8] sm:$0x3]
      %v2129 = vld [vmem:[%s2104 + $0xc0] sm:$0xff]
      %v2130 = vld [vmem:[%s2104 + $0xc8] sm:$0xff]
      %v2131 = vld [vmem:[%s2104 + $0xd0] sm:$0x3]
      %v2132 = vld [vmem:[%s2104 + $0xd8] sm:$0xff]
      %v2133 = vld [vmem:[%s2104 + $0xe0] sm:$0xff]
      %v2134 = vld [vmem:[%s2104 + $0xe8] sm:$0x3]
      %v2135 = vld [vmem:[%s2104 + $0xf0] sm:$0xff]
      %v2136 = vld [vmem:[%s2104 + $0xf8] sm:$0xff]
      %v2137 = vld [vmem:[%s2104 + $0x100] sm:$0x3]
      %v2138 = vld [vmem:[%s2104 + $0x108] sm:$0xff]
      %v2139 = vld [vmem:[%s2104 + $0x110] sm:$0xff]
      %v2140 = vld [vmem:[%s2104 + $0x118] sm:$0x3]
      %v2141 = vld [vmem:[%s2104 + $0x120] sm:$0xff]
      %v2142 = vld [vmem:[%s2104 + $0x128] sm:$0xff]
      %v2143 = vld [vmem:[%s2104 + $0x130] sm:$0x3]
      %v2144 = vld [vmem:[%s2104 + $0x138] sm:$0xff]
      %v2145 = vld [vmem:[%s2104 + $0x140] sm:$0xff]
      %v2146 = vld [vmem:[%s2104 + $0x148] sm:$0x3]
      %v2147 = vld [vmem:[%s2104 + $0x150] sm:$0xff]
      %v2148 = vld [vmem:[%s2104 + $0x158] sm:$0xff]
      %v2149 = vld [vmem:[%s2104 + $0x160] sm:$0x3]
      %v2150 = vld [vmem:[%s2104 + $0x168] sm:$0xff]
      %v2151 = vld [vmem:[%s2104 + $0x170] sm:$0xff]
      %v2152 = vld [vmem:[%s2104 + $0x178] sm:$0x3]
      %v2201 = vrot.slane %v2105, 1
      %v2202 = vrot.slane %v2106, 1
      %v2203 = vsel %vm561, %v2201, %v2202
      %v2204 = vrot.slane %v2107, 1
      %v2205 = vsel %vm561, %v2202, %v2204
      %v2206 = vrot.slane %v2108, 1
      %v2207 = vrot.slane %v2109, 1
      %v2208 = vsel %vm561, %v2206, %v2207
      %v2209 = vrot.slane %v2110, 1
      %v2210 = vsel %vm561, %v2207, %v2209
      %v2211 = vrot.slane %v2111, 1
      %v2212 = vrot.slane %v2112, 1
      %v2213 = vsel %vm561, %v2211, %v2212
      %v2214 = vrot.slane %v2113, 1
      %v2215 = vsel %vm561, %v2212, %v2214
      %v2216 = vrot.slane %v2114, 1
      %v2217 = vrot.slane %v2115, 1
      %v2218 = vsel %vm561, %v2216, %v2217
      %v2219 = vrot.slane %v2116, 1
      %v2220 = vsel %vm561, %v2217, %v2219
      %v2221 = vrot.slane %v2117, 1
      %v2222 = vrot.slane %v2118, 1
      %v2223 = vsel %vm561, %v2221, %v2222
      %v2224 = vrot.slane %v2119, 1
      %v2225 = vsel %vm561, %v2222, %v2224
      %v2226 = vrot.slane %v2120, 1
      %v2227 = vrot.slane %v2121, 1
      %v2228 = vsel %vm561, %v2226, %v2227
      %v2229 = vrot.slane %v2122, 1
      %v2230 = vsel %vm561, %v2227, %v2229
      %v2231 = vrot.slane %v2123, 1
      %v2232 = vrot.slane %v2124, 1
      %v2233 = vsel %vm561, %v2231, %v2232
      %v2234 = vrot.slane %v2125, 1
      %v2235 = vsel %vm561, %v2232, %v2234
      %v2236 = vrot.slane %v2126, 1
      %v2237 = vrot.slane %v2127, 1
      %v2238 = vsel %vm561, %v2236, %v2237
      %v2239 = vrot.slane %v2128, 1
      %v2240 = vsel %vm561, %v2237, %v2239
      %v2241 = vrot.slane %v2129, 1
      %v2242 = vrot.slane %v2130, 1
      %v2243 = vsel %vm561, %v2241, %v2242
      %v2244 = vrot.slane %v2131, 1
      %v2245 = vsel %vm561, %v2242, %v2244
      %v2246 = vrot.slane %v2132, 1
      %v2247 = vrot.slane %v2133, 1
      %v2248 = vsel %vm561, %v2246, %v2247
      %v2249 = vrot.slane %v2134, 1
      %v2250 = vsel %vm561, %v2247, %v2249
      %v2251 = vrot.slane %v2135, 1
      %v2252 = vrot.slane %v2136, 1
      %v2253 = vsel %vm561, %v2251, %v2252
      %v2254 = vrot.slane %v2137, 1
      %v2255 = vsel %vm561, %v2252, %v2254
      %v2256 = vrot.slane %v2138, 1
      %v2257 = vrot.slane %v2139, 1
      %v2258 = vsel %vm561, %v2256, %v2257
      %v2259 = vrot.slane %v2140, 1
      %v2260 = vsel %vm561, %v2257, %v2259
      %v2261 = vrot.slane %v2141, 1
      %v2262 = vrot.slane %v2142, 1
      %v2263 = vsel %vm561, %v2261, %v2262
      %v2264 = vrot.slane %v2143, 1
      %v2265 = vsel %vm561, %v2262, %v2264
      %v2266 = vrot.slane %v2144, 1
      %v2267 = vrot.slane %v2145, 1
      %v2268 = vsel %vm561, %v2266, %v2267
      %v2269 = vrot.slane %v2146, 1
      %v2270 = vsel %vm561, %v2267, %v2269
      %v2271 = vrot.slane %v2147, 1
      %v2272 = vrot.slane %v2148, 1
      %v2273 = vsel %vm561, %v2271, %v2272
      %v2274 = vrot.slane %v2149, 1
      %v2275 = vsel %vm561, %v2272, %v2274
      %v2276 = vrot.slane %v2150, 1
      %v2277 = vrot.slane %v2151, 1
      %v2278 = vsel %vm561, %v2276, %v2277
      %v2279 = vrot.slane %v2152, 1
      %v2280 = vsel %vm561, %v2277, %v2279
      %v2313 = vrot.slane %v2105, 2
      %v2314 = vrot.slane %v2106, 2
      %v2315 = vsel %vm674, %v2313, %v2314
      %v2316 = vrot.slane %v2107, 2
      %v2317 = vsel %vm674, %v2314, %v2316
      %v2318 = vrot.slane %v2108, 2
      %v2319 = vrot.slane %v2109, 2
      %v2320 = vsel %vm674, %v2318, %v2319
      %v2321 = vrot.slane %v2110, 2
      %v2322 = vsel %vm674, %v2319, %v2321
      %v2323 = vrot.slane %v2111, 2
      %v2324 = vrot.slane %v2112, 2
      %v2325 = vsel %vm674, %v2323, %v2324
      %v2326 = vrot.slane %v2113, 2
      %v2327 = vsel %vm674, %v2324, %v2326
      %v2328 = vrot.slane %v2114, 2
      %v2329 = vrot.slane %v2115, 2
      %v2330 = vsel %vm674, %v2328, %v2329
      %v2331 = vrot.slane %v2116, 2
      %v2332 = vsel %vm674, %v2329, %v2331
      %v2333 = vrot.slane %v2117, 2
      %v2334 = vrot.slane %v2118, 2
      %v2335 = vsel %vm674, %v2333, %v2334
      %v2336 = vrot.slane %v2119, 2
      %v2337 = vsel %vm674, %v2334, %v2336
      %v2338 = vrot.slane %v2120, 2
      %v2339 = vrot.slane %v2121, 2
      %v2340 = vsel %vm674, %v2338, %v2339
      %v2341 = vrot.slane %v2122, 2
      %v2342 = vsel %vm674, %v2339, %v2341
      %v2343 = vrot.slane %v2123, 2
      %v2344 = vrot.slane %v2124, 2
      %v2345 = vsel %vm674, %v2343, %v2344
      %v2346 = vrot.slane %v2125, 2
      %v2347 = vsel %vm674, %v2344, %v2346
      %v2348 = vrot.slane %v2126, 2
      %v2349 = vrot.slane %v2127, 2
      %v2350 = vsel %vm674, %v2348, %v2349
      %v2351 = vrot.slane %v2128, 2
      %v2352 = vsel %vm674, %v2349, %v2351
      %v2353 = vrot.slane %v2129, 2
      %v2354 = vrot.slane %v2130, 2
      %v2355 = vsel %vm674, %v2353, %v2354
      %v2356 = vrot.slane %v2131, 2
      %v2357 = vsel %vm674, %v2354, %v2356
      %v2358 = vrot.slane %v2132, 2
      %v2359 = vrot.slane %v2133, 2
      %v2360 = vsel %vm674, %v2358, %v2359
      %v2361 = vrot.slane %v2134, 2
      %v2362 = vsel %vm674, %v2359, %v2361
      %v2363 = vrot.slane %v2135, 2
      %v2364 = vrot.slane %v2136, 2
      %v2365 = vsel %vm674, %v2363, %v2364
      %v2366 = vrot.slane %v2137, 2
      %v2367 = vsel %vm674, %v2364, %v2366
      %v2368 = vrot.slane %v2138, 2
      %v2369 = vrot.slane %v2139, 2
      %v2370 = vsel %vm674, %v2368, %v2369
      %v2371 = vrot.slane %v2140, 2
      %v2372 = vsel %vm674, %v2369, %v2371
      %v2373 = vrot.slane %v2141, 2
      %v2374 = vrot.slane %v2142, 2
      %v2375 = vsel %vm674, %v2373, %v2374
      %v2376 = vrot.slane %v2143, 2
      %v2377 = vsel %vm674, %v2374, %v2376
      %v2378 = vrot.slane %v2144, 2
      %v2379 = vrot.slane %v2145, 2
      %v2380 = vsel %vm674, %v2378, %v2379
      %v2381 = vrot.slane %v2146, 2
      %v2382 = vsel %vm674, %v2379, %v2381
      %v2383 = vrot.slane %v2147, 2
      %v2384 = vrot.slane %v2148, 2
      %v2385 = vsel %vm674, %v2383, %v2384
      %v2386 = vrot.slane %v2149, 2
      %v2387 = vsel %vm674, %v2384, %v2386
      %v2388 = vrot.slane %v2150, 2
      %v2389 = vrot.slane %v2151, 2
      %v2390 = vsel %vm674, %v2388, %v2389
      %v2391 = vrot.slane %v2152, 2
      %v2392 = vsel %vm674, %v2389, %v2391
      %s2425 = scalar_lea.vmem %s1, 768
      %v2426 = vld [vmem:[%s2425] sm:$0xff]
      %v2427 = vld [vmem:[%s2425 + $0x8] sm:$0xff]
      %v2428 = vld [vmem:[%s2425 + $0x10] sm:$0xff]
      %v2429 = vld [vmem:[%s2425 + $0x18] sm:$0xff]
      %v2430 = vld [vmem:[%s2425 + $0x20] sm:$0xff]
      %v2431 = vld [vmem:[%s2425 + $0x28] sm:$0xff]
      %v2432 = vld [vmem:[%s2425 + $0x30] sm:$0xff]
      %v2433 = vld [vmem:[%s2425 + $0x38] sm:$0xff]
      %v2434 = vld [vmem:[%s2425 + $0x40] sm:$0xff]
      %v2435 = vld [vmem:[%s2425 + $0x48] sm:$0xff]
      %v2436 = vld [vmem:[%s2425 + $0x50] sm:$0xff]
      %v2437 = vld [vmem:[%s2425 + $0x58] sm:$0xff]
      %v2438 = vld [vmem:[%s2425 + $0x60] sm:$0xff]
      %v2439 = vld [vmem:[%s2425 + $0x68] sm:$0xff]
      %v2440 = vld [vmem:[%s2425 + $0x70] sm:$0xff]
      %v2441 = vld [vmem:[%s2425 + $0x78] sm:$0xff]
      %v2442 = vld [vmem:[%s2425 + $0x80] sm:$0xff]
      %v2443 = vld [vmem:[%s2425 + $0x88] sm:$0xff]
      %v2444 = vld [vmem:[%s2425 + $0x90] sm:$0xff]
      %v2445 = vld [vmem:[%s2425 + $0x98] sm:$0xff]
      %v2446 = vld [vmem:[%s2425 + $0xa0] sm:$0xff]
      %v2447 = vld [vmem:[%s2425 + $0xa8] sm:$0xff]
      %v2448 = vld [vmem:[%s2425 + $0xb0] sm:$0xff]
      %v2449 = vld [vmem:[%s2425 + $0xb8] sm:$0xff]
      %v2450 = vld [vmem:[%s2425 + $0xc0] sm:$0xff]
      %v2451 = vld [vmem:[%s2425 + $0xc8] sm:$0xff]
      %v2452 = vld [vmem:[%s2425 + $0xd0] sm:$0xff]
      %v2453 = vld [vmem:[%s2425 + $0xd8] sm:$0xff]
      %v2454 = vld [vmem:[%s2425 + $0xe0] sm:$0xff]
      %v2455 = vld [vmem:[%s2425 + $0xe8] sm:$0xff]
      %v2456 = vld [vmem:[%s2425 + $0xf0] sm:$0xff]
      %v2457 = vld [vmem:[%s2425 + $0xf8] sm:$0xff]
      %v2458 = vld [vmem:[%s2425 + $0x100] sm:$0xff]
      %v2459 = vld [vmem:[%s2425 + $0x108] sm:$0xff]
      %v2460 = vld [vmem:[%s2425 + $0x110] sm:$0xff]
      %v2461 = vld [vmem:[%s2425 + $0x118] sm:$0xff]
      %v2462 = vld [vmem:[%s2425 + $0x120] sm:$0xff]
      %v2463 = vld [vmem:[%s2425 + $0x128] sm:$0xff]
      %v2464 = vld [vmem:[%s2425 + $0x130] sm:$0xff]
      %v2465 = vld [vmem:[%s2425 + $0x138] sm:$0xff]
      %v2466 = vld [vmem:[%s2425 + $0x140] sm:$0xff]
      %v2467 = vld [vmem:[%s2425 + $0x148] sm:$0xff]
      %v2468 = vld [vmem:[%s2425 + $0x150] sm:$0xff]
      %v2469 = vld [vmem:[%s2425 + $0x158] sm:$0xff]
      %v2470 = vld [vmem:[%s2425 + $0x160] sm:$0xff]
      %v2471 = vld [vmem:[%s2425 + $0x168] sm:$0xff]
      %v2472 = vld [vmem:[%s2425 + $0x170] sm:$0xff]
      %v2473 = vld [vmem:[%s2425 + $0x178] sm:$0xff]
      %2474 = vmatprep.subr.mxu0 0.0
      %2475 = vmatpush1.msra.mxu0 %v2426
      %2476 = vmatprep.subr.mxu0 0.0
      %2477 = vmatpush1.msra.mxu0 %v2427
      %2478 = vmatprep.subr.mxu0 0.0
      %2479 = vmatpush1.msra.mxu0 %v2428
      %2480 = vmatprep.subr.mxu0 0.0
      %2481 = vmatpush1.msra.mxu0 %v2429
      %2482 = vmatprep.subr.mxu0 0.0
      %2483 = vmatpush1.msra.mxu0 %v2430
      %2484 = vmatprep.subr.mxu0 0.0
      %2485 = vmatpush1.msra.mxu0 %v2431
      %2486 = vmatprep.subr.mxu0 0.0
      %2487 = vmatpush1.msra.mxu0 %v2432
      %2488 = vmatprep.subr.mxu0 0.0
      %2489 = vmatpush1.msra.mxu0 %v2433
      %2490 = vmatprep.subr.mxu0 0.0
      %2491 = vmatpush1.msra.mxu0 %v2434
      %2492 = vmatprep.subr.mxu0 0.0
      %2493 = vmatpush1.msra.mxu0 %v2435
      %2494 = vmatprep.subr.mxu0 0.0
      %2495 = vmatpush1.msra.mxu0 %v2436
      %2496 = vmatprep.subr.mxu0 0.0
      %2497 = vmatpush1.msra.mxu0 %v2437
      %2498 = vmatprep.subr.mxu0 0.0
      %2499 = vmatpush1.msra.mxu0 %v2438
      %2500 = vmatprep.subr.mxu0 0.0
      %2501 = vmatpush1.msra.mxu0 %v2439
      %2502 = vmatprep.subr.mxu0 0.0
      %2503 = vmatpush1.msra.mxu0 %v2440
      %2504 = vmatprep.subr.mxu0 0.0
      %2505 = vmatpush1.msra.mxu0 %v2441
      %2506 = vmatprep.subr.mxu0 0.0
      %2507 = vmatpush1.msra.mxu0 %v2442
      %2508 = vmatprep.subr.mxu0 0.0
      %2509 = vmatpush1.msra.mxu0 %v2443
      %2510 = vmatprep.subr.mxu0 0.0
      %2511 = vmatpush1.msra.mxu0 %v2444
      %2512 = vmatprep.subr.mxu0 0.0
      %2513 = vmatpush1.msra.mxu0 %v2445
      %2514 = vmatprep.subr.mxu0 0.0
      %2515 = vmatpush1.msra.mxu0 %v2446
      %2516 = vmatprep.subr.mxu0 0.0
      %2517 = vmatpush1.msra.mxu0 %v2447
      %2518 = vmatprep.subr.mxu0 0.0
      %2519 = vmatpush1.msra.mxu0 %v2448
      %2520 = vmatprep.subr.mxu0 0.0
      %2521 = vmatpush1.msra.mxu0 %v2449
      %2522 = vmatprep.subr.mxu0 0.0
      %2523 = vmatpush1.msra.mxu0 %v2450
      %2524 = vmatprep.subr.mxu0 0.0
      %2525 = vmatpush1.msra.mxu0 %v2451
      %2526 = vmatprep.subr.mxu0 0.0
      %2527 = vmatpush1.msra.mxu0 %v2452
      %2528 = vmatprep.subr.mxu0 0.0
      %2529 = vmatpush1.msra.mxu0 %v2453
      %2530 = vmatprep.subr.mxu0 0.0
      %2531 = vmatpush1.msra.mxu0 %v2454
      %2532 = vmatprep.subr.mxu0 0.0
      %2533 = vmatpush1.msra.mxu0 %v2455
      %2534 = vmatprep.subr.mxu0 0.0
      %2535 = vmatpush1.msra.mxu0 %v2456
      %2536 = vmatprep.subr.mxu0 0.0
      %2537 = vmatpush1.msra.mxu0 %v2457
      %2538 = vmatprep.mubr.f32.mxu0 %v2203
      %2539 = vmatmul.mubr.f32.gmra.mrb[0].mxu0 %v2105
      %v2540 = vpop.f32.mrb[0].mxu0
      %v2541 = vadd.f32 0.0, %v2540
      %v2542 = vpop.f32.mrb[0].mxu0
      %2543 = vmatprep.mubr.f32.mxu0 %v2205
      %2544 = vmatmul.mubr.f32.gmra.mrb[0].mxu0 %v2106
      %v2545 = vpop.f32.mrb[0].mxu0
      %v2546 = vadd.f32 0.0, %v2545
      %v2547 = vpop.f32.mrb[0].mxu0
      %2548 = vmatprep.mubr.f32.mxu0 %v2208
      %2549 = vmatmul.mubr.f32.gmra.mrb[0].mxu0 %v2108
      %v2550 = vpop.f32.mrb[0].mxu0
      %v2551 = vadd.f32 0.0, %v2550
      %v2552 = vpop.f32.mrb[0].mxu0
      %2553 = vmatprep.mubr.f32.mxu0 %v2210
      %2554 = vmatmul.mubr.f32.gmra.mrb[0].mxu0 %v2109
      %v2555 = vpop.f32.mrb[0].mxu0
      %v2556 = vadd.f32 0.0, %v2555
      %v2557 = vpop.f32.mrb[0].mxu0
      %2558 = vmatprep.mubr.f32.mxu0 %v2213
      %2559 = vmatmul.mubr.f32.gmra.mrb[0].mxu0 %v2111
      %v2560 = vpop.f32.mrb[0].mxu0
      %v2561 = vadd.f32 0.0, %v2560
      %v2562 = vpop.f32.mrb[0].mxu0
      %2563 = vmatprep.mubr.f32.mxu0 %v2215
      %2564 = vmatmul.mubr.f32.gmra.mrb[0].mxu0 %v2112
      %v2565 = vpop.f32.mrb[0].mxu0
      %v2566 = vadd.f32 0.0, %v2565
      %v2567 = vpop.f32.mrb[0].mxu0
      %2568 = vmatprep.mubr.f32.mxu0 %v2218
      %2569 = vmatmul.mubr.f32.gmra.mrb[0].mxu0 %v2114
      %v2570 = vpop.f32.mrb[0].mxu0
      %v2571 = vadd.f32 0.0, %v2570
      %v2572 = vpop.f32.mrb[0].mxu0
      %2573 = vmatprep.mubr.f32.mxu0 %v2220
      %2574 = vmatmul.mubr.f32.gmra.mrb[0].mxu0 %v2115
      %v2575 = vpop.f32.mrb[0].mxu0
      %v2576 = vadd.f32 0.0, %v2575
      %v2577 = vpop.f32.mrb[0].mxu0
      %2578 = vmatprep.mubr.f32.mxu0 %v2223
      %2579 = vmatmul.mubr.f32.gmra.mrb[0].mxu0 %v2117
      %v2580 = vpop.f32.mrb[0].mxu0
      %v2581 = vadd.f32 0.0, %v2580
      %v2582 = vpop.f32.mrb[0].mxu0
      %2583 = vmatprep.mubr.f32.mxu0 %v2225
      %2584 = vmatmul.mubr.f32.gmra.mrb[0].mxu0 %v2118
      %v2585 = vpop.f32.mrb[0].mxu0
      %v2586 = vadd.f32 0.0, %v2585
      %v2587 = vpop.f32.mrb[0].mxu0
      %2588 = vmatprep.mubr.f32.mxu0 %v2228
      %2589 = vmatmul.mubr.f32.gmra.mrb[0].mxu0 %v2120
      %v2590 = vpop.f32.mrb[0].mxu0
      %v2591 = vadd.f32 0.0, %v2590
      %v2592 = vpop.f32.mrb[0].mxu0
      %2593 = vmatprep.mubr.f32.mxu0 %v2230
      %2594 = vmatmul.mubr.f32.gmra.mrb[0].mxu0 %v2121
      %v2595 = vpop.f32.mrb[0].mxu0
      %v2596 = vadd.f32 0.0, %v2595
      %v2597 = vpop.f32.mrb[0].mxu0
      %2598 = vmatprep.mubr.f32.mxu0 %v2233
      %2599 = vmatmul.mubr.f32.gmra.mrb[0].mxu0 %v2123
      %v2600 = vpop.f32.mrb[0].mxu0
      %v2601 = vadd.f32 0.0, %v2600
      %v2602 = vpop.f32.mrb[0].mxu0
      %2603 = vmatprep.mubr.f32.mxu0 %v2235
      %2604 = vmatmul.mubr.f32.gmra.mrb[0].mxu0 %v2124
      %v2605 = vpop.f32.mrb[0].mxu0
      %v2606 = vadd.f32 0.0, %v2605
      %v2607 = vpop.f32.mrb[0].mxu0
      %2608 = vmatprep.mubr.f32.mxu0 %v2238
      %2609 = vmatmul.mubr.f32.gmra.mrb[0].mxu0 %v2126
      %v2610 = vpop.f32.mrb[0].mxu0
      %v2611 = vadd.f32 0.0, %v2610
      %v2612 = vpop.f32.mrb[0].mxu0
      %2613 = vmatprep.mubr.f32.mxu0 %v2240
      %2614 = vmatmul.mubr.f32.gmra.mrb[0].mxu0 %v2127
      %v2615 = vpop.f32.mrb[0].mxu0
      %v2616 = vadd.f32 0.0, %v2615
      %v2617 = vpop.f32.mrb[0].mxu0
      %2618 = vmatprep.mubr.f32.mxu0 %v2243
      %2619 = vmatmul.mubr.f32.gmra.mrb[0].mxu0 %v2129
      %v2620 = vpop.f32.mrb[0].mxu0
      %v2621 = vadd.f32 0.0, %v2620
      %v2622 = vpop.f32.mrb[0].mxu0
      %2623 = vmatprep.mubr.f32.mxu0 %v2245
      %2624 = vmatmul.mubr.f32.gmra.mrb[0].mxu0 %v2130
      %v2625 = vpop.f32.mrb[0].mxu0
      %v2626 = vadd.f32 0.0, %v2625
      %v2627 = vpop.f32.mrb[0].mxu0
      %2628 = vmatprep.mubr.f32.mxu0 %v2248
      %2629 = vmatmul.mubr.f32.gmra.mrb[0].mxu0 %v2132
      %v2630 = vpop.f32.mrb[0].mxu0
      %v2631 = vadd.f32 0.0, %v2630
      %v2632 = vpop.f32.mrb[0].mxu0
      %2633 = vmatprep.mubr.f32.mxu0 %v2250
      %2634 = vmatmul.mubr.f32.gmra.mrb[0].mxu0 %v2133
      %v2635 = vpop.f32.mrb[0].mxu0
      %v2636 = vadd.f32 0.0, %v2635
      %v2637 = vpop.f32.mrb[0].mxu0
      %2638 = vmatprep.mubr.f32.mxu0 %v2253
      %2639 = vmatmul.mubr.f32.gmra.mrb[0].mxu0 %v2135
      %v2640 = vpop.f32.mrb[0].mxu0
      %v2641 = vadd.f32 0.0, %v2640
      %v2642 = vpop.f32.mrb[0].mxu0
      %2643 = vmatprep.mubr.f32.mxu0 %v2255
      %2644 = vmatmul.mubr.f32.gmra.mrb[0].mxu0 %v2136
      %v2645 = vpop.f32.mrb[0].mxu0
      %v2646 = vadd.f32 0.0, %v2645
      %v2647 = vpop.f32.mrb[0].mxu0
      %2648 = vmatprep.mubr.f32.mxu0 %v2258
      %2649 = vmatmul.mubr.f32.gmra.mrb[0].mxu0 %v2138
      %v2650 = vpop.f32.mrb[0].mxu0
      %v2651 = vadd.f32 0.0, %v2650
      %v2652 = vpop.f32.mrb[0].mxu0
      %2653 = vmatprep.mubr.f32.mxu0 %v2260
      %2654 = vmatmul.mubr.f32.gmra.mrb[0].mxu0 %v2139
      %v2655 = vpop.f32.mrb[0].mxu0
      %v2656 = vadd.f32 0.0, %v2655
      %v2657 = vpop.f32.mrb[0].mxu0
      %2658 = vmatprep.mubr.f32.mxu0 %v2263
      %2659 = vmatmul.mubr.f32.gmra.mrb[0].mxu0 %v2141
      %v2660 = vpop.f32.mrb[0].mxu0
      %v2661 = vadd.f32 0.0, %v2660
      %v2662 = vpop.f32.mrb[0].mxu0
      %2663 = vmatprep.mubr.f32.mxu0 %v2265
      %2664 = vmatmul.mubr.f32.gmra.mrb[0].mxu0 %v2142
      %v2665 = vpop.f32.mrb[0].mxu0
      %v2666 = vadd.f32 0.0, %v2665
      %v2667 = vpop.f32.mrb[0].mxu0
      %2668 = vmatprep.mubr.f32.mxu0 %v2268
      %2669 = vmatmul.mubr.f32.gmra.mrb[0].mxu0 %v2144
      %v2670 = vpop.f32.mrb[0].mxu0
      %v2671 = vadd.f32 0.0, %v2670
      %v2672 = vpop.f32.mrb[0].mxu0
      %2673 = vmatprep.mubr.f32.mxu0 %v2270
      %2674 = vmatmul.mubr.f32.gmra.mrb[0].mxu0 %v2145
      %v2675 = vpop.f32.mrb[0].mxu0
      %v2676 = vadd.f32 0.0, %v2675
      %v2677 = vpop.f32.mrb[0].mxu0
      %2678 = vmatprep.mubr.f32.mxu0 %v2273
      %2679 = vmatmul.mubr.f32.gmra.mrb[0].mxu0 %v2147
      %v2680 = vpop.f32.mrb[0].mxu0
      %v2681 = vadd.f32 0.0, %v2680
      %v2682 = vpop.f32.mrb[0].mxu0
      %2683 = vmatprep.mubr.f32.mxu0 %v2275
      %2684 = vmatmul.mubr.f32.gmra.mrb[0].mxu0 %v2148
      %v2685 = vpop.f32.mrb[0].mxu0
      %v2686 = vadd.f32 0.0, %v2685
      %v2687 = vpop.f32.mrb[0].mxu0
      %2688 = vmatprep.mubr.f32.mxu0 %v2278
      %2689 = vmatmul.mubr.f32.gmra.mrb[0].mxu0 %v2150
      %v2690 = vpop.f32.mrb[0].mxu0
      %v2691 = vadd.f32 0.0, %v2690
      %v2692 = vpop.f32.mrb[0].mxu0
      %2693 = vmatprep.mubr.f32.mxu0 %v2280
      %2694 = vmatmul.mubr.f32.gmra.mrb[0].mxu0 %v2151
      %v2695 = vpop.f32.mrb[0].mxu0
      %v2696 = vadd.f32 0.0, %v2695
      %v2697 = vpop.f32.mrb[0].mxu0
      %2698 = vdwg.mxu0
      %2699 = vmatprep.subr.mxu0 0.0
      %2700 = vmatpush1.msra.mxu0 %v2458
      %2701 = vmatprep.subr.mxu0 0.0
      %2702 = vmatpush1.msra.mxu0 %v2459
      %2703 = vmatprep.subr.mxu0 0.0
      %2704 = vmatpush1.msra.mxu0 %v2460
      %2705 = vmatprep.subr.mxu0 0.0
      %2706 = vmatpush1.msra.mxu0 %v2461
      %2707 = vmatprep.subr.mxu0 0.0
      %2708 = vmatpush1.msra.mxu0 %v2462
      %2709 = vmatprep.subr.mxu0 0.0
      %2710 = vmatpush1.msra.mxu0 %v2463
      %2711 = vmatprep.subr.mxu0 0.0
      %2712 = vmatpush1.msra.mxu0 %v2464
      %2713 = vmatprep.subr.mxu0 0.0
      %2714 = vmatpush1.msra.mxu0 %v2465
      %2715 = vmatprep.subr.mxu0 0.0
      %2716 = vmatpush1.msra.mxu0 %v2466
      %2717 = vmatprep.subr.mxu0 0.0
      %2718 = vmatpush1.msra.mxu0 %v2467
      %2719 = vmatprep.subr.mxu0 0.0
      %2720 = vmatpush1.msra.mxu0 %v2468
      %2721 = vmatprep.subr.mxu0 0.0
      %2722 = vmatpush1.msra.mxu0 %v2469
      %2723 = vmatprep.subr.mxu0 0.0
      %2724 = vmatpush1.msra.mxu0 %v2470
      %2725 = vmatprep.subr.mxu0 0.0
      %2726 = vmatpush1.msra.mxu0 %v2471
      %2727 = vmatprep.subr.mxu0 0.0
      %2728 = vmatpush1.msra.mxu0 %v2472
      %2729 = vmatprep.subr.mxu0 0.0
      %2730 = vmatpush1.msra.mxu0 %v2473
      %2731 = vmatprep.subr.mxu0 0.0
      %2732 = vmatpush1.msra.mxu0 0.0
      %2733 = vmatprep.subr.mxu0 0.0
      %2734 = vmatpush1.msra.mxu0 0.0
      %2735 = vmatprep.subr.mxu0 0.0
      %2736 = vmatpush1.msra.mxu0 0.0
      %2737 = vmatprep.subr.mxu0 0.0
      %2738 = vmatpush1.msra.mxu0 0.0
      %2739 = vmatprep.subr.mxu0 0.0
      %2740 = vmatpush1.msra.mxu0 0.0
      %2741 = vmatprep.subr.mxu0 0.0
      %2742 = vmatpush1.msra.mxu0 0.0
      %2743 = vmatprep.subr.mxu0 0.0
      %2744 = vmatpush1.msra.mxu0 0.0
      %2745 = vmatprep.subr.mxu0 0.0
      %2746 = vmatpush1.msra.mxu0 0.0
      %2747 = vmatprep.subr.mxu0 0.0
      %2748 = vmatpush1.msra.mxu0 0.0
      %2749 = vmatprep.subr.mxu0 0.0
      %2750 = vmatpush1.msra.mxu0 0.0
      %2751 = vmatprep.subr.mxu0 0.0
      %2752 = vmatpush1.msra.mxu0 0.0
      %2753 = vmatprep.subr.mxu0 0.0
      %2754 = vmatpush1.msra.mxu0 0.0
      %2755 = vmatprep.subr.mxu0 0.0
      %2756 = vmatpush1.msra.mxu0 0.0
      %2757 = vmatprep.subr.mxu0 0.0
      %2758 = vmatpush1.msra.mxu0 0.0
      %2759 = vmatprep.subr.mxu0 0.0
      %2760 = vmatpush1.msra.mxu0 0.0
      %2761 = vmatprep.subr.mxu0 0.0
      %2762 = vmatpush1.msra.mxu0 0.0
      %2763 = vmatprep.mubr.f32.mxu0 0.0
      %2764 = vmatmul.mubr.f32.gmra.mrb[0].mxu0 %v2315
      %v2765 = vpop.f32.mrb[0].mxu0
      %v2766 = vadd.f32 %v2541, %v2765
      %v2767 = vpop.f32.mrb[0].mxu0
      %2768 = vmatprep.mubr.f32.mxu0 0.0
      %2769 = vmatmul.mubr.f32.gmra.mrb[0].mxu0 %v2317
      %v2770 = vpop.f32.mrb[0].mxu0
      %v2771 = vadd.f32 %v2546, %v2770
      %v2772 = vpop.f32.mrb[0].mxu0
      %2773 = vmatprep.mubr.f32.mxu0 0.0
      %2774 = vmatmul.mubr.f32.gmra.mrb[0].mxu0 %v2320
      %v2775 = vpop.f32.mrb[0].mxu0
      %v2776 = vadd.f32 %v2551, %v2775
      %v2777 = vpop.f32.mrb[0].mxu0
      %2778 = vmatprep.mubr.f32.mxu0 0.0
      %2779 = vmatmul.mubr.f32.gmra.mrb[0].mxu0 %v2322
      %v2780 = vpop.f32.mrb[0].mxu0
      %v2781 = vadd.f32 %v2556, %v2780
      %v2782 = vpop.f32.mrb[0].mxu0
      %2783 = vmatprep.mubr.f32.mxu0 0.0
      %2784 = vmatmul.mubr.f32.gmra.mrb[0].mxu0 %v2325
      %v2785 = vpop.f32.mrb[0].mxu0
      %v2786 = vadd.f32 %v2561, %v2785
      %v2787 = vpop.f32.mrb[0].mxu0
      %2788 = vmatprep.mubr.f32.mxu0 0.0
      %2789 = vmatmul.mubr.f32.gmra.mrb[0].mxu0 %v2327
      %v2790 = vpop.f32.mrb[0].mxu0
      %v2791 = vadd.f32 %v2566, %v2790
      %v2792 = vpop.f32.mrb[0].mxu0
      %2793 = vmatprep.mubr.f32.mxu0 0.0
      %2794 = vmatmul.mubr.f32.gmra.mrb[0].mxu0 %v2330
      %v2795 = vpop.f32.mrb[0].mxu0
      %v2796 = vadd.f32 %v2571, %v2795
      %v2797 = vpop.f32.mrb[0].mxu0
      %2798 = vmatprep.mubr.f32.mxu0 0.0
      %2799 = vmatmul.mubr.f32.gmra.mrb[0].mxu0 %v2332
      %v2800 = vpop.f32.mrb[0].mxu0
      %v2801 = vadd.f32 %v2576, %v2800
      %v2802 = vpop.f32.mrb[0].mxu0
      %2803 = vmatprep.mubr.f32.mxu0 0.0
      %2804 = vmatmul.mubr.f32.gmra.mrb[0].mxu0 %v2335
      %v2805 = vpop.f32.mrb[0].mxu0
      %v2806 = vadd.f32 %v2581, %v2805
      %v2807 = vpop.f32.mrb[0].mxu0
      %2808 = vmatprep.mubr.f32.mxu0 0.0
      %2809 = vmatmul.mubr.f32.gmra.mrb[0].mxu0 %v2337
      %v2810 = vpop.f32.mrb[0].mxu0
      %v2811 = vadd.f32 %v2586, %v2810
      %v2812 = vpop.f32.mrb[0].mxu0
      %2813 = vmatprep.mubr.f32.mxu0 0.0
      %2814 = vmatmul.mubr.f32.gmra.mrb[0].mxu0 %v2340
      %v2815 = vpop.f32.mrb[0].mxu0
      %v2816 = vadd.f32 %v2591, %v2815
      %v2817 = vpop.f32.mrb[0].mxu0
      %2818 = vmatprep.mubr.f32.mxu0 0.0
      %2819 = vmatmul.mubr.f32.gmra.mrb[0].mxu0 %v2342
      %v2820 = vpop.f32.mrb[0].mxu0
      %v2821 = vadd.f32 %v2596, %v2820
      %v2822 = vpop.f32.mrb[0].mxu0
      %2823 = vmatprep.mubr.f32.mxu0 0.0
      %2824 = vmatmul.mubr.f32.gmra.mrb[0].mxu0 %v2345
      %v2825 = vpop.f32.mrb[0].mxu0
      %v2826 = vadd.f32 %v2601, %v2825
      %v2827 = vpop.f32.mrb[0].mxu0
      %2828 = vmatprep.mubr.f32.mxu0 0.0
      %2829 = vmatmul.mubr.f32.gmra.mrb[0].mxu0 %v2347
      %v2830 = vpop.f32.mrb[0].mxu0
      %v2831 = vadd.f32 %v2606, %v2830
      %v2832 = vpop.f32.mrb[0].mxu0
      %2833 = vmatprep.mubr.f32.mxu0 0.0
      %2834 = vmatmul.mubr.f32.gmra.mrb[0].mxu0 %v2350
      %v2835 = vpop.f32.mrb[0].mxu0
      %v2836 = vadd.f32 %v2611, %v2835
      %v2837 = vpop.f32.mrb[0].mxu0
      %2838 = vmatprep.mubr.f32.mxu0 0.0
      %2839 = vmatmul.mubr.f32.gmra.mrb[0].mxu0 %v2352
      %v2840 = vpop.f32.mrb[0].mxu0
      %v2841 = vadd.f32 %v2616, %v2840
      %v2842 = vpop.f32.mrb[0].mxu0
      %2843 = vmatprep.mubr.f32.mxu0 0.0
      %2844 = vmatmul.mubr.f32.gmra.mrb[0].mxu0 %v2355
      %v2845 = vpop.f32.mrb[0].mxu0
      %v2846 = vadd.f32 %v2621, %v2845
      %v2847 = vpop.f32.mrb[0].mxu0
      %2848 = vmatprep.mubr.f32.mxu0 0.0
      %2849 = vmatmul.mubr.f32.gmra.mrb[0].mxu0 %v2357
      %v2850 = vpop.f32.mrb[0].mxu0
      %v2851 = vadd.f32 %v2626, %v2850
      %v2852 = vpop.f32.mrb[0].mxu0
      %2853 = vmatprep.mubr.f32.mxu0 0.0
      %2854 = vmatmul.mubr.f32.gmra.mrb[0].mxu0 %v2360
      %v2855 = vpop.f32.mrb[0].mxu0
      %v2856 = vadd.f32 %v2631, %v2855
      %v2857 = vpop.f32.mrb[0].mxu0
      %2858 = vmatprep.mubr.f32.mxu0 0.0
      %2859 = vmatmul.mubr.f32.gmra.mrb[0].mxu0 %v2362
      %v2860 = vpop.f32.mrb[0].mxu0
      %v2861 = vadd.f32 %v2636, %v2860
      %v2862 = vpop.f32.mrb[0].mxu0
      %2863 = vmatprep.mubr.f32.mxu0 0.0
      %2864 = vmatmul.mubr.f32.gmra.mrb[0].mxu0 %v2365
      %v2865 = vpop.f32.mrb[0].mxu0
      %v2866 = vadd.f32 %v2641, %v2865
      %v2867 = vpop.f32.mrb[0].mxu0
      %2868 = vmatprep.mubr.f32.mxu0 0.0
      %2869 = vmatmul.mubr.f32.gmra.mrb[0].mxu0 %v2367
      %v2870 = vpop.f32.mrb[0].mxu0
      %v2871 = vadd.f32 %v2646, %v2870
      %v2872 = vpop.f32.mrb[0].mxu0
      %2873 = vmatprep.mubr.f32.mxu0 0.0
      %2874 = vmatmul.mubr.f32.gmra.mrb[0].mxu0 %v2370
      %v2875 = vpop.f32.mrb[0].mxu0
      %v2876 = vadd.f32 %v2651, %v2875
      %v2877 = vpop.f32.mrb[0].mxu0
      %2878 = vmatprep.mubr.f32.mxu0 0.0
      %2879 = vmatmul.mubr.f32.gmra.mrb[0].mxu0 %v2372
      %v2880 = vpop.f32.mrb[0].mxu0
      %v2881 = vadd.f32 %v2656, %v2880
      %v2882 = vpop.f32.mrb[0].mxu0
      %2883 = vmatprep.mubr.f32.mxu0 0.0
      %2884 = vmatmul.mubr.f32.gmra.mrb[0].mxu0 %v2375
      %v2885 = vpop.f32.mrb[0].mxu0
      %v2886 = vadd.f32 %v2661, %v2885
      %v2887 = vpop.f32.mrb[0].mxu0
      %2888 = vmatprep.mubr.f32.mxu0 0.0
      %2889 = vmatmul.mubr.f32.gmra.mrb[0].mxu0 %v2377
      %v2890 = vpop.f32.mrb[0].mxu0
      %v2891 = vadd.f32 %v2666, %v2890
      %v2892 = vpop.f32.mrb[0].mxu0
      %2893 = vmatprep.mubr.f32.mxu0 0.0
      %2894 = vmatmul.mubr.f32.gmra.mrb[0].mxu0 %v2380
      %v2895 = vpop.f32.mrb[0].mxu0
      %v2896 = vadd.f32 %v2671, %v2895
      %v2897 = vpop.f32.mrb[0].mxu0
      %2898 = vmatprep.mubr.f32.mxu0 0.0
      %2899 = vmatmul.mubr.f32.gmra.mrb[0].mxu0 %v2382
      %v2900 = vpop.f32.mrb[0].mxu0
      %v2901 = vadd.f32 %v2676, %v2900
      %v2902 = vpop.f32.mrb[0].mxu0
      %2903 = vmatprep.mubr.f32.mxu0 0.0
      %2904 = vmatmul.mubr.f32.gmra.mrb[0].mxu0 %v2385
      %v2905 = vpop.f32.mrb[0].mxu0
      %v2906 = vadd.f32 %v2681, %v2905
      %v2907 = vpop.f32.mrb[0].mxu0
      %2908 = vmatprep.mubr.f32.mxu0 0.0
      %2909 = vmatmul.mubr.f32.gmra.mrb[0].mxu0 %v2387
      %v2910 = vpop.f32.mrb[0].mxu0
      %v2911 = vadd.f32 %v2686, %v2910
      %v2912 = vpop.f32.mrb[0].mxu0
      %2913 = vmatprep.mubr.f32.mxu0 0.0
      %2914 = vmatmul.mubr.f32.gmra.mrb[0].mxu0 %v2390
      %v2915 = vpop.f32.mrb[0].mxu0
      %v2916 = vadd.f32 %v2691, %v2915
      %v2917 = vpop.f32.mrb[0].mxu0
      %2918 = vmatprep.mubr.f32.mxu0 0.0
      %2919 = vmatmul.mubr.f32.gmra.mrb[0].mxu0 %v2392
      %v2920 = vpop.f32.mrb[0].mxu0
      %v2921 = vadd.f32 %v2696, %v2920
      %v2922 = vpop.f32.mrb[0].mxu0
      %2923 = vdwg.mxu0
      %v2924 = vadd.f32 %v1946, %v2766
      %v2925 = vadd.f32 %v1951, %v2771
      %v2926 = vadd.f32 %v1956, %v2776
      %v2927 = vadd.f32 %v1961, %v2781
      %v2928 = vadd.f32 %v1966, %v2786
      %v2929 = vadd.f32 %v1971, %v2791
      %v2930 = vadd.f32 %v1976, %v2796
      %v2931 = vadd.f32 %v1981, %v2801
      %v2932 = vadd.f32 %v1986, %v2806
      %v2933 = vadd.f32 %v1991, %v2811
      %v2934 = vadd.f32 %v1996, %v2816
      %v2935 = vadd.f32 %v2001, %v2821
      %v2936 = vadd.f32 %v2006, %v2826
      %v2937 = vadd.f32 %v2011, %v2831
      %v2938 = vadd.f32 %v2016, %v2836
      %v2939 = vadd.f32 %v2021, %v2841
      %v2940 = vadd.f32 %v2026, %v2846
      %v2941 = vadd.f32 %v2031, %v2851
      %v2942 = vadd.f32 %v2036, %v2856
      %v2943 = vadd.f32 %v2041, %v2861
      %v2944 = vadd.f32 %v2046, %v2866
      %v2945 = vadd.f32 %v2051, %v2871
      %v2946 = vadd.f32 %v2056, %v2876
      %v2947 = vadd.f32 %v2061, %v2881
      %v2948 = vadd.f32 %v2066, %v2886
      %v2949 = vadd.f32 %v2071, %v2891
      %v2950 = vadd.f32 %v2076, %v2896
      %v2951 = vadd.f32 %v2081, %v2901
      %v2952 = vadd.f32 %v2086, %v2906
      %v2953 = vadd.f32 %v2091, %v2911
      %v2954 = vadd.f32 %v2096, %v2916
      %v2955 = vadd.f32 %v2101, %v2921
      %2956 = vst [vmem:[%s231] sm:$0xff] %v2924
      %2957 = vst [vmem:[%s231 + $0x8] sm:$0xff] %v2925
      %2958 = vst [vmem:[%s231 + $0x10] sm:$0xff] %v2926
      %2959 = vst [vmem:[%s231 + $0x18] sm:$0xff] %v2927
      %2960 = vst [vmem:[%s231 + $0x20] sm:$0xff] %v2928
      %2961 = vst [vmem:[%s231 + $0x28] sm:$0xff] %v2929
      %2962 = vst [vmem:[%s231 + $0x30] sm:$0xff] %v2930
      %2963 = vst [vmem:[%s231 + $0x38] sm:$0xff] %v2931
      %2964 = vst [vmem:[%s231 + $0x40] sm:$0xff] %v2932
      %2965 = vst [vmem:[%s231 + $0x48] sm:$0xff] %v2933
      %2966 = vst [vmem:[%s231 + $0x50] sm:$0xff] %v2934
      %2967 = vst [vmem:[%s231 + $0x58] sm:$0xff] %v2935
      %2968 = vst [vmem:[%s231 + $0x60] sm:$0xff] %v2936
      %2969 = vst [vmem:[%s231 + $0x68] sm:$0xff] %v2937
      %2970 = vst [vmem:[%s231 + $0x70] sm:$0xff] %v2938
      %2971 = vst [vmem:[%s231 + $0x78] sm:$0xff] %v2939
      %2972 = vst [vmem:[%s231 + $0x80] sm:$0xff] %v2940
      %2973 = vst [vmem:[%s231 + $0x88] sm:$0xff] %v2941
      %2974 = vst [vmem:[%s231 + $0x90] sm:$0xff] %v2942
      %2975 = vst [vmem:[%s231 + $0x98] sm:$0xff] %v2943
      %2976 = vst [vmem:[%s231 + $0xa0] sm:$0xff] %v2944
      %2977 = vst [vmem:[%s231 + $0xa8] sm:$0xff] %v2945
      %2978 = vst [vmem:[%s231 + $0xb0] sm:$0xff] %v2946
      %2979 = vst [vmem:[%s231 + $0xb8] sm:$0xff] %v2947
      %2980 = vst [vmem:[%s231 + $0xc0] sm:$0xff] %v2948
      %2981 = vst [vmem:[%s231 + $0xc8] sm:$0xff] %v2949
      %2982 = vst [vmem:[%s231 + $0xd0] sm:$0xff] %v2950
      %2983 = vst [vmem:[%s231 + $0xd8] sm:$0xff] %v2951
      %2984 = vst [vmem:[%s231 + $0xe0] sm:$0xff] %v2952
      %2985 = vst [vmem:[%s231 + $0xe8] sm:$0xff] %v2953
      %2986 = vst [vmem:[%s231 + $0xf0] sm:$0xff] %v2954
      %2987 = vst [vmem:[%s231 + $0xf8] sm:$0xff] %v2955
      %v2988 = vadd.f32 %v2924, %v2925
      %v2989 = vadd.f32 %v2988, %v2926
      %v2990 = vadd.f32 %v2989, %v2927
      %v2991 = vadd.f32 %v2990, %v2928
      %v2992 = vadd.f32 %v2991, %v2929
      %v2993 = vadd.f32 %v2992, %v2930
      %v2994 = vadd.f32 %v2993, %v2931
      %v2995 = vadd.f32 %v2994, %v2932
      %v2996 = vadd.f32 %v2995, %v2933
      %v2997 = vadd.f32 %v2996, %v2934
      %v2998 = vadd.f32 %v2997, %v2935
      %v2999 = vadd.f32 %v2998, %v2936
      %v3000 = vadd.f32 %v2999, %v2937
      %v3001 = vadd.f32 %v3000, %v2938
      %v3002 = vadd.f32 %v3001, %v2939
      %v3003 = vadd.f32 %v3002, %v2940
      %v3004 = vadd.f32 %v3003, %v2941
      %v3005 = vadd.f32 %v3004, %v2942
      %v3006 = vadd.f32 %v3005, %v2943
      %v3007 = vadd.f32 %v3006, %v2944
      %v3008 = vadd.f32 %v3007, %v2945
      %v3009 = vadd.f32 %v3008, %v2946
      %v3010 = vadd.f32 %v3009, %v2947
      %v3011 = vadd.f32 %v3010, %v2948
      %v3012 = vadd.f32 %v3011, %v2949
      %v3013 = vadd.f32 %v3012, %v2950
      %v3014 = vadd.f32 %v3013, %v2951
      %v3015 = vadd.f32 %v3014, %v2952
      %v3016 = vadd.f32 %v3015, %v2953
      %v3017 = vadd.f32 %v3016, %v2954
      %v3018 = vadd.f32 %v3017, %v2955
      %v3019 = vrot.slane %v3018, 4
      %v3020 = vadd.f32 %v3018, %v3019
      %v3021 = vrot.slane %v3020, 2
      %v3022 = vadd.f32 %v3020, %v3021
      %v3023 = vrot.slane %v3022, 1
      %v3024 = vadd.f32 %v3022, %v3023
      %v3025 = vmul.f32 %v2924, %v2924
      %v3026 = vmul.f32 %v2925, %v2925
      %v3027 = vmul.f32 %v2926, %v2926
      %v3028 = vmul.f32 %v2927, %v2927
      %v3029 = vmul.f32 %v2928, %v2928
      %v3030 = vmul.f32 %v2929, %v2929
      %v3031 = vmul.f32 %v2930, %v2930
      %v3032 = vmul.f32 %v2931, %v2931
      %v3033 = vmul.f32 %v2932, %v2932
      %v3034 = vmul.f32 %v2933, %v2933
      %v3035 = vmul.f32 %v2934, %v2934
      %v3036 = vmul.f32 %v2935, %v2935
      %v3037 = vmul.f32 %v2936, %v2936
      %v3038 = vmul.f32 %v2937, %v2937
      %v3039 = vmul.f32 %v2938, %v2938
      %v3040 = vmul.f32 %v2939, %v2939
      %v3041 = vmul.f32 %v2940, %v2940
      %v3042 = vmul.f32 %v2941, %v2941
      %v3043 = vmul.f32 %v2942, %v2942
      %v3044 = vmul.f32 %v2943, %v2943
      %v3045 = vmul.f32 %v2944, %v2944
      %v3046 = vmul.f32 %v2945, %v2945
      %v3047 = vmul.f32 %v2946, %v2946
      %v3048 = vmul.f32 %v2947, %v2947
      %v3049 = vmul.f32 %v2948, %v2948
      %v3050 = vmul.f32 %v2949, %v2949
      %v3051 = vmul.f32 %v2950, %v2950
      %v3052 = vmul.f32 %v2951, %v2951
      %v3053 = vmul.f32 %v2952, %v2952
      %v3054 = vmul.f32 %v2953, %v2953
      %v3055 = vmul.f32 %v2954, %v2954
      %v3056 = vmul.f32 %v2955, %v2955
      %v3057 = vadd.f32 %v3025, %v3026
      %v3058 = vadd.f32 %v3057, %v3027
      %v3059 = vadd.f32 %v3058, %v3028
      %v3060 = vadd.f32 %v3059, %v3029
      %v3061 = vadd.f32 %v3060, %v3030
      %v3062 = vadd.f32 %v3061, %v3031
      %v3063 = vadd.f32 %v3062, %v3032
      %v3064 = vadd.f32 %v3063, %v3033
      %v3065 = vadd.f32 %v3064, %v3034
      %v3066 = vadd.f32 %v3065, %v3035
      %v3067 = vadd.f32 %v3066, %v3036
      %v3068 = vadd.f32 %v3067, %v3037
      %v3069 = vadd.f32 %v3068, %v3038
      %v3070 = vadd.f32 %v3069, %v3039
      %v3071 = vadd.f32 %v3070, %v3040
      %v3072 = vadd.f32 %v3071, %v3041
      %v3073 = vadd.f32 %v3072, %v3042
      %v3074 = vadd.f32 %v3073, %v3043
      %v3075 = vadd.f32 %v3074, %v3044
      %v3076 = vadd.f32 %v3075, %v3045
      %v3077 = vadd.f32 %v3076, %v3046
      %v3078 = vadd.f32 %v3077, %v3047
      %v3079 = vadd.f32 %v3078, %v3048
      %v3080 = vadd.f32 %v3079, %v3049
      %v3081 = vadd.f32 %v3080, %v3050
      %v3082 = vadd.f32 %v3081, %v3051
      %v3083 = vadd.f32 %v3082, %v3052
      %v3084 = vadd.f32 %v3083, %v3053
      %v3085 = vadd.f32 %v3084, %v3054
      %v3086 = vadd.f32 %v3085, %v3055
      %v3087 = vadd.f32 %v3086, %v3056
      %v3088 = vrot.slane %v3087, 4
      %v3089 = vadd.f32 %v3087, %v3088
      %v3090 = vrot.slane %v3089, 2
      %v3091 = vadd.f32 %v3089, %v3090
      %v3092 = vrot.slane %v3091, 1
      %v3093 = vadd.f32 %v3091, %v3092
      %vm3094 = vcmask 1040384
      %v3095 = vsel %vm3094, %v3024, %v3093
      %3096 = vst [vmem:[%s235] sm:$0x3] %v3095
      %p3097 = scmp.lt.s32.totalorder %s17, 1
      %s3098 = scalar_select %p3097, %s17, 1
      %s3099 = smul.addr %s3098, 32
      %s3100 = smul.addr %s3099, 8
      %s3101 = scalar_lea.vmem %s4, %s3100
      %p3102 = scmp.lt.s32.totalorder %s17, 1
      %s3103 = scalar_select %p3102, %s17, 1
      %s3104 = smul.addr %s3103, 2
      %s3105 = scalar_lea.vmem %s5, %s3104
      // Predicated region
      $region37: #{basic_block_forward.4} parent=35 // pred_check
        %p3106 = pneg %p124
      $region38: #{basic_block_forward.4} parent=35 // pred_check_branch
        %3108 = sbr.rel (%p3106) target = $region40
      $region39: #{basic_block_forward.4} parent=35 // pred_region
        _
      $region40: #{basic_block_forward.4} parent=35 // pred_fallthru
        _
      // Predicated region
      $region41: #{basic_block_forward.4} parent=35 // pred_check
        %p3109 = pneg %p150
      $region42: #{basic_block_forward.4} parent=35 // pred_check_branch
        %3111 = sbr.rel (%p3109) target = $region44
      $region43: #{basic_block_forward.4} parent=35 // pred_region
        _
      $region44: #{basic_block_forward.4} parent=35 // pred_fallthru
        _
    $region36: #{basic_block_forward.4} parent=5 // pred_fallthru
      _
    %p3112 = scmp.le.s32.totalorder 2, %s12
    // Predicated region
    $region45: #{basic_block_forward.4} parent=5 // pred_check
      %p3113 = pneg %p3112
    $region46: #{basic_block_forward.4} parent=5 // pred_check_branch
      %3115 = sbr.rel (%p3113) target = $region48
    $region47: #{basic_block_forward.4} parent=5 // pred_region
      %s3116 = ssub.s32 %s12, 2
      // Predicated region
      $region49: #{basic_block_forward.4} parent=47 // pred_check
        %p3117 = pneg %p130
      $region50: #{basic_block_forward.4} parent=47 // pred_check_branch
        %3119 = sbr.rel (%p3117) target = $region52
      $region51: #{basic_block_forward.4} parent=47 // pred_region
        %p3120 = scmp.lt.s32.totalorder %s18, 1
        %s3121 = scalar_select %p3120, %s18, 1
        %s3122 = smul.addr %s3121, 32
        %s3123 = smul.addr %s3122, 8
        %s3124 = scalar_lea.vmem %s4, %s3123
      $region52: #{basic_block_forward.4} parent=47 // pred_fallthru
        _
      // Predicated region
      $region53: #{basic_block_forward.4} parent=47 // pred_check
        %p3125 = pneg %p156
      $region54: #{basic_block_forward.4} parent=47 // pred_check_branch
        %3127 = sbr.rel (%p3125) target = $region56
      $region55: #{basic_block_forward.4} parent=47 // pred_region
        %p3128 = scmp.lt.s32.totalorder %s18, 1
        %s3129 = scalar_select %p3128, %s18, 1
        %s3130 = smul.addr %s3129, 2
        %s3131 = scalar_lea.vmem %s5, %s3130
      $region56: #{basic_block_forward.4} parent=47 // pred_fallthru
        _
    $region48: #{basic_block_forward.4} parent=5 // pred_fallthru
      _
  $region6: #{basic_block_forward.4} parent=0 // loop_footer
    %s16 = sadd.s32 1, %s12
  $region7: #{basic_block_forward.4} parent=0 // loop_footer_branch
    %11 = sbr.rel target = $region3
  $region8: #{basic_block_forward.4} parent=0 // loop_exit
    _

</llo_original>
